<compile_context>
chip_gen: v5e
topology: v5e:2x2
jax: 0.10.0
libtpu: 0.0.40
codegen_flags: <defaults>
</compile_context>

<pallas_src>
import functools

import jax
import jax.numpy as jnp
from jax import lax
from jax.experimental import pallas as pl
from jax.experimental.pallas import tpu as pltpu

_HALO = 10          # halo of the widest separable conv (21 taps -> pad 10)
_PAD = _HALO + 2    # plus conv0's 5x5 padding (2)

_WEIGHT_NAMES = ("w0", "b0", "w0_1", "b0_1", "w0_2", "b0_2",
                 "w1_1", "b1_1", "w1_2", "b1_2", "w2_1", "b2_1", "w2_2", "b2_2",
                 "w3", "b3")


# ----------------------------------------------------------------------------
# Fused kernel
# ----------------------------------------------------------------------------
def _fused_attention_kernel(
        x_hbm,                                   # (N, H+2P, W+2P, C) zero-padded input, HBM
        w0_ref, b0_ref,                          # 5x5 depthwise:   (25, C), (1, C)
        w01_ref, b01_ref, w02_ref, b02_ref,      # 1x7 / 7x1
        w11_ref, b11_ref, w12_ref, b12_ref,      # 1x11 / 11x1
        w21_ref, b21_ref, w22_ref, b22_ref,      # 1x21 / 21x1
        w3_ref, b3_ref,                          # 1x1 conv: (C, C), (1, C)
        o_ref,                                   # (1, TH, W, C) output tile
        slab_ref, dma_sem, attn_ref, h_ref, s_ref,
        *, H, W, C, TH):
    RH = TH + 2 * _HALO            # attn rows needed by the vertical convs
    RW = W + 2 * _HALO             # attn cols needed by the horizontal convs
    SLAB_H = TH + 2 * _PAD

    b = pl.program_id(0)
    r = pl.program_id(1)
    n_row_tiles = pl.num_programs(1)
    slot = r % 2

    # ---- manual, double-buffered fetch of the padded input slab ----------------
    # start() and wait() build the SAME descriptor per slot (robustness fix).
    def slab_copy(row_tile, dst_slot):
        return pltpu.make_async_copy(
            x_hbm.at[b, pl.ds(row_tile * TH, SLAB_H), :, :],
            slab_ref.at[dst_slot],
            dma_sem.at[dst_slot])

    @pl.when(r == 0)               # prime the pipeline on the first row tile of each image
    def _():
        slab_copy(r, slot).start()

    slab_copy(r, slot).wait()      # wait for the current tile's slab

    @pl.when(r + 1 < n_row_tiles)  # prefetch the next row tile while we compute
    def _():
        slab_copy(r + 1, 1 - slot).start()
    # TODO(synk): cross-batch prefetch of the next image's first slab is intentionally
    # skipped: with the batch axis marked "parallel" (megacore) the next batch may run
    # on the other TensorCore and the dangling DMA/semaphore would never be consumed.

    cur = slab_ref.at[slot]        # (SLAB_H, W + 2P, C) view of the current slab
    row0 = r * TH - _HALO          # absolute image row of attn row 0

    # ---- conv0: 5x5 depthwise, one attn row per iteration ----------------------
    # Accumulate the 25 taps in a register-sized (RW, C) local value; single store.
    w0 = w0_ref[...]               # (25, C)
    b0 = b0_ref[...]               # (1, C)
    col_id = jax.lax.broadcasted_iota(jnp.int32, (RW, C), 0)
    col_ok = (col_id >= _HALO) & (col_id < _HALO + W)     # attn support along width

    def conv0_row(i, carry):
        acc = None
        for di in range(5):
            for dj in range(5):
                tap = cur[i + di, dj:dj + RW, :] * w0[di * 5 + dj][None, :]
                acc = tap if acc is None else acc + tap
        rv = (row0 + i >= 0) & (row0 + i < H)             # attn support along height
        attn_ref[i] = jnp.where(col_ok & rv, acc + b0, 0.0)
        return carry

    lax.fori_loop(0, RH, conv0_row, 0)

    # running sum of the four attention terms (starts with attn itself)
    s_ref[...] = attn_ref[_HALO:_HALO + TH, _HALO:_HALO + W, :]

    def run_branch(wh_ref, bh_ref, wv_ref, bv_ref, L):
        pad_k = (L - 1) // 2
        wh = wh_ref[...]
        bh = bh_ref[...]
        wv = wv_ref[...]
        bv = bv_ref[...]

        # 1xL horizontal depthwise on attn -> h_ref; only the rows the vertical
        # conv will read are computed.  Taps accumulate in a (W, C) local value.
        def h_row(i, carry):
            hacc = None
            for d in range(L):
                off = _HALO - pad_k + d
                tap = attn_ref[i, off:off + W, :] * wh[d][None, :]
                hacc = tap if hacc is None else hacc + tap
            rv = (row0 + i >= 0) & (row0 + i < H)          # zero padding for the Lx1 conv
            h_ref[i] = jnp.where(rv, hacc + bh, 0.0)
            return carry

        lax.fori_loop(_HALO - pad_k, TH + _HALO + pad_k, h_row, 0)

        # Lx1 vertical depthwise on h -> accumulate into the branch sum (one RMW
        # of a (W, C) row per output row, taps accumulate in registers).
        def v_row(t, carry):
            vacc = None
            for d in range(L):
                tap = h_ref[t + _HALO - pad_k + d] * wv[d][None, :]
                vacc = tap if vacc is None else vacc + tap
            s_ref[t] = s_ref[t] + vacc + bv
            return carry

        lax.fori_loop(0, TH, v_row, 0)

    run_branch(w01_ref, b01_ref, w02_ref, b02_ref, 7)
    run_branch(w11_ref, b11_ref, w12_ref, b12_ref, 11)
    run_branch(w21_ref, b21_ref, w22_ref, b22_ref, 21)

    # ---- conv3 (1x1, dense over channels, MXU) fused with the `attn * u` gate ---
    s = s_ref[...].reshape(TH * W, C)
    y = jnp.dot(s, w3_ref[...], preferred_element_type=jnp.float32) + b3_ref[...]
    u = cur[_PAD:_PAD + TH, _PAD:_PAD + W, :].reshape(TH * W, C)   # u = x.clone()
    o_ref[0] = (y * u).reshape(TH, W, C)


# ----------------------------------------------------------------------------
# Wrapper
# ----------------------------------------------------------------------------
def _vmem_capacity_bytes():
    try:
        info = pltpu.get_tpu_info()
        cap = getattr(info, "vmem_capacity_bytes", None)
        if cap:
            return int(cap)
    except Exception:
        pass
    return 64 * 1024 * 1024        # conservative default (v7x per-core VMEM)


def _pick_row_tile(H, W, C, vmem_capacity):
    """Largest divisor of H whose scratch footprint fits the VMEM budget."""
    def pad8(n):
        return -(-n // 8) * 8

    cp = -(-C // 128) * 128        # lane padding of the channel axis
    budget = int(vmem_capacity * 0.35)
    best = 1
    for t in range(1, min(H, 256) + 1):
        if H % t:
            continue
        rh, rw = t + 2 * _HALO, W + 2 * _HALO
        need = 4 * cp * (
            2 * (t + 2 * _PAD) * pad8(W + 2 * _PAD)   # input slab double buffer
            + rh * pad8(rw)                            # attn scratch
            + rh * pad8(W)                             # per-branch horizontal scratch
            + 3 * t * pad8(W)                          # branch sum + out double buffer
            + rh * pad8(rw))                           # headroom (spill temps etc.)
        if need <= budget:
            best = t
    return best


def _attention_pallas(x_nhwc, p):
    N, H, W, C = x_nhwc.shape
    cap = _vmem_capacity_bytes()
    TH = _pick_row_tile(H, W, C, cap)

    x_pad = jnp.pad(x_nhwc, ((0, 0), (_PAD, _PAD), (_PAD, _PAD), (0, 0)))
    weights = [p[n] for n in _WEIGHT_NAMES]
    weight_specs = [pl.BlockSpec(w.shape, lambda b, r: (0, 0)) for w in weights]

    grid_spec = pltpu.PrefetchScalarGridSpec(
        num_scalar_prefetch=0,
        grid=(N, H // TH),
        in_specs=[pl.BlockSpec(memory_space=pl.ANY)] + weight_specs,  # padded x stays in HBM
        out_specs=pl.BlockSpec((1, TH, W, C), lambda b, r: (b, r, 0, 0)),
        scratch_shapes=[
            pltpu.VMEM((2, TH + 2 * _PAD, W + 2 * _PAD, C), jnp.float32),  # input slab x2
            pltpu.SemaphoreType.DMA((2,)),
            pltpu.VMEM((TH + 2 * _HALO, W + 2 * _HALO, C), jnp.float32),   # conv0 output
            pltpu.VMEM((TH + 2 * _HALO, W, C), jnp.float32),               # branch horizontal
            pltpu.VMEM((TH, W, C), jnp.float32),                           # branch sum
        ])

    kernel = functools.partial(_fused_attention_kernel, H=H, W=W, C=C, TH=TH)
    return pl.pallas_call(
        kernel,
        out_shape=jax.ShapeDtypeStruct((N, H, W, C), jnp.float32),
        grid_spec=grid_spec,
        compiler_params=pltpu.CompilerParams(
            dimension_semantics=("parallel", "arbitrary"),
            vmem_limit_bytes=int(cap * 0.7)),
    )(x_pad, *weights)


def _pack_pair_params(p):
    """Duplicate depthwise weights and make conv3 block-diagonal for lane packing."""
    def dup(a):
        return jnp.concatenate([a, a], axis=-1)

    q = {k: dup(p[k]) for k in _WEIGHT_NAMES if k not in ("w3", "b3")}
    w3 = p["w3"]
    z = jnp.zeros_like(w3)
    q["w3"] = jnp.concatenate(
        [jnp.concatenate([w3, z], axis=1), jnp.concatenate([z, w3], axis=1)], axis=0)
    q["b3"] = dup(p["b3"])
    return q


def attention_forward(x_nchw, params):
    """AttentionModule.forward — NCHW in / NCHW out, like the PyTorch module."""
    x = jnp.transpose(x_nchw, (0, 2, 3, 1)).astype(jnp.float32)   # NHWC (C on lanes)
    N, H, W, C = x.shape
    # Lane packing: with C <= 64 and an even batch, stack image pairs on the channel
    # axis so all vregs / VMEM tiles / stores and the MXU matmul are 128-lane dense.
    if N % 2 == 0 and N > 1 and 2 * C <= 128:
        xp = (x.reshape(N // 2, 2, H, W, C)
                .transpose(0, 2, 3, 1, 4)
                .reshape(N // 2, H, W, 2 * C))
        out = _attention_pallas(xp, _pack_pair_params(params))
        out = (out.reshape(N // 2, H, W, 2, C)
                  .transpose(0, 3, 1, 2, 4)
                  .reshape(N, H, W, C))
    else:
        out = _attention_pallas(x, params)
    return jnp.transpose(out, (0, 3, 1, 2))


# ----------------------------------------------------------------------------
# Parameters + pure-JAX reference (for validation)
# ----------------------------------------------------------------------------
def init_params(key, dim):
    ks = jax.random.split(key, 16)

    def conv_w(k, taps):
        return jax.random.normal(k, (taps, dim), jnp.float32) * (1.0 / (taps ** 0.5))

    def bias(k):
        return 0.1 * jax.random.normal(k, (1, dim), jnp.float32)

    p = {}
    p["w0"], p["b0"] = conv_w(ks[0], 25), bias(ks[1])
    p["w0_1"], p["b0_1"] = conv_w(ks[2], 7), bias(ks[3])
    p["w0_2"], p["b0_2"] = conv_w(ks[4], 7), bias(ks[5])
    p["w1_1"], p["b1_1"] = conv_w(ks[6], 11), bias(ks[7])
    p["w1_2"], p["b1_2"] = conv_w(ks[8], 11), bias(ks[9])
    p["w2_1"], p["b2_1"] = conv_w(ks[10], 21), bias(ks[11])
    p["w2_2"], p["b2_2"] = conv_w(ks[12], 21), bias(ks[13])
    p["w3"] = jax.random.normal(ks[14], (dim, dim), jnp.float32) * (1.0 / (dim ** 0.5))
    p["b3"] = bias(ks[15])
    return p


def attention_ref(x_nchw, p):
    x = jnp.transpose(x_nchw, (0, 2, 3, 1)).astype(jnp.float32)
    N, H, W, C = x.shape
    u = x
    xp = jnp.pad(x, ((0, 0), (2, 2), (2, 2), (0, 0)))
    attn = jnp.zeros_like(x)
    for di in range(5):
        for dj in range(5):
            attn = attn + xp[:, di:di + H, dj:dj + W, :] * p["w0"][di * 5 + dj]
    attn = attn + p["b0"][0]

    def sep(a, wh, bh, wv, bv, L):
        pd = (L - 1) // 2
        ap = jnp.pad(a, ((0, 0), (0, 0), (pd, pd), (0, 0)))
        h = jnp.zeros_like(a)
        for d in range(L):
            h = h + ap[:, :, d:d + W, :] * wh[d]
        h = h + bh[0]
        hp = jnp.pad(h, ((0, 0), (pd, pd), (0, 0), (0, 0)))
        v = jnp.zeros_like(a)
        for d in range(L):
            v = v + hp[:, d:d + H, :, :] * wv[d]
        return v + bv[0]

    s = (attn
         + sep(attn, p["w0_1"], p["b0_1"], p["w0_2"], p["b0_2"], 7)
         + sep(attn, p["w1_1"], p["b1_1"], p["w1_2"], p["b1_2"], 11)
         + sep(attn, p["w2_1"], p["b2_1"], p["w2_2"], p["b2_2"], 21))
    y = jnp.einsum("nhwc,cd->nhwd", s, p["w3"],
                   precision=jax.lax.Precision.HIGHEST) + p["b3"][0]
    return jnp.transpose(y * u, (0, 3, 1, 2))


# ----------------------------------------------------------------------------
if __name__ == "__main__":
    key = jax.random.PRNGKey(0)
    kp, kx = jax.random.split(key)
    dim = 64
    params = init_params(kp, dim)
    x = jax.random.normal(kx, (2, dim, 32, 32), jnp.float32)      # NCHW input

    fwd = jax.jit(lambda inp: attention_forward(inp, params))
    out = fwd(x)
    jax.block_until_ready(out)

    assert out.shape == x.shape, out.shape
    assert bool(jnp.all(jnp.isfinite(out)))

    ref = attention_ref(x, params)
    err = float(jnp.max(jnp.abs(out - ref)))
    scale = float(jnp.max(jnp.abs(ref)))
    assert err <= 1e-3 * scale + 1e-3, (err, scale)
    print("KERNEL_OK")
</pallas_src>

<mosaic_0001>
module attributes {stable_mosaic.version = 11 : i64} {
  func.func @_fused_attention_kernel(%arg0: i32, %arg1: i32, %arg2: memref<1x56x56x128xf32, #tpu.memory_space<any>>, %arg3: memref<25x128xf32, #tpu.memory_space<vmem>>, %arg4: memref<1x128xf32, #tpu.memory_space<vmem>>, %arg5: memref<7x128xf32, #tpu.memory_space<vmem>>, %arg6: memref<1x128xf32, #tpu.memory_space<vmem>>, %arg7: memref<7x128xf32, #tpu.memory_space<vmem>>, %arg8: memref<1x128xf32, #tpu.memory_space<vmem>>, %arg9: memref<11x128xf32, #tpu.memory_space<vmem>>, %arg10: memref<1x128xf32, #tpu.memory_space<vmem>>, %arg11: memref<11x128xf32, #tpu.memory_space<vmem>>, %arg12: memref<1x128xf32, #tpu.memory_space<vmem>>, %arg13: memref<21x128xf32, #tpu.memory_space<vmem>>, %arg14: memref<1x128xf32, #tpu.memory_space<vmem>>, %arg15: memref<21x128xf32, #tpu.memory_space<vmem>>, %arg16: memref<1x128xf32, #tpu.memory_space<vmem>>, %arg17: memref<128x128xf32, #tpu.memory_space<vmem>>, %arg18: memref<1x128xf32, #tpu.memory_space<vmem>>, %arg19: memref<1x32x32x128xf32, #tpu.memory_space<vmem>>, %arg20: memref<2x56x56x128xf32, #tpu.memory_space<vmem>>, %arg21: memref<2x!tpu.dma_semaphore, #tpu.memory_space<semaphore_mem>>, %arg22: memref<52x52x128xf32, #tpu.memory_space<vmem>>, %arg23: memref<52x32x128xf32, #tpu.memory_space<vmem>>, %arg24: memref<32x32x128xf32, #tpu.memory_space<vmem>>) attributes {dimension_semantics = [#tpu.dimension_semantics<parallel>, #tpu.dimension_semantics<arbitrary>], iteration_bounds = array<i64: 1, 1>, scalar_prefetch = 0 : i64, scratch_operands = 5 : i64, tpu.core_type = #tpu.core_type<tc>, window_params = [{}, {pipeline_mode = #tpu.pipeline_mode<synchronous>, transform_indices = @transform_1, window_bounds = array<i64: 25, 128>}, {pipeline_mode = #tpu.pipeline_mode<synchronous>, transform_indices = @transform_2, window_bounds = array<i64: 1, 128>}, {pipeline_mode = #tpu.pipeline_mode<synchronous>, transform_indices = @transform_3, window_bounds = array<i64: 7, 128>}, {pipeline_mode = #tpu.pipeline_mode<synchronous>, transform_indices = @transform_4, window_bounds = array<i64: 1, 128>}, {pipeline_mode = #tpu.pipeline_mode<synchronous>, transform_indices = @transform_5, window_bounds = array<i64: 7, 128>}, {pipeline_mode = #tpu.pipeline_mode<synchronous>, transform_indices = @transform_6, window_bounds = array<i64: 1, 128>}, {pipeline_mode = #tpu.pipeline_mode<synchronous>, transform_indices = @transform_7, window_bounds = array<i64: 11, 128>}, {pipeline_mode = #tpu.pipeline_mode<synchronous>, transform_indices = @transform_8, window_bounds = array<i64: 1, 128>}, {pipeline_mode = #tpu.pipeline_mode<synchronous>, transform_indices = @transform_9, window_bounds = array<i64: 11, 128>}, {pipeline_mode = #tpu.pipeline_mode<synchronous>, transform_indices = @transform_10, window_bounds = array<i64: 1, 128>}, {pipeline_mode = #tpu.pipeline_mode<synchronous>, transform_indices = @transform_11, window_bounds = array<i64: 21, 128>}, {pipeline_mode = #tpu.pipeline_mode<synchronous>, transform_indices = @transform_12, window_bounds = array<i64: 1, 128>}, {pipeline_mode = #tpu.pipeline_mode<synchronous>, transform_indices = @transform_13, window_bounds = array<i64: 21, 128>}, {pipeline_mode = #tpu.pipeline_mode<synchronous>, transform_indices = @transform_14, window_bounds = array<i64: 1, 128>}, {pipeline_mode = #tpu.pipeline_mode<synchronous>, transform_indices = @transform_15, window_bounds = array<i64: 128, 128>}, {pipeline_mode = #tpu.pipeline_mode<synchronous>, transform_indices = @transform_16, window_bounds = array<i64: 1, 128>}, {transform_indices = @transform_17, window_bounds = array<i64: 1, 32, 32, 128>}]} {
    %c2_i32 = arith.constant 2 : i32
    %c0_i32 = arith.constant 0 : i32
    %0 = arith.cmpi eq, %c2_i32, %c0_i32 : i32
    %c1_i32 = arith.constant 1 : i32
    %1 = arith.select %0, %c1_i32, %c2_i32 : i32
    %2 = arith.remsi %arg1, %1 : i32
    %c0_i32_0 = arith.constant 0 : i32
    %3 = arith.cmpi ne, %2, %c0_i32_0 : i32
    %c0_i32_1 = arith.constant 0 : i32
    %4 = arith.cmpi slt, %2, %c0_i32_1 : i32
    %c0_i32_2 = arith.constant 0 : i32
    %5 = arith.cmpi slt, %1, %c0_i32_2 : i32
    %6 = arith.xori %4, %5 : i1
    %7 = arith.andi %6, %3 : i1
    %8 = arith.addi %2, %1 : i32
    %9 = arith.select %7, %8, %2 : i32
    %c0_i32_3 = arith.constant 0 : i32
    %10 = arith.cmpi eq, %arg1, %c0_i32_3 : i32
    %11 = arith.extui %10 : i1 to i32
    %c0_i32_4 = arith.constant 0 : i32
    %12 = arith.cmpi ne, %11, %c0_i32_4 : i32
    scf.if %12 {
      %c32_i32_87 = arith.constant 32 : i32
      %71 = arith.muli %arg1, %c32_i32_87 : i32
      %c0_i32_88 = arith.constant 0 : i32
      %c0_i32_89 = arith.constant 0 : i32
      %72 = tpu.memref_slice %arg2[%arg0, %71, %c0_i32_88, %c0_i32_89] : memref<1x56x56x128xf32, #tpu.memory_space<any>> -> memref<1x56x56x128xf32, #tpu.memory_space<any>>
      %73 = tpu.memref_squeeze %72 : memref<1x56x56x128xf32, #tpu.memory_space<any>> -> memref<56x56x128xf32, #tpu.memory_space<any>>
      %c0_i32_90 = arith.constant 0 : i32
      %c0_i32_91 = arith.constant 0 : i32
      %c0_i32_92 = arith.constant 0 : i32
      %74 = tpu.memref_slice %arg20[%9, %c0_i32_90, %c0_i32_91, %c0_i32_92] : memref<2x56x56x128xf32, #tpu.memory_space<vmem>> -> memref<1x56x56x128xf32, #tpu.memory_space<vmem>>
      %75 = tpu.memref_squeeze %74 : memref<1x56x56x128xf32, #tpu.memory_space<vmem>> -> memref<56x56x128xf32, #tpu.memory_space<vmem>>
      %76 = tpu.memref_slice %arg21[%9] : memref<2x!tpu.dma_semaphore, #tpu.memory_space<semaphore_mem>> -> memref<1x!tpu.dma_semaphore, #tpu.memory_space<semaphore_mem>>
      %77 = tpu.memref_squeeze %76 : memref<1x!tpu.dma_semaphore, #tpu.memory_space<semaphore_mem>> -> memref<!tpu.dma_semaphore, #tpu.memory_space<semaphore_mem>>
      tpu.enqueue_dma source(%73 : memref<56x56x128xf32, #tpu.memory_space<any>>) target(%75 : memref<56x56x128xf32, #tpu.memory_space<vmem>>) target_semaphore(%77 : memref<!tpu.dma_semaphore, #tpu.memory_space<semaphore_mem>>)
    } else {
    }
    %c32_i32 = arith.constant 32 : i32
    %13 = arith.muli %arg1, %c32_i32 : i32
    %c0_i32_5 = arith.constant 0 : i32
    %c0_i32_6 = arith.constant 0 : i32
    %14 = tpu.memref_slice %arg2[%arg0, %13, %c0_i32_5, %c0_i32_6] : memref<1x56x56x128xf32, #tpu.memory_space<any>> -> memref<1x56x56x128xf32, #tpu.memory_space<any>>
    %15 = tpu.memref_squeeze %14 : memref<1x56x56x128xf32, #tpu.memory_space<any>> -> memref<56x56x128xf32, #tpu.memory_space<any>>
    %c0_i32_7 = arith.constant 0 : i32
    %c0_i32_8 = arith.constant 0 : i32
    %c0_i32_9 = arith.constant 0 : i32
    %16 = tpu.memref_slice %arg20[%9, %c0_i32_7, %c0_i32_8, %c0_i32_9] : memref<2x56x56x128xf32, #tpu.memory_space<vmem>> -> memref<1x56x56x128xf32, #tpu.memory_space<vmem>>
    %17 = tpu.memref_squeeze %16 : memref<1x56x56x128xf32, #tpu.memory_space<vmem>> -> memref<56x56x128xf32, #tpu.memory_space<vmem>>
    %18 = tpu.memref_slice %arg21[%9] : memref<2x!tpu.dma_semaphore, #tpu.memory_space<semaphore_mem>> -> memref<1x!tpu.dma_semaphore, #tpu.memory_space<semaphore_mem>>
    %19 = tpu.memref_squeeze %18 : memref<1x!tpu.dma_semaphore, #tpu.memory_space<semaphore_mem>> -> memref<!tpu.dma_semaphore, #tpu.memory_space<semaphore_mem>>
    tpu.wait_dma2 semaphore(%19 : memref<!tpu.dma_semaphore, #tpu.memory_space<semaphore_mem>>) src(%15 : memref<56x56x128xf32, #tpu.memory_space<any>>) dst(%17 : memref<56x56x128xf32, #tpu.memory_space<vmem>>)
    %c1_i32_10 = arith.constant 1 : i32
    %20 = arith.addi %arg1, %c1_i32_10 : i32
    %c1_i32_11 = arith.constant 1 : i32
    %21 = arith.cmpi slt, %20, %c1_i32_11 : i32
    %22 = arith.extui %21 : i1 to i32
    %c0_i32_12 = arith.constant 0 : i32
    %23 = arith.cmpi ne, %22, %c0_i32_12 : i32
    scf.if %23 {
      %c1_i32_87 = arith.constant 1 : i32
      %71 = arith.addi %arg1, %c1_i32_87 : i32
      %c1_i32_88 = arith.constant 1 : i32
      %72 = arith.subi %c1_i32_88, %9 : i32
      %c32_i32_89 = arith.constant 32 : i32
      %73 = arith.muli %71, %c32_i32_89 : i32
      %c0_i32_90 = arith.constant 0 : i32
      %c0_i32_91 = arith.constant 0 : i32
      %74 = tpu.memref_slice %arg2[%arg0, %73, %c0_i32_90, %c0_i32_91] : memref<1x56x56x128xf32, #tpu.memory_space<any>> -> memref<1x56x56x128xf32, #tpu.memory_space<any>>
      %75 = tpu.memref_squeeze %74 : memref<1x56x56x128xf32, #tpu.memory_space<any>> -> memref<56x56x128xf32, #tpu.memory_space<any>>
      %c0_i32_92 = arith.constant 0 : i32
      %c0_i32_93 = arith.constant 0 : i32
      %c0_i32_94 = arith.constant 0 : i32
      %76 = tpu.memref_slice %arg20[%72, %c0_i32_92, %c0_i32_93, %c0_i32_94] : memref<2x56x56x128xf32, #tpu.memory_space<vmem>> -> memref<1x56x56x128xf32, #tpu.memory_space<vmem>>
      %77 = tpu.memref_squeeze %76 : memref<1x56x56x128xf32, #tpu.memory_space<vmem>> -> memref<56x56x128xf32, #tpu.memory_space<vmem>>
      %78 = tpu.memref_slice %arg21[%72] : memref<2x!tpu.dma_semaphore, #tpu.memory_space<semaphore_mem>> -> memref<1x!tpu.dma_semaphore, #tpu.memory_space<semaphore_mem>>
      %79 = tpu.memref_squeeze %78 : memref<1x!tpu.dma_semaphore, #tpu.memory_space<semaphore_mem>> -> memref<!tpu.dma_semaphore, #tpu.memory_space<semaphore_mem>>
      tpu.enqueue_dma source(%75 : memref<56x56x128xf32, #tpu.memory_space<any>>) target(%77 : memref<56x56x128xf32, #tpu.memory_space<vmem>>) target_semaphore(%79 : memref<!tpu.dma_semaphore, #tpu.memory_space<semaphore_mem>>)
    } else {
    }
    %c32_i32_13 = arith.constant 32 : i32
    %24 = arith.muli %arg1, %c32_i32_13 : i32
    %c10_i32 = arith.constant 10 : i32
    %25 = arith.subi %24, %c10_i32 : i32
    %c0 = arith.constant 0 : index
    %c0_14 = arith.constant 0 : index
    %26 = vector.load %arg3[%c0, %c0_14] : memref<25x128xf32, #tpu.memory_space<vmem>>, vector<25x128xf32>
    %c0_15 = arith.constant 0 : index
    %c0_16 = arith.constant 0 : index
    %27 = vector.load %arg4[%c0_15, %c0_16] : memref<1x128xf32, #tpu.memory_space<vmem>>, vector<1x128xf32>
    %28 = tpu.iota {dimensions = array<i32: 0>} : vector<52x128xi32>
    %c10_i32_17 = arith.constant 10 : i32
    %29 = vector.broadcast %c10_i32_17 : i32 to vector<52x128xi32>
    %30 = arith.cmpi sge, %28, %29 : vector<52x128xi32>
    %c42_i32 = arith.constant 42 : i32
    %31 = vector.broadcast %c42_i32 : i32 to vector<52x128xi32>
    %32 = arith.cmpi slt, %28, %31 : vector<52x128xi32>
    %33 = arith.andi %30, %32 : vector<52x128xi1>
    %c0_i32_18 = arith.constant 0 : i32
    %c52_i32 = arith.constant 52 : i32
    %34 = arith.addi %c0_i32_18, %c52_i32 : i32
    %c1_i32_19 = arith.constant 1 : i32
    scf.for %arg25 = %c0_i32_18 to %34 step %c1_i32_19  : i32 {
      %c0_i32_87 = arith.constant 0 : i32
      %71 = arith.addi %arg25, %c0_i32_87 : i32
      %c0_i32_88 = arith.constant 0 : i32
      %c0_i32_89 = arith.constant 0 : i32
      %c0_i32_90 = arith.constant 0 : i32
      %72 = tpu.memref_slice %arg20[%9, %c0_i32_88, %c0_i32_89, %c0_i32_90] : memref<2x56x56x128xf32, #tpu.memory_space<vmem>> -> memref<1x56x56x128xf32, #tpu.memory_space<vmem>>
      %73 = tpu.memref_squeeze %72 : memref<1x56x56x128xf32, #tpu.memory_space<vmem>> -> memref<56x56x128xf32, #tpu.memory_space<vmem>>
      %74 = arith.index_cast %71 : i32 to index
      %c0_91 = arith.constant 0 : index
      %c0_92 = arith.constant 0 : index
      %75 = vector.load %73[%74, %c0_91, %c0_92] : memref<56x56x128xf32, #tpu.memory_space<vmem>>, vector<1x52x128xf32>
      %76 = vector.shape_cast %75 : vector<1x52x128xf32> to vector<52x128xf32>
      %77 = vector.extract_strided_slice %26 {offsets = [0, 0], sizes = [1, 128], strides = [1, 1]} : vector<25x128xf32> to vector<1x128xf32>
      %78 = vector.shape_cast %77 : vector<1x128xf32> to vector<128xf32>
      %79 = vector.shape_cast %78 : vector<128xf32> to vector<1x128xf32>
      %80 = vector.broadcast %79 : vector<1x128xf32> to vector<52x128xf32>
      %81 = arith.mulf %76, %80 : vector<52x128xf32>
      %c0_i32_93 = arith.constant 0 : i32
      %82 = arith.addi %arg25, %c0_i32_93 : i32
      %c0_i32_94 = arith.constant 0 : i32
      %c0_i32_95 = arith.constant 0 : i32
      %c0_i32_96 = arith.constant 0 : i32
      %83 = tpu.memref_slice %arg20[%9, %c0_i32_94, %c0_i32_95, %c0_i32_96] : memref<2x56x56x128xf32, #tpu.memory_space<vmem>> -> memref<1x56x56x128xf32, #tpu.memory_space<vmem>>
      %84 = tpu.memref_squeeze %83 : memref<1x56x56x128xf32, #tpu.memory_space<vmem>> -> memref<56x56x128xf32, #tpu.memory_space<vmem>>
      %85 = arith.index_cast %82 : i32 to index
      %c1 = arith.constant 1 : index
      %c0_97 = arith.constant 0 : index
      %86 = vector.load %84[%85, %c1, %c0_97] : memref<56x56x128xf32, #tpu.memory_space<vmem>>, vector<1x52x128xf32>
      %87 = vector.shape_cast %86 : vector<1x52x128xf32> to vector<52x128xf32>
      %88 = vector.extract_strided_slice %26 {offsets = [1, 0], sizes = [1, 128], strides = [1, 1]} : vector<25x128xf32> to vector<1x128xf32>
      %89 = vector.shape_cast %88 : vector<1x128xf32> to vector<128xf32>
      %90 = vector.shape_cast %89 : vector<128xf32> to vector<1x128xf32>
      %91 = vector.broadcast %90 : vector<1x128xf32> to vector<52x128xf32>
      %92 = arith.mulf %87, %91 : vector<52x128xf32>
      %93 = arith.addf %81, %92 : vector<52x128xf32>
      %c0_i32_98 = arith.constant 0 : i32
      %94 = arith.addi %arg25, %c0_i32_98 : i32
      %c0_i32_99 = arith.constant 0 : i32
      %c0_i32_100 = arith.constant 0 : i32
      %c0_i32_101 = arith.constant 0 : i32
      %95 = tpu.memref_slice %arg20[%9, %c0_i32_99, %c0_i32_100, %c0_i32_101] : memref<2x56x56x128xf32, #tpu.memory_space<vmem>> -> memref<1x56x56x128xf32, #tpu.memory_space<vmem>>
      %96 = tpu.memref_squeeze %95 : memref<1x56x56x128xf32, #tpu.memory_space<vmem>> -> memref<56x56x128xf32, #tpu.memory_space<vmem>>
      %97 = arith.index_cast %94 : i32 to index
      %c2 = arith.constant 2 : index
      %c0_102 = arith.constant 0 : index
      %98 = vector.load %96[%97, %c2, %c0_102] : memref<56x56x128xf32, #tpu.memory_space<vmem>>, vector<1x52x128xf32>
      %99 = vector.shape_cast %98 : vector<1x52x128xf32> to vector<52x128xf32>
      %100 = vector.extract_strided_slice %26 {offsets = [2, 0], sizes = [1, 128], strides = [1, 1]} : vector<25x128xf32> to vector<1x128xf32>
      %101 = vector.shape_cast %100 : vector<1x128xf32> to vector<128xf32>
      %102 = vector.shape_cast %101 : vector<128xf32> to vector<1x128xf32>
      %103 = vector.broadcast %102 : vector<1x128xf32> to vector<52x128xf32>
      %104 = arith.mulf %99, %103 : vector<52x128xf32>
      %105 = arith.addf %93, %104 : vector<52x128xf32>
      %c0_i32_103 = arith.constant 0 : i32
      %106 = arith.addi %arg25, %c0_i32_103 : i32
      %c0_i32_104 = arith.constant 0 : i32
      %c0_i32_105 = arith.constant 0 : i32
      %c0_i32_106 = arith.constant 0 : i32
      %107 = tpu.memref_slice %arg20[%9, %c0_i32_104, %c0_i32_105, %c0_i32_106] : memref<2x56x56x128xf32, #tpu.memory_space<vmem>> -> memref<1x56x56x128xf32, #tpu.memory_space<vmem>>
      %108 = tpu.memref_squeeze %107 : memref<1x56x56x128xf32, #tpu.memory_space<vmem>> -> memref<56x56x128xf32, #tpu.memory_space<vmem>>
      %109 = arith.index_cast %106 : i32 to index
      %c3 = arith.constant 3 : index
      %c0_107 = arith.constant 0 : index
      %110 = vector.load %108[%109, %c3, %c0_107] : memref<56x56x128xf32, #tpu.memory_space<vmem>>, vector<1x52x128xf32>
      %111 = vector.shape_cast %110 : vector<1x52x128xf32> to vector<52x128xf32>
      %112 = vector.extract_strided_slice %26 {offsets = [3, 0], sizes = [1, 128], strides = [1, 1]} : vector<25x128xf32> to vector<1x128xf32>
      %113 = vector.shape_cast %112 : vector<1x128xf32> to vector<128xf32>
      %114 = vector.shape_cast %113 : vector<128xf32> to vector<1x128xf32>
      %115 = vector.broadcast %114 : vector<1x128xf32> to vector<52x128xf32>
      %116 = arith.mulf %111, %115 : vector<52x128xf32>
      %117 = arith.addf %105, %116 : vector<52x128xf32>
      %c0_i32_108 = arith.constant 0 : i32
      %118 = arith.addi %arg25, %c0_i32_108 : i32
      %c0_i32_109 = arith.constant 0 : i32
      %c0_i32_110 = arith.constant 0 : i32
      %c0_i32_111 = arith.constant 0 : i32
      %119 = tpu.memref_slice %arg20[%9, %c0_i32_109, %c0_i32_110, %c0_i32_111] : memref<2x56x56x128xf32, #tpu.memory_space<vmem>> -> memref<1x56x56x128xf32, #tpu.memory_space<vmem>>
      %120 = tpu.memref_squeeze %119 : memref<1x56x56x128xf32, #tpu.memory_space<vmem>> -> memref<56x56x128xf32, #tpu.memory_space<vmem>>
      %121 = arith.index_cast %118 : i32 to index
      %c4 = arith.constant 4 : index
      %c0_112 = arith.constant 0 : index
      %122 = vector.load %120[%121, %c4, %c0_112] : memref<56x56x128xf32, #tpu.memory_space<vmem>>, vector<1x52x128xf32>
      %123 = vector.shape_cast %122 : vector<1x52x128xf32> to vector<52x128xf32>
      %124 = vector.extract_strided_slice %26 {offsets = [4, 0], sizes = [1, 128], strides = [1, 1]} : vector<25x128xf32> to vector<1x128xf32>
      %125 = vector.shape_cast %124 : vector<1x128xf32> to vector<128xf32>
      %126 = vector.shape_cast %125 : vector<128xf32> to vector<1x128xf32>
      %127 = vector.broadcast %126 : vector<1x128xf32> to vector<52x128xf32>
      %128 = arith.mulf %123, %127 : vector<52x128xf32>
      %129 = arith.addf %117, %128 : vector<52x128xf32>
      %c1_i32_113 = arith.constant 1 : i32
      %130 = arith.addi %arg25, %c1_i32_113 : i32
      %c0_i32_114 = arith.constant 0 : i32
      %c0_i32_115 = arith.constant 0 : i32
      %c0_i32_116 = arith.constant 0 : i32
      %131 = tpu.memref_slice %arg20[%9, %c0_i32_114, %c0_i32_115, %c0_i32_116] : memref<2x56x56x128xf32, #tpu.memory_space<vmem>> -> memref<1x56x56x128xf32, #tpu.memory_space<vmem>>
      %132 = tpu.memref_squeeze %131 : memref<1x56x56x128xf32, #tpu.memory_space<vmem>> -> memref<56x56x128xf32, #tpu.memory_space<vmem>>
      %133 = arith.index_cast %130 : i32 to index
      %c0_117 = arith.constant 0 : index
      %c0_118 = arith.constant 0 : index
      %134 = vector.load %132[%133, %c0_117, %c0_118] : memref<56x56x128xf32, #tpu.memory_space<vmem>>, vector<1x52x128xf32>
      %135 = vector.shape_cast %134 : vector<1x52x128xf32> to vector<52x128xf32>
      %136 = vector.extract_strided_slice %26 {offsets = [5, 0], sizes = [1, 128], strides = [1, 1]} : vector<25x128xf32> to vector<1x128xf32>
      %137 = vector.shape_cast %136 : vector<1x128xf32> to vector<128xf32>
      %138 = vector.shape_cast %137 : vector<128xf32> to vector<1x128xf32>
      %139 = vector.broadcast %138 : vector<1x128xf32> to vector<52x128xf32>
      %140 = arith.mulf %135, %139 : vector<52x128xf32>
      %141 = arith.addf %129, %140 : vector<52x128xf32>
      %c1_i32_119 = arith.constant 1 : i32
      %142 = arith.addi %arg25, %c1_i32_119 : i32
      %c0_i32_120 = arith.constant 0 : i32
      %c0_i32_121 = arith.constant 0 : i32
      %c0_i32_122 = arith.constant 0 : i32
      %143 = tpu.memref_slice %arg20[%9, %c0_i32_120, %c0_i32_121, %c0_i32_122] : memref<2x56x56x128xf32, #tpu.memory_space<vmem>> -> memref<1x56x56x128xf32, #tpu.memory_space<vmem>>
      %144 = tpu.memref_squeeze %143 : memref<1x56x56x128xf32, #tpu.memory_space<vmem>> -> memref<56x56x128xf32, #tpu.memory_space<vmem>>
      %145 = arith.index_cast %142 : i32 to index
      %c1_123 = arith.constant 1 : index
      %c0_124 = arith.constant 0 : index
      %146 = vector.load %144[%145, %c1_123, %c0_124] : memref<56x56x128xf32, #tpu.memory_space<vmem>>, vector<1x52x128xf32>
      %147 = vector.shape_cast %146 : vector<1x52x128xf32> to vector<52x128xf32>
      %148 = vector.extract_strided_slice %26 {offsets = [6, 0], sizes = [1, 128], strides = [1, 1]} : vector<25x128xf32> to vector<1x128xf32>
      %149 = vector.shape_cast %148 : vector<1x128xf32> to vector<128xf32>
      %150 = vector.shape_cast %149 : vector<128xf32> to vector<1x128xf32>
      %151 = vector.broadcast %150 : vector<1x128xf32> to vector<52x128xf32>
      %152 = arith.mulf %147, %151 : vector<52x128xf32>
      %153 = arith.addf %141, %152 : vector<52x128xf32>
      %c1_i32_125 = arith.constant 1 : i32
      %154 = arith.addi %arg25, %c1_i32_125 : i32
      %c0_i32_126 = arith.constant 0 : i32
      %c0_i32_127 = arith.constant 0 : i32
      %c0_i32_128 = arith.constant 0 : i32
      %155 = tpu.memref_slice %arg20[%9, %c0_i32_126, %c0_i32_127, %c0_i32_128] : memref<2x56x56x128xf32, #tpu.memory_space<vmem>> -> memref<1x56x56x128xf32, #tpu.memory_space<vmem>>
      %156 = tpu.memref_squeeze %155 : memref<1x56x56x128xf32, #tpu.memory_space<vmem>> -> memref<56x56x128xf32, #tpu.memory_space<vmem>>
      %157 = arith.index_cast %154 : i32 to index
      %c2_129 = arith.constant 2 : index
      %c0_130 = arith.constant 0 : index
      %158 = vector.load %156[%157, %c2_129, %c0_130] : memref<56x56x128xf32, #tpu.memory_space<vmem>>, vector<1x52x128xf32>
      %159 = vector.shape_cast %158 : vector<1x52x128xf32> to vector<52x128xf32>
      %160 = vector.extract_strided_slice %26 {offsets = [7, 0], sizes = [1, 128], strides = [1, 1]} : vector<25x128xf32> to vector<1x128xf32>
      %161 = vector.shape_cast %160 : vector<1x128xf32> to vector<128xf32>
      %162 = vector.shape_cast %161 : vector<128xf32> to vector<1x128xf32>
      %163 = vector.broadcast %162 : vector<1x128xf32> to vector<52x128xf32>
      %164 = arith.mulf %159, %163 : vector<52x128xf32>
      %165 = arith.addf %153, %164 : vector<52x128xf32>
      %c1_i32_131 = arith.constant 1 : i32
      %166 = arith.addi %arg25, %c1_i32_131 : i32
      %c0_i32_132 = arith.constant 0 : i32
      %c0_i32_133 = arith.constant 0 : i32
      %c0_i32_134 = arith.constant 0 : i32
      %167 = tpu.memref_slice %arg20[%9, %c0_i32_132, %c0_i32_133, %c0_i32_134] : memref<2x56x56x128xf32, #tpu.memory_space<vmem>> -> memref<1x56x56x128xf32, #tpu.memory_space<vmem>>
      %168 = tpu.memref_squeeze %167 : memref<1x56x56x128xf32, #tpu.memory_space<vmem>> -> memref<56x56x128xf32, #tpu.memory_space<vmem>>
      %169 = arith.index_cast %166 : i32 to index
      %c3_135 = arith.constant 3 : index
      %c0_136 = arith.constant 0 : index
      %170 = vector.load %168[%169, %c3_135, %c0_136] : memref<56x56x128xf32, #tpu.memory_space<vmem>>, vector<1x52x128xf32>
      %171 = vector.shape_cast %170 : vector<1x52x128xf32> to vector<52x128xf32>
      %172 = vector.extract_strided_slice %26 {offsets = [8, 0], sizes = [1, 128], strides = [1, 1]} : vector<25x128xf32> to vector<1x128xf32>
      %173 = vector.shape_cast %172 : vector<1x128xf32> to vector<128xf32>
      %174 = vector.shape_cast %173 : vector<128xf32> to vector<1x128xf32>
      %175 = vector.broadcast %174 : vector<1x128xf32> to vector<52x128xf32>
      %176 = arith.mulf %171, %175 : vector<52x128xf32>
      %177 = arith.addf %165, %176 : vector<52x128xf32>
      %c1_i32_137 = arith.constant 1 : i32
      %178 = arith.addi %arg25, %c1_i32_137 : i32
      %c0_i32_138 = arith.constant 0 : i32
      %c0_i32_139 = arith.constant 0 : i32
      %c0_i32_140 = arith.constant 0 : i32
      %179 = tpu.memref_slice %arg20[%9, %c0_i32_138, %c0_i32_139, %c0_i32_140] : memref<2x56x56x128xf32, #tpu.memory_space<vmem>> -> memref<1x56x56x128xf32, #tpu.memory_space<vmem>>
      %180 = tpu.memref_squeeze %179 : memref<1x56x56x128xf32, #tpu.memory_space<vmem>> -> memref<56x56x128xf32, #tpu.memory_space<vmem>>
      %181 = arith.index_cast %178 : i32 to index
      %c4_141 = arith.constant 4 : index
      %c0_142 = arith.constant 0 : index
      %182 = vector.load %180[%181, %c4_141, %c0_142] : memref<56x56x128xf32, #tpu.memory_space<vmem>>, vector<1x52x128xf32>
      %183 = vector.shape_cast %182 : vector<1x52x128xf32> to vector<52x128xf32>
      %184 = vector.extract_strided_slice %26 {offsets = [9, 0], sizes = [1, 128], strides = [1, 1]} : vector<25x128xf32> to vector<1x128xf32>
      %185 = vector.shape_cast %184 : vector<1x128xf32> to vector<128xf32>
      %186 = vector.shape_cast %185 : vector<128xf32> to vector<1x128xf32>
      %187 = vector.broadcast %186 : vector<1x128xf32> to vector<52x128xf32>
      %188 = arith.mulf %183, %187 : vector<52x128xf32>
      %189 = arith.addf %177, %188 : vector<52x128xf32>
      %c2_i32_143 = arith.constant 2 : i32
      %190 = arith.addi %arg25, %c2_i32_143 : i32
      %c0_i32_144 = arith.constant 0 : i32
      %c0_i32_145 = arith.constant 0 : i32
      %c0_i32_146 = arith.constant 0 : i32
      %191 = tpu.memref_slice %arg20[%9, %c0_i32_144, %c0_i32_145, %c0_i32_146] : memref<2x56x56x128xf32, #tpu.memory_space<vmem>> -> memref<1x56x56x128xf32, #tpu.memory_space<vmem>>
      %192 = tpu.memref_squeeze %191 : memref<1x56x56x128xf32, #tpu.memory_space<vmem>> -> memref<56x56x128xf32, #tpu.memory_space<vmem>>
      %193 = arith.index_cast %190 : i32 to index
      %c0_147 = arith.constant 0 : index
      %c0_148 = arith.constant 0 : index
      %194 = vector.load %192[%193, %c0_147, %c0_148] : memref<56x56x128xf32, #tpu.memory_space<vmem>>, vector<1x52x128xf32>
      %195 = vector.shape_cast %194 : vector<1x52x128xf32> to vector<52x128xf32>
      %196 = vector.extract_strided_slice %26 {offsets = [10, 0], sizes = [1, 128], strides = [1, 1]} : vector<25x128xf32> to vector<1x128xf32>
      %197 = vector.shape_cast %196 : vector<1x128xf32> to vector<128xf32>
      %198 = vector.shape_cast %197 : vector<128xf32> to vector<1x128xf32>
      %199 = vector.broadcast %198 : vector<1x128xf32> to vector<52x128xf32>
      %200 = arith.mulf %195, %199 : vector<52x128xf32>
      %201 = arith.addf %189, %200 : vector<52x128xf32>
      %c2_i32_149 = arith.constant 2 : i32
      %202 = arith.addi %arg25, %c2_i32_149 : i32
      %c0_i32_150 = arith.constant 0 : i32
      %c0_i32_151 = arith.constant 0 : i32
      %c0_i32_152 = arith.constant 0 : i32
      %203 = tpu.memref_slice %arg20[%9, %c0_i32_150, %c0_i32_151, %c0_i32_152] : memref<2x56x56x128xf32, #tpu.memory_space<vmem>> -> memref<1x56x56x128xf32, #tpu.memory_space<vmem>>
      %204 = tpu.memref_squeeze %203 : memref<1x56x56x128xf32, #tpu.memory_space<vmem>> -> memref<56x56x128xf32, #tpu.memory_space<vmem>>
      %205 = arith.index_cast %202 : i32 to index
      %c1_153 = arith.constant 1 : index
      %c0_154 = arith.constant 0 : index
      %206 = vector.load %204[%205, %c1_153, %c0_154] : memref<56x56x128xf32, #tpu.memory_space<vmem>>, vector<1x52x128xf32>
      %207 = vector.shape_cast %206 : vector<1x52x128xf32> to vector<52x128xf32>
      %208 = vector.extract_strided_slice %26 {offsets = [11, 0], sizes = [1, 128], strides = [1, 1]} : vector<25x128xf32> to vector<1x128xf32>
      %209 = vector.shape_cast %208 : vector<1x128xf32> to vector<128xf32>
      %210 = vector.shape_cast %209 : vector<128xf32> to vector<1x128xf32>
      %211 = vector.broadcast %210 : vector<1x128xf32> to vector<52x128xf32>
      %212 = arith.mulf %207, %211 : vector<52x128xf32>
      %213 = arith.addf %201, %212 : vector<52x128xf32>
      %c2_i32_155 = arith.constant 2 : i32
      %214 = arith.addi %arg25, %c2_i32_155 : i32
      %c0_i32_156 = arith.constant 0 : i32
      %c0_i32_157 = arith.constant 0 : i32
      %c0_i32_158 = arith.constant 0 : i32
      %215 = tpu.memref_slice %arg20[%9, %c0_i32_156, %c0_i32_157, %c0_i32_158] : memref<2x56x56x128xf32, #tpu.memory_space<vmem>> -> memref<1x56x56x128xf32, #tpu.memory_space<vmem>>
      %216 = tpu.memref_squeeze %215 : memref<1x56x56x128xf32, #tpu.memory_space<vmem>> -> memref<56x56x128xf32, #tpu.memory_space<vmem>>
      %217 = arith.index_cast %214 : i32 to index
      %c2_159 = arith.constant 2 : index
      %c0_160 = arith.constant 0 : index
      %218 = vector.load %216[%217, %c2_159, %c0_160] : memref<56x56x128xf32, #tpu.memory_space<vmem>>, vector<1x52x128xf32>
      %219 = vector.shape_cast %218 : vector<1x52x128xf32> to vector<52x128xf32>
      %220 = vector.extract_strided_slice %26 {offsets = [12, 0], sizes = [1, 128], strides = [1, 1]} : vector<25x128xf32> to vector<1x128xf32>
      %221 = vector.shape_cast %220 : vector<1x128xf32> to vector<128xf32>
      %222 = vector.shape_cast %221 : vector<128xf32> to vector<1x128xf32>
      %223 = vector.broadcast %222 : vector<1x128xf32> to vector<52x128xf32>
      %224 = arith.mulf %219, %223 : vector<52x128xf32>
      %225 = arith.addf %213, %224 : vector<52x128xf32>
      %c2_i32_161 = arith.constant 2 : i32
      %226 = arith.addi %arg25, %c2_i32_161 : i32
      %c0_i32_162 = arith.constant 0 : i32
      %c0_i32_163 = arith.constant 0 : i32
      %c0_i32_164 = arith.constant 0 : i32
      %227 = tpu.memref_slice %arg20[%9, %c0_i32_162, %c0_i32_163, %c0_i32_164] : memref<2x56x56x128xf32, #tpu.memory_space<vmem>> -> memref<1x56x56x128xf32, #tpu.memory_space<vmem>>
      %228 = tpu.memref_squeeze %227 : memref<1x56x56x128xf32, #tpu.memory_space<vmem>> -> memref<56x56x128xf32, #tpu.memory_space<vmem>>
      %229 = arith.index_cast %226 : i32 to index
      %c3_165 = arith.constant 3 : index
      %c0_166 = arith.constant 0 : index
      %230 = vector.load %228[%229, %c3_165, %c0_166] : memref<56x56x128xf32, #tpu.memory_space<vmem>>, vector<1x52x128xf32>
      %231 = vector.shape_cast %230 : vector<1x52x128xf32> to vector<52x128xf32>
      %232 = vector.extract_strided_slice %26 {offsets = [13, 0], sizes = [1, 128], strides = [1, 1]} : vector<25x128xf32> to vector<1x128xf32>
      %233 = vector.shape_cast %232 : vector<1x128xf32> to vector<128xf32>
      %234 = vector.shape_cast %233 : vector<128xf32> to vector<1x128xf32>
      %235 = vector.broadcast %234 : vector<1x128xf32> to vector<52x128xf32>
      %236 = arith.mulf %231, %235 : vector<52x128xf32>
      %237 = arith.addf %225, %236 : vector<52x128xf32>
      %c2_i32_167 = arith.constant 2 : i32
      %238 = arith.addi %arg25, %c2_i32_167 : i32
      %c0_i32_168 = arith.constant 0 : i32
      %c0_i32_169 = arith.constant 0 : i32
      %c0_i32_170 = arith.constant 0 : i32
      %239 = tpu.memref_slice %arg20[%9, %c0_i32_168, %c0_i32_169, %c0_i32_170] : memref<2x56x56x128xf32, #tpu.memory_space<vmem>> -> memref<1x56x56x128xf32, #tpu.memory_space<vmem>>
      %240 = tpu.memref_squeeze %239 : memref<1x56x56x128xf32, #tpu.memory_space<vmem>> -> memref<56x56x128xf32, #tpu.memory_space<vmem>>
      %241 = arith.index_cast %238 : i32 to index
      %c4_171 = arith.constant 4 : index
      %c0_172 = arith.constant 0 : index
      %242 = vector.load %240[%241, %c4_171, %c0_172] : memref<56x56x128xf32, #tpu.memory_space<vmem>>, vector<1x52x128xf32>
      %243 = vector.shape_cast %242 : vector<1x52x128xf32> to vector<52x128xf32>
      %244 = vector.extract_strided_slice %26 {offsets = [14, 0], sizes = [1, 128], strides = [1, 1]} : vector<25x128xf32> to vector<1x128xf32>
      %245 = vector.shape_cast %244 : vector<1x128xf32> to vector<128xf32>
      %246 = vector.shape_cast %245 : vector<128xf32> to vector<1x128xf32>
      %247 = vector.broadcast %246 : vector<1x128xf32> to vector<52x128xf32>
      %248 = arith.mulf %243, %247 : vector<52x128xf32>
      %249 = arith.addf %237, %248 : vector<52x128xf32>
      %c3_i32 = arith.constant 3 : i32
      %250 = arith.addi %arg25, %c3_i32 : i32
      %c0_i32_173 = arith.constant 0 : i32
      %c0_i32_174 = arith.constant 0 : i32
      %c0_i32_175 = arith.constant 0 : i32
      %251 = tpu.memref_slice %arg20[%9, %c0_i32_173, %c0_i32_174, %c0_i32_175] : memref<2x56x56x128xf32, #tpu.memory_space<vmem>> -> memref<1x56x56x128xf32, #tpu.memory_space<vmem>>
      %252 = tpu.memref_squeeze %251 : memref<1x56x56x128xf32, #tpu.memory_space<vmem>> -> memref<56x56x128xf32, #tpu.memory_space<vmem>>
      %253 = arith.index_cast %250 : i32 to index
      %c0_176 = arith.constant 0 : index
      %c0_177 = arith.constant 0 : index
      %254 = vector.load %252[%253, %c0_176, %c0_177] : memref<56x56x128xf32, #tpu.memory_space<vmem>>, vector<1x52x128xf32>
      %255 = vector.shape_cast %254 : vector<1x52x128xf32> to vector<52x128xf32>
      %256 = vector.extract_strided_slice %26 {offsets = [15, 0], sizes = [1, 128], strides = [1, 1]} : vector<25x128xf32> to vector<1x128xf32>
      %257 = vector.shape_cast %256 : vector<1x128xf32> to vector<128xf32>
      %258 = vector.shape_cast %257 : vector<128xf32> to vector<1x128xf32>
      %259 = vector.broadcast %258 : vector<1x128xf32> to vector<52x128xf32>
      %260 = arith.mulf %255, %259 : vector<52x128xf32>
      %261 = arith.addf %249, %260 : vector<52x128xf32>
      %c3_i32_178 = arith.constant 3 : i32
      %262 = arith.addi %arg25, %c3_i32_178 : i32
      %c0_i32_179 = arith.constant 0 : i32
      %c0_i32_180 = arith.constant 0 : i32
      %c0_i32_181 = arith.constant 0 : i32
      %263 = tpu.memref_slice %arg20[%9, %c0_i32_179, %c0_i32_180, %c0_i32_181] : memref<2x56x56x128xf32, #tpu.memory_space<vmem>> -> memref<1x56x56x128xf32, #tpu.memory_space<vmem>>
      %264 = tpu.memref_squeeze %263 : memref<1x56x56x128xf32, #tpu.memory_space<vmem>> -> memref<56x56x128xf32, #tpu.memory_space<vmem>>
      %265 = arith.index_cast %262 : i32 to index
      %c1_182 = arith.constant 1 : index
      %c0_183 = arith.constant 0 : index
      %266 = vector.load %264[%265, %c1_182, %c0_183] : memref<56x56x128xf32, #tpu.memory_space<vmem>>, vector<1x52x128xf32>
      %267 = vector.shape_cast %266 : vector<1x52x128xf32> to vector<52x128xf32>
      %268 = vector.extract_strided_slice %26 {offsets = [16, 0], sizes = [1, 128], strides = [1, 1]} : vector<25x128xf32> to vector<1x128xf32>
      %269 = vector.shape_cast %268 : vector<1x128xf32> to vector<128xf32>
      %270 = vector.shape_cast %269 : vector<128xf32> to vector<1x128xf32>
      %271 = vector.broadcast %270 : vector<1x128xf32> to vector<52x128xf32>
      %272 = arith.mulf %267, %271 : vector<52x128xf32>
      %273 = arith.addf %261, %272 : vector<52x128xf32>
      %c3_i32_184 = arith.constant 3 : i32
      %274 = arith.addi %arg25, %c3_i32_184 : i32
      %c0_i32_185 = arith.constant 0 : i32
      %c0_i32_186 = arith.constant 0 : i32
      %c0_i32_187 = arith.constant 0 : i32
      %275 = tpu.memref_slice %arg20[%9, %c0_i32_185, %c0_i32_186, %c0_i32_187] : memref<2x56x56x128xf32, #tpu.memory_space<vmem>> -> memref<1x56x56x128xf32, #tpu.memory_space<vmem>>
      %276 = tpu.memref_squeeze %275 : memref<1x56x56x128xf32, #tpu.memory_space<vmem>> -> memref<56x56x128xf32, #tpu.memory_space<vmem>>
      %277 = arith.index_cast %274 : i32 to index
      %c2_188 = arith.constant 2 : index
      %c0_189 = arith.constant 0 : index
      %278 = vector.load %276[%277, %c2_188, %c0_189] : memref<56x56x128xf32, #tpu.memory_space<vmem>>, vector<1x52x128xf32>
      %279 = vector.shape_cast %278 : vector<1x52x128xf32> to vector<52x128xf32>
      %280 = vector.extract_strided_slice %26 {offsets = [17, 0], sizes = [1, 128], strides = [1, 1]} : vector<25x128xf32> to vector<1x128xf32>
      %281 = vector.shape_cast %280 : vector<1x128xf32> to vector<128xf32>
      %282 = vector.shape_cast %281 : vector<128xf32> to vector<1x128xf32>
      %283 = vector.broadcast %282 : vector<1x128xf32> to vector<52x128xf32>
      %284 = arith.mulf %279, %283 : vector<52x128xf32>
      %285 = arith.addf %273, %284 : vector<52x128xf32>
      %c3_i32_190 = arith.constant 3 : i32
      %286 = arith.addi %arg25, %c3_i32_190 : i32
      %c0_i32_191 = arith.constant 0 : i32
      %c0_i32_192 = arith.constant 0 : i32
      %c0_i32_193 = arith.constant 0 : i32
      %287 = tpu.memref_slice %arg20[%9, %c0_i32_191, %c0_i32_192, %c0_i32_193] : memref<2x56x56x128xf32, #tpu.memory_space<vmem>> -> memref<1x56x56x128xf32, #tpu.memory_space<vmem>>
      %288 = tpu.memref_squeeze %287 : memref<1x56x56x128xf32, #tpu.memory_space<vmem>> -> memref<56x56x128xf32, #tpu.memory_space<vmem>>
      %289 = arith.index_cast %286 : i32 to index
      %c3_194 = arith.constant 3 : index
      %c0_195 = arith.constant 0 : index
      %290 = vector.load %288[%289, %c3_194, %c0_195] : memref<56x56x128xf32, #tpu.memory_space<vmem>>, vector<1x52x128xf32>
      %291 = vector.shape_cast %290 : vector<1x52x128xf32> to vector<52x128xf32>
      %292 = vector.extract_strided_slice %26 {offsets = [18, 0], sizes = [1, 128], strides = [1, 1]} : vector<25x128xf32> to vector<1x128xf32>
      %293 = vector.shape_cast %292 : vector<1x128xf32> to vector<128xf32>
      %294 = vector.shape_cast %293 : vector<128xf32> to vector<1x128xf32>
      %295 = vector.broadcast %294 : vector<1x128xf32> to vector<52x128xf32>
      %296 = arith.mulf %291, %295 : vector<52x128xf32>
      %297 = arith.addf %285, %296 : vector<52x128xf32>
      %c3_i32_196 = arith.constant 3 : i32
      %298 = arith.addi %arg25, %c3_i32_196 : i32
      %c0_i32_197 = arith.constant 0 : i32
      %c0_i32_198 = arith.constant 0 : i32
      %c0_i32_199 = arith.constant 0 : i32
      %299 = tpu.memref_slice %arg20[%9, %c0_i32_197, %c0_i32_198, %c0_i32_199] : memref<2x56x56x128xf32, #tpu.memory_space<vmem>> -> memref<1x56x56x128xf32, #tpu.memory_space<vmem>>
      %300 = tpu.memref_squeeze %299 : memref<1x56x56x128xf32, #tpu.memory_space<vmem>> -> memref<56x56x128xf32, #tpu.memory_space<vmem>>
      %301 = arith.index_cast %298 : i32 to index
      %c4_200 = arith.constant 4 : index
      %c0_201 = arith.constant 0 : index
      %302 = vector.load %300[%301, %c4_200, %c0_201] : memref<56x56x128xf32, #tpu.memory_space<vmem>>, vector<1x52x128xf32>
      %303 = vector.shape_cast %302 : vector<1x52x128xf32> to vector<52x128xf32>
      %304 = vector.extract_strided_slice %26 {offsets = [19, 0], sizes = [1, 128], strides = [1, 1]} : vector<25x128xf32> to vector<1x128xf32>
      %305 = vector.shape_cast %304 : vector<1x128xf32> to vector<128xf32>
      %306 = vector.shape_cast %305 : vector<128xf32> to vector<1x128xf32>
      %307 = vector.broadcast %306 : vector<1x128xf32> to vector<52x128xf32>
      %308 = arith.mulf %303, %307 : vector<52x128xf32>
      %309 = arith.addf %297, %308 : vector<52x128xf32>
      %c4_i32 = arith.constant 4 : i32
      %310 = arith.addi %arg25, %c4_i32 : i32
      %c0_i32_202 = arith.constant 0 : i32
      %c0_i32_203 = arith.constant 0 : i32
      %c0_i32_204 = arith.constant 0 : i32
      %311 = tpu.memref_slice %arg20[%9, %c0_i32_202, %c0_i32_203, %c0_i32_204] : memref<2x56x56x128xf32, #tpu.memory_space<vmem>> -> memref<1x56x56x128xf32, #tpu.memory_space<vmem>>
      %312 = tpu.memref_squeeze %311 : memref<1x56x56x128xf32, #tpu.memory_space<vmem>> -> memref<56x56x128xf32, #tpu.memory_space<vmem>>
      %313 = arith.index_cast %310 : i32 to index
      %c0_205 = arith.constant 0 : index
      %c0_206 = arith.constant 0 : index
      %314 = vector.load %312[%313, %c0_205, %c0_206] : memref<56x56x128xf32, #tpu.memory_space<vmem>>, vector<1x52x128xf32>
      %315 = vector.shape_cast %314 : vector<1x52x128xf32> to vector<52x128xf32>
      %316 = vector.extract_strided_slice %26 {offsets = [20, 0], sizes = [1, 128], strides = [1, 1]} : vector<25x128xf32> to vector<1x128xf32>
      %317 = vector.shape_cast %316 : vector<1x128xf32> to vector<128xf32>
      %318 = vector.shape_cast %317 : vector<128xf32> to vector<1x128xf32>
      %319 = vector.broadcast %318 : vector<1x128xf32> to vector<52x128xf32>
      %320 = arith.mulf %315, %319 : vector<52x128xf32>
      %321 = arith.addf %309, %320 : vector<52x128xf32>
      %c4_i32_207 = arith.constant 4 : i32
      %322 = arith.addi %arg25, %c4_i32_207 : i32
      %c0_i32_208 = arith.constant 0 : i32
      %c0_i32_209 = arith.constant 0 : i32
      %c0_i32_210 = arith.constant 0 : i32
      %323 = tpu.memref_slice %arg20[%9, %c0_i32_208, %c0_i32_209, %c0_i32_210] : memref<2x56x56x128xf32, #tpu.memory_space<vmem>> -> memref<1x56x56x128xf32, #tpu.memory_space<vmem>>
      %324 = tpu.memref_squeeze %323 : memref<1x56x56x128xf32, #tpu.memory_space<vmem>> -> memref<56x56x128xf32, #tpu.memory_space<vmem>>
      %325 = arith.index_cast %322 : i32 to index
      %c1_211 = arith.constant 1 : index
      %c0_212 = arith.constant 0 : index
      %326 = vector.load %324[%325, %c1_211, %c0_212] : memref<56x56x128xf32, #tpu.memory_space<vmem>>, vector<1x52x128xf32>
      %327 = vector.shape_cast %326 : vector<1x52x128xf32> to vector<52x128xf32>
      %328 = vector.extract_strided_slice %26 {offsets = [21, 0], sizes = [1, 128], strides = [1, 1]} : vector<25x128xf32> to vector<1x128xf32>
      %329 = vector.shape_cast %328 : vector<1x128xf32> to vector<128xf32>
      %330 = vector.shape_cast %329 : vector<128xf32> to vector<1x128xf32>
      %331 = vector.broadcast %330 : vector<1x128xf32> to vector<52x128xf32>
      %332 = arith.mulf %327, %331 : vector<52x128xf32>
      %333 = arith.addf %321, %332 : vector<52x128xf32>
      %c4_i32_213 = arith.constant 4 : i32
      %334 = arith.addi %arg25, %c4_i32_213 : i32
      %c0_i32_214 = arith.constant 0 : i32
      %c0_i32_215 = arith.constant 0 : i32
      %c0_i32_216 = arith.constant 0 : i32
      %335 = tpu.memref_slice %arg20[%9, %c0_i32_214, %c0_i32_215, %c0_i32_216] : memref<2x56x56x128xf32, #tpu.memory_space<vmem>> -> memref<1x56x56x128xf32, #tpu.memory_space<vmem>>
      %336 = tpu.memref_squeeze %335 : memref<1x56x56x128xf32, #tpu.memory_space<vmem>> -> memref<56x56x128xf32, #tpu.memory_space<vmem>>
      %337 = arith.index_cast %334 : i32 to index
      %c2_217 = arith.constant 2 : index
      %c0_218 = arith.constant 0 : index
      %338 = vector.load %336[%337, %c2_217, %c0_218] : memref<56x56x128xf32, #tpu.memory_space<vmem>>, vector<1x52x128xf32>
      %339 = vector.shape_cast %338 : vector<1x52x128xf32> to vector<52x128xf32>
      %340 = vector.extract_strided_slice %26 {offsets = [22, 0], sizes = [1, 128], strides = [1, 1]} : vector<25x128xf32> to vector<1x128xf32>
      %341 = vector.shape_cast %340 : vector<1x128xf32> to vector<128xf32>
      %342 = vector.shape_cast %341 : vector<128xf32> to vector<1x128xf32>
      %343 = vector.broadcast %342 : vector<1x128xf32> to vector<52x128xf32>
      %344 = arith.mulf %339, %343 : vector<52x128xf32>
      %345 = arith.addf %333, %344 : vector<52x128xf32>
      %c4_i32_219 = arith.constant 4 : i32
      %346 = arith.addi %arg25, %c4_i32_219 : i32
      %c0_i32_220 = arith.constant 0 : i32
      %c0_i32_221 = arith.constant 0 : i32
      %c0_i32_222 = arith.constant 0 : i32
      %347 = tpu.memref_slice %arg20[%9, %c0_i32_220, %c0_i32_221, %c0_i32_222] : memref<2x56x56x128xf32, #tpu.memory_space<vmem>> -> memref<1x56x56x128xf32, #tpu.memory_space<vmem>>
      %348 = tpu.memref_squeeze %347 : memref<1x56x56x128xf32, #tpu.memory_space<vmem>> -> memref<56x56x128xf32, #tpu.memory_space<vmem>>
      %349 = arith.index_cast %346 : i32 to index
      %c3_223 = arith.constant 3 : index
      %c0_224 = arith.constant 0 : index
      %350 = vector.load %348[%349, %c3_223, %c0_224] : memref<56x56x128xf32, #tpu.memory_space<vmem>>, vector<1x52x128xf32>
      %351 = vector.shape_cast %350 : vector<1x52x128xf32> to vector<52x128xf32>
      %352 = vector.extract_strided_slice %26 {offsets = [23, 0], sizes = [1, 128], strides = [1, 1]} : vector<25x128xf32> to vector<1x128xf32>
      %353 = vector.shape_cast %352 : vector<1x128xf32> to vector<128xf32>
      %354 = vector.shape_cast %353 : vector<128xf32> to vector<1x128xf32>
      %355 = vector.broadcast %354 : vector<1x128xf32> to vector<52x128xf32>
      %356 = arith.mulf %351, %355 : vector<52x128xf32>
      %357 = arith.addf %345, %356 : vector<52x128xf32>
      %c4_i32_225 = arith.constant 4 : i32
      %358 = arith.addi %arg25, %c4_i32_225 : i32
      %c0_i32_226 = arith.constant 0 : i32
      %c0_i32_227 = arith.constant 0 : i32
      %c0_i32_228 = arith.constant 0 : i32
      %359 = tpu.memref_slice %arg20[%9, %c0_i32_226, %c0_i32_227, %c0_i32_228] : memref<2x56x56x128xf32, #tpu.memory_space<vmem>> -> memref<1x56x56x128xf32, #tpu.memory_space<vmem>>
      %360 = tpu.memref_squeeze %359 : memref<1x56x56x128xf32, #tpu.memory_space<vmem>> -> memref<56x56x128xf32, #tpu.memory_space<vmem>>
      %361 = arith.index_cast %358 : i32 to index
      %c4_229 = arith.constant 4 : index
      %c0_230 = arith.constant 0 : index
      %362 = vector.load %360[%361, %c4_229, %c0_230] : memref<56x56x128xf32, #tpu.memory_space<vmem>>, vector<1x52x128xf32>
      %363 = vector.shape_cast %362 : vector<1x52x128xf32> to vector<52x128xf32>
      %364 = vector.extract_strided_slice %26 {offsets = [24, 0], sizes = [1, 128], strides = [1, 1]} : vector<25x128xf32> to vector<1x128xf32>
      %365 = vector.shape_cast %364 : vector<1x128xf32> to vector<128xf32>
      %366 = vector.shape_cast %365 : vector<128xf32> to vector<1x128xf32>
      %367 = vector.broadcast %366 : vector<1x128xf32> to vector<52x128xf32>
      %368 = arith.mulf %363, %367 : vector<52x128xf32>
      %369 = arith.addf %357, %368 : vector<52x128xf32>
      %370 = arith.addi %25, %arg25 : i32
      %c0_i32_231 = arith.constant 0 : i32
      %371 = arith.cmpi sge, %370, %c0_i32_231 : i32
      %372 = arith.addi %25, %arg25 : i32
      %c32_i32_232 = arith.constant 32 : i32
      %373 = arith.cmpi slt, %372, %c32_i32_232 : i32
      %374 = arith.andi %371, %373 : i1
      %375 = vector.broadcast %374 : i1 to vector<52x128xi1>
      %376 = arith.andi %33, %375 : vector<52x128xi1>
      %377 = vector.broadcast %27 : vector<1x128xf32> to vector<52x128xf32>
      %378 = arith.addf %369, %377 : vector<52x128xf32>
      %cst_233 = arith.constant 0.000000e+00 : f32
      %379 = vector.broadcast %cst_233 : f32 to vector<52x128xf32>
      %380 = arith.select %376, %378, %379 : vector<52x128xi1>, vector<52x128xf32>
      %381 = arith.index_cast %arg25 : i32 to index
      %c0_234 = arith.constant 0 : index
      %c0_235 = arith.constant 0 : index
      %382 = vector.load %arg22[%381, %c0_234, %c0_235] : memref<52x52x128xf32, #tpu.memory_space<vmem>>, vector<1x52x128xf32>
      %383 = vector.shape_cast %382 : vector<1x52x128xf32> to vector<52x128xf32>
      %384 = vector.shape_cast %380 : vector<52x128xf32> to vector<1x52x128xf32>
      tpu.vector_store %arg22[%381, %c0_234, %c0_235], %384 {strides = array<i32>} : memref<52x52x128xf32, #tpu.memory_space<vmem>>, vector<1x52x128xf32>,
    }
    %c52_i32_20 = arith.constant 52 : i32
    %c10 = arith.constant 10 : index
    %c10_21 = arith.constant 10 : index
    %c0_22 = arith.constant 0 : index
    %35 = vector.load %arg22[%c10, %c10_21, %c0_22] : memref<52x52x128xf32, #tpu.memory_space<vmem>>, vector<32x32x128xf32>
    %c0_23 = arith.constant 0 : index
    %c0_24 = arith.constant 0 : index
    %c0_25 = arith.constant 0 : index
    %36 = vector.load %arg24[%c0_23, %c0_24, %c0_25] : memref<32x32x128xf32, #tpu.memory_space<vmem>>, vector<32x32x128xf32>
    tpu.vector_store %arg24[%c0_23, %c0_24, %c0_25], %35 {strides = array<i32>} : memref<32x32x128xf32, #tpu.memory_space<vmem>>, vector<32x32x128xf32>,
    %c0_26 = arith.constant 0 : index
    %c0_27 = arith.constant 0 : index
    %37 = vector.load %arg5[%c0_26, %c0_27] : memref<7x128xf32, #tpu.memory_space<vmem>>, vector<7x128xf32>
    %c0_28 = arith.constant 0 : index
    %c0_29 = arith.constant 0 : index
    %38 = vector.load %arg6[%c0_28, %c0_29] : memref<1x128xf32, #tpu.memory_space<vmem>>, vector<1x128xf32>
    %c0_30 = arith.constant 0 : index
    %c0_31 = arith.constant 0 : index
    %39 = vector.load %arg7[%c0_30, %c0_31] : memref<7x128xf32, #tpu.memory_space<vmem>>, vector<7x128xf32>
    %c0_32 = arith.constant 0 : index
    %c0_33 = arith.constant 0 : index
    %40 = vector.load %arg8[%c0_32, %c0_33] : memref<1x128xf32, #tpu.memory_space<vmem>>, vector<1x128xf32>
    %c7_i32 = arith.constant 7 : i32
    %c38_i32 = arith.constant 38 : i32
    %41 = arith.addi %c7_i32, %c38_i32 : i32
    %c1_i32_34 = arith.constant 1 : i32
    scf.for %arg25 = %c7_i32 to %41 step %c1_i32_34  : i32 {
      %71 = arith.index_cast %arg25 : i32 to index
      %c7 = arith.constant 7 : index
      %c0_87 = arith.constant 0 : index
      %72 = vector.load %arg22[%71, %c7, %c0_87] : memref<52x52x128xf32, #tpu.memory_space<vmem>>, vector<1x32x128xf32>
      %73 = vector.shape_cast %72 : vector<1x32x128xf32> to vector<32x128xf32>
      %74 = vector.extract_strided_slice %37 {offsets = [0, 0], sizes = [1, 128], strides = [1, 1]} : vector<7x128xf32> to vector<1x128xf32>
      %75 = vector.shape_cast %74 : vector<1x128xf32> to vector<128xf32>
      %76 = vector.shape_cast %75 : vector<128xf32> to vector<1x128xf32>
      %77 = vector.broadcast %76 : vector<1x128xf32> to vector<32x128xf32>
      %78 = arith.mulf %73, %77 : vector<32x128xf32>
      %79 = arith.index_cast %arg25 : i32 to index
      %c8 = arith.constant 8 : index
      %c0_88 = arith.constant 0 : index
      %80 = vector.load %arg22[%79, %c8, %c0_88] : memref<52x52x128xf32, #tpu.memory_space<vmem>>, vector<1x32x128xf32>
      %81 = vector.shape_cast %80 : vector<1x32x128xf32> to vector<32x128xf32>
      %82 = vector.extract_strided_slice %37 {offsets = [1, 0], sizes = [1, 128], strides = [1, 1]} : vector<7x128xf32> to vector<1x128xf32>
      %83 = vector.shape_cast %82 : vector<1x128xf32> to vector<128xf32>
      %84 = vector.shape_cast %83 : vector<128xf32> to vector<1x128xf32>
      %85 = vector.broadcast %84 : vector<1x128xf32> to vector<32x128xf32>
      %86 = arith.mulf %81, %85 : vector<32x128xf32>
      %87 = arith.addf %78, %86 : vector<32x128xf32>
      %88 = arith.index_cast %arg25 : i32 to index
      %c9 = arith.constant 9 : index
      %c0_89 = arith.constant 0 : index
      %89 = vector.load %arg22[%88, %c9, %c0_89] : memref<52x52x128xf32, #tpu.memory_space<vmem>>, vector<1x32x128xf32>
      %90 = vector.shape_cast %89 : vector<1x32x128xf32> to vector<32x128xf32>
      %91 = vector.extract_strided_slice %37 {offsets = [2, 0], sizes = [1, 128], strides = [1, 1]} : vector<7x128xf32> to vector<1x128xf32>
      %92 = vector.shape_cast %91 : vector<1x128xf32> to vector<128xf32>
      %93 = vector.shape_cast %92 : vector<128xf32> to vector<1x128xf32>
      %94 = vector.broadcast %93 : vector<1x128xf32> to vector<32x128xf32>
      %95 = arith.mulf %90, %94 : vector<32x128xf32>
      %96 = arith.addf %87, %95 : vector<32x128xf32>
      %97 = arith.index_cast %arg25 : i32 to index
      %c10_90 = arith.constant 10 : index
      %c0_91 = arith.constant 0 : index
      %98 = vector.load %arg22[%97, %c10_90, %c0_91] : memref<52x52x128xf32, #tpu.memory_space<vmem>>, vector<1x32x128xf32>
      %99 = vector.shape_cast %98 : vector<1x32x128xf32> to vector<32x128xf32>
      %100 = vector.extract_strided_slice %37 {offsets = [3, 0], sizes = [1, 128], strides = [1, 1]} : vector<7x128xf32> to vector<1x128xf32>
      %101 = vector.shape_cast %100 : vector<1x128xf32> to vector<128xf32>
      %102 = vector.shape_cast %101 : vector<128xf32> to vector<1x128xf32>
      %103 = vector.broadcast %102 : vector<1x128xf32> to vector<32x128xf32>
      %104 = arith.mulf %99, %103 : vector<32x128xf32>
      %105 = arith.addf %96, %104 : vector<32x128xf32>
      %106 = arith.index_cast %arg25 : i32 to index
      %c11 = arith.constant 11 : index
      %c0_92 = arith.constant 0 : index
      %107 = vector.load %arg22[%106, %c11, %c0_92] : memref<52x52x128xf32, #tpu.memory_space<vmem>>, vector<1x32x128xf32>
      %108 = vector.shape_cast %107 : vector<1x32x128xf32> to vector<32x128xf32>
      %109 = vector.extract_strided_slice %37 {offsets = [4, 0], sizes = [1, 128], strides = [1, 1]} : vector<7x128xf32> to vector<1x128xf32>
      %110 = vector.shape_cast %109 : vector<1x128xf32> to vector<128xf32>
      %111 = vector.shape_cast %110 : vector<128xf32> to vector<1x128xf32>
      %112 = vector.broadcast %111 : vector<1x128xf32> to vector<32x128xf32>
      %113 = arith.mulf %108, %112 : vector<32x128xf32>
      %114 = arith.addf %105, %113 : vector<32x128xf32>
      %115 = arith.index_cast %arg25 : i32 to index
      %c12_93 = arith.constant 12 : index
      %c0_94 = arith.constant 0 : index
      %116 = vector.load %arg22[%115, %c12_93, %c0_94] : memref<52x52x128xf32, #tpu.memory_space<vmem>>, vector<1x32x128xf32>
      %117 = vector.shape_cast %116 : vector<1x32x128xf32> to vector<32x128xf32>
      %118 = vector.extract_strided_slice %37 {offsets = [5, 0], sizes = [1, 128], strides = [1, 1]} : vector<7x128xf32> to vector<1x128xf32>
      %119 = vector.shape_cast %118 : vector<1x128xf32> to vector<128xf32>
      %120 = vector.shape_cast %119 : vector<128xf32> to vector<1x128xf32>
      %121 = vector.broadcast %120 : vector<1x128xf32> to vector<32x128xf32>
      %122 = arith.mulf %117, %121 : vector<32x128xf32>
      %123 = arith.addf %114, %122 : vector<32x128xf32>
      %124 = arith.index_cast %arg25 : i32 to index
      %c13 = arith.constant 13 : index
      %c0_95 = arith.constant 0 : index
      %125 = vector.load %arg22[%124, %c13, %c0_95] : memref<52x52x128xf32, #tpu.memory_space<vmem>>, vector<1x32x128xf32>
      %126 = vector.shape_cast %125 : vector<1x32x128xf32> to vector<32x128xf32>
      %127 = vector.extract_strided_slice %37 {offsets = [6, 0], sizes = [1, 128], strides = [1, 1]} : vector<7x128xf32> to vector<1x128xf32>
      %128 = vector.shape_cast %127 : vector<1x128xf32> to vector<128xf32>
      %129 = vector.shape_cast %128 : vector<128xf32> to vector<1x128xf32>
      %130 = vector.broadcast %129 : vector<1x128xf32> to vector<32x128xf32>
      %131 = arith.mulf %126, %130 : vector<32x128xf32>
      %132 = arith.addf %123, %131 : vector<32x128xf32>
      %133 = arith.addi %25, %arg25 : i32
      %c0_i32_96 = arith.constant 0 : i32
      %134 = arith.cmpi sge, %133, %c0_i32_96 : i32
      %135 = arith.addi %25, %arg25 : i32
      %c32_i32_97 = arith.constant 32 : i32
      %136 = arith.cmpi slt, %135, %c32_i32_97 : i32
      %137 = arith.andi %134, %136 : i1
      %138 = vector.broadcast %38 : vector<1x128xf32> to vector<32x128xf32>
      %139 = arith.addf %132, %138 : vector<32x128xf32>
      %cst_98 = arith.constant 0.000000e+00 : f32
      %140 = vector.broadcast %cst_98 : f32 to vector<32x128xf32>
      %141 = arith.select %137, %139, %140 : vector<32x128xf32>
      %142 = arith.index_cast %arg25 : i32 to index
      %c0_99 = arith.constant 0 : index
      %c0_100 = arith.constant 0 : index
      %143 = vector.load %arg23[%142, %c0_99, %c0_100] : memref<52x32x128xf32, #tpu.memory_space<vmem>>, vector<1x32x128xf32>
      %144 = vector.shape_cast %143 : vector<1x32x128xf32> to vector<32x128xf32>
      %145 = vector.shape_cast %141 : vector<32x128xf32> to vector<1x32x128xf32>
      tpu.vector_store %arg23[%142, %c0_99, %c0_100], %145 {strides = array<i32>} : memref<52x32x128xf32, #tpu.memory_space<vmem>>, vector<1x32x128xf32>,
    }
    %c38_i32_35 = arith.constant 38 : i32
    %c0_i32_36 = arith.constant 0 : i32
    %c32_i32_37 = arith.constant 32 : i32
    %42 = arith.addi %c0_i32_36, %c32_i32_37 : i32
    %c1_i32_38 = arith.constant 1 : i32
    scf.for %arg25 = %c0_i32_36 to %42 step %c1_i32_38  : i32 {
      %c10_i32_87 = arith.constant 10 : i32
      %71 = arith.addi %arg25, %c10_i32_87 : i32
      %c3_i32 = arith.constant 3 : i32
      %72 = arith.subi %71, %c3_i32 : i32
      %c0_i32_88 = arith.constant 0 : i32
      %73 = arith.addi %72, %c0_i32_88 : i32
      %74 = arith.index_cast %73 : i32 to index
      %c0_89 = arith.constant 0 : index
      %c0_90 = arith.constant 0 : index
      %75 = vector.load %arg23[%74, %c0_89, %c0_90] : memref<52x32x128xf32, #tpu.memory_space<vmem>>, vector<1x32x128xf32>
      %76 = vector.shape_cast %75 : vector<1x32x128xf32> to vector<32x128xf32>
      %77 = vector.extract_strided_slice %39 {offsets = [0, 0], sizes = [1, 128], strides = [1, 1]} : vector<7x128xf32> to vector<1x128xf32>
      %78 = vector.shape_cast %77 : vector<1x128xf32> to vector<128xf32>
      %79 = vector.shape_cast %78 : vector<128xf32> to vector<1x128xf32>
      %80 = vector.broadcast %79 : vector<1x128xf32> to vector<32x128xf32>
      %81 = arith.mulf %76, %80 : vector<32x128xf32>
      %c10_i32_91 = arith.constant 10 : i32
      %82 = arith.addi %arg25, %c10_i32_91 : i32
      %c3_i32_92 = arith.constant 3 : i32
      %83 = arith.subi %82, %c3_i32_92 : i32
      %c1_i32_93 = arith.constant 1 : i32
      %84 = arith.addi %83, %c1_i32_93 : i32
      %85 = arith.index_cast %84 : i32 to index
      %c0_94 = arith.constant 0 : index
      %c0_95 = arith.constant 0 : index
      %86 = vector.load %arg23[%85, %c0_94, %c0_95] : memref<52x32x128xf32, #tpu.memory_space<vmem>>, vector<1x32x128xf32>
      %87 = vector.shape_cast %86 : vector<1x32x128xf32> to vector<32x128xf32>
      %88 = vector.extract_strided_slice %39 {offsets = [1, 0], sizes = [1, 128], strides = [1, 1]} : vector<7x128xf32> to vector<1x128xf32>
      %89 = vector.shape_cast %88 : vector<1x128xf32> to vector<128xf32>
      %90 = vector.shape_cast %89 : vector<128xf32> to vector<1x128xf32>
      %91 = vector.broadcast %90 : vector<1x128xf32> to vector<32x128xf32>
      %92 = arith.mulf %87, %91 : vector<32x128xf32>
      %93 = arith.addf %81, %92 : vector<32x128xf32>
      %c10_i32_96 = arith.constant 10 : i32
      %94 = arith.addi %arg25, %c10_i32_96 : i32
      %c3_i32_97 = arith.constant 3 : i32
      %95 = arith.subi %94, %c3_i32_97 : i32
      %c2_i32_98 = arith.constant 2 : i32
      %96 = arith.addi %95, %c2_i32_98 : i32
      %97 = arith.index_cast %96 : i32 to index
      %c0_99 = arith.constant 0 : index
      %c0_100 = arith.constant 0 : index
      %98 = vector.load %arg23[%97, %c0_99, %c0_100] : memref<52x32x128xf32, #tpu.memory_space<vmem>>, vector<1x32x128xf32>
      %99 = vector.shape_cast %98 : vector<1x32x128xf32> to vector<32x128xf32>
      %100 = vector.extract_strided_slice %39 {offsets = [2, 0], sizes = [1, 128], strides = [1, 1]} : vector<7x128xf32> to vector<1x128xf32>
      %101 = vector.shape_cast %100 : vector<1x128xf32> to vector<128xf32>
      %102 = vector.shape_cast %101 : vector<128xf32> to vector<1x128xf32>
      %103 = vector.broadcast %102 : vector<1x128xf32> to vector<32x128xf32>
      %104 = arith.mulf %99, %103 : vector<32x128xf32>
      %105 = arith.addf %93, %104 : vector<32x128xf32>
      %c10_i32_101 = arith.constant 10 : i32
      %106 = arith.addi %arg25, %c10_i32_101 : i32
      %c3_i32_102 = arith.constant 3 : i32
      %107 = arith.subi %106, %c3_i32_102 : i32
      %c3_i32_103 = arith.constant 3 : i32
      %108 = arith.addi %107, %c3_i32_103 : i32
      %109 = arith.index_cast %108 : i32 to index
      %c0_104 = arith.constant 0 : index
      %c0_105 = arith.constant 0 : index
      %110 = vector.load %arg23[%109, %c0_104, %c0_105] : memref<52x32x128xf32, #tpu.memory_space<vmem>>, vector<1x32x128xf32>
      %111 = vector.shape_cast %110 : vector<1x32x128xf32> to vector<32x128xf32>
      %112 = vector.extract_strided_slice %39 {offsets = [3, 0], sizes = [1, 128], strides = [1, 1]} : vector<7x128xf32> to vector<1x128xf32>
      %113 = vector.shape_cast %112 : vector<1x128xf32> to vector<128xf32>
      %114 = vector.shape_cast %113 : vector<128xf32> to vector<1x128xf32>
      %115 = vector.broadcast %114 : vector<1x128xf32> to vector<32x128xf32>
      %116 = arith.mulf %111, %115 : vector<32x128xf32>
      %117 = arith.addf %105, %116 : vector<32x128xf32>
      %c10_i32_106 = arith.constant 10 : i32
      %118 = arith.addi %arg25, %c10_i32_106 : i32
      %c3_i32_107 = arith.constant 3 : i32
      %119 = arith.subi %118, %c3_i32_107 : i32
      %c4_i32 = arith.constant 4 : i32
      %120 = arith.addi %119, %c4_i32 : i32
      %121 = arith.index_cast %120 : i32 to index
      %c0_108 = arith.constant 0 : index
      %c0_109 = arith.constant 0 : index
      %122 = vector.load %arg23[%121, %c0_108, %c0_109] : memref<52x32x128xf32, #tpu.memory_space<vmem>>, vector<1x32x128xf32>
      %123 = vector.shape_cast %122 : vector<1x32x128xf32> to vector<32x128xf32>
      %124 = vector.extract_strided_slice %39 {offsets = [4, 0], sizes = [1, 128], strides = [1, 1]} : vector<7x128xf32> to vector<1x128xf32>
      %125 = vector.shape_cast %124 : vector<1x128xf32> to vector<128xf32>
      %126 = vector.shape_cast %125 : vector<128xf32> to vector<1x128xf32>
      %127 = vector.broadcast %126 : vector<1x128xf32> to vector<32x128xf32>
      %128 = arith.mulf %123, %127 : vector<32x128xf32>
      %129 = arith.addf %117, %128 : vector<32x128xf32>
      %c10_i32_110 = arith.constant 10 : i32
      %130 = arith.addi %arg25, %c10_i32_110 : i32
      %c3_i32_111 = arith.constant 3 : i32
      %131 = arith.subi %130, %c3_i32_111 : i32
      %c5_i32_112 = arith.constant 5 : i32
      %132 = arith.addi %131, %c5_i32_112 : i32
      %133 = arith.index_cast %132 : i32 to index
      %c0_113 = arith.constant 0 : index
      %c0_114 = arith.constant 0 : index
      %134 = vector.load %arg23[%133, %c0_113, %c0_114] : memref<52x32x128xf32, #tpu.memory_space<vmem>>, vector<1x32x128xf32>
      %135 = vector.shape_cast %134 : vector<1x32x128xf32> to vector<32x128xf32>
      %136 = vector.extract_strided_slice %39 {offsets = [5, 0], sizes = [1, 128], strides = [1, 1]} : vector<7x128xf32> to vector<1x128xf32>
      %137 = vector.shape_cast %136 : vector<1x128xf32> to vector<128xf32>
      %138 = vector.shape_cast %137 : vector<128xf32> to vector<1x128xf32>
      %139 = vector.broadcast %138 : vector<1x128xf32> to vector<32x128xf32>
      %140 = arith.mulf %135, %139 : vector<32x128xf32>
      %141 = arith.addf %129, %140 : vector<32x128xf32>
      %c10_i32_115 = arith.constant 10 : i32
      %142 = arith.addi %arg25, %c10_i32_115 : i32
      %c3_i32_116 = arith.constant 3 : i32
      %143 = arith.subi %142, %c3_i32_116 : i32
      %c6_i32 = arith.constant 6 : i32
      %144 = arith.addi %143, %c6_i32 : i32
      %145 = arith.index_cast %144 : i32 to index
      %c0_117 = arith.constant 0 : index
      %c0_118 = arith.constant 0 : index
      %146 = vector.load %arg23[%145, %c0_117, %c0_118] : memref<52x32x128xf32, #tpu.memory_space<vmem>>, vector<1x32x128xf32>
      %147 = vector.shape_cast %146 : vector<1x32x128xf32> to vector<32x128xf32>
      %148 = vector.extract_strided_slice %39 {offsets = [6, 0], sizes = [1, 128], strides = [1, 1]} : vector<7x128xf32> to vector<1x128xf32>
      %149 = vector.shape_cast %148 : vector<1x128xf32> to vector<128xf32>
      %150 = vector.shape_cast %149 : vector<128xf32> to vector<1x128xf32>
      %151 = vector.broadcast %150 : vector<1x128xf32> to vector<32x128xf32>
      %152 = arith.mulf %147, %151 : vector<32x128xf32>
      %153 = arith.addf %141, %152 : vector<32x128xf32>
      %154 = arith.index_cast %arg25 : i32 to index
      %c0_119 = arith.constant 0 : index
      %c0_120 = arith.constant 0 : index
      %155 = vector.load %arg24[%154, %c0_119, %c0_120] : memref<32x32x128xf32, #tpu.memory_space<vmem>>, vector<1x32x128xf32>
      %156 = vector.shape_cast %155 : vector<1x32x128xf32> to vector<32x128xf32>
      %157 = arith.addf %156, %153 : vector<32x128xf32>
      %158 = vector.broadcast %40 : vector<1x128xf32> to vector<32x128xf32>
      %159 = arith.addf %157, %158 : vector<32x128xf32>
      %160 = arith.index_cast %arg25 : i32 to index
      %c0_121 = arith.constant 0 : index
      %c0_122 = arith.constant 0 : index
      %161 = vector.load %arg24[%160, %c0_121, %c0_122] : memref<32x32x128xf32, #tpu.memory_space<vmem>>, vector<1x32x128xf32>
      %162 = vector.shape_cast %161 : vector<1x32x128xf32> to vector<32x128xf32>
      %163 = vector.shape_cast %159 : vector<32x128xf32> to vector<1x32x128xf32>
      tpu.vector_store %arg24[%160, %c0_121, %c0_122], %163 {strides = array<i32>} : memref<32x32x128xf32, #tpu.memory_space<vmem>>, vector<1x32x128xf32>,
    }
    %c32_i32_39 = arith.constant 32 : i32
    %c0_40 = arith.constant 0 : index
    %c0_41 = arith.constant 0 : index
    %43 = vector.load %arg9[%c0_40, %c0_41] : memref<11x128xf32, #tpu.memory_space<vmem>>, vector<11x128xf32>
    %c0_42 = arith.constant 0 : index
    %c0_43 = arith.constant 0 : index
    %44 = vector.load %arg10[%c0_42, %c0_43] : memref<1x128xf32, #tpu.memory_space<vmem>>, vector<1x128xf32>
    %c0_44 = arith.constant 0 : index
    %c0_45 = arith.constant 0 : index
    %45 = vector.load %arg11[%c0_44, %c0_45] : memref<11x128xf32, #tpu.memory_space<vmem>>, vector<11x128xf32>
    %c0_46 = arith.constant 0 : index
    %c0_47 = arith.constant 0 : index
    %46 = vector.load %arg12[%c0_46, %c0_47] : memref<1x128xf32, #tpu.memory_space<vmem>>, vector<1x128xf32>
    %c5_i32 = arith.constant 5 : i32
    %c42_i32_48 = arith.constant 42 : i32
    %47 = arith.addi %c5_i32, %c42_i32_48 : i32
    %c1_i32_49 = arith.constant 1 : i32
    scf.for %arg25 = %c5_i32 to %47 step %c1_i32_49  : i32 {
      %71 = arith.index_cast %arg25 : i32 to index
      %c5 = arith.constant 5 : index
      %c0_87 = arith.constant 0 : index
      %72 = vector.load %arg22[%71, %c5, %c0_87] : memref<52x52x128xf32, #tpu.memory_space<vmem>>, vector<1x32x128xf32>
      %73 = vector.shape_cast %72 : vector<1x32x128xf32> to vector<32x128xf32>
      %74 = vector.extract_strided_slice %43 {offsets = [0, 0], sizes = [1, 128], strides = [1, 1]} : vector<11x128xf32> to vector<1x128xf32>
      %75 = vector.shape_cast %74 : vector<1x128xf32> to vector<128xf32>
      %76 = vector.shape_cast %75 : vector<128xf32> to vector<1x128xf32>
      %77 = vector.broadcast %76 : vector<1x128xf32> to vector<32x128xf32>
      %78 = arith.mulf %73, %77 : vector<32x128xf32>
      %79 = arith.index_cast %arg25 : i32 to index
      %c6 = arith.constant 6 : index
      %c0_88 = arith.constant 0 : index
      %80 = vector.load %arg22[%79, %c6, %c0_88] : memref<52x52x128xf32, #tpu.memory_space<vmem>>, vector<1x32x128xf32>
      %81 = vector.shape_cast %80 : vector<1x32x128xf32> to vector<32x128xf32>
      %82 = vector.extract_strided_slice %43 {offsets = [1, 0], sizes = [1, 128], strides = [1, 1]} : vector<11x128xf32> to vector<1x128xf32>
      %83 = vector.shape_cast %82 : vector<1x128xf32> to vector<128xf32>
      %84 = vector.shape_cast %83 : vector<128xf32> to vector<1x128xf32>
      %85 = vector.broadcast %84 : vector<1x128xf32> to vector<32x128xf32>
      %86 = arith.mulf %81, %85 : vector<32x128xf32>
      %87 = arith.addf %78, %86 : vector<32x128xf32>
      %88 = arith.index_cast %arg25 : i32 to index
      %c7 = arith.constant 7 : index
      %c0_89 = arith.constant 0 : index
      %89 = vector.load %arg22[%88, %c7, %c0_89] : memref<52x52x128xf32, #tpu.memory_space<vmem>>, vector<1x32x128xf32>
      %90 = vector.shape_cast %89 : vector<1x32x128xf32> to vector<32x128xf32>
      %91 = vector.extract_strided_slice %43 {offsets = [2, 0], sizes = [1, 128], strides = [1, 1]} : vector<11x128xf32> to vector<1x128xf32>
      %92 = vector.shape_cast %91 : vector<1x128xf32> to vector<128xf32>
      %93 = vector.shape_cast %92 : vector<128xf32> to vector<1x128xf32>
      %94 = vector.broadcast %93 : vector<1x128xf32> to vector<32x128xf32>
      %95 = arith.mulf %90, %94 : vector<32x128xf32>
      %96 = arith.addf %87, %95 : vector<32x128xf32>
      %97 = arith.index_cast %arg25 : i32 to index
      %c8 = arith.constant 8 : index
      %c0_90 = arith.constant 0 : index
      %98 = vector.load %arg22[%97, %c8, %c0_90] : memref<52x52x128xf32, #tpu.memory_space<vmem>>, vector<1x32x128xf32>
      %99 = vector.shape_cast %98 : vector<1x32x128xf32> to vector<32x128xf32>
      %100 = vector.extract_strided_slice %43 {offsets = [3, 0], sizes = [1, 128], strides = [1, 1]} : vector<11x128xf32> to vector<1x128xf32>
      %101 = vector.shape_cast %100 : vector<1x128xf32> to vector<128xf32>
      %102 = vector.shape_cast %101 : vector<128xf32> to vector<1x128xf32>
      %103 = vector.broadcast %102 : vector<1x128xf32> to vector<32x128xf32>
      %104 = arith.mulf %99, %103 : vector<32x128xf32>
      %105 = arith.addf %96, %104 : vector<32x128xf32>
      %106 = arith.index_cast %arg25 : i32 to index
      %c9 = arith.constant 9 : index
      %c0_91 = arith.constant 0 : index
      %107 = vector.load %arg22[%106, %c9, %c0_91] : memref<52x52x128xf32, #tpu.memory_space<vmem>>, vector<1x32x128xf32>
      %108 = vector.shape_cast %107 : vector<1x32x128xf32> to vector<32x128xf32>
      %109 = vector.extract_strided_slice %43 {offsets = [4, 0], sizes = [1, 128], strides = [1, 1]} : vector<11x128xf32> to vector<1x128xf32>
      %110 = vector.shape_cast %109 : vector<1x128xf32> to vector<128xf32>
      %111 = vector.shape_cast %110 : vector<128xf32> to vector<1x128xf32>
      %112 = vector.broadcast %111 : vector<1x128xf32> to vector<32x128xf32>
      %113 = arith.mulf %108, %112 : vector<32x128xf32>
      %114 = arith.addf %105, %113 : vector<32x128xf32>
      %115 = arith.index_cast %arg25 : i32 to index
      %c10_92 = arith.constant 10 : index
      %c0_93 = arith.constant 0 : index
      %116 = vector.load %arg22[%115, %c10_92, %c0_93] : memref<52x52x128xf32, #tpu.memory_space<vmem>>, vector<1x32x128xf32>
      %117 = vector.shape_cast %116 : vector<1x32x128xf32> to vector<32x128xf32>
      %118 = vector.extract_strided_slice %43 {offsets = [5, 0], sizes = [1, 128], strides = [1, 1]} : vector<11x128xf32> to vector<1x128xf32>
      %119 = vector.shape_cast %118 : vector<1x128xf32> to vector<128xf32>
      %120 = vector.shape_cast %119 : vector<128xf32> to vector<1x128xf32>
      %121 = vector.broadcast %120 : vector<1x128xf32> to vector<32x128xf32>
      %122 = arith.mulf %117, %121 : vector<32x128xf32>
      %123 = arith.addf %114, %122 : vector<32x128xf32>
      %124 = arith.index_cast %arg25 : i32 to index
      %c11 = arith.constant 11 : index
      %c0_94 = arith.constant 0 : index
      %125 = vector.load %arg22[%124, %c11, %c0_94] : memref<52x52x128xf32, #tpu.memory_space<vmem>>, vector<1x32x128xf32>
      %126 = vector.shape_cast %125 : vector<1x32x128xf32> to vector<32x128xf32>
      %127 = vector.extract_strided_slice %43 {offsets = [6, 0], sizes = [1, 128], strides = [1, 1]} : vector<11x128xf32> to vector<1x128xf32>
      %128 = vector.shape_cast %127 : vector<1x128xf32> to vector<128xf32>
      %129 = vector.shape_cast %128 : vector<128xf32> to vector<1x128xf32>
      %130 = vector.broadcast %129 : vector<1x128xf32> to vector<32x128xf32>
      %131 = arith.mulf %126, %130 : vector<32x128xf32>
      %132 = arith.addf %123, %131 : vector<32x128xf32>
      %133 = arith.index_cast %arg25 : i32 to index
      %c12_95 = arith.constant 12 : index
      %c0_96 = arith.constant 0 : index
      %134 = vector.load %arg22[%133, %c12_95, %c0_96] : memref<52x52x128xf32, #tpu.memory_space<vmem>>, vector<1x32x128xf32>
      %135 = vector.shape_cast %134 : vector<1x32x128xf32> to vector<32x128xf32>
      %136 = vector.extract_strided_slice %43 {offsets = [7, 0], sizes = [1, 128], strides = [1, 1]} : vector<11x128xf32> to vector<1x128xf32>
      %137 = vector.shape_cast %136 : vector<1x128xf32> to vector<128xf32>
      %138 = vector.shape_cast %137 : vector<128xf32> to vector<1x128xf32>
      %139 = vector.broadcast %138 : vector<1x128xf32> to vector<32x128xf32>
      %140 = arith.mulf %135, %139 : vector<32x128xf32>
      %141 = arith.addf %132, %140 : vector<32x128xf32>
      %142 = arith.index_cast %arg25 : i32 to index
      %c13 = arith.constant 13 : index
      %c0_97 = arith.constant 0 : index
      %143 = vector.load %arg22[%142, %c13, %c0_97] : memref<52x52x128xf32, #tpu.memory_space<vmem>>, vector<1x32x128xf32>
      %144 = vector.shape_cast %143 : vector<1x32x128xf32> to vector<32x128xf32>
      %145 = vector.extract_strided_slice %43 {offsets = [8, 0], sizes = [1, 128], strides = [1, 1]} : vector<11x128xf32> to vector<1x128xf32>
      %146 = vector.shape_cast %145 : vector<1x128xf32> to vector<128xf32>
      %147 = vector.shape_cast %146 : vector<128xf32> to vector<1x128xf32>
      %148 = vector.broadcast %147 : vector<1x128xf32> to vector<32x128xf32>
      %149 = arith.mulf %144, %148 : vector<32x128xf32>
      %150 = arith.addf %141, %149 : vector<32x128xf32>
      %151 = arith.index_cast %arg25 : i32 to index
      %c14 = arith.constant 14 : index
      %c0_98 = arith.constant 0 : index
      %152 = vector.load %arg22[%151, %c14, %c0_98] : memref<52x52x128xf32, #tpu.memory_space<vmem>>, vector<1x32x128xf32>
      %153 = vector.shape_cast %152 : vector<1x32x128xf32> to vector<32x128xf32>
      %154 = vector.extract_strided_slice %43 {offsets = [9, 0], sizes = [1, 128], strides = [1, 1]} : vector<11x128xf32> to vector<1x128xf32>
      %155 = vector.shape_cast %154 : vector<1x128xf32> to vector<128xf32>
      %156 = vector.shape_cast %155 : vector<128xf32> to vector<1x128xf32>
      %157 = vector.broadcast %156 : vector<1x128xf32> to vector<32x128xf32>
      %158 = arith.mulf %153, %157 : vector<32x128xf32>
      %159 = arith.addf %150, %158 : vector<32x128xf32>
      %160 = arith.index_cast %arg25 : i32 to index
      %c15 = arith.constant 15 : index
      %c0_99 = arith.constant 0 : index
      %161 = vector.load %arg22[%160, %c15, %c0_99] : memref<52x52x128xf32, #tpu.memory_space<vmem>>, vector<1x32x128xf32>
      %162 = vector.shape_cast %161 : vector<1x32x128xf32> to vector<32x128xf32>
      %163 = vector.extract_strided_slice %43 {offsets = [10, 0], sizes = [1, 128], strides = [1, 1]} : vector<11x128xf32> to vector<1x128xf32>
      %164 = vector.shape_cast %163 : vector<1x128xf32> to vector<128xf32>
      %165 = vector.shape_cast %164 : vector<128xf32> to vector<1x128xf32>
      %166 = vector.broadcast %165 : vector<1x128xf32> to vector<32x128xf32>
      %167 = arith.mulf %162, %166 : vector<32x128xf32>
      %168 = arith.addf %159, %167 : vector<32x128xf32>
      %169 = arith.addi %25, %arg25 : i32
      %c0_i32_100 = arith.constant 0 : i32
      %170 = arith.cmpi sge, %169, %c0_i32_100 : i32
      %171 = arith.addi %25, %arg25 : i32
      %c32_i32_101 = arith.constant 32 : i32
      %172 = arith.cmpi slt, %171, %c32_i32_101 : i32
      %173 = arith.andi %170, %172 : i1
      %174 = vector.broadcast %44 : vector<1x128xf32> to vector<32x128xf32>
      %175 = arith.addf %168, %174 : vector<32x128xf32>
      %cst_102 = arith.constant 0.000000e+00 : f32
      %176 = vector.broadcast %cst_102 : f32 to vector<32x128xf32>
      %177 = arith.select %173, %175, %176 : vector<32x128xf32>
      %178 = arith.index_cast %arg25 : i32 to index
      %c0_103 = arith.constant 0 : index
      %c0_104 = arith.constant 0 : index
      %179 = vector.load %arg23[%178, %c0_103, %c0_104] : memref<52x32x128xf32, #tpu.memory_space<vmem>>, vector<1x32x128xf32>
      %180 = vector.shape_cast %179 : vector<1x32x128xf32> to vector<32x128xf32>
      %181 = vector.shape_cast %177 : vector<32x128xf32> to vector<1x32x128xf32>
      tpu.vector_store %arg23[%178, %c0_103, %c0_104], %181 {strides = array<i32>} : memref<52x32x128xf32, #tpu.memory_space<vmem>>, vector<1x32x128xf32>,
    }
    %c42_i32_50 = arith.constant 42 : i32
    %c0_i32_51 = arith.constant 0 : i32
    %c32_i32_52 = arith.constant 32 : i32
    %48 = arith.addi %c0_i32_51, %c32_i32_52 : i32
    %c1_i32_53 = arith.constant 1 : i32
    scf.for %arg25 = %c0_i32_51 to %48 step %c1_i32_53  : i32 {
      %c10_i32_87 = arith.constant 10 : i32
      %71 = arith.addi %arg25, %c10_i32_87 : i32
      %c5_i32_88 = arith.constant 5 : i32
      %72 = arith.subi %71, %c5_i32_88 : i32
      %c0_i32_89 = arith.constant 0 : i32
      %73 = arith.addi %72, %c0_i32_89 : i32
      %74 = arith.index_cast %73 : i32 to index
      %c0_90 = arith.constant 0 : index
      %c0_91 = arith.constant 0 : index
      %75 = vector.load %arg23[%74, %c0_90, %c0_91] : memref<52x32x128xf32, #tpu.memory_space<vmem>>, vector<1x32x128xf32>
      %76 = vector.shape_cast %75 : vector<1x32x128xf32> to vector<32x128xf32>
      %77 = vector.extract_strided_slice %45 {offsets = [0, 0], sizes = [1, 128], strides = [1, 1]} : vector<11x128xf32> to vector<1x128xf32>
      %78 = vector.shape_cast %77 : vector<1x128xf32> to vector<128xf32>
      %79 = vector.shape_cast %78 : vector<128xf32> to vector<1x128xf32>
      %80 = vector.broadcast %79 : vector<1x128xf32> to vector<32x128xf32>
      %81 = arith.mulf %76, %80 : vector<32x128xf32>
      %c10_i32_92 = arith.constant 10 : i32
      %82 = arith.addi %arg25, %c10_i32_92 : i32
      %c5_i32_93 = arith.constant 5 : i32
      %83 = arith.subi %82, %c5_i32_93 : i32
      %c1_i32_94 = arith.constant 1 : i32
      %84 = arith.addi %83, %c1_i32_94 : i32
      %85 = arith.index_cast %84 : i32 to index
      %c0_95 = arith.constant 0 : index
      %c0_96 = arith.constant 0 : index
      %86 = vector.load %arg23[%85, %c0_95, %c0_96] : memref<52x32x128xf32, #tpu.memory_space<vmem>>, vector<1x32x128xf32>
      %87 = vector.shape_cast %86 : vector<1x32x128xf32> to vector<32x128xf32>
      %88 = vector.extract_strided_slice %45 {offsets = [1, 0], sizes = [1, 128], strides = [1, 1]} : vector<11x128xf32> to vector<1x128xf32>
      %89 = vector.shape_cast %88 : vector<1x128xf32> to vector<128xf32>
      %90 = vector.shape_cast %89 : vector<128xf32> to vector<1x128xf32>
      %91 = vector.broadcast %90 : vector<1x128xf32> to vector<32x128xf32>
      %92 = arith.mulf %87, %91 : vector<32x128xf32>
      %93 = arith.addf %81, %92 : vector<32x128xf32>
      %c10_i32_97 = arith.constant 10 : i32
      %94 = arith.addi %arg25, %c10_i32_97 : i32
      %c5_i32_98 = arith.constant 5 : i32
      %95 = arith.subi %94, %c5_i32_98 : i32
      %c2_i32_99 = arith.constant 2 : i32
      %96 = arith.addi %95, %c2_i32_99 : i32
      %97 = arith.index_cast %96 : i32 to index
      %c0_100 = arith.constant 0 : index
      %c0_101 = arith.constant 0 : index
      %98 = vector.load %arg23[%97, %c0_100, %c0_101] : memref<52x32x128xf32, #tpu.memory_space<vmem>>, vector<1x32x128xf32>
      %99 = vector.shape_cast %98 : vector<1x32x128xf32> to vector<32x128xf32>
      %100 = vector.extract_strided_slice %45 {offsets = [2, 0], sizes = [1, 128], strides = [1, 1]} : vector<11x128xf32> to vector<1x128xf32>
      %101 = vector.shape_cast %100 : vector<1x128xf32> to vector<128xf32>
      %102 = vector.shape_cast %101 : vector<128xf32> to vector<1x128xf32>
      %103 = vector.broadcast %102 : vector<1x128xf32> to vector<32x128xf32>
      %104 = arith.mulf %99, %103 : vector<32x128xf32>
      %105 = arith.addf %93, %104 : vector<32x128xf32>
      %c10_i32_102 = arith.constant 10 : i32
      %106 = arith.addi %arg25, %c10_i32_102 : i32
      %c5_i32_103 = arith.constant 5 : i32
      %107 = arith.subi %106, %c5_i32_103 : i32
      %c3_i32 = arith.constant 3 : i32
      %108 = arith.addi %107, %c3_i32 : i32
      %109 = arith.index_cast %108 : i32 to index
      %c0_104 = arith.constant 0 : index
      %c0_105 = arith.constant 0 : index
      %110 = vector.load %arg23[%109, %c0_104, %c0_105] : memref<52x32x128xf32, #tpu.memory_space<vmem>>, vector<1x32x128xf32>
      %111 = vector.shape_cast %110 : vector<1x32x128xf32> to vector<32x128xf32>
      %112 = vector.extract_strided_slice %45 {offsets = [3, 0], sizes = [1, 128], strides = [1, 1]} : vector<11x128xf32> to vector<1x128xf32>
      %113 = vector.shape_cast %112 : vector<1x128xf32> to vector<128xf32>
      %114 = vector.shape_cast %113 : vector<128xf32> to vector<1x128xf32>
      %115 = vector.broadcast %114 : vector<1x128xf32> to vector<32x128xf32>
      %116 = arith.mulf %111, %115 : vector<32x128xf32>
      %117 = arith.addf %105, %116 : vector<32x128xf32>
      %c10_i32_106 = arith.constant 10 : i32
      %118 = arith.addi %arg25, %c10_i32_106 : i32
      %c5_i32_107 = arith.constant 5 : i32
      %119 = arith.subi %118, %c5_i32_107 : i32
      %c4_i32 = arith.constant 4 : i32
      %120 = arith.addi %119, %c4_i32 : i32
      %121 = arith.index_cast %120 : i32 to index
      %c0_108 = arith.constant 0 : index
      %c0_109 = arith.constant 0 : index
      %122 = vector.load %arg23[%121, %c0_108, %c0_109] : memref<52x32x128xf32, #tpu.memory_space<vmem>>, vector<1x32x128xf32>
      %123 = vector.shape_cast %122 : vector<1x32x128xf32> to vector<32x128xf32>
      %124 = vector.extract_strided_slice %45 {offsets = [4, 0], sizes = [1, 128], strides = [1, 1]} : vector<11x128xf32> to vector<1x128xf32>
      %125 = vector.shape_cast %124 : vector<1x128xf32> to vector<128xf32>
      %126 = vector.shape_cast %125 : vector<128xf32> to vector<1x128xf32>
      %127 = vector.broadcast %126 : vector<1x128xf32> to vector<32x128xf32>
      %128 = arith.mulf %123, %127 : vector<32x128xf32>
      %129 = arith.addf %117, %128 : vector<32x128xf32>
      %c10_i32_110 = arith.constant 10 : i32
      %130 = arith.addi %arg25, %c10_i32_110 : i32
      %c5_i32_111 = arith.constant 5 : i32
      %131 = arith.subi %130, %c5_i32_111 : i32
      %c5_i32_112 = arith.constant 5 : i32
      %132 = arith.addi %131, %c5_i32_112 : i32
      %133 = arith.index_cast %132 : i32 to index
      %c0_113 = arith.constant 0 : index
      %c0_114 = arith.constant 0 : index
      %134 = vector.load %arg23[%133, %c0_113, %c0_114] : memref<52x32x128xf32, #tpu.memory_space<vmem>>, vector<1x32x128xf32>
      %135 = vector.shape_cast %134 : vector<1x32x128xf32> to vector<32x128xf32>
      %136 = vector.extract_strided_slice %45 {offsets = [5, 0], sizes = [1, 128], strides = [1, 1]} : vector<11x128xf32> to vector<1x128xf32>
      %137 = vector.shape_cast %136 : vector<1x128xf32> to vector<128xf32>
      %138 = vector.shape_cast %137 : vector<128xf32> to vector<1x128xf32>
      %139 = vector.broadcast %138 : vector<1x128xf32> to vector<32x128xf32>
      %140 = arith.mulf %135, %139 : vector<32x128xf32>
      %141 = arith.addf %129, %140 : vector<32x128xf32>
      %c10_i32_115 = arith.constant 10 : i32
      %142 = arith.addi %arg25, %c10_i32_115 : i32
      %c5_i32_116 = arith.constant 5 : i32
      %143 = arith.subi %142, %c5_i32_116 : i32
      %c6_i32 = arith.constant 6 : i32
      %144 = arith.addi %143, %c6_i32 : i32
      %145 = arith.index_cast %144 : i32 to index
      %c0_117 = arith.constant 0 : index
      %c0_118 = arith.constant 0 : index
      %146 = vector.load %arg23[%145, %c0_117, %c0_118] : memref<52x32x128xf32, #tpu.memory_space<vmem>>, vector<1x32x128xf32>
      %147 = vector.shape_cast %146 : vector<1x32x128xf32> to vector<32x128xf32>
      %148 = vector.extract_strided_slice %45 {offsets = [6, 0], sizes = [1, 128], strides = [1, 1]} : vector<11x128xf32> to vector<1x128xf32>
      %149 = vector.shape_cast %148 : vector<1x128xf32> to vector<128xf32>
      %150 = vector.shape_cast %149 : vector<128xf32> to vector<1x128xf32>
      %151 = vector.broadcast %150 : vector<1x128xf32> to vector<32x128xf32>
      %152 = arith.mulf %147, %151 : vector<32x128xf32>
      %153 = arith.addf %141, %152 : vector<32x128xf32>
      %c10_i32_119 = arith.constant 10 : i32
      %154 = arith.addi %arg25, %c10_i32_119 : i32
      %c5_i32_120 = arith.constant 5 : i32
      %155 = arith.subi %154, %c5_i32_120 : i32
      %c7_i32_121 = arith.constant 7 : i32
      %156 = arith.addi %155, %c7_i32_121 : i32
      %157 = arith.index_cast %156 : i32 to index
      %c0_122 = arith.constant 0 : index
      %c0_123 = arith.constant 0 : index
      %158 = vector.load %arg23[%157, %c0_122, %c0_123] : memref<52x32x128xf32, #tpu.memory_space<vmem>>, vector<1x32x128xf32>
      %159 = vector.shape_cast %158 : vector<1x32x128xf32> to vector<32x128xf32>
      %160 = vector.extract_strided_slice %45 {offsets = [7, 0], sizes = [1, 128], strides = [1, 1]} : vector<11x128xf32> to vector<1x128xf32>
      %161 = vector.shape_cast %160 : vector<1x128xf32> to vector<128xf32>
      %162 = vector.shape_cast %161 : vector<128xf32> to vector<1x128xf32>
      %163 = vector.broadcast %162 : vector<1x128xf32> to vector<32x128xf32>
      %164 = arith.mulf %159, %163 : vector<32x128xf32>
      %165 = arith.addf %153, %164 : vector<32x128xf32>
      %c10_i32_124 = arith.constant 10 : i32
      %166 = arith.addi %arg25, %c10_i32_124 : i32
      %c5_i32_125 = arith.constant 5 : i32
      %167 = arith.subi %166, %c5_i32_125 : i32
      %c8_i32 = arith.constant 8 : i32
      %168 = arith.addi %167, %c8_i32 : i32
      %169 = arith.index_cast %168 : i32 to index
      %c0_126 = arith.constant 0 : index
      %c0_127 = arith.constant 0 : index
      %170 = vector.load %arg23[%169, %c0_126, %c0_127] : memref<52x32x128xf32, #tpu.memory_space<vmem>>, vector<1x32x128xf32>
      %171 = vector.shape_cast %170 : vector<1x32x128xf32> to vector<32x128xf32>
      %172 = vector.extract_strided_slice %45 {offsets = [8, 0], sizes = [1, 128], strides = [1, 1]} : vector<11x128xf32> to vector<1x128xf32>
      %173 = vector.shape_cast %172 : vector<1x128xf32> to vector<128xf32>
      %174 = vector.shape_cast %173 : vector<128xf32> to vector<1x128xf32>
      %175 = vector.broadcast %174 : vector<1x128xf32> to vector<32x128xf32>
      %176 = arith.mulf %171, %175 : vector<32x128xf32>
      %177 = arith.addf %165, %176 : vector<32x128xf32>
      %c10_i32_128 = arith.constant 10 : i32
      %178 = arith.addi %arg25, %c10_i32_128 : i32
      %c5_i32_129 = arith.constant 5 : i32
      %179 = arith.subi %178, %c5_i32_129 : i32
      %c9_i32 = arith.constant 9 : i32
      %180 = arith.addi %179, %c9_i32 : i32
      %181 = arith.index_cast %180 : i32 to index
      %c0_130 = arith.constant 0 : index
      %c0_131 = arith.constant 0 : index
      %182 = vector.load %arg23[%181, %c0_130, %c0_131] : memref<52x32x128xf32, #tpu.memory_space<vmem>>, vector<1x32x128xf32>
      %183 = vector.shape_cast %182 : vector<1x32x128xf32> to vector<32x128xf32>
      %184 = vector.extract_strided_slice %45 {offsets = [9, 0], sizes = [1, 128], strides = [1, 1]} : vector<11x128xf32> to vector<1x128xf32>
      %185 = vector.shape_cast %184 : vector<1x128xf32> to vector<128xf32>
      %186 = vector.shape_cast %185 : vector<128xf32> to vector<1x128xf32>
      %187 = vector.broadcast %186 : vector<1x128xf32> to vector<32x128xf32>
      %188 = arith.mulf %183, %187 : vector<32x128xf32>
      %189 = arith.addf %177, %188 : vector<32x128xf32>
      %c10_i32_132 = arith.constant 10 : i32
      %190 = arith.addi %arg25, %c10_i32_132 : i32
      %c5_i32_133 = arith.constant 5 : i32
      %191 = arith.subi %190, %c5_i32_133 : i32
      %c10_i32_134 = arith.constant 10 : i32
      %192 = arith.addi %191, %c10_i32_134 : i32
      %193 = arith.index_cast %192 : i32 to index
      %c0_135 = arith.constant 0 : index
      %c0_136 = arith.constant 0 : index
      %194 = vector.load %arg23[%193, %c0_135, %c0_136] : memref<52x32x128xf32, #tpu.memory_space<vmem>>, vector<1x32x128xf32>
      %195 = vector.shape_cast %194 : vector<1x32x128xf32> to vector<32x128xf32>
      %196 = vector.extract_strided_slice %45 {offsets = [10, 0], sizes = [1, 128], strides = [1, 1]} : vector<11x128xf32> to vector<1x128xf32>
      %197 = vector.shape_cast %196 : vector<1x128xf32> to vector<128xf32>
      %198 = vector.shape_cast %197 : vector<128xf32> to vector<1x128xf32>
      %199 = vector.broadcast %198 : vector<1x128xf32> to vector<32x128xf32>
      %200 = arith.mulf %195, %199 : vector<32x128xf32>
      %201 = arith.addf %189, %200 : vector<32x128xf32>
      %202 = arith.index_cast %arg25 : i32 to index
      %c0_137 = arith.constant 0 : index
      %c0_138 = arith.constant 0 : index
      %203 = vector.load %arg24[%202, %c0_137, %c0_138] : memref<32x32x128xf32, #tpu.memory_space<vmem>>, vector<1x32x128xf32>
      %204 = vector.shape_cast %203 : vector<1x32x128xf32> to vector<32x128xf32>
      %205 = arith.addf %204, %201 : vector<32x128xf32>
      %206 = vector.broadcast %46 : vector<1x128xf32> to vector<32x128xf32>
      %207 = arith.addf %205, %206 : vector<32x128xf32>
      %208 = arith.index_cast %arg25 : i32 to index
      %c0_139 = arith.constant 0 : index
      %c0_140 = arith.constant 0 : index
      %209 = vector.load %arg24[%208, %c0_139, %c0_140] : memref<32x32x128xf32, #tpu.memory_space<vmem>>, vector<1x32x128xf32>
      %210 = vector.shape_cast %209 : vector<1x32x128xf32> to vector<32x128xf32>
      %211 = vector.shape_cast %207 : vector<32x128xf32> to vector<1x32x128xf32>
      tpu.vector_store %arg24[%208, %c0_139, %c0_140], %211 {strides = array<i32>} : memref<32x32x128xf32, #tpu.memory_space<vmem>>, vector<1x32x128xf32>,
    }
    %c32_i32_54 = arith.constant 32 : i32
    %c0_55 = arith.constant 0 : index
    %c0_56 = arith.constant 0 : index
    %49 = vector.load %arg13[%c0_55, %c0_56] : memref<21x128xf32, #tpu.memory_space<vmem>>, vector<21x128xf32>
    %c0_57 = arith.constant 0 : index
    %c0_58 = arith.constant 0 : index
    %50 = vector.load %arg14[%c0_57, %c0_58] : memref<1x128xf32, #tpu.memory_space<vmem>>, vector<1x128xf32>
    %c0_59 = arith.constant 0 : index
    %c0_60 = arith.constant 0 : index
    %51 = vector.load %arg15[%c0_59, %c0_60] : memref<21x128xf32, #tpu.memory_space<vmem>>, vector<21x128xf32>
    %c0_61 = arith.constant 0 : index
    %c0_62 = arith.constant 0 : index
    %52 = vector.load %arg16[%c0_61, %c0_62] : memref<1x128xf32, #tpu.memory_space<vmem>>, vector<1x128xf32>
    %c0_i32_63 = arith.constant 0 : i32
    %c52_i32_64 = arith.constant 52 : i32
    %53 = arith.addi %c0_i32_63, %c52_i32_64 : i32
    %c1_i32_65 = arith.constant 1 : i32
    scf.for %arg25 = %c0_i32_63 to %53 step %c1_i32_65  : i32 {
      %71 = arith.index_cast %arg25 : i32 to index
      %c0_87 = arith.constant 0 : index
      %c0_88 = arith.constant 0 : index
      %72 = vector.load %arg22[%71, %c0_87, %c0_88] : memref<52x52x128xf32, #tpu.memory_space<vmem>>, vector<1x32x128xf32>
      %73 = vector.shape_cast %72 : vector<1x32x128xf32> to vector<32x128xf32>
      %74 = vector.extract_strided_slice %49 {offsets = [0, 0], sizes = [1, 128], strides = [1, 1]} : vector<21x128xf32> to vector<1x128xf32>
      %75 = vector.shape_cast %74 : vector<1x128xf32> to vector<128xf32>
      %76 = vector.shape_cast %75 : vector<128xf32> to vector<1x128xf32>
      %77 = vector.broadcast %76 : vector<1x128xf32> to vector<32x128xf32>
      %78 = arith.mulf %73, %77 : vector<32x128xf32>
      %79 = arith.index_cast %arg25 : i32 to index
      %c1 = arith.constant 1 : index
      %c0_89 = arith.constant 0 : index
      %80 = vector.load %arg22[%79, %c1, %c0_89] : memref<52x52x128xf32, #tpu.memory_space<vmem>>, vector<1x32x128xf32>
      %81 = vector.shape_cast %80 : vector<1x32x128xf32> to vector<32x128xf32>
      %82 = vector.extract_strided_slice %49 {offsets = [1, 0], sizes = [1, 128], strides = [1, 1]} : vector<21x128xf32> to vector<1x128xf32>
      %83 = vector.shape_cast %82 : vector<1x128xf32> to vector<128xf32>
      %84 = vector.shape_cast %83 : vector<128xf32> to vector<1x128xf32>
      %85 = vector.broadcast %84 : vector<1x128xf32> to vector<32x128xf32>
      %86 = arith.mulf %81, %85 : vector<32x128xf32>
      %87 = arith.addf %78, %86 : vector<32x128xf32>
      %88 = arith.index_cast %arg25 : i32 to index
      %c2 = arith.constant 2 : index
      %c0_90 = arith.constant 0 : index
      %89 = vector.load %arg22[%88, %c2, %c0_90] : memref<52x52x128xf32, #tpu.memory_space<vmem>>, vector<1x32x128xf32>
      %90 = vector.shape_cast %89 : vector<1x32x128xf32> to vector<32x128xf32>
      %91 = vector.extract_strided_slice %49 {offsets = [2, 0], sizes = [1, 128], strides = [1, 1]} : vector<21x128xf32> to vector<1x128xf32>
      %92 = vector.shape_cast %91 : vector<1x128xf32> to vector<128xf32>
      %93 = vector.shape_cast %92 : vector<128xf32> to vector<1x128xf32>
      %94 = vector.broadcast %93 : vector<1x128xf32> to vector<32x128xf32>
      %95 = arith.mulf %90, %94 : vector<32x128xf32>
      %96 = arith.addf %87, %95 : vector<32x128xf32>
      %97 = arith.index_cast %arg25 : i32 to index
      %c3 = arith.constant 3 : index
      %c0_91 = arith.constant 0 : index
      %98 = vector.load %arg22[%97, %c3, %c0_91] : memref<52x52x128xf32, #tpu.memory_space<vmem>>, vector<1x32x128xf32>
      %99 = vector.shape_cast %98 : vector<1x32x128xf32> to vector<32x128xf32>
      %100 = vector.extract_strided_slice %49 {offsets = [3, 0], sizes = [1, 128], strides = [1, 1]} : vector<21x128xf32> to vector<1x128xf32>
      %101 = vector.shape_cast %100 : vector<1x128xf32> to vector<128xf32>
      %102 = vector.shape_cast %101 : vector<128xf32> to vector<1x128xf32>
      %103 = vector.broadcast %102 : vector<1x128xf32> to vector<32x128xf32>
      %104 = arith.mulf %99, %103 : vector<32x128xf32>
      %105 = arith.addf %96, %104 : vector<32x128xf32>
      %106 = arith.index_cast %arg25 : i32 to index
      %c4 = arith.constant 4 : index
      %c0_92 = arith.constant 0 : index
      %107 = vector.load %arg22[%106, %c4, %c0_92] : memref<52x52x128xf32, #tpu.memory_space<vmem>>, vector<1x32x128xf32>
      %108 = vector.shape_cast %107 : vector<1x32x128xf32> to vector<32x128xf32>
      %109 = vector.extract_strided_slice %49 {offsets = [4, 0], sizes = [1, 128], strides = [1, 1]} : vector<21x128xf32> to vector<1x128xf32>
      %110 = vector.shape_cast %109 : vector<1x128xf32> to vector<128xf32>
      %111 = vector.shape_cast %110 : vector<128xf32> to vector<1x128xf32>
      %112 = vector.broadcast %111 : vector<1x128xf32> to vector<32x128xf32>
      %113 = arith.mulf %108, %112 : vector<32x128xf32>
      %114 = arith.addf %105, %113 : vector<32x128xf32>
      %115 = arith.index_cast %arg25 : i32 to index
      %c5 = arith.constant 5 : index
      %c0_93 = arith.constant 0 : index
      %116 = vector.load %arg22[%115, %c5, %c0_93] : memref<52x52x128xf32, #tpu.memory_space<vmem>>, vector<1x32x128xf32>
      %117 = vector.shape_cast %116 : vector<1x32x128xf32> to vector<32x128xf32>
      %118 = vector.extract_strided_slice %49 {offsets = [5, 0], sizes = [1, 128], strides = [1, 1]} : vector<21x128xf32> to vector<1x128xf32>
      %119 = vector.shape_cast %118 : vector<1x128xf32> to vector<128xf32>
      %120 = vector.shape_cast %119 : vector<128xf32> to vector<1x128xf32>
      %121 = vector.broadcast %120 : vector<1x128xf32> to vector<32x128xf32>
      %122 = arith.mulf %117, %121 : vector<32x128xf32>
      %123 = arith.addf %114, %122 : vector<32x128xf32>
      %124 = arith.index_cast %arg25 : i32 to index
      %c6 = arith.constant 6 : index
      %c0_94 = arith.constant 0 : index
      %125 = vector.load %arg22[%124, %c6, %c0_94] : memref<52x52x128xf32, #tpu.memory_space<vmem>>, vector<1x32x128xf32>
      %126 = vector.shape_cast %125 : vector<1x32x128xf32> to vector<32x128xf32>
      %127 = vector.extract_strided_slice %49 {offsets = [6, 0], sizes = [1, 128], strides = [1, 1]} : vector<21x128xf32> to vector<1x128xf32>
      %128 = vector.shape_cast %127 : vector<1x128xf32> to vector<128xf32>
      %129 = vector.shape_cast %128 : vector<128xf32> to vector<1x128xf32>
      %130 = vector.broadcast %129 : vector<1x128xf32> to vector<32x128xf32>
      %131 = arith.mulf %126, %130 : vector<32x128xf32>
      %132 = arith.addf %123, %131 : vector<32x128xf32>
      %133 = arith.index_cast %arg25 : i32 to index
      %c7 = arith.constant 7 : index
      %c0_95 = arith.constant 0 : index
      %134 = vector.load %arg22[%133, %c7, %c0_95] : memref<52x52x128xf32, #tpu.memory_space<vmem>>, vector<1x32x128xf32>
      %135 = vector.shape_cast %134 : vector<1x32x128xf32> to vector<32x128xf32>
      %136 = vector.extract_strided_slice %49 {offsets = [7, 0], sizes = [1, 128], strides = [1, 1]} : vector<21x128xf32> to vector<1x128xf32>
      %137 = vector.shape_cast %136 : vector<1x128xf32> to vector<128xf32>
      %138 = vector.shape_cast %137 : vector<128xf32> to vector<1x128xf32>
      %139 = vector.broadcast %138 : vector<1x128xf32> to vector<32x128xf32>
      %140 = arith.mulf %135, %139 : vector<32x128xf32>
      %141 = arith.addf %132, %140 : vector<32x128xf32>
      %142 = arith.index_cast %arg25 : i32 to index
      %c8 = arith.constant 8 : index
      %c0_96 = arith.constant 0 : index
      %143 = vector.load %arg22[%142, %c8, %c0_96] : memref<52x52x128xf32, #tpu.memory_space<vmem>>, vector<1x32x128xf32>
      %144 = vector.shape_cast %143 : vector<1x32x128xf32> to vector<32x128xf32>
      %145 = vector.extract_strided_slice %49 {offsets = [8, 0], sizes = [1, 128], strides = [1, 1]} : vector<21x128xf32> to vector<1x128xf32>
      %146 = vector.shape_cast %145 : vector<1x128xf32> to vector<128xf32>
      %147 = vector.shape_cast %146 : vector<128xf32> to vector<1x128xf32>
      %148 = vector.broadcast %147 : vector<1x128xf32> to vector<32x128xf32>
      %149 = arith.mulf %144, %148 : vector<32x128xf32>
      %150 = arith.addf %141, %149 : vector<32x128xf32>
      %151 = arith.index_cast %arg25 : i32 to index
      %c9 = arith.constant 9 : index
      %c0_97 = arith.constant 0 : index
      %152 = vector.load %arg22[%151, %c9, %c0_97] : memref<52x52x128xf32, #tpu.memory_space<vmem>>, vector<1x32x128xf32>
      %153 = vector.shape_cast %152 : vector<1x32x128xf32> to vector<32x128xf32>
      %154 = vector.extract_strided_slice %49 {offsets = [9, 0], sizes = [1, 128], strides = [1, 1]} : vector<21x128xf32> to vector<1x128xf32>
      %155 = vector.shape_cast %154 : vector<1x128xf32> to vector<128xf32>
      %156 = vector.shape_cast %155 : vector<128xf32> to vector<1x128xf32>
      %157 = vector.broadcast %156 : vector<1x128xf32> to vector<32x128xf32>
      %158 = arith.mulf %153, %157 : vector<32x128xf32>
      %159 = arith.addf %150, %158 : vector<32x128xf32>
      %160 = arith.index_cast %arg25 : i32 to index
      %c10_98 = arith.constant 10 : index
      %c0_99 = arith.constant 0 : index
      %161 = vector.load %arg22[%160, %c10_98, %c0_99] : memref<52x52x128xf32, #tpu.memory_space<vmem>>, vector<1x32x128xf32>
      %162 = vector.shape_cast %161 : vector<1x32x128xf32> to vector<32x128xf32>
      %163 = vector.extract_strided_slice %49 {offsets = [10, 0], sizes = [1, 128], strides = [1, 1]} : vector<21x128xf32> to vector<1x128xf32>
      %164 = vector.shape_cast %163 : vector<1x128xf32> to vector<128xf32>
      %165 = vector.shape_cast %164 : vector<128xf32> to vector<1x128xf32>
      %166 = vector.broadcast %165 : vector<1x128xf32> to vector<32x128xf32>
      %167 = arith.mulf %162, %166 : vector<32x128xf32>
      %168 = arith.addf %159, %167 : vector<32x128xf32>
      %169 = arith.index_cast %arg25 : i32 to index
      %c11 = arith.constant 11 : index
      %c0_100 = arith.constant 0 : index
      %170 = vector.load %arg22[%169, %c11, %c0_100] : memref<52x52x128xf32, #tpu.memory_space<vmem>>, vector<1x32x128xf32>
      %171 = vector.shape_cast %170 : vector<1x32x128xf32> to vector<32x128xf32>
      %172 = vector.extract_strided_slice %49 {offsets = [11, 0], sizes = [1, 128], strides = [1, 1]} : vector<21x128xf32> to vector<1x128xf32>
      %173 = vector.shape_cast %172 : vector<1x128xf32> to vector<128xf32>
      %174 = vector.shape_cast %173 : vector<128xf32> to vector<1x128xf32>
      %175 = vector.broadcast %174 : vector<1x128xf32> to vector<32x128xf32>
      %176 = arith.mulf %171, %175 : vector<32x128xf32>
      %177 = arith.addf %168, %176 : vector<32x128xf32>
      %178 = arith.index_cast %arg25 : i32 to index
      %c12_101 = arith.constant 12 : index
      %c0_102 = arith.constant 0 : index
      %179 = vector.load %arg22[%178, %c12_101, %c0_102] : memref<52x52x128xf32, #tpu.memory_space<vmem>>, vector<1x32x128xf32>
      %180 = vector.shape_cast %179 : vector<1x32x128xf32> to vector<32x128xf32>
      %181 = vector.extract_strided_slice %49 {offsets = [12, 0], sizes = [1, 128], strides = [1, 1]} : vector<21x128xf32> to vector<1x128xf32>
      %182 = vector.shape_cast %181 : vector<1x128xf32> to vector<128xf32>
      %183 = vector.shape_cast %182 : vector<128xf32> to vector<1x128xf32>
      %184 = vector.broadcast %183 : vector<1x128xf32> to vector<32x128xf32>
      %185 = arith.mulf %180, %184 : vector<32x128xf32>
      %186 = arith.addf %177, %185 : vector<32x128xf32>
      %187 = arith.index_cast %arg25 : i32 to index
      %c13 = arith.constant 13 : index
      %c0_103 = arith.constant 0 : index
      %188 = vector.load %arg22[%187, %c13, %c0_103] : memref<52x52x128xf32, #tpu.memory_space<vmem>>, vector<1x32x128xf32>
      %189 = vector.shape_cast %188 : vector<1x32x128xf32> to vector<32x128xf32>
      %190 = vector.extract_strided_slice %49 {offsets = [13, 0], sizes = [1, 128], strides = [1, 1]} : vector<21x128xf32> to vector<1x128xf32>
      %191 = vector.shape_cast %190 : vector<1x128xf32> to vector<128xf32>
      %192 = vector.shape_cast %191 : vector<128xf32> to vector<1x128xf32>
      %193 = vector.broadcast %192 : vector<1x128xf32> to vector<32x128xf32>
      %194 = arith.mulf %189, %193 : vector<32x128xf32>
      %195 = arith.addf %186, %194 : vector<32x128xf32>
      %196 = arith.index_cast %arg25 : i32 to index
      %c14 = arith.constant 14 : index
      %c0_104 = arith.constant 0 : index
      %197 = vector.load %arg22[%196, %c14, %c0_104] : memref<52x52x128xf32, #tpu.memory_space<vmem>>, vector<1x32x128xf32>
      %198 = vector.shape_cast %197 : vector<1x32x128xf32> to vector<32x128xf32>
      %199 = vector.extract_strided_slice %49 {offsets = [14, 0], sizes = [1, 128], strides = [1, 1]} : vector<21x128xf32> to vector<1x128xf32>
      %200 = vector.shape_cast %199 : vector<1x128xf32> to vector<128xf32>
      %201 = vector.shape_cast %200 : vector<128xf32> to vector<1x128xf32>
      %202 = vector.broadcast %201 : vector<1x128xf32> to vector<32x128xf32>
      %203 = arith.mulf %198, %202 : vector<32x128xf32>
      %204 = arith.addf %195, %203 : vector<32x128xf32>
      %205 = arith.index_cast %arg25 : i32 to index
      %c15 = arith.constant 15 : index
      %c0_105 = arith.constant 0 : index
      %206 = vector.load %arg22[%205, %c15, %c0_105] : memref<52x52x128xf32, #tpu.memory_space<vmem>>, vector<1x32x128xf32>
      %207 = vector.shape_cast %206 : vector<1x32x128xf32> to vector<32x128xf32>
      %208 = vector.extract_strided_slice %49 {offsets = [15, 0], sizes = [1, 128], strides = [1, 1]} : vector<21x128xf32> to vector<1x128xf32>
      %209 = vector.shape_cast %208 : vector<1x128xf32> to vector<128xf32>
      %210 = vector.shape_cast %209 : vector<128xf32> to vector<1x128xf32>
      %211 = vector.broadcast %210 : vector<1x128xf32> to vector<32x128xf32>
      %212 = arith.mulf %207, %211 : vector<32x128xf32>
      %213 = arith.addf %204, %212 : vector<32x128xf32>
      %214 = arith.index_cast %arg25 : i32 to index
      %c16 = arith.constant 16 : index
      %c0_106 = arith.constant 0 : index
      %215 = vector.load %arg22[%214, %c16, %c0_106] : memref<52x52x128xf32, #tpu.memory_space<vmem>>, vector<1x32x128xf32>
      %216 = vector.shape_cast %215 : vector<1x32x128xf32> to vector<32x128xf32>
      %217 = vector.extract_strided_slice %49 {offsets = [16, 0], sizes = [1, 128], strides = [1, 1]} : vector<21x128xf32> to vector<1x128xf32>
      %218 = vector.shape_cast %217 : vector<1x128xf32> to vector<128xf32>
      %219 = vector.shape_cast %218 : vector<128xf32> to vector<1x128xf32>
      %220 = vector.broadcast %219 : vector<1x128xf32> to vector<32x128xf32>
      %221 = arith.mulf %216, %220 : vector<32x128xf32>
      %222 = arith.addf %213, %221 : vector<32x128xf32>
      %223 = arith.index_cast %arg25 : i32 to index
      %c17 = arith.constant 17 : index
      %c0_107 = arith.constant 0 : index
      %224 = vector.load %arg22[%223, %c17, %c0_107] : memref<52x52x128xf32, #tpu.memory_space<vmem>>, vector<1x32x128xf32>
      %225 = vector.shape_cast %224 : vector<1x32x128xf32> to vector<32x128xf32>
      %226 = vector.extract_strided_slice %49 {offsets = [17, 0], sizes = [1, 128], strides = [1, 1]} : vector<21x128xf32> to vector<1x128xf32>
      %227 = vector.shape_cast %226 : vector<1x128xf32> to vector<128xf32>
      %228 = vector.shape_cast %227 : vector<128xf32> to vector<1x128xf32>
      %229 = vector.broadcast %228 : vector<1x128xf32> to vector<32x128xf32>
      %230 = arith.mulf %225, %229 : vector<32x128xf32>
      %231 = arith.addf %222, %230 : vector<32x128xf32>
      %232 = arith.index_cast %arg25 : i32 to index
      %c18 = arith.constant 18 : index
      %c0_108 = arith.constant 0 : index
      %233 = vector.load %arg22[%232, %c18, %c0_108] : memref<52x52x128xf32, #tpu.memory_space<vmem>>, vector<1x32x128xf32>
      %234 = vector.shape_cast %233 : vector<1x32x128xf32> to vector<32x128xf32>
      %235 = vector.extract_strided_slice %49 {offsets = [18, 0], sizes = [1, 128], strides = [1, 1]} : vector<21x128xf32> to vector<1x128xf32>
      %236 = vector.shape_cast %235 : vector<1x128xf32> to vector<128xf32>
      %237 = vector.shape_cast %236 : vector<128xf32> to vector<1x128xf32>
      %238 = vector.broadcast %237 : vector<1x128xf32> to vector<32x128xf32>
      %239 = arith.mulf %234, %238 : vector<32x128xf32>
      %240 = arith.addf %231, %239 : vector<32x128xf32>
      %241 = arith.index_cast %arg25 : i32 to index
      %c19 = arith.constant 19 : index
      %c0_109 = arith.constant 0 : index
      %242 = vector.load %arg22[%241, %c19, %c0_109] : memref<52x52x128xf32, #tpu.memory_space<vmem>>, vector<1x32x128xf32>
      %243 = vector.shape_cast %242 : vector<1x32x128xf32> to vector<32x128xf32>
      %244 = vector.extract_strided_slice %49 {offsets = [19, 0], sizes = [1, 128], strides = [1, 1]} : vector<21x128xf32> to vector<1x128xf32>
      %245 = vector.shape_cast %244 : vector<1x128xf32> to vector<128xf32>
      %246 = vector.shape_cast %245 : vector<128xf32> to vector<1x128xf32>
      %247 = vector.broadcast %246 : vector<1x128xf32> to vector<32x128xf32>
      %248 = arith.mulf %243, %247 : vector<32x128xf32>
      %249 = arith.addf %240, %248 : vector<32x128xf32>
      %250 = arith.index_cast %arg25 : i32 to index
      %c20 = arith.constant 20 : index
      %c0_110 = arith.constant 0 : index
      %251 = vector.load %arg22[%250, %c20, %c0_110] : memref<52x52x128xf32, #tpu.memory_space<vmem>>, vector<1x32x128xf32>
      %252 = vector.shape_cast %251 : vector<1x32x128xf32> to vector<32x128xf32>
      %253 = vector.extract_strided_slice %49 {offsets = [20, 0], sizes = [1, 128], strides = [1, 1]} : vector<21x128xf32> to vector<1x128xf32>
      %254 = vector.shape_cast %253 : vector<1x128xf32> to vector<128xf32>
      %255 = vector.shape_cast %254 : vector<128xf32> to vector<1x128xf32>
      %256 = vector.broadcast %255 : vector<1x128xf32> to vector<32x128xf32>
      %257 = arith.mulf %252, %256 : vector<32x128xf32>
      %258 = arith.addf %249, %257 : vector<32x128xf32>
      %259 = arith.addi %25, %arg25 : i32
      %c0_i32_111 = arith.constant 0 : i32
      %260 = arith.cmpi sge, %259, %c0_i32_111 : i32
      %261 = arith.addi %25, %arg25 : i32
      %c32_i32_112 = arith.constant 32 : i32
      %262 = arith.cmpi slt, %261, %c32_i32_112 : i32
      %263 = arith.andi %260, %262 : i1
      %264 = vector.broadcast %50 : vector<1x128xf32> to vector<32x128xf32>
      %265 = arith.addf %258, %264 : vector<32x128xf32>
      %cst_113 = arith.constant 0.000000e+00 : f32
      %266 = vector.broadcast %cst_113 : f32 to vector<32x128xf32>
      %267 = arith.select %263, %265, %266 : vector<32x128xf32>
      %268 = arith.index_cast %arg25 : i32 to index
      %c0_114 = arith.constant 0 : index
      %c0_115 = arith.constant 0 : index
      %269 = vector.load %arg23[%268, %c0_114, %c0_115] : memref<52x32x128xf32, #tpu.memory_space<vmem>>, vector<1x32x128xf32>
      %270 = vector.shape_cast %269 : vector<1x32x128xf32> to vector<32x128xf32>
      %271 = vector.shape_cast %267 : vector<32x128xf32> to vector<1x32x128xf32>
      tpu.vector_store %arg23[%268, %c0_114, %c0_115], %271 {strides = array<i32>} : memref<52x32x128xf32, #tpu.memory_space<vmem>>, vector<1x32x128xf32>,
    }
    %c52_i32_66 = arith.constant 52 : i32
    %c0_i32_67 = arith.constant 0 : i32
    %c32_i32_68 = arith.constant 32 : i32
    %54 = arith.addi %c0_i32_67, %c32_i32_68 : i32
    %c1_i32_69 = arith.constant 1 : i32
    scf.for %arg25 = %c0_i32_67 to %54 step %c1_i32_69  : i32 {
      %c10_i32_87 = arith.constant 10 : i32
      %71 = arith.addi %arg25, %c10_i32_87 : i32
      %c10_i32_88 = arith.constant 10 : i32
      %72 = arith.subi %71, %c10_i32_88 : i32
      %c0_i32_89 = arith.constant 0 : i32
      %73 = arith.addi %72, %c0_i32_89 : i32
      %74 = arith.index_cast %73 : i32 to index
      %c0_90 = arith.constant 0 : index
      %c0_91 = arith.constant 0 : index
      %75 = vector.load %arg23[%74, %c0_90, %c0_91] : memref<52x32x128xf32, #tpu.memory_space<vmem>>, vector<1x32x128xf32>
      %76 = vector.shape_cast %75 : vector<1x32x128xf32> to vector<32x128xf32>
      %77 = vector.extract_strided_slice %51 {offsets = [0, 0], sizes = [1, 128], strides = [1, 1]} : vector<21x128xf32> to vector<1x128xf32>
      %78 = vector.shape_cast %77 : vector<1x128xf32> to vector<128xf32>
      %79 = vector.shape_cast %78 : vector<128xf32> to vector<1x128xf32>
      %80 = vector.broadcast %79 : vector<1x128xf32> to vector<32x128xf32>
      %81 = arith.mulf %76, %80 : vector<32x128xf32>
      %c10_i32_92 = arith.constant 10 : i32
      %82 = arith.addi %arg25, %c10_i32_92 : i32
      %c10_i32_93 = arith.constant 10 : i32
      %83 = arith.subi %82, %c10_i32_93 : i32
      %c1_i32_94 = arith.constant 1 : i32
      %84 = arith.addi %83, %c1_i32_94 : i32
      %85 = arith.index_cast %84 : i32 to index
      %c0_95 = arith.constant 0 : index
      %c0_96 = arith.constant 0 : index
      %86 = vector.load %arg23[%85, %c0_95, %c0_96] : memref<52x32x128xf32, #tpu.memory_space<vmem>>, vector<1x32x128xf32>
      %87 = vector.shape_cast %86 : vector<1x32x128xf32> to vector<32x128xf32>
      %88 = vector.extract_strided_slice %51 {offsets = [1, 0], sizes = [1, 128], strides = [1, 1]} : vector<21x128xf32> to vector<1x128xf32>
      %89 = vector.shape_cast %88 : vector<1x128xf32> to vector<128xf32>
      %90 = vector.shape_cast %89 : vector<128xf32> to vector<1x128xf32>
      %91 = vector.broadcast %90 : vector<1x128xf32> to vector<32x128xf32>
      %92 = arith.mulf %87, %91 : vector<32x128xf32>
      %93 = arith.addf %81, %92 : vector<32x128xf32>
      %c10_i32_97 = arith.constant 10 : i32
      %94 = arith.addi %arg25, %c10_i32_97 : i32
      %c10_i32_98 = arith.constant 10 : i32
      %95 = arith.subi %94, %c10_i32_98 : i32
      %c2_i32_99 = arith.constant 2 : i32
      %96 = arith.addi %95, %c2_i32_99 : i32
      %97 = arith.index_cast %96 : i32 to index
      %c0_100 = arith.constant 0 : index
      %c0_101 = arith.constant 0 : index
      %98 = vector.load %arg23[%97, %c0_100, %c0_101] : memref<52x32x128xf32, #tpu.memory_space<vmem>>, vector<1x32x128xf32>
      %99 = vector.shape_cast %98 : vector<1x32x128xf32> to vector<32x128xf32>
      %100 = vector.extract_strided_slice %51 {offsets = [2, 0], sizes = [1, 128], strides = [1, 1]} : vector<21x128xf32> to vector<1x128xf32>
      %101 = vector.shape_cast %100 : vector<1x128xf32> to vector<128xf32>
      %102 = vector.shape_cast %101 : vector<128xf32> to vector<1x128xf32>
      %103 = vector.broadcast %102 : vector<1x128xf32> to vector<32x128xf32>
      %104 = arith.mulf %99, %103 : vector<32x128xf32>
      %105 = arith.addf %93, %104 : vector<32x128xf32>
      %c10_i32_102 = arith.constant 10 : i32
      %106 = arith.addi %arg25, %c10_i32_102 : i32
      %c10_i32_103 = arith.constant 10 : i32
      %107 = arith.subi %106, %c10_i32_103 : i32
      %c3_i32 = arith.constant 3 : i32
      %108 = arith.addi %107, %c3_i32 : i32
      %109 = arith.index_cast %108 : i32 to index
      %c0_104 = arith.constant 0 : index
      %c0_105 = arith.constant 0 : index
      %110 = vector.load %arg23[%109, %c0_104, %c0_105] : memref<52x32x128xf32, #tpu.memory_space<vmem>>, vector<1x32x128xf32>
      %111 = vector.shape_cast %110 : vector<1x32x128xf32> to vector<32x128xf32>
      %112 = vector.extract_strided_slice %51 {offsets = [3, 0], sizes = [1, 128], strides = [1, 1]} : vector<21x128xf32> to vector<1x128xf32>
      %113 = vector.shape_cast %112 : vector<1x128xf32> to vector<128xf32>
      %114 = vector.shape_cast %113 : vector<128xf32> to vector<1x128xf32>
      %115 = vector.broadcast %114 : vector<1x128xf32> to vector<32x128xf32>
      %116 = arith.mulf %111, %115 : vector<32x128xf32>
      %117 = arith.addf %105, %116 : vector<32x128xf32>
      %c10_i32_106 = arith.constant 10 : i32
      %118 = arith.addi %arg25, %c10_i32_106 : i32
      %c10_i32_107 = arith.constant 10 : i32
      %119 = arith.subi %118, %c10_i32_107 : i32
      %c4_i32 = arith.constant 4 : i32
      %120 = arith.addi %119, %c4_i32 : i32
      %121 = arith.index_cast %120 : i32 to index
      %c0_108 = arith.constant 0 : index
      %c0_109 = arith.constant 0 : index
      %122 = vector.load %arg23[%121, %c0_108, %c0_109] : memref<52x32x128xf32, #tpu.memory_space<vmem>>, vector<1x32x128xf32>
      %123 = vector.shape_cast %122 : vector<1x32x128xf32> to vector<32x128xf32>
      %124 = vector.extract_strided_slice %51 {offsets = [4, 0], sizes = [1, 128], strides = [1, 1]} : vector<21x128xf32> to vector<1x128xf32>
      %125 = vector.shape_cast %124 : vector<1x128xf32> to vector<128xf32>
      %126 = vector.shape_cast %125 : vector<128xf32> to vector<1x128xf32>
      %127 = vector.broadcast %126 : vector<1x128xf32> to vector<32x128xf32>
      %128 = arith.mulf %123, %127 : vector<32x128xf32>
      %129 = arith.addf %117, %128 : vector<32x128xf32>
      %c10_i32_110 = arith.constant 10 : i32
      %130 = arith.addi %arg25, %c10_i32_110 : i32
      %c10_i32_111 = arith.constant 10 : i32
      %131 = arith.subi %130, %c10_i32_111 : i32
      %c5_i32_112 = arith.constant 5 : i32
      %132 = arith.addi %131, %c5_i32_112 : i32
      %133 = arith.index_cast %132 : i32 to index
      %c0_113 = arith.constant 0 : index
      %c0_114 = arith.constant 0 : index
      %134 = vector.load %arg23[%133, %c0_113, %c0_114] : memref<52x32x128xf32, #tpu.memory_space<vmem>>, vector<1x32x128xf32>
      %135 = vector.shape_cast %134 : vector<1x32x128xf32> to vector<32x128xf32>
      %136 = vector.extract_strided_slice %51 {offsets = [5, 0], sizes = [1, 128], strides = [1, 1]} : vector<21x128xf32> to vector<1x128xf32>
      %137 = vector.shape_cast %136 : vector<1x128xf32> to vector<128xf32>
      %138 = vector.shape_cast %137 : vector<128xf32> to vector<1x128xf32>
      %139 = vector.broadcast %138 : vector<1x128xf32> to vector<32x128xf32>
      %140 = arith.mulf %135, %139 : vector<32x128xf32>
      %141 = arith.addf %129, %140 : vector<32x128xf32>
      %c10_i32_115 = arith.constant 10 : i32
      %142 = arith.addi %arg25, %c10_i32_115 : i32
      %c10_i32_116 = arith.constant 10 : i32
      %143 = arith.subi %142, %c10_i32_116 : i32
      %c6_i32 = arith.constant 6 : i32
      %144 = arith.addi %143, %c6_i32 : i32
      %145 = arith.index_cast %144 : i32 to index
      %c0_117 = arith.constant 0 : index
      %c0_118 = arith.constant 0 : index
      %146 = vector.load %arg23[%145, %c0_117, %c0_118] : memref<52x32x128xf32, #tpu.memory_space<vmem>>, vector<1x32x128xf32>
      %147 = vector.shape_cast %146 : vector<1x32x128xf32> to vector<32x128xf32>
      %148 = vector.extract_strided_slice %51 {offsets = [6, 0], sizes = [1, 128], strides = [1, 1]} : vector<21x128xf32> to vector<1x128xf32>
      %149 = vector.shape_cast %148 : vector<1x128xf32> to vector<128xf32>
      %150 = vector.shape_cast %149 : vector<128xf32> to vector<1x128xf32>
      %151 = vector.broadcast %150 : vector<1x128xf32> to vector<32x128xf32>
      %152 = arith.mulf %147, %151 : vector<32x128xf32>
      %153 = arith.addf %141, %152 : vector<32x128xf32>
      %c10_i32_119 = arith.constant 10 : i32
      %154 = arith.addi %arg25, %c10_i32_119 : i32
      %c10_i32_120 = arith.constant 10 : i32
      %155 = arith.subi %154, %c10_i32_120 : i32
      %c7_i32_121 = arith.constant 7 : i32
      %156 = arith.addi %155, %c7_i32_121 : i32
      %157 = arith.index_cast %156 : i32 to index
      %c0_122 = arith.constant 0 : index
      %c0_123 = arith.constant 0 : index
      %158 = vector.load %arg23[%157, %c0_122, %c0_123] : memref<52x32x128xf32, #tpu.memory_space<vmem>>, vector<1x32x128xf32>
      %159 = vector.shape_cast %158 : vector<1x32x128xf32> to vector<32x128xf32>
      %160 = vector.extract_strided_slice %51 {offsets = [7, 0], sizes = [1, 128], strides = [1, 1]} : vector<21x128xf32> to vector<1x128xf32>
      %161 = vector.shape_cast %160 : vector<1x128xf32> to vector<128xf32>
      %162 = vector.shape_cast %161 : vector<128xf32> to vector<1x128xf32>
      %163 = vector.broadcast %162 : vector<1x128xf32> to vector<32x128xf32>
      %164 = arith.mulf %159, %163 : vector<32x128xf32>
      %165 = arith.addf %153, %164 : vector<32x128xf32>
      %c10_i32_124 = arith.constant 10 : i32
      %166 = arith.addi %arg25, %c10_i32_124 : i32
      %c10_i32_125 = arith.constant 10 : i32
      %167 = arith.subi %166, %c10_i32_125 : i32
      %c8_i32 = arith.constant 8 : i32
      %168 = arith.addi %167, %c8_i32 : i32
      %169 = arith.index_cast %168 : i32 to index
      %c0_126 = arith.constant 0 : index
      %c0_127 = arith.constant 0 : index
      %170 = vector.load %arg23[%169, %c0_126, %c0_127] : memref<52x32x128xf32, #tpu.memory_space<vmem>>, vector<1x32x128xf32>
      %171 = vector.shape_cast %170 : vector<1x32x128xf32> to vector<32x128xf32>
      %172 = vector.extract_strided_slice %51 {offsets = [8, 0], sizes = [1, 128], strides = [1, 1]} : vector<21x128xf32> to vector<1x128xf32>
      %173 = vector.shape_cast %172 : vector<1x128xf32> to vector<128xf32>
      %174 = vector.shape_cast %173 : vector<128xf32> to vector<1x128xf32>
      %175 = vector.broadcast %174 : vector<1x128xf32> to vector<32x128xf32>
      %176 = arith.mulf %171, %175 : vector<32x128xf32>
      %177 = arith.addf %165, %176 : vector<32x128xf32>
      %c10_i32_128 = arith.constant 10 : i32
      %178 = arith.addi %arg25, %c10_i32_128 : i32
      %c10_i32_129 = arith.constant 10 : i32
      %179 = arith.subi %178, %c10_i32_129 : i32
      %c9_i32 = arith.constant 9 : i32
      %180 = arith.addi %179, %c9_i32 : i32
      %181 = arith.index_cast %180 : i32 to index
      %c0_130 = arith.constant 0 : index
      %c0_131 = arith.constant 0 : index
      %182 = vector.load %arg23[%181, %c0_130, %c0_131] : memref<52x32x128xf32, #tpu.memory_space<vmem>>, vector<1x32x128xf32>
      %183 = vector.shape_cast %182 : vector<1x32x128xf32> to vector<32x128xf32>
      %184 = vector.extract_strided_slice %51 {offsets = [9, 0], sizes = [1, 128], strides = [1, 1]} : vector<21x128xf32> to vector<1x128xf32>
      %185 = vector.shape_cast %184 : vector<1x128xf32> to vector<128xf32>
      %186 = vector.shape_cast %185 : vector<128xf32> to vector<1x128xf32>
      %187 = vector.broadcast %186 : vector<1x128xf32> to vector<32x128xf32>
      %188 = arith.mulf %183, %187 : vector<32x128xf32>
      %189 = arith.addf %177, %188 : vector<32x128xf32>
      %c10_i32_132 = arith.constant 10 : i32
      %190 = arith.addi %arg25, %c10_i32_132 : i32
      %c10_i32_133 = arith.constant 10 : i32
      %191 = arith.subi %190, %c10_i32_133 : i32
      %c10_i32_134 = arith.constant 10 : i32
      %192 = arith.addi %191, %c10_i32_134 : i32
      %193 = arith.index_cast %192 : i32 to index
      %c0_135 = arith.constant 0 : index
      %c0_136 = arith.constant 0 : index
      %194 = vector.load %arg23[%193, %c0_135, %c0_136] : memref<52x32x128xf32, #tpu.memory_space<vmem>>, vector<1x32x128xf32>
      %195 = vector.shape_cast %194 : vector<1x32x128xf32> to vector<32x128xf32>
      %196 = vector.extract_strided_slice %51 {offsets = [10, 0], sizes = [1, 128], strides = [1, 1]} : vector<21x128xf32> to vector<1x128xf32>
      %197 = vector.shape_cast %196 : vector<1x128xf32> to vector<128xf32>
      %198 = vector.shape_cast %197 : vector<128xf32> to vector<1x128xf32>
      %199 = vector.broadcast %198 : vector<1x128xf32> to vector<32x128xf32>
      %200 = arith.mulf %195, %199 : vector<32x128xf32>
      %201 = arith.addf %189, %200 : vector<32x128xf32>
      %c10_i32_137 = arith.constant 10 : i32
      %202 = arith.addi %arg25, %c10_i32_137 : i32
      %c10_i32_138 = arith.constant 10 : i32
      %203 = arith.subi %202, %c10_i32_138 : i32
      %c11_i32 = arith.constant 11 : i32
      %204 = arith.addi %203, %c11_i32 : i32
      %205 = arith.index_cast %204 : i32 to index
      %c0_139 = arith.constant 0 : index
      %c0_140 = arith.constant 0 : index
      %206 = vector.load %arg23[%205, %c0_139, %c0_140] : memref<52x32x128xf32, #tpu.memory_space<vmem>>, vector<1x32x128xf32>
      %207 = vector.shape_cast %206 : vector<1x32x128xf32> to vector<32x128xf32>
      %208 = vector.extract_strided_slice %51 {offsets = [11, 0], sizes = [1, 128], strides = [1, 1]} : vector<21x128xf32> to vector<1x128xf32>
      %209 = vector.shape_cast %208 : vector<1x128xf32> to vector<128xf32>
      %210 = vector.shape_cast %209 : vector<128xf32> to vector<1x128xf32>
      %211 = vector.broadcast %210 : vector<1x128xf32> to vector<32x128xf32>
      %212 = arith.mulf %207, %211 : vector<32x128xf32>
      %213 = arith.addf %201, %212 : vector<32x128xf32>
      %c10_i32_141 = arith.constant 10 : i32
      %214 = arith.addi %arg25, %c10_i32_141 : i32
      %c10_i32_142 = arith.constant 10 : i32
      %215 = arith.subi %214, %c10_i32_142 : i32
      %c12_i32 = arith.constant 12 : i32
      %216 = arith.addi %215, %c12_i32 : i32
      %217 = arith.index_cast %216 : i32 to index
      %c0_143 = arith.constant 0 : index
      %c0_144 = arith.constant 0 : index
      %218 = vector.load %arg23[%217, %c0_143, %c0_144] : memref<52x32x128xf32, #tpu.memory_space<vmem>>, vector<1x32x128xf32>
      %219 = vector.shape_cast %218 : vector<1x32x128xf32> to vector<32x128xf32>
      %220 = vector.extract_strided_slice %51 {offsets = [12, 0], sizes = [1, 128], strides = [1, 1]} : vector<21x128xf32> to vector<1x128xf32>
      %221 = vector.shape_cast %220 : vector<1x128xf32> to vector<128xf32>
      %222 = vector.shape_cast %221 : vector<128xf32> to vector<1x128xf32>
      %223 = vector.broadcast %222 : vector<1x128xf32> to vector<32x128xf32>
      %224 = arith.mulf %219, %223 : vector<32x128xf32>
      %225 = arith.addf %213, %224 : vector<32x128xf32>
      %c10_i32_145 = arith.constant 10 : i32
      %226 = arith.addi %arg25, %c10_i32_145 : i32
      %c10_i32_146 = arith.constant 10 : i32
      %227 = arith.subi %226, %c10_i32_146 : i32
      %c13_i32 = arith.constant 13 : i32
      %228 = arith.addi %227, %c13_i32 : i32
      %229 = arith.index_cast %228 : i32 to index
      %c0_147 = arith.constant 0 : index
      %c0_148 = arith.constant 0 : index
      %230 = vector.load %arg23[%229, %c0_147, %c0_148] : memref<52x32x128xf32, #tpu.memory_space<vmem>>, vector<1x32x128xf32>
      %231 = vector.shape_cast %230 : vector<1x32x128xf32> to vector<32x128xf32>
      %232 = vector.extract_strided_slice %51 {offsets = [13, 0], sizes = [1, 128], strides = [1, 1]} : vector<21x128xf32> to vector<1x128xf32>
      %233 = vector.shape_cast %232 : vector<1x128xf32> to vector<128xf32>
      %234 = vector.shape_cast %233 : vector<128xf32> to vector<1x128xf32>
      %235 = vector.broadcast %234 : vector<1x128xf32> to vector<32x128xf32>
      %236 = arith.mulf %231, %235 : vector<32x128xf32>
      %237 = arith.addf %225, %236 : vector<32x128xf32>
      %c10_i32_149 = arith.constant 10 : i32
      %238 = arith.addi %arg25, %c10_i32_149 : i32
      %c10_i32_150 = arith.constant 10 : i32
      %239 = arith.subi %238, %c10_i32_150 : i32
      %c14_i32 = arith.constant 14 : i32
      %240 = arith.addi %239, %c14_i32 : i32
      %241 = arith.index_cast %240 : i32 to index
      %c0_151 = arith.constant 0 : index
      %c0_152 = arith.constant 0 : index
      %242 = vector.load %arg23[%241, %c0_151, %c0_152] : memref<52x32x128xf32, #tpu.memory_space<vmem>>, vector<1x32x128xf32>
      %243 = vector.shape_cast %242 : vector<1x32x128xf32> to vector<32x128xf32>
      %244 = vector.extract_strided_slice %51 {offsets = [14, 0], sizes = [1, 128], strides = [1, 1]} : vector<21x128xf32> to vector<1x128xf32>
      %245 = vector.shape_cast %244 : vector<1x128xf32> to vector<128xf32>
      %246 = vector.shape_cast %245 : vector<128xf32> to vector<1x128xf32>
      %247 = vector.broadcast %246 : vector<1x128xf32> to vector<32x128xf32>
      %248 = arith.mulf %243, %247 : vector<32x128xf32>
      %249 = arith.addf %237, %248 : vector<32x128xf32>
      %c10_i32_153 = arith.constant 10 : i32
      %250 = arith.addi %arg25, %c10_i32_153 : i32
      %c10_i32_154 = arith.constant 10 : i32
      %251 = arith.subi %250, %c10_i32_154 : i32
      %c15_i32 = arith.constant 15 : i32
      %252 = arith.addi %251, %c15_i32 : i32
      %253 = arith.index_cast %252 : i32 to index
      %c0_155 = arith.constant 0 : index
      %c0_156 = arith.constant 0 : index
      %254 = vector.load %arg23[%253, %c0_155, %c0_156] : memref<52x32x128xf32, #tpu.memory_space<vmem>>, vector<1x32x128xf32>
      %255 = vector.shape_cast %254 : vector<1x32x128xf32> to vector<32x128xf32>
      %256 = vector.extract_strided_slice %51 {offsets = [15, 0], sizes = [1, 128], strides = [1, 1]} : vector<21x128xf32> to vector<1x128xf32>
      %257 = vector.shape_cast %256 : vector<1x128xf32> to vector<128xf32>
      %258 = vector.shape_cast %257 : vector<128xf32> to vector<1x128xf32>
      %259 = vector.broadcast %258 : vector<1x128xf32> to vector<32x128xf32>
      %260 = arith.mulf %255, %259 : vector<32x128xf32>
      %261 = arith.addf %249, %260 : vector<32x128xf32>
      %c10_i32_157 = arith.constant 10 : i32
      %262 = arith.addi %arg25, %c10_i32_157 : i32
      %c10_i32_158 = arith.constant 10 : i32
      %263 = arith.subi %262, %c10_i32_158 : i32
      %c16_i32 = arith.constant 16 : i32
      %264 = arith.addi %263, %c16_i32 : i32
      %265 = arith.index_cast %264 : i32 to index
      %c0_159 = arith.constant 0 : index
      %c0_160 = arith.constant 0 : index
      %266 = vector.load %arg23[%265, %c0_159, %c0_160] : memref<52x32x128xf32, #tpu.memory_space<vmem>>, vector<1x32x128xf32>
      %267 = vector.shape_cast %266 : vector<1x32x128xf32> to vector<32x128xf32>
      %268 = vector.extract_strided_slice %51 {offsets = [16, 0], sizes = [1, 128], strides = [1, 1]} : vector<21x128xf32> to vector<1x128xf32>
      %269 = vector.shape_cast %268 : vector<1x128xf32> to vector<128xf32>
      %270 = vector.shape_cast %269 : vector<128xf32> to vector<1x128xf32>
      %271 = vector.broadcast %270 : vector<1x128xf32> to vector<32x128xf32>
      %272 = arith.mulf %267, %271 : vector<32x128xf32>
      %273 = arith.addf %261, %272 : vector<32x128xf32>
      %c10_i32_161 = arith.constant 10 : i32
      %274 = arith.addi %arg25, %c10_i32_161 : i32
      %c10_i32_162 = arith.constant 10 : i32
      %275 = arith.subi %274, %c10_i32_162 : i32
      %c17_i32 = arith.constant 17 : i32
      %276 = arith.addi %275, %c17_i32 : i32
      %277 = arith.index_cast %276 : i32 to index
      %c0_163 = arith.constant 0 : index
      %c0_164 = arith.constant 0 : index
      %278 = vector.load %arg23[%277, %c0_163, %c0_164] : memref<52x32x128xf32, #tpu.memory_space<vmem>>, vector<1x32x128xf32>
      %279 = vector.shape_cast %278 : vector<1x32x128xf32> to vector<32x128xf32>
      %280 = vector.extract_strided_slice %51 {offsets = [17, 0], sizes = [1, 128], strides = [1, 1]} : vector<21x128xf32> to vector<1x128xf32>
      %281 = vector.shape_cast %280 : vector<1x128xf32> to vector<128xf32>
      %282 = vector.shape_cast %281 : vector<128xf32> to vector<1x128xf32>
      %283 = vector.broadcast %282 : vector<1x128xf32> to vector<32x128xf32>
      %284 = arith.mulf %279, %283 : vector<32x128xf32>
      %285 = arith.addf %273, %284 : vector<32x128xf32>
      %c10_i32_165 = arith.constant 10 : i32
      %286 = arith.addi %arg25, %c10_i32_165 : i32
      %c10_i32_166 = arith.constant 10 : i32
      %287 = arith.subi %286, %c10_i32_166 : i32
      %c18_i32 = arith.constant 18 : i32
      %288 = arith.addi %287, %c18_i32 : i32
      %289 = arith.index_cast %288 : i32 to index
      %c0_167 = arith.constant 0 : index
      %c0_168 = arith.constant 0 : index
      %290 = vector.load %arg23[%289, %c0_167, %c0_168] : memref<52x32x128xf32, #tpu.memory_space<vmem>>, vector<1x32x128xf32>
      %291 = vector.shape_cast %290 : vector<1x32x128xf32> to vector<32x128xf32>
      %292 = vector.extract_strided_slice %51 {offsets = [18, 0], sizes = [1, 128], strides = [1, 1]} : vector<21x128xf32> to vector<1x128xf32>
      %293 = vector.shape_cast %292 : vector<1x128xf32> to vector<128xf32>
      %294 = vector.shape_cast %293 : vector<128xf32> to vector<1x128xf32>
      %295 = vector.broadcast %294 : vector<1x128xf32> to vector<32x128xf32>
      %296 = arith.mulf %291, %295 : vector<32x128xf32>
      %297 = arith.addf %285, %296 : vector<32x128xf32>
      %c10_i32_169 = arith.constant 10 : i32
      %298 = arith.addi %arg25, %c10_i32_169 : i32
      %c10_i32_170 = arith.constant 10 : i32
      %299 = arith.subi %298, %c10_i32_170 : i32
      %c19_i32 = arith.constant 19 : i32
      %300 = arith.addi %299, %c19_i32 : i32
      %301 = arith.index_cast %300 : i32 to index
      %c0_171 = arith.constant 0 : index
      %c0_172 = arith.constant 0 : index
      %302 = vector.load %arg23[%301, %c0_171, %c0_172] : memref<52x32x128xf32, #tpu.memory_space<vmem>>, vector<1x32x128xf32>
      %303 = vector.shape_cast %302 : vector<1x32x128xf32> to vector<32x128xf32>
      %304 = vector.extract_strided_slice %51 {offsets = [19, 0], sizes = [1, 128], strides = [1, 1]} : vector<21x128xf32> to vector<1x128xf32>
      %305 = vector.shape_cast %304 : vector<1x128xf32> to vector<128xf32>
      %306 = vector.shape_cast %305 : vector<128xf32> to vector<1x128xf32>
      %307 = vector.broadcast %306 : vector<1x128xf32> to vector<32x128xf32>
      %308 = arith.mulf %303, %307 : vector<32x128xf32>
      %309 = arith.addf %297, %308 : vector<32x128xf32>
      %c10_i32_173 = arith.constant 10 : i32
      %310 = arith.addi %arg25, %c10_i32_173 : i32
      %c10_i32_174 = arith.constant 10 : i32
      %311 = arith.subi %310, %c10_i32_174 : i32
      %c20_i32 = arith.constant 20 : i32
      %312 = arith.addi %311, %c20_i32 : i32
      %313 = arith.index_cast %312 : i32 to index
      %c0_175 = arith.constant 0 : index
      %c0_176 = arith.constant 0 : index
      %314 = vector.load %arg23[%313, %c0_175, %c0_176] : memref<52x32x128xf32, #tpu.memory_space<vmem>>, vector<1x32x128xf32>
      %315 = vector.shape_cast %314 : vector<1x32x128xf32> to vector<32x128xf32>
      %316 = vector.extract_strided_slice %51 {offsets = [20, 0], sizes = [1, 128], strides = [1, 1]} : vector<21x128xf32> to vector<1x128xf32>
      %317 = vector.shape_cast %316 : vector<1x128xf32> to vector<128xf32>
      %318 = vector.shape_cast %317 : vector<128xf32> to vector<1x128xf32>
      %319 = vector.broadcast %318 : vector<1x128xf32> to vector<32x128xf32>
      %320 = arith.mulf %315, %319 : vector<32x128xf32>
      %321 = arith.addf %309, %320 : vector<32x128xf32>
      %322 = arith.index_cast %arg25 : i32 to index
      %c0_177 = arith.constant 0 : index
      %c0_178 = arith.constant 0 : index
      %323 = vector.load %arg24[%322, %c0_177, %c0_178] : memref<32x32x128xf32, #tpu.memory_space<vmem>>, vector<1x32x128xf32>
      %324 = vector.shape_cast %323 : vector<1x32x128xf32> to vector<32x128xf32>
      %325 = arith.addf %324, %321 : vector<32x128xf32>
      %326 = vector.broadcast %52 : vector<1x128xf32> to vector<32x128xf32>
      %327 = arith.addf %325, %326 : vector<32x128xf32>
      %328 = arith.index_cast %arg25 : i32 to index
      %c0_179 = arith.constant 0 : index
      %c0_180 = arith.constant 0 : index
      %329 = vector.load %arg24[%328, %c0_179, %c0_180] : memref<32x32x128xf32, #tpu.memory_space<vmem>>, vector<1x32x128xf32>
      %330 = vector.shape_cast %329 : vector<1x32x128xf32> to vector<32x128xf32>
      %331 = vector.shape_cast %327 : vector<32x128xf32> to vector<1x32x128xf32>
      tpu.vector_store %arg24[%328, %c0_179, %c0_180], %331 {strides = array<i32>} : memref<32x32x128xf32, #tpu.memory_space<vmem>>, vector<1x32x128xf32>,
    }
    %c32_i32_70 = arith.constant 32 : i32
    %c0_71 = arith.constant 0 : index
    %c0_72 = arith.constant 0 : index
    %c0_73 = arith.constant 0 : index
    %55 = vector.load %arg24[%c0_71, %c0_72, %c0_73] : memref<32x32x128xf32, #tpu.memory_space<vmem>>, vector<32x32x128xf32>
    %56 = vector.shape_cast %55 : vector<32x32x128xf32> to vector<1024x128xf32>
    %c0_74 = arith.constant 0 : index
    %c0_75 = arith.constant 0 : index
    %57 = vector.load %arg17[%c0_74, %c0_75] : memref<128x128xf32, #tpu.memory_space<vmem>>, vector<128x128xf32>
    %cst = arith.constant dense<0.000000e+00> : vector<1024x128xf32>
    %58 = tpu.matmul %56, %57, %cst {dimension_numbers = #tpu.dot_dimension_numbers<[1], [0], [0], [1], [0, 0, 1, 1], [], []>} : vector<1024x128xf32>, vector<128x128xf32>, vector<1024x128xf32> -> vector<1024x128xf32>
    %c0_76 = arith.constant 0 : index
    %c0_77 = arith.constant 0 : index
    %59 = vector.load %arg18[%c0_76, %c0_77] : memref<1x128xf32, #tpu.memory_space<vmem>>, vector<1x128xf32>
    %60 = vector.broadcast %59 : vector<1x128xf32> to vector<1024x128xf32>
    %61 = arith.addf %58, %60 : vector<1024x128xf32>
    %c0_i32_78 = arith.constant 0 : i32
    %c0_i32_79 = arith.constant 0 : i32
    %c0_i32_80 = arith.constant 0 : i32
    %62 = tpu.memref_slice %arg20[%9, %c0_i32_78, %c0_i32_79, %c0_i32_80] : memref<2x56x56x128xf32, #tpu.memory_space<vmem>> -> memref<1x56x56x128xf32, #tpu.memory_space<vmem>>
    %63 = tpu.memref_squeeze %62 : memref<1x56x56x128xf32, #tpu.memory_space<vmem>> -> memref<56x56x128xf32, #tpu.memory_space<vmem>>
    %c12 = arith.constant 12 : index
    %c12_81 = arith.constant 12 : index
    %c0_82 = arith.constant 0 : index
    %64 = vector.load %63[%c12, %c12_81, %c0_82] : memref<56x56x128xf32, #tpu.memory_space<vmem>>, vector<32x32x128xf32>
    %65 = vector.shape_cast %64 : vector<32x32x128xf32> to vector<1024x128xf32>
    %66 = arith.mulf %61, %65 : vector<1024x128xf32>
    %67 = vector.shape_cast %66 : vector<1024x128xf32> to vector<32x32x128xf32>
    %c0_83 = arith.constant 0 : index
    %c0_84 = arith.constant 0 : index
    %c0_85 = arith.constant 0 : index
    %c0_86 = arith.constant 0 : index
    %68 = vector.load %arg19[%c0_83, %c0_84, %c0_85, %c0_86] : memref<1x32x32x128xf32, #tpu.memory_space<vmem>>, vector<1x32x32x128xf32>
    %69 = vector.shape_cast %68 : vector<1x32x32x128xf32> to vector<32x32x128xf32>
    %70 = vector.shape_cast %67 : vector<32x32x128xf32> to vector<1x32x32x128xf32>
    tpu.vector_store %arg19[%c0_83, %c0_84, %c0_85, %c0_86], %70 {strides = array<i32>} : memref<1x32x32x128xf32, #tpu.memory_space<vmem>>, vector<1x32x32x128xf32>,
    return
  }
  func.func @transform_1(%arg0: i32, %arg1: i32) -> (i32, i32) {
    %c0_i32 = arith.constant 0 : i32
    %c0_i32_0 = arith.constant 0 : i32
    %c0_i32_1 = arith.constant 0 : i32
    return %c0_i32, %c0_i32_0 : i32, i32
  }
  func.func @transform_2(%arg0: i32, %arg1: i32) -> (i32, i32) {
    %c0_i32 = arith.constant 0 : i32
    %c0_i32_0 = arith.constant 0 : i32
    %c0_i32_1 = arith.constant 0 : i32
    return %c0_i32, %c0_i32_0 : i32, i32
  }
  func.func @transform_3(%arg0: i32, %arg1: i32) -> (i32, i32) {
    %c0_i32 = arith.constant 0 : i32
    %c0_i32_0 = arith.constant 0 : i32
    %c0_i32_1 = arith.constant 0 : i32
    return %c0_i32, %c0_i32_0 : i32, i32
  }
  func.func @transform_4(%arg0: i32, %arg1: i32) -> (i32, i32) {
    %c0_i32 = arith.constant 0 : i32
    %c0_i32_0 = arith.constant 0 : i32
    %c0_i32_1 = arith.constant 0 : i32
    return %c0_i32, %c0_i32_0 : i32, i32
  }
  func.func @transform_5(%arg0: i32, %arg1: i32) -> (i32, i32) {
    %c0_i32 = arith.constant 0 : i32
    %c0_i32_0 = arith.constant 0 : i32
    %c0_i32_1 = arith.constant 0 : i32
    return %c0_i32, %c0_i32_0 : i32, i32
  }
  func.func @transform_6(%arg0: i32, %arg1: i32) -> (i32, i32) {
    %c0_i32 = arith.constant 0 : i32
    %c0_i32_0 = arith.constant 0 : i32
    %c0_i32_1 = arith.constant 0 : i32
    return %c0_i32, %c0_i32_0 : i32, i32
  }
  func.func @transform_7(%arg0: i32, %arg1: i32) -> (i32, i32) {
    %c0_i32 = arith.constant 0 : i32
    %c0_i32_0 = arith.constant 0 : i32
    %c0_i32_1 = arith.constant 0 : i32
    return %c0_i32, %c0_i32_0 : i32, i32
  }
  func.func @transform_8(%arg0: i32, %arg1: i32) -> (i32, i32) {
    %c0_i32 = arith.constant 0 : i32
    %c0_i32_0 = arith.constant 0 : i32
    %c0_i32_1 = arith.constant 0 : i32
    return %c0_i32, %c0_i32_0 : i32, i32
  }
  func.func @transform_9(%arg0: i32, %arg1: i32) -> (i32, i32) {
    %c0_i32 = arith.constant 0 : i32
    %c0_i32_0 = arith.constant 0 : i32
    %c0_i32_1 = arith.constant 0 : i32
    return %c0_i32, %c0_i32_0 : i32, i32
  }
  func.func @transform_10(%arg0: i32, %arg1: i32) -> (i32, i32) {
    %c0_i32 = arith.constant 0 : i32
    %c0_i32_0 = arith.constant 0 : i32
    %c0_i32_1 = arith.constant 0 : i32
    return %c0_i32, %c0_i32_0 : i32, i32
  }
  func.func @transform_11(%arg0: i32, %arg1: i32) -> (i32, i32) {
    %c0_i32 = arith.constant 0 : i32
    %c0_i32_0 = arith.constant 0 : i32
    %c0_i32_1 = arith.constant 0 : i32
    return %c0_i32, %c0_i32_0 : i32, i32
  }
  func.func @transform_12(%arg0: i32, %arg1: i32) -> (i32, i32) {
    %c0_i32 = arith.constant 0 : i32
    %c0_i32_0 = arith.constant 0 : i32
    %c0_i32_1 = arith.constant 0 : i32
    return %c0_i32, %c0_i32_0 : i32, i32
  }
  func.func @transform_13(%arg0: i32, %arg1: i32) -> (i32, i32) {
    %c0_i32 = arith.constant 0 : i32
    %c0_i32_0 = arith.constant 0 : i32
    %c0_i32_1 = arith.constant 0 : i32
    return %c0_i32, %c0_i32_0 : i32, i32
  }
  func.func @transform_14(%arg0: i32, %arg1: i32) -> (i32, i32) {
    %c0_i32 = arith.constant 0 : i32
    %c0_i32_0 = arith.constant 0 : i32
    %c0_i32_1 = arith.constant 0 : i32
    return %c0_i32, %c0_i32_0 : i32, i32
  }
  func.func @transform_15(%arg0: i32, %arg1: i32) -> (i32, i32) {
    %c0_i32 = arith.constant 0 : i32
    %c0_i32_0 = arith.constant 0 : i32
    %c0_i32_1 = arith.constant 0 : i32
    return %c0_i32, %c0_i32_0 : i32, i32
  }
  func.func @transform_16(%arg0: i32, %arg1: i32) -> (i32, i32) {
    %c0_i32 = arith.constant 0 : i32
    %c0_i32_0 = arith.constant 0 : i32
    %c0_i32_1 = arith.constant 0 : i32
    return %c0_i32, %c0_i32_0 : i32, i32
  }
  func.func @transform_17(%arg0: i32, %arg1: i32) -> (i32, i32, i32, i32) {
    %c0_i32 = arith.constant 0 : i32
    %c0_i32_0 = arith.constant 0 : i32
    %c0_i32_1 = arith.constant 0 : i32
    return %arg0, %arg1, %c0_i32, %c0_i32_0 : i32, i32, i32, i32
  }
}

</mosaic_0001>

<llo_original>
// kernel: _lambda_.1
$region0: #{_lambda_.1}
  #allocation0 [shape = 'u32[]', space=smem, size = 0x4, offset = 0x4, fixed_abs, tag = 'smem constant byte address 0x4 - core index']
  #allocation1 [shape = 'u32[72,128]{1,0:T(1,128)}', space=vmem, size = 0x9000, scoped, tag = 'internal scratch']
  #allocation2 [shape = 'f32[2,56,56,128]{3,2,1,0:T(8,128)}', space=vmem, size = 0x310000, scoped, tag = 'scratch operand']
  #allocation3 [shape = 's32[2]{0}', space=sflag, size = 0x8, scoped, tag = 'scratch operand']
  #allocation4 [shape = 'f32[52,52,128]{2,1,0:T(8,128)}', space=vmem, size = 0x16c000, scoped, tag = 'scratch operand']
  #allocation5 [shape = 'f32[52,32,128]{2,1,0:T(8,128)}', space=vmem, size = 0xd0000, scoped, tag = 'scratch operand']
  #allocation6 [shape = 'f32[32,32,128]{2,1,0:T(8,128)}', space=vmem, size = 0x80000, scoped, tag = 'scratch operand']
  #allocation7 [shape = 's32[]', space=sflag, size = 0x4, offset = 0, fixed_abs, tag = 'sflag constant byte address 0x0 - dummy sync flag']
  #allocation8 [shape = 's32[]', space=sflag, size = 0x4, offset = 0, fixed_abs, tag = 'sflag constant byte address 0x0 - dummy sync flag']
  %s0 = inlined_call_operand.vmem [shape: f32[1,56,56,128], index: 0, kind: input, shape index: {}]
  %s1 = inlined_call_operand.vmem [shape: f32[25,128], index: 1, kind: input, shape index: {}]
  %s2 = inlined_call_operand.vmem [shape: f32[1,128], index: 2, kind: input, shape index: {}]
  %s3 = inlined_call_operand.vmem [shape: f32[7,128], index: 3, kind: input, shape index: {}]
  %s4 = inlined_call_operand.vmem [shape: f32[1,128], index: 4, kind: input, shape index: {}]
  %s5 = inlined_call_operand.vmem [shape: f32[7,128], index: 5, kind: input, shape index: {}]
  %s6 = inlined_call_operand.vmem [shape: f32[1,128], index: 6, kind: input, shape index: {}]
  %s7 = inlined_call_operand.vmem [shape: f32[11,128], index: 7, kind: input, shape index: {}]
  %s8 = inlined_call_operand.vmem [shape: f32[1,128], index: 8, kind: input, shape index: {}]
  %s9 = inlined_call_operand.vmem [shape: f32[11,128], index: 9, kind: input, shape index: {}]
  %s10 = inlined_call_operand.vmem [shape: f32[1,128], index: 10, kind: input, shape index: {}]
  %s11 = inlined_call_operand.vmem [shape: f32[21,128], index: 11, kind: input, shape index: {}]
  %s12 = inlined_call_operand.vmem [shape: f32[1,128], index: 12, kind: input, shape index: {}]
  %s13 = inlined_call_operand.vmem [shape: f32[21,128], index: 13, kind: input, shape index: {}]
  %s14 = inlined_call_operand.vmem [shape: f32[1,128], index: 14, kind: input, shape index: {}]
  %s15 = inlined_call_operand.vmem [shape: f32[128,128], index: 15, kind: input, shape index: {}]
  %s16 = inlined_call_operand.vmem [shape: f32[1,128], index: 16, kind: input, shape index: {}]
  %s17 = inlined_call_operand.vmem [shape: f32[1,32,32,128], index: 17, kind: output, shape index: {}]
  %s18 = sld [smem:[#allocation0]]
  $region169: #{_lambda_.1} parent=0
    _
  %s20 = ssub.s32 1, %s18
  %s21 = scalar_select 0, %s20, %s18
  // Predicated region
  $region2: #{_lambda_.1} parent=0 // pred_check
    _
  $region3: #{_lambda_.1} parent=0 // pred_check_branch
    %23 = sbr.rel (0) target = $region5
  $region4: #{_lambda_.1} parent=0 // pred_region
    _
  $region5: #{_lambda_.1} parent=0 // pred_fallthru
    _
  // Predicated region
  $region6: #{_lambda_.1} parent=0 // pred_check
    _
  $region7: #{_lambda_.1} parent=0 // pred_check_branch
    %25 = sbr.rel (0) target = $region9
  $region8: #{_lambda_.1} parent=0 // pred_region
    _
  $region9: #{_lambda_.1} parent=0 // pred_fallthru
    _
  // Predicated region
  $region10: #{_lambda_.1} parent=0 // pred_check
    _
  $region11: #{_lambda_.1} parent=0 // pred_check_branch
    %27 = sbr.rel (0) target = $region13
  $region12: #{_lambda_.1} parent=0 // pred_region
    _
  $region13: #{_lambda_.1} parent=0 // pred_fallthru
    _
  // Predicated region
  $region14: #{_lambda_.1} parent=0 // pred_check
    _
  $region15: #{_lambda_.1} parent=0 // pred_check_branch
    %29 = sbr.rel (0) target = $region17
  $region16: #{_lambda_.1} parent=0 // pred_region
    _
  $region17: #{_lambda_.1} parent=0 // pred_fallthru
    _
  // Predicated region
  $region18: #{_lambda_.1} parent=0 // pred_check
    _
  $region19: #{_lambda_.1} parent=0 // pred_check_branch
    %31 = sbr.rel (0) target = $region21
  $region20: #{_lambda_.1} parent=0 // pred_region
    _
  $region21: #{_lambda_.1} parent=0 // pred_fallthru
    _
  // Predicated region
  $region22: #{_lambda_.1} parent=0 // pred_check
    _
  $region23: #{_lambda_.1} parent=0 // pred_check_branch
    %33 = sbr.rel (0) target = $region25
  $region24: #{_lambda_.1} parent=0 // pred_region
    _
  $region25: #{_lambda_.1} parent=0 // pred_fallthru
    _
  // Predicated region
  $region26: #{_lambda_.1} parent=0 // pred_check
    _
  $region27: #{_lambda_.1} parent=0 // pred_check_branch
    %35 = sbr.rel (0) target = $region29
  $region28: #{_lambda_.1} parent=0 // pred_region
    _
  $region29: #{_lambda_.1} parent=0 // pred_fallthru
    _
  // Predicated region
  $region30: #{_lambda_.1} parent=0 // pred_check
    _
  $region31: #{_lambda_.1} parent=0 // pred_check_branch
    %37 = sbr.rel (0) target = $region33
  $region32: #{_lambda_.1} parent=0 // pred_region
    _
  $region33: #{_lambda_.1} parent=0 // pred_fallthru
    _
  // Predicated region
  $region34: #{_lambda_.1} parent=0 // pred_check
    _
  $region35: #{_lambda_.1} parent=0 // pred_check_branch
    %39 = sbr.rel (0) target = $region37
  $region36: #{_lambda_.1} parent=0 // pred_region
    _
  $region37: #{_lambda_.1} parent=0 // pred_fallthru
    _
  // Predicated region
  $region38: #{_lambda_.1} parent=0 // pred_check
    _
  $region39: #{_lambda_.1} parent=0 // pred_check_branch
    %41 = sbr.rel (0) target = $region41
  $region40: #{_lambda_.1} parent=0 // pred_region
    _
  $region41: #{_lambda_.1} parent=0 // pred_fallthru
    _
  // Predicated region
  $region42: #{_lambda_.1} parent=0 // pred_check
    _
  $region43: #{_lambda_.1} parent=0 // pred_check_branch
    %43 = sbr.rel (0) target = $region45
  $region44: #{_lambda_.1} parent=0 // pred_region
    _
  $region45: #{_lambda_.1} parent=0 // pred_fallthru
    _
  // Predicated region
  $region46: #{_lambda_.1} parent=0 // pred_check
    _
  $region47: #{_lambda_.1} parent=0 // pred_check_branch
    %45 = sbr.rel (0) target = $region49
  $region48: #{_lambda_.1} parent=0 // pred_region
    _
  $region49: #{_lambda_.1} parent=0 // pred_fallthru
    _
  // Predicated region
  $region50: #{_lambda_.1} parent=0 // pred_check
    _
  $region51: #{_lambda_.1} parent=0 // pred_check_branch
    %47 = sbr.rel (0) target = $region53
  $region52: #{_lambda_.1} parent=0 // pred_region
    _
  $region53: #{_lambda_.1} parent=0 // pred_fallthru
    _
  // Predicated region
  $region54: #{_lambda_.1} parent=0 // pred_check
    _
  $region55: #{_lambda_.1} parent=0 // pred_check_branch
    %49 = sbr.rel (0) target = $region57
  $region56: #{_lambda_.1} parent=0 // pred_region
    _
  $region57: #{_lambda_.1} parent=0 // pred_fallthru
    _
  // Predicated region
  $region58: #{_lambda_.1} parent=0 // pred_check
    _
  $region59: #{_lambda_.1} parent=0 // pred_check_branch
    %51 = sbr.rel (0) target = $region61
  $region60: #{_lambda_.1} parent=0 // pred_region
    _
  $region61: #{_lambda_.1} parent=0 // pred_fallthru
    _
  // Predicated region
  $region62: #{_lambda_.1} parent=0 // pred_check
    _
  $region63: #{_lambda_.1} parent=0 // pred_check_branch
    %53 = sbr.rel (0) target = $region65
  $region64: #{_lambda_.1} parent=0 // pred_region
    _
  $region65: #{_lambda_.1} parent=0 // pred_fallthru
    _
  %s54 = ssub.s32 0, 0
  %s55 = ssub.s32 0, 0
  %p56 = scmp.ne.s32.totalorder 0, 0
  %p57 = scmp.lt.s32.totalorder 0, 0
  %p58 = pnand %p57, %p56
  %p59 = pneg %p58
  %s60 = sadd.s32 0, 2
  %s61 = scalar_select %p59, %s60, 0
  %p62 = scmp.eq.s32.totalorder 0, 0
  // Predicated region
  $region66: #{_lambda_.1} parent=0 // pred_check
    %p63 = pneg %p62
  $region67: #{_lambda_.1} parent=0 // pred_check_branch
    %65 = sbr.rel (%p63) target = $region69
  $region68: #{_lambda_.1} parent=0 // pred_region
    %s66 = smul.u32 0, 32
    %s67 = smul.u32 %s66, 56
    %s68 = smul.u32 0, 3136
    %s69 = sadd.s32 %s67, %s68
    %s70 = scalar_lea.vmem %s0, %s69
    %s71 = smul.u32 %s61, 3136
    %s72 = scalar_lea.vmem [#allocation2], %s71
    %s73 = scalar_lea.sflag [#allocation3], %s61
    // Predicated region
    $region70: #{_lambda_.1} parent=68 // pred_check
      _
    $region71: #{_lambda_.1} parent=68 // pred_check_branch
      %75 = sbr.rel (0) target = $region73
    $region72: #{_lambda_.1} parent=68 // pred_region
      loop: start=0, step=1, limit=1
      $region74: #{_lambda_.1} parent=72 // loop_pre_header
        _
      $region75: #{_lambda_.1} parent=72 // loop_header
        %s77 = sphi 0, %s81
        %p78 = scmp.ge.s32.totalorder %s77, 1
        %s82 = sphi %s70, %s70
        %s83 = sphi %s72, %s72
      $region76: #{_lambda_.1} parent=72 // loop_header_branch
        %80 = sbr.rel (%p78) target = $region80
      $region77: #{_lambda_.1} parent=72 // loop_body
        %v84 = vld [vmem:[%s82] sm:$0xff]
        %85 = vst [vmem:[%s83] sm:$0xff] %v84
        %v86 = vld [vmem:[%s82 + $0x8] sm:$0xff]
        %87 = vst [vmem:[%s83 + $0x8] sm:$0xff] %v86
        %v88 = vld [vmem:[%s82 + $0x10] sm:$0xff]
        %89 = vst [vmem:[%s83 + $0x10] sm:$0xff] %v88
        %v90 = vld [vmem:[%s82 + $0x18] sm:$0xff]
        %91 = vst [vmem:[%s83 + $0x18] sm:$0xff] %v90
        %v92 = vld [vmem:[%s82 + $0x20] sm:$0xff]
        %93 = vst [vmem:[%s83 + $0x20] sm:$0xff] %v92
        %v94 = vld [vmem:[%s82 + $0x28] sm:$0xff]
        %95 = vst [vmem:[%s83 + $0x28] sm:$0xff] %v94
        %v96 = vld [vmem:[%s82 + $0x30] sm:$0xff]
        %97 = vst [vmem:[%s83 + $0x30] sm:$0xff] %v96
        %v98 = vld [vmem:[%s82 + $0x38] sm:$0xff]
        %99 = vst [vmem:[%s83 + $0x38] sm:$0xff] %v98
        %v100 = vld [vmem:[%s82 + $0x40] sm:$0xff]
        %101 = vst [vmem:[%s83 + $0x40] sm:$0xff] %v100
        %v102 = vld [vmem:[%s82 + $0x48] sm:$0xff]
        %103 = vst [vmem:[%s83 + $0x48] sm:$0xff] %v102
        %v104 = vld [vmem:[%s82 + $0x50] sm:$0xff]
        %105 = vst [vmem:[%s83 + $0x50] sm:$0xff] %v104
        %v106 = vld [vmem:[%s82 + $0x58] sm:$0xff]
        %107 = vst [vmem:[%s83 + $0x58] sm:$0xff] %v106
        %v108 = vld [vmem:[%s82 + $0x60] sm:$0xff]
        %109 = vst [vmem:[%s83 + $0x60] sm:$0xff] %v108
        %v110 = vld [vmem:[%s82 + $0x68] sm:$0xff]
        %111 = vst [vmem:[%s83 + $0x68] sm:$0xff] %v110
        %v112 = vld [vmem:[%s82 + $0x70] sm:$0xff]
        %113 = vst [vmem:[%s83 + $0x70] sm:$0xff] %v112
        %v114 = vld [vmem:[%s82 + $0x78] sm:$0xff]
        %115 = vst [vmem:[%s83 + $0x78] sm:$0xff] %v114
        %v116 = vld [vmem:[%s82 + $0x80] sm:$0xff]
        %117 = vst [vmem:[%s83 + $0x80] sm:$0xff] %v116
        %v118 = vld [vmem:[%s82 + $0x88] sm:$0xff]
        %119 = vst [vmem:[%s83 + $0x88] sm:$0xff] %v118
        %v120 = vld [vmem:[%s82 + $0x90] sm:$0xff]
        %121 = vst [vmem:[%s83 + $0x90] sm:$0xff] %v120
        %v122 = vld [vmem:[%s82 + $0x98] sm:$0xff]
        %123 = vst [vmem:[%s83 + $0x98] sm:$0xff] %v122
        %v124 = vld [vmem:[%s82 + $0xa0] sm:$0xff]
        %125 = vst [vmem:[%s83 + $0xa0] sm:$0xff] %v124
        %v126 = vld [vmem:[%s82 + $0xa8] sm:$0xff]
        %127 = vst [vmem:[%s83 + $0xa8] sm:$0xff] %v126
        %v128 = vld [vmem:[%s82 + $0xb0] sm:$0xff]
        %129 = vst [vmem:[%s83 + $0xb0] sm:$0xff] %v128
        %v130 = vld [vmem:[%s82 + $0xb8] sm:$0xff]
        %131 = vst [vmem:[%s83 + $0xb8] sm:$0xff] %v130
        %v132 = vld [vmem:[%s82 + $0xc0] sm:$0xff]
        %133 = vst [vmem:[%s83 + $0xc0] sm:$0xff] %v132
        %v134 = vld [vmem:[%s82 + $0xc8] sm:$0xff]
        %135 = vst [vmem:[%s83 + $0xc8] sm:$0xff] %v134
        %v136 = vld [vmem:[%s82 + $0xd0] sm:$0xff]
        %137 = vst [vmem:[%s83 + $0xd0] sm:$0xff] %v136
        %v138 = vld [vmem:[%s82 + $0xd8] sm:$0xff]
        %139 = vst [vmem:[%s83 + $0xd8] sm:$0xff] %v138
        %v140 = vld [vmem:[%s82 + $0xe0] sm:$0xff]
        %141 = vst [vmem:[%s83 + $0xe0] sm:$0xff] %v140
        %v142 = vld [vmem:[%s82 + $0xe8] sm:$0xff]
        %143 = vst [vmem:[%s83 + $0xe8] sm:$0xff] %v142
        %v144 = vld [vmem:[%s82 + $0xf0] sm:$0xff]
        %145 = vst [vmem:[%s83 + $0xf0] sm:$0xff] %v144
        %v146 = vld [vmem:[%s82 + $0xf8] sm:$0xff]
        %147 = vst [vmem:[%s83 + $0xf8] sm:$0xff] %v146
        %v148 = vld [vmem:[%s82 + $0x100] sm:$0xff]
        %149 = vst [vmem:[%s83 + $0x100] sm:$0xff] %v148
        %v150 = vld [vmem:[%s82 + $0x108] sm:$0xff]
        %151 = vst [vmem:[%s83 + $0x108] sm:$0xff] %v150
        %v152 = vld [vmem:[%s82 + $0x110] sm:$0xff]
        %153 = vst [vmem:[%s83 + $0x110] sm:$0xff] %v152
        %v154 = vld [vmem:[%s82 + $0x118] sm:$0xff]
        %155 = vst [vmem:[%s83 + $0x118] sm:$0xff] %v154
        %v156 = vld [vmem:[%s82 + $0x120] sm:$0xff]
        %157 = vst [vmem:[%s83 + $0x120] sm:$0xff] %v156
        %v158 = vld [vmem:[%s82 + $0x128] sm:$0xff]
        %159 = vst [vmem:[%s83 + $0x128] sm:$0xff] %v158
        %v160 = vld [vmem:[%s82 + $0x130] sm:$0xff]
        %161 = vst [vmem:[%s83 + $0x130] sm:$0xff] %v160
        %v162 = vld [vmem:[%s82 + $0x138] sm:$0xff]
        %163 = vst [vmem:[%s83 + $0x138] sm:$0xff] %v162
        %v164 = vld [vmem:[%s82 + $0x140] sm:$0xff]
        %165 = vst [vmem:[%s83 + $0x140] sm:$0xff] %v164
        %v166 = vld [vmem:[%s82 + $0x148] sm:$0xff]
        %167 = vst [vmem:[%s83 + $0x148] sm:$0xff] %v166
        %v168 = vld [vmem:[%s82 + $0x150] sm:$0xff]
        %169 = vst [vmem:[%s83 + $0x150] sm:$0xff] %v168
        %v170 = vld [vmem:[%s82 + $0x158] sm:$0xff]
        %171 = vst [vmem:[%s83 + $0x158] sm:$0xff] %v170
        %v172 = vld [vmem:[%s82 + $0x160] sm:$0xff]
        %173 = vst [vmem:[%s83 + $0x160] sm:$0xff] %v172
        %v174 = vld [vmem:[%s82 + $0x168] sm:$0xff]
        %175 = vst [vmem:[%s83 + $0x168] sm:$0xff] %v174
        %v176 = vld [vmem:[%s82 + $0x170] sm:$0xff]
        %177 = vst [vmem:[%s83 + $0x170] sm:$0xff] %v176
        %v178 = vld [vmem:[%s82 + $0x178] sm:$0xff]
        %179 = vst [vmem:[%s83 + $0x178] sm:$0xff] %v178
        %v180 = vld [vmem:[%s82 + $0x180] sm:$0xff]
        %181 = vst [vmem:[%s83 + $0x180] sm:$0xff] %v180
        %v182 = vld [vmem:[%s82 + $0x188] sm:$0xff]
        %183 = vst [vmem:[%s83 + $0x188] sm:$0xff] %v182
        %v184 = vld [vmem:[%s82 + $0x190] sm:$0xff]
        %185 = vst [vmem:[%s83 + $0x190] sm:$0xff] %v184
        %v186 = vld [vmem:[%s82 + $0x198] sm:$0xff]
        %187 = vst [vmem:[%s83 + $0x198] sm:$0xff] %v186
        %v188 = vld [vmem:[%s82 + $0x1a0] sm:$0xff]
        %189 = vst [vmem:[%s83 + $0x1a0] sm:$0xff] %v188
        %v190 = vld [vmem:[%s82 + $0x1a8] sm:$0xff]
        %191 = vst [vmem:[%s83 + $0x1a8] sm:$0xff] %v190
        %v192 = vld [vmem:[%s82 + $0x1b0] sm:$0xff]
        %193 = vst [vmem:[%s83 + $0x1b0] sm:$0xff] %v192
        %v194 = vld [vmem:[%s82 + $0x1b8] sm:$0xff]
        %195 = vst [vmem:[%s83 + $0x1b8] sm:$0xff] %v194
        %v196 = vld [vmem:[%s82 + $0x1c0] sm:$0xff]
        %197 = vst [vmem:[%s83 + $0x1c0] sm:$0xff] %v196
        %v198 = vld [vmem:[%s82 + $0x1c8] sm:$0xff]
        %199 = vst [vmem:[%s83 + $0x1c8] sm:$0xff] %v198
        %v200 = vld [vmem:[%s82 + $0x1d0] sm:$0xff]
        %201 = vst [vmem:[%s83 + $0x1d0] sm:$0xff] %v200
        %v202 = vld [vmem:[%s82 + $0x1d8] sm:$0xff]
        %203 = vst [vmem:[%s83 + $0x1d8] sm:$0xff] %v202
        %v204 = vld [vmem:[%s82 + $0x1e0] sm:$0xff]
        %205 = vst [vmem:[%s83 + $0x1e0] sm:$0xff] %v204
        %v206 = vld [vmem:[%s82 + $0x1e8] sm:$0xff]
        %207 = vst [vmem:[%s83 + $0x1e8] sm:$0xff] %v206
        %v208 = vld [vmem:[%s82 + $0x1f0] sm:$0xff]
        %209 = vst [vmem:[%s83 + $0x1f0] sm:$0xff] %v208
        %v210 = vld [vmem:[%s82 + $0x1f8] sm:$0xff]
        %211 = vst [vmem:[%s83 + $0x1f8] sm:$0xff] %v210
        %v212 = vld [vmem:[%s82 + $0x200] sm:$0xff]
        %213 = vst [vmem:[%s83 + $0x200] sm:$0xff] %v212
        %v214 = vld [vmem:[%s82 + $0x208] sm:$0xff]
        %215 = vst [vmem:[%s83 + $0x208] sm:$0xff] %v214
        %v216 = vld [vmem:[%s82 + $0x210] sm:$0xff]
        %217 = vst [vmem:[%s83 + $0x210] sm:$0xff] %v216
        %v218 = vld [vmem:[%s82 + $0x218] sm:$0xff]
        %219 = vst [vmem:[%s83 + $0x218] sm:$0xff] %v218
        %v220 = vld [vmem:[%s82 + $0x220] sm:$0xff]
        %221 = vst [vmem:[%s83 + $0x220] sm:$0xff] %v220
        %v222 = vld [vmem:[%s82 + $0x228] sm:$0xff]
        %223 = vst [vmem:[%s83 + $0x228] sm:$0xff] %v222
        %v224 = vld [vmem:[%s82 + $0x230] sm:$0xff]
        %225 = vst [vmem:[%s83 + $0x230] sm:$0xff] %v224
        %v226 = vld [vmem:[%s82 + $0x238] sm:$0xff]
        %227 = vst [vmem:[%s83 + $0x238] sm:$0xff] %v226
        %v228 = vld [vmem:[%s82 + $0x240] sm:$0xff]
        %229 = vst [vmem:[%s83 + $0x240] sm:$0xff] %v228
        %v230 = vld [vmem:[%s82 + $0x248] sm:$0xff]
        %231 = vst [vmem:[%s83 + $0x248] sm:$0xff] %v230
        %v232 = vld [vmem:[%s82 + $0x250] sm:$0xff]
        %233 = vst [vmem:[%s83 + $0x250] sm:$0xff] %v232
        %v234 = vld [vmem:[%s82 + $0x258] sm:$0xff]
        %235 = vst [vmem:[%s83 + $0x258] sm:$0xff] %v234
        %v236 = vld [vmem:[%s82 + $0x260] sm:$0xff]
        %237 = vst [vmem:[%s83 + $0x260] sm:$0xff] %v236
        %v238 = vld [vmem:[%s82 + $0x268] sm:$0xff]
        %239 = vst [vmem:[%s83 + $0x268] sm:$0xff] %v238
        %v240 = vld [vmem:[%s82 + $0x270] sm:$0xff]
        %241 = vst [vmem:[%s83 + $0x270] sm:$0xff] %v240
        %v242 = vld [vmem:[%s82 + $0x278] sm:$0xff]
        %243 = vst [vmem:[%s83 + $0x278] sm:$0xff] %v242
        %v244 = vld [vmem:[%s82 + $0x280] sm:$0xff]
        %245 = vst [vmem:[%s83 + $0x280] sm:$0xff] %v244
        %v246 = vld [vmem:[%s82 + $0x288] sm:$0xff]
        %247 = vst [vmem:[%s83 + $0x288] sm:$0xff] %v246
        %v248 = vld [vmem:[%s82 + $0x290] sm:$0xff]
        %249 = vst [vmem:[%s83 + $0x290] sm:$0xff] %v248
        %v250 = vld [vmem:[%s82 + $0x298] sm:$0xff]
        %251 = vst [vmem:[%s83 + $0x298] sm:$0xff] %v250
        %v252 = vld [vmem:[%s82 + $0x2a0] sm:$0xff]
        %253 = vst [vmem:[%s83 + $0x2a0] sm:$0xff] %v252
        %v254 = vld [vmem:[%s82 + $0x2a8] sm:$0xff]
        %255 = vst [vmem:[%s83 + $0x2a8] sm:$0xff] %v254
        %v256 = vld [vmem:[%s82 + $0x2b0] sm:$0xff]
        %257 = vst [vmem:[%s83 + $0x2b0] sm:$0xff] %v256
        %v258 = vld [vmem:[%s82 + $0x2b8] sm:$0xff]
        %259 = vst [vmem:[%s83 + $0x2b8] sm:$0xff] %v258
        %v260 = vld [vmem:[%s82 + $0x2c0] sm:$0xff]
        %261 = vst [vmem:[%s83 + $0x2c0] sm:$0xff] %v260
        %v262 = vld [vmem:[%s82 + $0x2c8] sm:$0xff]
        %263 = vst [vmem:[%s83 + $0x2c8] sm:$0xff] %v262
        %v264 = vld [vmem:[%s82 + $0x2d0] sm:$0xff]
        %265 = vst [vmem:[%s83 + $0x2d0] sm:$0xff] %v264
        %v266 = vld [vmem:[%s82 + $0x2d8] sm:$0xff]
        %267 = vst [vmem:[%s83 + $0x2d8] sm:$0xff] %v266
        %v268 = vld [vmem:[%s82 + $0x2e0] sm:$0xff]
        %269 = vst [vmem:[%s83 + $0x2e0] sm:$0xff] %v268
        %v270 = vld [vmem:[%s82 + $0x2e8] sm:$0xff]
        %271 = vst [vmem:[%s83 + $0x2e8] sm:$0xff] %v270
        %v272 = vld [vmem:[%s82 + $0x2f0] sm:$0xff]
        %273 = vst [vmem:[%s83 + $0x2f0] sm:$0xff] %v272
        %v274 = vld [vmem:[%s82 + $0x2f8] sm:$0xff]
        %275 = vst [vmem:[%s83 + $0x2f8] sm:$0xff] %v274
        %v276 = vld [vmem:[%s82 + $0x300] sm:$0xff]
        %277 = vst [vmem:[%s83 + $0x300] sm:$0xff] %v276
        %v278 = vld [vmem:[%s82 + $0x308] sm:$0xff]
        %279 = vst [vmem:[%s83 + $0x308] sm:$0xff] %v278
        %v280 = vld [vmem:[%s82 + $0x310] sm:$0xff]
        %281 = vst [vmem:[%s83 + $0x310] sm:$0xff] %v280
        %v282 = vld [vmem:[%s82 + $0x318] sm:$0xff]
        %283 = vst [vmem:[%s83 + $0x318] sm:$0xff] %v282
        %v284 = vld [vmem:[%s82 + $0x320] sm:$0xff]
        %285 = vst [vmem:[%s83 + $0x320] sm:$0xff] %v284
        %v286 = vld [vmem:[%s82 + $0x328] sm:$0xff]
        %287 = vst [vmem:[%s83 + $0x328] sm:$0xff] %v286
        %v288 = vld [vmem:[%s82 + $0x330] sm:$0xff]
        %289 = vst [vmem:[%s83 + $0x330] sm:$0xff] %v288
        %v290 = vld [vmem:[%s82 + $0x338] sm:$0xff]
        %291 = vst [vmem:[%s83 + $0x338] sm:$0xff] %v290
        %v292 = vld [vmem:[%s82 + $0x340] sm:$0xff]
        %293 = vst [vmem:[%s83 + $0x340] sm:$0xff] %v292
        %v294 = vld [vmem:[%s82 + $0x348] sm:$0xff]
        %295 = vst [vmem:[%s83 + $0x348] sm:$0xff] %v294
        %v296 = vld [vmem:[%s82 + $0x350] sm:$0xff]
        %297 = vst [vmem:[%s83 + $0x350] sm:$0xff] %v296
        %v298 = vld [vmem:[%s82 + $0x358] sm:$0xff]
        %299 = vst [vmem:[%s83 + $0x358] sm:$0xff] %v298
        %v300 = vld [vmem:[%s82 + $0x360] sm:$0xff]
        %301 = vst [vmem:[%s83 + $0x360] sm:$0xff] %v300
        %v302 = vld [vmem:[%s82 + $0x368] sm:$0xff]
        %303 = vst [vmem:[%s83 + $0x368] sm:$0xff] %v302
        %v304 = vld [vmem:[%s82 + $0x370] sm:$0xff]
        %305 = vst [vmem:[%s83 + $0x370] sm:$0xff] %v304
        %v306 = vld [vmem:[%s82 + $0x378] sm:$0xff]
        %307 = vst [vmem:[%s83 + $0x378] sm:$0xff] %v306
        %v308 = vld [vmem:[%s82 + $0x380] sm:$0xff]
        %309 = vst [vmem:[%s83 + $0x380] sm:$0xff] %v308
        %v310 = vld [vmem:[%s82 + $0x388] sm:$0xff]
        %311 = vst [vmem:[%s83 + $0x388] sm:$0xff] %v310
        %v312 = vld [vmem:[%s82 + $0x390] sm:$0xff]
        %313 = vst [vmem:[%s83 + $0x390] sm:$0xff] %v312
        %v314 = vld [vmem:[%s82 + $0x398] sm:$0xff]
        %315 = vst [vmem:[%s83 + $0x398] sm:$0xff] %v314
        %v316 = vld [vmem:[%s82 + $0x3a0] sm:$0xff]
        %317 = vst [vmem:[%s83 + $0x3a0] sm:$0xff] %v316
        %v318 = vld [vmem:[%s82 + $0x3a8] sm:$0xff]
        %319 = vst [vmem:[%s83 + $0x3a8] sm:$0xff] %v318
        %v320 = vld [vmem:[%s82 + $0x3b0] sm:$0xff]
        %321 = vst [vmem:[%s83 + $0x3b0] sm:$0xff] %v320
        %v322 = vld [vmem:[%s82 + $0x3b8] sm:$0xff]
        %323 = vst [vmem:[%s83 + $0x3b8] sm:$0xff] %v322
        %v324 = vld [vmem:[%s82 + $0x3c0] sm:$0xff]
        %325 = vst [vmem:[%s83 + $0x3c0] sm:$0xff] %v324
        %v326 = vld [vmem:[%s82 + $0x3c8] sm:$0xff]
        %327 = vst [vmem:[%s83 + $0x3c8] sm:$0xff] %v326
        %v328 = vld [vmem:[%s82 + $0x3d0] sm:$0xff]
        %329 = vst [vmem:[%s83 + $0x3d0] sm:$0xff] %v328
        %v330 = vld [vmem:[%s82 + $0x3d8] sm:$0xff]
        %331 = vst [vmem:[%s83 + $0x3d8] sm:$0xff] %v330
        %v332 = vld [vmem:[%s82 + $0x3e0] sm:$0xff]
        %333 = vst [vmem:[%s83 + $0x3e0] sm:$0xff] %v332
        %v334 = vld [vmem:[%s82 + $0x3e8] sm:$0xff]
        %335 = vst [vmem:[%s83 + $0x3e8] sm:$0xff] %v334
        %v336 = vld [vmem:[%s82 + $0x3f0] sm:$0xff]
        %337 = vst [vmem:[%s83 + $0x3f0] sm:$0xff] %v336
        %v338 = vld [vmem:[%s82 + $0x3f8] sm:$0xff]
        %339 = vst [vmem:[%s83 + $0x3f8] sm:$0xff] %v338
        %v340 = vld [vmem:[%s82 + $0x400] sm:$0xff]
        %341 = vst [vmem:[%s83 + $0x400] sm:$0xff] %v340
        %v342 = vld [vmem:[%s82 + $0x408] sm:$0xff]
        %343 = vst [vmem:[%s83 + $0x408] sm:$0xff] %v342
        %v344 = vld [vmem:[%s82 + $0x410] sm:$0xff]
        %345 = vst [vmem:[%s83 + $0x410] sm:$0xff] %v344
        %v346 = vld [vmem:[%s82 + $0x418] sm:$0xff]
        %347 = vst [vmem:[%s83 + $0x418] sm:$0xff] %v346
        %v348 = vld [vmem:[%s82 + $0x420] sm:$0xff]
        %349 = vst [vmem:[%s83 + $0x420] sm:$0xff] %v348
        %v350 = vld [vmem:[%s82 + $0x428] sm:$0xff]
        %351 = vst [vmem:[%s83 + $0x428] sm:$0xff] %v350
        %v352 = vld [vmem:[%s82 + $0x430] sm:$0xff]
        %353 = vst [vmem:[%s83 + $0x430] sm:$0xff] %v352
        %v354 = vld [vmem:[%s82 + $0x438] sm:$0xff]
        %355 = vst [vmem:[%s83 + $0x438] sm:$0xff] %v354
        %v356 = vld [vmem:[%s82 + $0x440] sm:$0xff]
        %357 = vst [vmem:[%s83 + $0x440] sm:$0xff] %v356
        %v358 = vld [vmem:[%s82 + $0x448] sm:$0xff]
        %359 = vst [vmem:[%s83 + $0x448] sm:$0xff] %v358
        %v360 = vld [vmem:[%s82 + $0x450] sm:$0xff]
        %361 = vst [vmem:[%s83 + $0x450] sm:$0xff] %v360
        %v362 = vld [vmem:[%s82 + $0x458] sm:$0xff]
        %363 = vst [vmem:[%s83 + $0x458] sm:$0xff] %v362
        %v364 = vld [vmem:[%s82 + $0x460] sm:$0xff]
        %365 = vst [vmem:[%s83 + $0x460] sm:$0xff] %v364
        %v366 = vld [vmem:[%s82 + $0x468] sm:$0xff]
        %367 = vst [vmem:[%s83 + $0x468] sm:$0xff] %v366
        %v368 = vld [vmem:[%s82 + $0x470] sm:$0xff]
        %369 = vst [vmem:[%s83 + $0x470] sm:$0xff] %v368
        %v370 = vld [vmem:[%s82 + $0x478] sm:$0xff]
        %371 = vst [vmem:[%s83 + $0x478] sm:$0xff] %v370
        %v372 = vld [vmem:[%s82 + $0x480] sm:$0xff]
        %373 = vst [vmem:[%s83 + $0x480] sm:$0xff] %v372
        %v374 = vld [vmem:[%s82 + $0x488] sm:$0xff]
        %375 = vst [vmem:[%s83 + $0x488] sm:$0xff] %v374
        %v376 = vld [vmem:[%s82 + $0x490] sm:$0xff]
        %377 = vst [vmem:[%s83 + $0x490] sm:$0xff] %v376
        %v378 = vld [vmem:[%s82 + $0x498] sm:$0xff]
        %379 = vst [vmem:[%s83 + $0x498] sm:$0xff] %v378
        %v380 = vld [vmem:[%s82 + $0x4a0] sm:$0xff]
        %381 = vst [vmem:[%s83 + $0x4a0] sm:$0xff] %v380
        %v382 = vld [vmem:[%s82 + $0x4a8] sm:$0xff]
        %383 = vst [vmem:[%s83 + $0x4a8] sm:$0xff] %v382
        %v384 = vld [vmem:[%s82 + $0x4b0] sm:$0xff]
        %385 = vst [vmem:[%s83 + $0x4b0] sm:$0xff] %v384
        %v386 = vld [vmem:[%s82 + $0x4b8] sm:$0xff]
        %387 = vst [vmem:[%s83 + $0x4b8] sm:$0xff] %v386
        %v388 = vld [vmem:[%s82 + $0x4c0] sm:$0xff]
        %389 = vst [vmem:[%s83 + $0x4c0] sm:$0xff] %v388
        %v390 = vld [vmem:[%s82 + $0x4c8] sm:$0xff]
        %391 = vst [vmem:[%s83 + $0x4c8] sm:$0xff] %v390
        %v392 = vld [vmem:[%s82 + $0x4d0] sm:$0xff]
        %393 = vst [vmem:[%s83 + $0x4d0] sm:$0xff] %v392
        %v394 = vld [vmem:[%s82 + $0x4d8] sm:$0xff]
        %395 = vst [vmem:[%s83 + $0x4d8] sm:$0xff] %v394
        %v396 = vld [vmem:[%s82 + $0x4e0] sm:$0xff]
        %397 = vst [vmem:[%s83 + $0x4e0] sm:$0xff] %v396
        %v398 = vld [vmem:[%s82 + $0x4e8] sm:$0xff]
        %399 = vst [vmem:[%s83 + $0x4e8] sm:$0xff] %v398
        %v400 = vld [vmem:[%s82 + $0x4f0] sm:$0xff]
        %401 = vst [vmem:[%s83 + $0x4f0] sm:$0xff] %v400
        %v402 = vld [vmem:[%s82 + $0x4f8] sm:$0xff]
        %403 = vst [vmem:[%s83 + $0x4f8] sm:$0xff] %v402
        %v404 = vld [vmem:[%s82 + $0x500] sm:$0xff]
        %405 = vst [vmem:[%s83 + $0x500] sm:$0xff] %v404
        %v406 = vld [vmem:[%s82 + $0x508] sm:$0xff]
        %407 = vst [vmem:[%s83 + $0x508] sm:$0xff] %v406
        %v408 = vld [vmem:[%s82 + $0x510] sm:$0xff]
        %409 = vst [vmem:[%s83 + $0x510] sm:$0xff] %v408
        %v410 = vld [vmem:[%s82 + $0x518] sm:$0xff]
        %411 = vst [vmem:[%s83 + $0x518] sm:$0xff] %v410
        %v412 = vld [vmem:[%s82 + $0x520] sm:$0xff]
        %413 = vst [vmem:[%s83 + $0x520] sm:$0xff] %v412
        %v414 = vld [vmem:[%s82 + $0x528] sm:$0xff]
        %415 = vst [vmem:[%s83 + $0x528] sm:$0xff] %v414
        %v416 = vld [vmem:[%s82 + $0x530] sm:$0xff]
        %417 = vst [vmem:[%s83 + $0x530] sm:$0xff] %v416
        %v418 = vld [vmem:[%s82 + $0x538] sm:$0xff]
        %419 = vst [vmem:[%s83 + $0x538] sm:$0xff] %v418
        %v420 = vld [vmem:[%s82 + $0x540] sm:$0xff]
        %421 = vst [vmem:[%s83 + $0x540] sm:$0xff] %v420
        %v422 = vld [vmem:[%s82 + $0x548] sm:$0xff]
        %423 = vst [vmem:[%s83 + $0x548] sm:$0xff] %v422
        %v424 = vld [vmem:[%s82 + $0x550] sm:$0xff]
        %425 = vst [vmem:[%s83 + $0x550] sm:$0xff] %v424
        %v426 = vld [vmem:[%s82 + $0x558] sm:$0xff]
        %427 = vst [vmem:[%s83 + $0x558] sm:$0xff] %v426
        %v428 = vld [vmem:[%s82 + $0x560] sm:$0xff]
        %429 = vst [vmem:[%s83 + $0x560] sm:$0xff] %v428
        %v430 = vld [vmem:[%s82 + $0x568] sm:$0xff]
        %431 = vst [vmem:[%s83 + $0x568] sm:$0xff] %v430
        %v432 = vld [vmem:[%s82 + $0x570] sm:$0xff]
        %433 = vst [vmem:[%s83 + $0x570] sm:$0xff] %v432
        %v434 = vld [vmem:[%s82 + $0x578] sm:$0xff]
        %435 = vst [vmem:[%s83 + $0x578] sm:$0xff] %v434
        %v436 = vld [vmem:[%s82 + $0x580] sm:$0xff]
        %437 = vst [vmem:[%s83 + $0x580] sm:$0xff] %v436
        %v438 = vld [vmem:[%s82 + $0x588] sm:$0xff]
        %439 = vst [vmem:[%s83 + $0x588] sm:$0xff] %v438
        %v440 = vld [vmem:[%s82 + $0x590] sm:$0xff]
        %441 = vst [vmem:[%s83 + $0x590] sm:$0xff] %v440
        %v442 = vld [vmem:[%s82 + $0x598] sm:$0xff]
        %443 = vst [vmem:[%s83 + $0x598] sm:$0xff] %v442
        %v444 = vld [vmem:[%s82 + $0x5a0] sm:$0xff]
        %445 = vst [vmem:[%s83 + $0x5a0] sm:$0xff] %v444
        %v446 = vld [vmem:[%s82 + $0x5a8] sm:$0xff]
        %447 = vst [vmem:[%s83 + $0x5a8] sm:$0xff] %v446
        %v448 = vld [vmem:[%s82 + $0x5b0] sm:$0xff]
        %449 = vst [vmem:[%s83 + $0x5b0] sm:$0xff] %v448
        %v450 = vld [vmem:[%s82 + $0x5b8] sm:$0xff]
        %451 = vst [vmem:[%s83 + $0x5b8] sm:$0xff] %v450
        %v452 = vld [vmem:[%s82 + $0x5c0] sm:$0xff]
        %453 = vst [vmem:[%s83 + $0x5c0] sm:$0xff] %v452
        %v454 = vld [vmem:[%s82 + $0x5c8] sm:$0xff]
        %455 = vst [vmem:[%s83 + $0x5c8] sm:$0xff] %v454
        %v456 = vld [vmem:[%s82 + $0x5d0] sm:$0xff]
        %457 = vst [vmem:[%s83 + $0x5d0] sm:$0xff] %v456
        %v458 = vld [vmem:[%s82 + $0x5d8] sm:$0xff]
        %459 = vst [vmem:[%s83 + $0x5d8] sm:$0xff] %v458
        %v460 = vld [vmem:[%s82 + $0x5e0] sm:$0xff]
        %461 = vst [vmem:[%s83 + $0x5e0] sm:$0xff] %v460
        %v462 = vld [vmem:[%s82 + $0x5e8] sm:$0xff]
        %463 = vst [vmem:[%s83 + $0x5e8] sm:$0xff] %v462
        %v464 = vld [vmem:[%s82 + $0x5f0] sm:$0xff]
        %465 = vst [vmem:[%s83 + $0x5f0] sm:$0xff] %v464
        %v466 = vld [vmem:[%s82 + $0x5f8] sm:$0xff]
        %467 = vst [vmem:[%s83 + $0x5f8] sm:$0xff] %v466
        %v468 = vld [vmem:[%s82 + $0x600] sm:$0xff]
        %469 = vst [vmem:[%s83 + $0x600] sm:$0xff] %v468
        %v470 = vld [vmem:[%s82 + $0x608] sm:$0xff]
        %471 = vst [vmem:[%s83 + $0x608] sm:$0xff] %v470
        %v472 = vld [vmem:[%s82 + $0x610] sm:$0xff]
        %473 = vst [vmem:[%s83 + $0x610] sm:$0xff] %v472
        %v474 = vld [vmem:[%s82 + $0x618] sm:$0xff]
        %475 = vst [vmem:[%s83 + $0x618] sm:$0xff] %v474
        %v476 = vld [vmem:[%s82 + $0x620] sm:$0xff]
        %477 = vst [vmem:[%s83 + $0x620] sm:$0xff] %v476
        %v478 = vld [vmem:[%s82 + $0x628] sm:$0xff]
        %479 = vst [vmem:[%s83 + $0x628] sm:$0xff] %v478
        %v480 = vld [vmem:[%s82 + $0x630] sm:$0xff]
        %481 = vst [vmem:[%s83 + $0x630] sm:$0xff] %v480
        %v482 = vld [vmem:[%s82 + $0x638] sm:$0xff]
        %483 = vst [vmem:[%s83 + $0x638] sm:$0xff] %v482
        %v484 = vld [vmem:[%s82 + $0x640] sm:$0xff]
        %485 = vst [vmem:[%s83 + $0x640] sm:$0xff] %v484
        %v486 = vld [vmem:[%s82 + $0x648] sm:$0xff]
        %487 = vst [vmem:[%s83 + $0x648] sm:$0xff] %v486
        %v488 = vld [vmem:[%s82 + $0x650] sm:$0xff]
        %489 = vst [vmem:[%s83 + $0x650] sm:$0xff] %v488
        %v490 = vld [vmem:[%s82 + $0x658] sm:$0xff]
        %491 = vst [vmem:[%s83 + $0x658] sm:$0xff] %v490
        %v492 = vld [vmem:[%s82 + $0x660] sm:$0xff]
        %493 = vst [vmem:[%s83 + $0x660] sm:$0xff] %v492
        %v494 = vld [vmem:[%s82 + $0x668] sm:$0xff]
        %495 = vst [vmem:[%s83 + $0x668] sm:$0xff] %v494
        %v496 = vld [vmem:[%s82 + $0x670] sm:$0xff]
        %497 = vst [vmem:[%s83 + $0x670] sm:$0xff] %v496
        %v498 = vld [vmem:[%s82 + $0x678] sm:$0xff]
        %499 = vst [vmem:[%s83 + $0x678] sm:$0xff] %v498
        %v500 = vld [vmem:[%s82 + $0x680] sm:$0xff]
        %501 = vst [vmem:[%s83 + $0x680] sm:$0xff] %v500
        %v502 = vld [vmem:[%s82 + $0x688] sm:$0xff]
        %503 = vst [vmem:[%s83 + $0x688] sm:$0xff] %v502
        %v504 = vld [vmem:[%s82 + $0x690] sm:$0xff]
        %505 = vst [vmem:[%s83 + $0x690] sm:$0xff] %v504
        %v506 = vld [vmem:[%s82 + $0x698] sm:$0xff]
        %507 = vst [vmem:[%s83 + $0x698] sm:$0xff] %v506
        %v508 = vld [vmem:[%s82 + $0x6a0] sm:$0xff]
        %509 = vst [vmem:[%s83 + $0x6a0] sm:$0xff] %v508
        %v510 = vld [vmem:[%s82 + $0x6a8] sm:$0xff]
        %511 = vst [vmem:[%s83 + $0x6a8] sm:$0xff] %v510
        %v512 = vld [vmem:[%s82 + $0x6b0] sm:$0xff]
        %513 = vst [vmem:[%s83 + $0x6b0] sm:$0xff] %v512
        %v514 = vld [vmem:[%s82 + $0x6b8] sm:$0xff]
        %515 = vst [vmem:[%s83 + $0x6b8] sm:$0xff] %v514
        %v516 = vld [vmem:[%s82 + $0x6c0] sm:$0xff]
        %517 = vst [vmem:[%s83 + $0x6c0] sm:$0xff] %v516
        %v518 = vld [vmem:[%s82 + $0x6c8] sm:$0xff]
        %519 = vst [vmem:[%s83 + $0x6c8] sm:$0xff] %v518
        %v520 = vld [vmem:[%s82 + $0x6d0] sm:$0xff]
        %521 = vst [vmem:[%s83 + $0x6d0] sm:$0xff] %v520
        %v522 = vld [vmem:[%s82 + $0x6d8] sm:$0xff]
        %523 = vst [vmem:[%s83 + $0x6d8] sm:$0xff] %v522
        %v524 = vld [vmem:[%s82 + $0x6e0] sm:$0xff]
        %525 = vst [vmem:[%s83 + $0x6e0] sm:$0xff] %v524
        %v526 = vld [vmem:[%s82 + $0x6e8] sm:$0xff]
        %527 = vst [vmem:[%s83 + $0x6e8] sm:$0xff] %v526
        %v528 = vld [vmem:[%s82 + $0x6f0] sm:$0xff]
        %529 = vst [vmem:[%s83 + $0x6f0] sm:$0xff] %v528
        %v530 = vld [vmem:[%s82 + $0x6f8] sm:$0xff]
        %531 = vst [vmem:[%s83 + $0x6f8] sm:$0xff] %v530
        %v532 = vld [vmem:[%s82 + $0x700] sm:$0xff]
        %533 = vst [vmem:[%s83 + $0x700] sm:$0xff] %v532
        %v534 = vld [vmem:[%s82 + $0x708] sm:$0xff]
        %535 = vst [vmem:[%s83 + $0x708] sm:$0xff] %v534
        %v536 = vld [vmem:[%s82 + $0x710] sm:$0xff]
        %537 = vst [vmem:[%s83 + $0x710] sm:$0xff] %v536
        %v538 = vld [vmem:[%s82 + $0x718] sm:$0xff]
        %539 = vst [vmem:[%s83 + $0x718] sm:$0xff] %v538
        %v540 = vld [vmem:[%s82 + $0x720] sm:$0xff]
        %541 = vst [vmem:[%s83 + $0x720] sm:$0xff] %v540
        %v542 = vld [vmem:[%s82 + $0x728] sm:$0xff]
        %543 = vst [vmem:[%s83 + $0x728] sm:$0xff] %v542
        %v544 = vld [vmem:[%s82 + $0x730] sm:$0xff]
        %545 = vst [vmem:[%s83 + $0x730] sm:$0xff] %v544
        %v546 = vld [vmem:[%s82 + $0x738] sm:$0xff]
        %547 = vst [vmem:[%s83 + $0x738] sm:$0xff] %v546
        %v548 = vld [vmem:[%s82 + $0x740] sm:$0xff]
        %549 = vst [vmem:[%s83 + $0x740] sm:$0xff] %v548
        %v550 = vld [vmem:[%s82 + $0x748] sm:$0xff]
        %551 = vst [vmem:[%s83 + $0x748] sm:$0xff] %v550
        %v552 = vld [vmem:[%s82 + $0x750] sm:$0xff]
        %553 = vst [vmem:[%s83 + $0x750] sm:$0xff] %v552
        %v554 = vld [vmem:[%s82 + $0x758] sm:$0xff]
        %555 = vst [vmem:[%s83 + $0x758] sm:$0xff] %v554
        %v556 = vld [vmem:[%s82 + $0x760] sm:$0xff]
        %557 = vst [vmem:[%s83 + $0x760] sm:$0xff] %v556
        %v558 = vld [vmem:[%s82 + $0x768] sm:$0xff]
        %559 = vst [vmem:[%s83 + $0x768] sm:$0xff] %v558
        %v560 = vld [vmem:[%s82 + $0x770] sm:$0xff]
        %561 = vst [vmem:[%s83 + $0x770] sm:$0xff] %v560
        %v562 = vld [vmem:[%s82 + $0x778] sm:$0xff]
        %563 = vst [vmem:[%s83 + $0x778] sm:$0xff] %v562
        %v564 = vld [vmem:[%s82 + $0x780] sm:$0xff]
        %565 = vst [vmem:[%s83 + $0x780] sm:$0xff] %v564
        %v566 = vld [vmem:[%s82 + $0x788] sm:$0xff]
        %567 = vst [vmem:[%s83 + $0x788] sm:$0xff] %v566
        %v568 = vld [vmem:[%s82 + $0x790] sm:$0xff]
        %569 = vst [vmem:[%s83 + $0x790] sm:$0xff] %v568
        %v570 = vld [vmem:[%s82 + $0x798] sm:$0xff]
        %571 = vst [vmem:[%s83 + $0x798] sm:$0xff] %v570
        %v572 = vld [vmem:[%s82 + $0x7a0] sm:$0xff]
        %573 = vst [vmem:[%s83 + $0x7a0] sm:$0xff] %v572
        %v574 = vld [vmem:[%s82 + $0x7a8] sm:$0xff]
        %575 = vst [vmem:[%s83 + $0x7a8] sm:$0xff] %v574
        %v576 = vld [vmem:[%s82 + $0x7b0] sm:$0xff]
        %577 = vst [vmem:[%s83 + $0x7b0] sm:$0xff] %v576
        %v578 = vld [vmem:[%s82 + $0x7b8] sm:$0xff]
        %579 = vst [vmem:[%s83 + $0x7b8] sm:$0xff] %v578
        %v580 = vld [vmem:[%s82 + $0x7c0] sm:$0xff]
        %581 = vst [vmem:[%s83 + $0x7c0] sm:$0xff] %v580
        %v582 = vld [vmem:[%s82 + $0x7c8] sm:$0xff]
        %583 = vst [vmem:[%s83 + $0x7c8] sm:$0xff] %v582
        %v584 = vld [vmem:[%s82 + $0x7d0] sm:$0xff]
        %585 = vst [vmem:[%s83 + $0x7d0] sm:$0xff] %v584
        %v586 = vld [vmem:[%s82 + $0x7d8] sm:$0xff]
        %587 = vst [vmem:[%s83 + $0x7d8] sm:$0xff] %v586
        %v588 = vld [vmem:[%s82 + $0x7e0] sm:$0xff]
        %589 = vst [vmem:[%s83 + $0x7e0] sm:$0xff] %v588
        %v590 = vld [vmem:[%s82 + $0x7e8] sm:$0xff]
        %591 = vst [vmem:[%s83 + $0x7e8] sm:$0xff] %v590
        %v592 = vld [vmem:[%s82 + $0x7f0] sm:$0xff]
        %593 = vst [vmem:[%s83 + $0x7f0] sm:$0xff] %v592
        %v594 = vld [vmem:[%s82 + $0x7f8] sm:$0xff]
        %595 = vst [vmem:[%s83 + $0x7f8] sm:$0xff] %v594
        %v596 = vld [vmem:[%s82 + $0x800] sm:$0xff]
        %597 = vst [vmem:[%s83 + $0x800] sm:$0xff] %v596
        %v598 = vld [vmem:[%s82 + $0x808] sm:$0xff]
        %599 = vst [vmem:[%s83 + $0x808] sm:$0xff] %v598
        %v600 = vld [vmem:[%s82 + $0x810] sm:$0xff]
        %601 = vst [vmem:[%s83 + $0x810] sm:$0xff] %v600
        %v602 = vld [vmem:[%s82 + $0x818] sm:$0xff]
        %603 = vst [vmem:[%s83 + $0x818] sm:$0xff] %v602
        %v604 = vld [vmem:[%s82 + $0x820] sm:$0xff]
        %605 = vst [vmem:[%s83 + $0x820] sm:$0xff] %v604
        %v606 = vld [vmem:[%s82 + $0x828] sm:$0xff]
        %607 = vst [vmem:[%s83 + $0x828] sm:$0xff] %v606
        %v608 = vld [vmem:[%s82 + $0x830] sm:$0xff]
        %609 = vst [vmem:[%s83 + $0x830] sm:$0xff] %v608
        %v610 = vld [vmem:[%s82 + $0x838] sm:$0xff]
        %611 = vst [vmem:[%s83 + $0x838] sm:$0xff] %v610
        %v612 = vld [vmem:[%s82 + $0x840] sm:$0xff]
        %613 = vst [vmem:[%s83 + $0x840] sm:$0xff] %v612
        %v614 = vld [vmem:[%s82 + $0x848] sm:$0xff]
        %615 = vst [vmem:[%s83 + $0x848] sm:$0xff] %v614
        %v616 = vld [vmem:[%s82 + $0x850] sm:$0xff]
        %617 = vst [vmem:[%s83 + $0x850] sm:$0xff] %v616
        %v618 = vld [vmem:[%s82 + $0x858] sm:$0xff]
        %619 = vst [vmem:[%s83 + $0x858] sm:$0xff] %v618
        %v620 = vld [vmem:[%s82 + $0x860] sm:$0xff]
        %621 = vst [vmem:[%s83 + $0x860] sm:$0xff] %v620
        %v622 = vld [vmem:[%s82 + $0x868] sm:$0xff]
        %623 = vst [vmem:[%s83 + $0x868] sm:$0xff] %v622
        %v624 = vld [vmem:[%s82 + $0x870] sm:$0xff]
        %625 = vst [vmem:[%s83 + $0x870] sm:$0xff] %v624
        %v626 = vld [vmem:[%s82 + $0x878] sm:$0xff]
        %627 = vst [vmem:[%s83 + $0x878] sm:$0xff] %v626
        %v628 = vld [vmem:[%s82 + $0x880] sm:$0xff]
        %629 = vst [vmem:[%s83 + $0x880] sm:$0xff] %v628
        %v630 = vld [vmem:[%s82 + $0x888] sm:$0xff]
        %631 = vst [vmem:[%s83 + $0x888] sm:$0xff] %v630
        %v632 = vld [vmem:[%s82 + $0x890] sm:$0xff]
        %633 = vst [vmem:[%s83 + $0x890] sm:$0xff] %v632
        %v634 = vld [vmem:[%s82 + $0x898] sm:$0xff]
        %635 = vst [vmem:[%s83 + $0x898] sm:$0xff] %v634
        %v636 = vld [vmem:[%s82 + $0x8a0] sm:$0xff]
        %637 = vst [vmem:[%s83 + $0x8a0] sm:$0xff] %v636
        %v638 = vld [vmem:[%s82 + $0x8a8] sm:$0xff]
        %639 = vst [vmem:[%s83 + $0x8a8] sm:$0xff] %v638
        %v640 = vld [vmem:[%s82 + $0x8b0] sm:$0xff]
        %641 = vst [vmem:[%s83 + $0x8b0] sm:$0xff] %v640
        %v642 = vld [vmem:[%s82 + $0x8b8] sm:$0xff]
        %643 = vst [vmem:[%s83 + $0x8b8] sm:$0xff] %v642
        %v644 = vld [vmem:[%s82 + $0x8c0] sm:$0xff]
        %645 = vst [vmem:[%s83 + $0x8c0] sm:$0xff] %v644
        %v646 = vld [vmem:[%s82 + $0x8c8] sm:$0xff]
        %647 = vst [vmem:[%s83 + $0x8c8] sm:$0xff] %v646
        %v648 = vld [vmem:[%s82 + $0x8d0] sm:$0xff]
        %649 = vst [vmem:[%s83 + $0x8d0] sm:$0xff] %v648
        %v650 = vld [vmem:[%s82 + $0x8d8] sm:$0xff]
        %651 = vst [vmem:[%s83 + $0x8d8] sm:$0xff] %v650
        %v652 = vld [vmem:[%s82 + $0x8e0] sm:$0xff]
        %653 = vst [vmem:[%s83 + $0x8e0] sm:$0xff] %v652
        %v654 = vld [vmem:[%s82 + $0x8e8] sm:$0xff]
        %655 = vst [vmem:[%s83 + $0x8e8] sm:$0xff] %v654
        %v656 = vld [vmem:[%s82 + $0x8f0] sm:$0xff]
        %657 = vst [vmem:[%s83 + $0x8f0] sm:$0xff] %v656
        %v658 = vld [vmem:[%s82 + $0x8f8] sm:$0xff]
        %659 = vst [vmem:[%s83 + $0x8f8] sm:$0xff] %v658
        %v660 = vld [vmem:[%s82 + $0x900] sm:$0xff]
        %661 = vst [vmem:[%s83 + $0x900] sm:$0xff] %v660
        %v662 = vld [vmem:[%s82 + $0x908] sm:$0xff]
        %663 = vst [vmem:[%s83 + $0x908] sm:$0xff] %v662
        %v664 = vld [vmem:[%s82 + $0x910] sm:$0xff]
        %665 = vst [vmem:[%s83 + $0x910] sm:$0xff] %v664
        %v666 = vld [vmem:[%s82 + $0x918] sm:$0xff]
        %667 = vst [vmem:[%s83 + $0x918] sm:$0xff] %v666
        %v668 = vld [vmem:[%s82 + $0x920] sm:$0xff]
        %669 = vst [vmem:[%s83 + $0x920] sm:$0xff] %v668
        %v670 = vld [vmem:[%s82 + $0x928] sm:$0xff]
        %671 = vst [vmem:[%s83 + $0x928] sm:$0xff] %v670
        %v672 = vld [vmem:[%s82 + $0x930] sm:$0xff]
        %673 = vst [vmem:[%s83 + $0x930] sm:$0xff] %v672
        %v674 = vld [vmem:[%s82 + $0x938] sm:$0xff]
        %675 = vst [vmem:[%s83 + $0x938] sm:$0xff] %v674
        %v676 = vld [vmem:[%s82 + $0x940] sm:$0xff]
        %677 = vst [vmem:[%s83 + $0x940] sm:$0xff] %v676
        %v678 = vld [vmem:[%s82 + $0x948] sm:$0xff]
        %679 = vst [vmem:[%s83 + $0x948] sm:$0xff] %v678
        %v680 = vld [vmem:[%s82 + $0x950] sm:$0xff]
        %681 = vst [vmem:[%s83 + $0x950] sm:$0xff] %v680
        %v682 = vld [vmem:[%s82 + $0x958] sm:$0xff]
        %683 = vst [vmem:[%s83 + $0x958] sm:$0xff] %v682
        %v684 = vld [vmem:[%s82 + $0x960] sm:$0xff]
        %685 = vst [vmem:[%s83 + $0x960] sm:$0xff] %v684
        %v686 = vld [vmem:[%s82 + $0x968] sm:$0xff]
        %687 = vst [vmem:[%s83 + $0x968] sm:$0xff] %v686
        %v688 = vld [vmem:[%s82 + $0x970] sm:$0xff]
        %689 = vst [vmem:[%s83 + $0x970] sm:$0xff] %v688
        %v690 = vld [vmem:[%s82 + $0x978] sm:$0xff]
        %691 = vst [vmem:[%s83 + $0x978] sm:$0xff] %v690
        %v692 = vld [vmem:[%s82 + $0x980] sm:$0xff]
        %693 = vst [vmem:[%s83 + $0x980] sm:$0xff] %v692
        %v694 = vld [vmem:[%s82 + $0x988] sm:$0xff]
        %695 = vst [vmem:[%s83 + $0x988] sm:$0xff] %v694
        %v696 = vld [vmem:[%s82 + $0x990] sm:$0xff]
        %697 = vst [vmem:[%s83 + $0x990] sm:$0xff] %v696
        %v698 = vld [vmem:[%s82 + $0x998] sm:$0xff]
        %699 = vst [vmem:[%s83 + $0x998] sm:$0xff] %v698
        %v700 = vld [vmem:[%s82 + $0x9a0] sm:$0xff]
        %701 = vst [vmem:[%s83 + $0x9a0] sm:$0xff] %v700
        %v702 = vld [vmem:[%s82 + $0x9a8] sm:$0xff]
        %703 = vst [vmem:[%s83 + $0x9a8] sm:$0xff] %v702
        %v704 = vld [vmem:[%s82 + $0x9b0] sm:$0xff]
        %705 = vst [vmem:[%s83 + $0x9b0] sm:$0xff] %v704
        %v706 = vld [vmem:[%s82 + $0x9b8] sm:$0xff]
        %707 = vst [vmem:[%s83 + $0x9b8] sm:$0xff] %v706
        %v708 = vld [vmem:[%s82 + $0x9c0] sm:$0xff]
        %709 = vst [vmem:[%s83 + $0x9c0] sm:$0xff] %v708
        %v710 = vld [vmem:[%s82 + $0x9c8] sm:$0xff]
        %711 = vst [vmem:[%s83 + $0x9c8] sm:$0xff] %v710
        %v712 = vld [vmem:[%s82 + $0x9d0] sm:$0xff]
        %713 = vst [vmem:[%s83 + $0x9d0] sm:$0xff] %v712
        %v714 = vld [vmem:[%s82 + $0x9d8] sm:$0xff]
        %715 = vst [vmem:[%s83 + $0x9d8] sm:$0xff] %v714
        %v716 = vld [vmem:[%s82 + $0x9e0] sm:$0xff]
        %717 = vst [vmem:[%s83 + $0x9e0] sm:$0xff] %v716
        %v718 = vld [vmem:[%s82 + $0x9e8] sm:$0xff]
        %719 = vst [vmem:[%s83 + $0x9e8] sm:$0xff] %v718
        %v720 = vld [vmem:[%s82 + $0x9f0] sm:$0xff]
        %721 = vst [vmem:[%s83 + $0x9f0] sm:$0xff] %v720
        %v722 = vld [vmem:[%s82 + $0x9f8] sm:$0xff]
        %723 = vst [vmem:[%s83 + $0x9f8] sm:$0xff] %v722
        %v724 = vld [vmem:[%s82 + $0xa00] sm:$0xff]
        %725 = vst [vmem:[%s83 + $0xa00] sm:$0xff] %v724
        %v726 = vld [vmem:[%s82 + $0xa08] sm:$0xff]
        %727 = vst [vmem:[%s83 + $0xa08] sm:$0xff] %v726
        %v728 = vld [vmem:[%s82 + $0xa10] sm:$0xff]
        %729 = vst [vmem:[%s83 + $0xa10] sm:$0xff] %v728
        %v730 = vld [vmem:[%s82 + $0xa18] sm:$0xff]
        %731 = vst [vmem:[%s83 + $0xa18] sm:$0xff] %v730
        %v732 = vld [vmem:[%s82 + $0xa20] sm:$0xff]
        %733 = vst [vmem:[%s83 + $0xa20] sm:$0xff] %v732
        %v734 = vld [vmem:[%s82 + $0xa28] sm:$0xff]
        %735 = vst [vmem:[%s83 + $0xa28] sm:$0xff] %v734
        %v736 = vld [vmem:[%s82 + $0xa30] sm:$0xff]
        %737 = vst [vmem:[%s83 + $0xa30] sm:$0xff] %v736
        %v738 = vld [vmem:[%s82 + $0xa38] sm:$0xff]
        %739 = vst [vmem:[%s83 + $0xa38] sm:$0xff] %v738
        %v740 = vld [vmem:[%s82 + $0xa40] sm:$0xff]
        %741 = vst [vmem:[%s83 + $0xa40] sm:$0xff] %v740
        %v742 = vld [vmem:[%s82 + $0xa48] sm:$0xff]
        %743 = vst [vmem:[%s83 + $0xa48] sm:$0xff] %v742
        %v744 = vld [vmem:[%s82 + $0xa50] sm:$0xff]
        %745 = vst [vmem:[%s83 + $0xa50] sm:$0xff] %v744
        %v746 = vld [vmem:[%s82 + $0xa58] sm:$0xff]
        %747 = vst [vmem:[%s83 + $0xa58] sm:$0xff] %v746
        %v748 = vld [vmem:[%s82 + $0xa60] sm:$0xff]
        %749 = vst [vmem:[%s83 + $0xa60] sm:$0xff] %v748
        %v750 = vld [vmem:[%s82 + $0xa68] sm:$0xff]
        %751 = vst [vmem:[%s83 + $0xa68] sm:$0xff] %v750
        %v752 = vld [vmem:[%s82 + $0xa70] sm:$0xff]
        %753 = vst [vmem:[%s83 + $0xa70] sm:$0xff] %v752
        %v754 = vld [vmem:[%s82 + $0xa78] sm:$0xff]
        %755 = vst [vmem:[%s83 + $0xa78] sm:$0xff] %v754
        %v756 = vld [vmem:[%s82 + $0xa80] sm:$0xff]
        %757 = vst [vmem:[%s83 + $0xa80] sm:$0xff] %v756
        %v758 = vld [vmem:[%s82 + $0xa88] sm:$0xff]
        %759 = vst [vmem:[%s83 + $0xa88] sm:$0xff] %v758
        %v760 = vld [vmem:[%s82 + $0xa90] sm:$0xff]
        %761 = vst [vmem:[%s83 + $0xa90] sm:$0xff] %v760
        %v762 = vld [vmem:[%s82 + $0xa98] sm:$0xff]
        %763 = vst [vmem:[%s83 + $0xa98] sm:$0xff] %v762
        %v764 = vld [vmem:[%s82 + $0xaa0] sm:$0xff]
        %765 = vst [vmem:[%s83 + $0xaa0] sm:$0xff] %v764
        %v766 = vld [vmem:[%s82 + $0xaa8] sm:$0xff]
        %767 = vst [vmem:[%s83 + $0xaa8] sm:$0xff] %v766
        %v768 = vld [vmem:[%s82 + $0xab0] sm:$0xff]
        %769 = vst [vmem:[%s83 + $0xab0] sm:$0xff] %v768
        %v770 = vld [vmem:[%s82 + $0xab8] sm:$0xff]
        %771 = vst [vmem:[%s83 + $0xab8] sm:$0xff] %v770
        %v772 = vld [vmem:[%s82 + $0xac0] sm:$0xff]
        %773 = vst [vmem:[%s83 + $0xac0] sm:$0xff] %v772
        %v774 = vld [vmem:[%s82 + $0xac8] sm:$0xff]
        %775 = vst [vmem:[%s83 + $0xac8] sm:$0xff] %v774
        %v776 = vld [vmem:[%s82 + $0xad0] sm:$0xff]
        %777 = vst [vmem:[%s83 + $0xad0] sm:$0xff] %v776
        %v778 = vld [vmem:[%s82 + $0xad8] sm:$0xff]
        %779 = vst [vmem:[%s83 + $0xad8] sm:$0xff] %v778
        %v780 = vld [vmem:[%s82 + $0xae0] sm:$0xff]
        %781 = vst [vmem:[%s83 + $0xae0] sm:$0xff] %v780
        %v782 = vld [vmem:[%s82 + $0xae8] sm:$0xff]
        %783 = vst [vmem:[%s83 + $0xae8] sm:$0xff] %v782
        %v784 = vld [vmem:[%s82 + $0xaf0] sm:$0xff]
        %785 = vst [vmem:[%s83 + $0xaf0] sm:$0xff] %v784
        %v786 = vld [vmem:[%s82 + $0xaf8] sm:$0xff]
        %787 = vst [vmem:[%s83 + $0xaf8] sm:$0xff] %v786
        %v788 = vld [vmem:[%s82 + $0xb00] sm:$0xff]
        %789 = vst [vmem:[%s83 + $0xb00] sm:$0xff] %v788
        %v790 = vld [vmem:[%s82 + $0xb08] sm:$0xff]
        %791 = vst [vmem:[%s83 + $0xb08] sm:$0xff] %v790
        %v792 = vld [vmem:[%s82 + $0xb10] sm:$0xff]
        %793 = vst [vmem:[%s83 + $0xb10] sm:$0xff] %v792
        %v794 = vld [vmem:[%s82 + $0xb18] sm:$0xff]
        %795 = vst [vmem:[%s83 + $0xb18] sm:$0xff] %v794
        %v796 = vld [vmem:[%s82 + $0xb20] sm:$0xff]
        %797 = vst [vmem:[%s83 + $0xb20] sm:$0xff] %v796
        %v798 = vld [vmem:[%s82 + $0xb28] sm:$0xff]
        %799 = vst [vmem:[%s83 + $0xb28] sm:$0xff] %v798
        %v800 = vld [vmem:[%s82 + $0xb30] sm:$0xff]
        %801 = vst [vmem:[%s83 + $0xb30] sm:$0xff] %v800
        %v802 = vld [vmem:[%s82 + $0xb38] sm:$0xff]
        %803 = vst [vmem:[%s83 + $0xb38] sm:$0xff] %v802
        %v804 = vld [vmem:[%s82 + $0xb40] sm:$0xff]
        %805 = vst [vmem:[%s83 + $0xb40] sm:$0xff] %v804
        %v806 = vld [vmem:[%s82 + $0xb48] sm:$0xff]
        %807 = vst [vmem:[%s83 + $0xb48] sm:$0xff] %v806
        %v808 = vld [vmem:[%s82 + $0xb50] sm:$0xff]
        %809 = vst [vmem:[%s83 + $0xb50] sm:$0xff] %v808
        %v810 = vld [vmem:[%s82 + $0xb58] sm:$0xff]
        %811 = vst [vmem:[%s83 + $0xb58] sm:$0xff] %v810
        %v812 = vld [vmem:[%s82 + $0xb60] sm:$0xff]
        %813 = vst [vmem:[%s83 + $0xb60] sm:$0xff] %v812
        %v814 = vld [vmem:[%s82 + $0xb68] sm:$0xff]
        %815 = vst [vmem:[%s83 + $0xb68] sm:$0xff] %v814
        %v816 = vld [vmem:[%s82 + $0xb70] sm:$0xff]
        %817 = vst [vmem:[%s83 + $0xb70] sm:$0xff] %v816
        %v818 = vld [vmem:[%s82 + $0xb78] sm:$0xff]
        %819 = vst [vmem:[%s83 + $0xb78] sm:$0xff] %v818
        %v820 = vld [vmem:[%s82 + $0xb80] sm:$0xff]
        %821 = vst [vmem:[%s83 + $0xb80] sm:$0xff] %v820
        %v822 = vld [vmem:[%s82 + $0xb88] sm:$0xff]
        %823 = vst [vmem:[%s83 + $0xb88] sm:$0xff] %v822
        %v824 = vld [vmem:[%s82 + $0xb90] sm:$0xff]
        %825 = vst [vmem:[%s83 + $0xb90] sm:$0xff] %v824
        %v826 = vld [vmem:[%s82 + $0xb98] sm:$0xff]
        %827 = vst [vmem:[%s83 + $0xb98] sm:$0xff] %v826
        %v828 = vld [vmem:[%s82 + $0xba0] sm:$0xff]
        %829 = vst [vmem:[%s83 + $0xba0] sm:$0xff] %v828
        %v830 = vld [vmem:[%s82 + $0xba8] sm:$0xff]
        %831 = vst [vmem:[%s83 + $0xba8] sm:$0xff] %v830
        %v832 = vld [vmem:[%s82 + $0xbb0] sm:$0xff]
        %833 = vst [vmem:[%s83 + $0xbb0] sm:$0xff] %v832
        %v834 = vld [vmem:[%s82 + $0xbb8] sm:$0xff]
        %835 = vst [vmem:[%s83 + $0xbb8] sm:$0xff] %v834
        %v836 = vld [vmem:[%s82 + $0xbc0] sm:$0xff]
        %837 = vst [vmem:[%s83 + $0xbc0] sm:$0xff] %v836
        %v838 = vld [vmem:[%s82 + $0xbc8] sm:$0xff]
        %839 = vst [vmem:[%s83 + $0xbc8] sm:$0xff] %v838
        %v840 = vld [vmem:[%s82 + $0xbd0] sm:$0xff]
        %841 = vst [vmem:[%s83 + $0xbd0] sm:$0xff] %v840
        %v842 = vld [vmem:[%s82 + $0xbd8] sm:$0xff]
        %843 = vst [vmem:[%s83 + $0xbd8] sm:$0xff] %v842
        %v844 = vld [vmem:[%s82 + $0xbe0] sm:$0xff]
        %845 = vst [vmem:[%s83 + $0xbe0] sm:$0xff] %v844
        %v846 = vld [vmem:[%s82 + $0xbe8] sm:$0xff]
        %847 = vst [vmem:[%s83 + $0xbe8] sm:$0xff] %v846
        %v848 = vld [vmem:[%s82 + $0xbf0] sm:$0xff]
        %849 = vst [vmem:[%s83 + $0xbf0] sm:$0xff] %v848
        %v850 = vld [vmem:[%s82 + $0xbf8] sm:$0xff]
        %851 = vst [vmem:[%s83 + $0xbf8] sm:$0xff] %v850
        %v852 = vld [vmem:[%s82 + $0xc00] sm:$0xff]
        %853 = vst [vmem:[%s83 + $0xc00] sm:$0xff] %v852
        %v854 = vld [vmem:[%s82 + $0xc08] sm:$0xff]
        %855 = vst [vmem:[%s83 + $0xc08] sm:$0xff] %v854
        %v856 = vld [vmem:[%s82 + $0xc10] sm:$0xff]
        %857 = vst [vmem:[%s83 + $0xc10] sm:$0xff] %v856
        %v858 = vld [vmem:[%s82 + $0xc18] sm:$0xff]
        %859 = vst [vmem:[%s83 + $0xc18] sm:$0xff] %v858
        %v860 = vld [vmem:[%s82 + $0xc20] sm:$0xff]
        %861 = vst [vmem:[%s83 + $0xc20] sm:$0xff] %v860
        %v862 = vld [vmem:[%s82 + $0xc28] sm:$0xff]
        %863 = vst [vmem:[%s83 + $0xc28] sm:$0xff] %v862
        %v864 = vld [vmem:[%s82 + $0xc30] sm:$0xff]
        %865 = vst [vmem:[%s83 + $0xc30] sm:$0xff] %v864
        %v866 = vld [vmem:[%s82 + $0xc38] sm:$0xff]
        %867 = vst [vmem:[%s83 + $0xc38] sm:$0xff] %v866
      $region78: #{_lambda_.1} parent=72 // loop_footer
        %s81 = sadd.s32 1, %s77
      $region79: #{_lambda_.1} parent=72 // loop_footer_branch
        %76 = sbr.rel target = $region75
      $region80: #{_lambda_.1} parent=72 // loop_exit
        _
    $region73: #{_lambda_.1} parent=68 // pred_fallthru
      _
    // Predicated region
    $region81: #{_lambda_.1} parent=68 // pred_check
      _
    $region82: #{_lambda_.1} parent=68 // pred_check_branch
      %869 = sbr.rel target = $region84
    $region83: #{_lambda_.1} parent=68 // pred_region
      _
    $region84: #{_lambda_.1} parent=68 // pred_fallthru
      _
    // Predicated region
    $region85: #{_lambda_.1} parent=68 // pred_check
      _
    $region86: #{_lambda_.1} parent=68 // pred_check_branch
      %872 = sbr.rel (0) target = $region88
    $region87: #{_lambda_.1} parent=68 // pred_region
      %873 = vsyncadd %s73, 50176
    $region88: #{_lambda_.1} parent=68 // pred_fallthru
      _
  $region69: #{_lambda_.1} parent=0 // pred_fallthru
    _
  %s874 = smul.u32 0, 32
  %s875 = smul.u32 %s61, 3136
  %s876 = scalar_lea.vmem [#allocation2], %s875
  %s877 = scalar_lea.sflag [#allocation3], %s61
  %s878 = smul.u32 56, 56
  %s879 = smul.u32 %s878, 1
  %s880 = sshll.u32 %s879, 4
  %881 = dma.done %s877, %s880
  %s882 = sadd.s32 0, 1
  %p883 = scmp.lt.s32.totalorder %s882, 1
  // Predicated region
  $region89: #{_lambda_.1} parent=0 // pred_check
    %p884 = pneg %p883
  $region90: #{_lambda_.1} parent=0 // pred_check_branch
    %886 = sbr.rel (%p884) target = $region92
  $region91: #{_lambda_.1} parent=0 // pred_region
    %s887 = ssub.s32 1, %s61
    %s888 = smul.u32 %s882, 32
    %s889 = smul.u32 %s888, 56
    %s890 = smul.u32 0, 3136
    %s891 = sadd.s32 %s889, %s890
    %s892 = scalar_lea.vmem %s0, %s891
    %s893 = smul.u32 %s887, 3136
    %s894 = scalar_lea.vmem [#allocation2], %s893
    %s895 = scalar_lea.sflag [#allocation3], %s887
    // Predicated region
    $region93: #{_lambda_.1} parent=91 // pred_check
      _
    $region94: #{_lambda_.1} parent=91 // pred_check_branch
      %897 = sbr.rel (0) target = $region96
    $region95: #{_lambda_.1} parent=91 // pred_region
      loop: start=0, step=1, limit=1
      $region97: #{_lambda_.1} parent=95 // loop_pre_header
        _
      $region98: #{_lambda_.1} parent=95 // loop_header
        %s899 = sphi 0, %s903
        %p900 = scmp.ge.s32.totalorder %s899, 1
        %s904 = sphi %s892, %s892
        %s905 = sphi %s894, %s894
      $region99: #{_lambda_.1} parent=95 // loop_header_branch
        %902 = sbr.rel (%p900) target = $region103
      $region100: #{_lambda_.1} parent=95 // loop_body
        %v906 = vld [vmem:[%s904] sm:$0xff]
        %907 = vst [vmem:[%s905] sm:$0xff] %v906
        %v908 = vld [vmem:[%s904 + $0x8] sm:$0xff]
        %909 = vst [vmem:[%s905 + $0x8] sm:$0xff] %v908
        %v910 = vld [vmem:[%s904 + $0x10] sm:$0xff]
        %911 = vst [vmem:[%s905 + $0x10] sm:$0xff] %v910
        %v912 = vld [vmem:[%s904 + $0x18] sm:$0xff]
        %913 = vst [vmem:[%s905 + $0x18] sm:$0xff] %v912
        %v914 = vld [vmem:[%s904 + $0x20] sm:$0xff]
        %915 = vst [vmem:[%s905 + $0x20] sm:$0xff] %v914
        %v916 = vld [vmem:[%s904 + $0x28] sm:$0xff]
        %917 = vst [vmem:[%s905 + $0x28] sm:$0xff] %v916
        %v918 = vld [vmem:[%s904 + $0x30] sm:$0xff]
        %919 = vst [vmem:[%s905 + $0x30] sm:$0xff] %v918
        %v920 = vld [vmem:[%s904 + $0x38] sm:$0xff]
        %921 = vst [vmem:[%s905 + $0x38] sm:$0xff] %v920
        %v922 = vld [vmem:[%s904 + $0x40] sm:$0xff]
        %923 = vst [vmem:[%s905 + $0x40] sm:$0xff] %v922
        %v924 = vld [vmem:[%s904 + $0x48] sm:$0xff]
        %925 = vst [vmem:[%s905 + $0x48] sm:$0xff] %v924
        %v926 = vld [vmem:[%s904 + $0x50] sm:$0xff]
        %927 = vst [vmem:[%s905 + $0x50] sm:$0xff] %v926
        %v928 = vld [vmem:[%s904 + $0x58] sm:$0xff]
        %929 = vst [vmem:[%s905 + $0x58] sm:$0xff] %v928
        %v930 = vld [vmem:[%s904 + $0x60] sm:$0xff]
        %931 = vst [vmem:[%s905 + $0x60] sm:$0xff] %v930
        %v932 = vld [vmem:[%s904 + $0x68] sm:$0xff]
        %933 = vst [vmem:[%s905 + $0x68] sm:$0xff] %v932
        %v934 = vld [vmem:[%s904 + $0x70] sm:$0xff]
        %935 = vst [vmem:[%s905 + $0x70] sm:$0xff] %v934
        %v936 = vld [vmem:[%s904 + $0x78] sm:$0xff]
        %937 = vst [vmem:[%s905 + $0x78] sm:$0xff] %v936
        %v938 = vld [vmem:[%s904 + $0x80] sm:$0xff]
        %939 = vst [vmem:[%s905 + $0x80] sm:$0xff] %v938
        %v940 = vld [vmem:[%s904 + $0x88] sm:$0xff]
        %941 = vst [vmem:[%s905 + $0x88] sm:$0xff] %v940
        %v942 = vld [vmem:[%s904 + $0x90] sm:$0xff]
        %943 = vst [vmem:[%s905 + $0x90] sm:$0xff] %v942
        %v944 = vld [vmem:[%s904 + $0x98] sm:$0xff]
        %945 = vst [vmem:[%s905 + $0x98] sm:$0xff] %v944
        %v946 = vld [vmem:[%s904 + $0xa0] sm:$0xff]
        %947 = vst [vmem:[%s905 + $0xa0] sm:$0xff] %v946
        %v948 = vld [vmem:[%s904 + $0xa8] sm:$0xff]
        %949 = vst [vmem:[%s905 + $0xa8] sm:$0xff] %v948
        %v950 = vld [vmem:[%s904 + $0xb0] sm:$0xff]
        %951 = vst [vmem:[%s905 + $0xb0] sm:$0xff] %v950
        %v952 = vld [vmem:[%s904 + $0xb8] sm:$0xff]
        %953 = vst [vmem:[%s905 + $0xb8] sm:$0xff] %v952
        %v954 = vld [vmem:[%s904 + $0xc0] sm:$0xff]
        %955 = vst [vmem:[%s905 + $0xc0] sm:$0xff] %v954
        %v956 = vld [vmem:[%s904 + $0xc8] sm:$0xff]
        %957 = vst [vmem:[%s905 + $0xc8] sm:$0xff] %v956
        %v958 = vld [vmem:[%s904 + $0xd0] sm:$0xff]
        %959 = vst [vmem:[%s905 + $0xd0] sm:$0xff] %v958
        %v960 = vld [vmem:[%s904 + $0xd8] sm:$0xff]
        %961 = vst [vmem:[%s905 + $0xd8] sm:$0xff] %v960
        %v962 = vld [vmem:[%s904 + $0xe0] sm:$0xff]
        %963 = vst [vmem:[%s905 + $0xe0] sm:$0xff] %v962
        %v964 = vld [vmem:[%s904 + $0xe8] sm:$0xff]
        %965 = vst [vmem:[%s905 + $0xe8] sm:$0xff] %v964
        %v966 = vld [vmem:[%s904 + $0xf0] sm:$0xff]
        %967 = vst [vmem:[%s905 + $0xf0] sm:$0xff] %v966
        %v968 = vld [vmem:[%s904 + $0xf8] sm:$0xff]
        %969 = vst [vmem:[%s905 + $0xf8] sm:$0xff] %v968
        %v970 = vld [vmem:[%s904 + $0x100] sm:$0xff]
        %971 = vst [vmem:[%s905 + $0x100] sm:$0xff] %v970
        %v972 = vld [vmem:[%s904 + $0x108] sm:$0xff]
        %973 = vst [vmem:[%s905 + $0x108] sm:$0xff] %v972
        %v974 = vld [vmem:[%s904 + $0x110] sm:$0xff]
        %975 = vst [vmem:[%s905 + $0x110] sm:$0xff] %v974
        %v976 = vld [vmem:[%s904 + $0x118] sm:$0xff]
        %977 = vst [vmem:[%s905 + $0x118] sm:$0xff] %v976
        %v978 = vld [vmem:[%s904 + $0x120] sm:$0xff]
        %979 = vst [vmem:[%s905 + $0x120] sm:$0xff] %v978
        %v980 = vld [vmem:[%s904 + $0x128] sm:$0xff]
        %981 = vst [vmem:[%s905 + $0x128] sm:$0xff] %v980
        %v982 = vld [vmem:[%s904 + $0x130] sm:$0xff]
        %983 = vst [vmem:[%s905 + $0x130] sm:$0xff] %v982
        %v984 = vld [vmem:[%s904 + $0x138] sm:$0xff]
        %985 = vst [vmem:[%s905 + $0x138] sm:$0xff] %v984
        %v986 = vld [vmem:[%s904 + $0x140] sm:$0xff]
        %987 = vst [vmem:[%s905 + $0x140] sm:$0xff] %v986
        %v988 = vld [vmem:[%s904 + $0x148] sm:$0xff]
        %989 = vst [vmem:[%s905 + $0x148] sm:$0xff] %v988
        %v990 = vld [vmem:[%s904 + $0x150] sm:$0xff]
        %991 = vst [vmem:[%s905 + $0x150] sm:$0xff] %v990
        %v992 = vld [vmem:[%s904 + $0x158] sm:$0xff]
        %993 = vst [vmem:[%s905 + $0x158] sm:$0xff] %v992
        %v994 = vld [vmem:[%s904 + $0x160] sm:$0xff]
        %995 = vst [vmem:[%s905 + $0x160] sm:$0xff] %v994
        %v996 = vld [vmem:[%s904 + $0x168] sm:$0xff]
        %997 = vst [vmem:[%s905 + $0x168] sm:$0xff] %v996
        %v998 = vld [vmem:[%s904 + $0x170] sm:$0xff]
        %999 = vst [vmem:[%s905 + $0x170] sm:$0xff] %v998
        %v1000 = vld [vmem:[%s904 + $0x178] sm:$0xff]
        %1001 = vst [vmem:[%s905 + $0x178] sm:$0xff] %v1000
        %v1002 = vld [vmem:[%s904 + $0x180] sm:$0xff]
        %1003 = vst [vmem:[%s905 + $0x180] sm:$0xff] %v1002
        %v1004 = vld [vmem:[%s904 + $0x188] sm:$0xff]
        %1005 = vst [vmem:[%s905 + $0x188] sm:$0xff] %v1004
        %v1006 = vld [vmem:[%s904 + $0x190] sm:$0xff]
        %1007 = vst [vmem:[%s905 + $0x190] sm:$0xff] %v1006
        %v1008 = vld [vmem:[%s904 + $0x198] sm:$0xff]
        %1009 = vst [vmem:[%s905 + $0x198] sm:$0xff] %v1008
        %v1010 = vld [vmem:[%s904 + $0x1a0] sm:$0xff]
        %1011 = vst [vmem:[%s905 + $0x1a0] sm:$0xff] %v1010
        %v1012 = vld [vmem:[%s904 + $0x1a8] sm:$0xff]
        %1013 = vst [vmem:[%s905 + $0x1a8] sm:$0xff] %v1012
        %v1014 = vld [vmem:[%s904 + $0x1b0] sm:$0xff]
        %1015 = vst [vmem:[%s905 + $0x1b0] sm:$0xff] %v1014
        %v1016 = vld [vmem:[%s904 + $0x1b8] sm:$0xff]
        %1017 = vst [vmem:[%s905 + $0x1b8] sm:$0xff] %v1016
        %v1018 = vld [vmem:[%s904 + $0x1c0] sm:$0xff]
        %1019 = vst [vmem:[%s905 + $0x1c0] sm:$0xff] %v1018
        %v1020 = vld [vmem:[%s904 + $0x1c8] sm:$0xff]
        %1021 = vst [vmem:[%s905 + $0x1c8] sm:$0xff] %v1020
        %v1022 = vld [vmem:[%s904 + $0x1d0] sm:$0xff]
        %1023 = vst [vmem:[%s905 + $0x1d0] sm:$0xff] %v1022
        %v1024 = vld [vmem:[%s904 + $0x1d8] sm:$0xff]
        %1025 = vst [vmem:[%s905 + $0x1d8] sm:$0xff] %v1024
        %v1026 = vld [vmem:[%s904 + $0x1e0] sm:$0xff]
        %1027 = vst [vmem:[%s905 + $0x1e0] sm:$0xff] %v1026
        %v1028 = vld [vmem:[%s904 + $0x1e8] sm:$0xff]
        %1029 = vst [vmem:[%s905 + $0x1e8] sm:$0xff] %v1028
        %v1030 = vld [vmem:[%s904 + $0x1f0] sm:$0xff]
        %1031 = vst [vmem:[%s905 + $0x1f0] sm:$0xff] %v1030
        %v1032 = vld [vmem:[%s904 + $0x1f8] sm:$0xff]
        %1033 = vst [vmem:[%s905 + $0x1f8] sm:$0xff] %v1032
        %v1034 = vld [vmem:[%s904 + $0x200] sm:$0xff]
        %1035 = vst [vmem:[%s905 + $0x200] sm:$0xff] %v1034
        %v1036 = vld [vmem:[%s904 + $0x208] sm:$0xff]
        %1037 = vst [vmem:[%s905 + $0x208] sm:$0xff] %v1036
        %v1038 = vld [vmem:[%s904 + $0x210] sm:$0xff]
        %1039 = vst [vmem:[%s905 + $0x210] sm:$0xff] %v1038
        %v1040 = vld [vmem:[%s904 + $0x218] sm:$0xff]
        %1041 = vst [vmem:[%s905 + $0x218] sm:$0xff] %v1040
        %v1042 = vld [vmem:[%s904 + $0x220] sm:$0xff]
        %1043 = vst [vmem:[%s905 + $0x220] sm:$0xff] %v1042
        %v1044 = vld [vmem:[%s904 + $0x228] sm:$0xff]
        %1045 = vst [vmem:[%s905 + $0x228] sm:$0xff] %v1044
        %v1046 = vld [vmem:[%s904 + $0x230] sm:$0xff]
        %1047 = vst [vmem:[%s905 + $0x230] sm:$0xff] %v1046
        %v1048 = vld [vmem:[%s904 + $0x238] sm:$0xff]
        %1049 = vst [vmem:[%s905 + $0x238] sm:$0xff] %v1048
        %v1050 = vld [vmem:[%s904 + $0x240] sm:$0xff]
        %1051 = vst [vmem:[%s905 + $0x240] sm:$0xff] %v1050
        %v1052 = vld [vmem:[%s904 + $0x248] sm:$0xff]
        %1053 = vst [vmem:[%s905 + $0x248] sm:$0xff] %v1052
        %v1054 = vld [vmem:[%s904 + $0x250] sm:$0xff]
        %1055 = vst [vmem:[%s905 + $0x250] sm:$0xff] %v1054
        %v1056 = vld [vmem:[%s904 + $0x258] sm:$0xff]
        %1057 = vst [vmem:[%s905 + $0x258] sm:$0xff] %v1056
        %v1058 = vld [vmem:[%s904 + $0x260] sm:$0xff]
        %1059 = vst [vmem:[%s905 + $0x260] sm:$0xff] %v1058
        %v1060 = vld [vmem:[%s904 + $0x268] sm:$0xff]
        %1061 = vst [vmem:[%s905 + $0x268] sm:$0xff] %v1060
        %v1062 = vld [vmem:[%s904 + $0x270] sm:$0xff]
        %1063 = vst [vmem:[%s905 + $0x270] sm:$0xff] %v1062
        %v1064 = vld [vmem:[%s904 + $0x278] sm:$0xff]
        %1065 = vst [vmem:[%s905 + $0x278] sm:$0xff] %v1064
        %v1066 = vld [vmem:[%s904 + $0x280] sm:$0xff]
        %1067 = vst [vmem:[%s905 + $0x280] sm:$0xff] %v1066
        %v1068 = vld [vmem:[%s904 + $0x288] sm:$0xff]
        %1069 = vst [vmem:[%s905 + $0x288] sm:$0xff] %v1068
        %v1070 = vld [vmem:[%s904 + $0x290] sm:$0xff]
        %1071 = vst [vmem:[%s905 + $0x290] sm:$0xff] %v1070
        %v1072 = vld [vmem:[%s904 + $0x298] sm:$0xff]
        %1073 = vst [vmem:[%s905 + $0x298] sm:$0xff] %v1072
        %v1074 = vld [vmem:[%s904 + $0x2a0] sm:$0xff]
        %1075 = vst [vmem:[%s905 + $0x2a0] sm:$0xff] %v1074
        %v1076 = vld [vmem:[%s904 + $0x2a8] sm:$0xff]
        %1077 = vst [vmem:[%s905 + $0x2a8] sm:$0xff] %v1076
        %v1078 = vld [vmem:[%s904 + $0x2b0] sm:$0xff]
        %1079 = vst [vmem:[%s905 + $0x2b0] sm:$0xff] %v1078
        %v1080 = vld [vmem:[%s904 + $0x2b8] sm:$0xff]
        %1081 = vst [vmem:[%s905 + $0x2b8] sm:$0xff] %v1080
        %v1082 = vld [vmem:[%s904 + $0x2c0] sm:$0xff]
        %1083 = vst [vmem:[%s905 + $0x2c0] sm:$0xff] %v1082
        %v1084 = vld [vmem:[%s904 + $0x2c8] sm:$0xff]
        %1085 = vst [vmem:[%s905 + $0x2c8] sm:$0xff] %v1084
        %v1086 = vld [vmem:[%s904 + $0x2d0] sm:$0xff]
        %1087 = vst [vmem:[%s905 + $0x2d0] sm:$0xff] %v1086
        %v1088 = vld [vmem:[%s904 + $0x2d8] sm:$0xff]
        %1089 = vst [vmem:[%s905 + $0x2d8] sm:$0xff] %v1088
        %v1090 = vld [vmem:[%s904 + $0x2e0] sm:$0xff]
        %1091 = vst [vmem:[%s905 + $0x2e0] sm:$0xff] %v1090
        %v1092 = vld [vmem:[%s904 + $0x2e8] sm:$0xff]
        %1093 = vst [vmem:[%s905 + $0x2e8] sm:$0xff] %v1092
        %v1094 = vld [vmem:[%s904 + $0x2f0] sm:$0xff]
        %1095 = vst [vmem:[%s905 + $0x2f0] sm:$0xff] %v1094
        %v1096 = vld [vmem:[%s904 + $0x2f8] sm:$0xff]
        %1097 = vst [vmem:[%s905 + $0x2f8] sm:$0xff] %v1096
        %v1098 = vld [vmem:[%s904 + $0x300] sm:$0xff]
        %1099 = vst [vmem:[%s905 + $0x300] sm:$0xff] %v1098
        %v1100 = vld [vmem:[%s904 + $0x308] sm:$0xff]
        %1101 = vst [vmem:[%s905 + $0x308] sm:$0xff] %v1100
        %v1102 = vld [vmem:[%s904 + $0x310] sm:$0xff]
        %1103 = vst [vmem:[%s905 + $0x310] sm:$0xff] %v1102
        %v1104 = vld [vmem:[%s904 + $0x318] sm:$0xff]
        %1105 = vst [vmem:[%s905 + $0x318] sm:$0xff] %v1104
        %v1106 = vld [vmem:[%s904 + $0x320] sm:$0xff]
        %1107 = vst [vmem:[%s905 + $0x320] sm:$0xff] %v1106
        %v1108 = vld [vmem:[%s904 + $0x328] sm:$0xff]
        %1109 = vst [vmem:[%s905 + $0x328] sm:$0xff] %v1108
        %v1110 = vld [vmem:[%s904 + $0x330] sm:$0xff]
        %1111 = vst [vmem:[%s905 + $0x330] sm:$0xff] %v1110
        %v1112 = vld [vmem:[%s904 + $0x338] sm:$0xff]
        %1113 = vst [vmem:[%s905 + $0x338] sm:$0xff] %v1112
        %v1114 = vld [vmem:[%s904 + $0x340] sm:$0xff]
        %1115 = vst [vmem:[%s905 + $0x340] sm:$0xff] %v1114
        %v1116 = vld [vmem:[%s904 + $0x348] sm:$0xff]
        %1117 = vst [vmem:[%s905 + $0x348] sm:$0xff] %v1116
        %v1118 = vld [vmem:[%s904 + $0x350] sm:$0xff]
        %1119 = vst [vmem:[%s905 + $0x350] sm:$0xff] %v1118
        %v1120 = vld [vmem:[%s904 + $0x358] sm:$0xff]
        %1121 = vst [vmem:[%s905 + $0x358] sm:$0xff] %v1120
        %v1122 = vld [vmem:[%s904 + $0x360] sm:$0xff]
        %1123 = vst [vmem:[%s905 + $0x360] sm:$0xff] %v1122
        %v1124 = vld [vmem:[%s904 + $0x368] sm:$0xff]
        %1125 = vst [vmem:[%s905 + $0x368] sm:$0xff] %v1124
        %v1126 = vld [vmem:[%s904 + $0x370] sm:$0xff]
        %1127 = vst [vmem:[%s905 + $0x370] sm:$0xff] %v1126
        %v1128 = vld [vmem:[%s904 + $0x378] sm:$0xff]
        %1129 = vst [vmem:[%s905 + $0x378] sm:$0xff] %v1128
        %v1130 = vld [vmem:[%s904 + $0x380] sm:$0xff]
        %1131 = vst [vmem:[%s905 + $0x380] sm:$0xff] %v1130
        %v1132 = vld [vmem:[%s904 + $0x388] sm:$0xff]
        %1133 = vst [vmem:[%s905 + $0x388] sm:$0xff] %v1132
        %v1134 = vld [vmem:[%s904 + $0x390] sm:$0xff]
        %1135 = vst [vmem:[%s905 + $0x390] sm:$0xff] %v1134
        %v1136 = vld [vmem:[%s904 + $0x398] sm:$0xff]
        %1137 = vst [vmem:[%s905 + $0x398] sm:$0xff] %v1136
        %v1138 = vld [vmem:[%s904 + $0x3a0] sm:$0xff]
        %1139 = vst [vmem:[%s905 + $0x3a0] sm:$0xff] %v1138
        %v1140 = vld [vmem:[%s904 + $0x3a8] sm:$0xff]
        %1141 = vst [vmem:[%s905 + $0x3a8] sm:$0xff] %v1140
        %v1142 = vld [vmem:[%s904 + $0x3b0] sm:$0xff]
        %1143 = vst [vmem:[%s905 + $0x3b0] sm:$0xff] %v1142
        %v1144 = vld [vmem:[%s904 + $0x3b8] sm:$0xff]
        %1145 = vst [vmem:[%s905 + $0x3b8] sm:$0xff] %v1144
        %v1146 = vld [vmem:[%s904 + $0x3c0] sm:$0xff]
        %1147 = vst [vmem:[%s905 + $0x3c0] sm:$0xff] %v1146
        %v1148 = vld [vmem:[%s904 + $0x3c8] sm:$0xff]
        %1149 = vst [vmem:[%s905 + $0x3c8] sm:$0xff] %v1148
        %v1150 = vld [vmem:[%s904 + $0x3d0] sm:$0xff]
        %1151 = vst [vmem:[%s905 + $0x3d0] sm:$0xff] %v1150
        %v1152 = vld [vmem:[%s904 + $0x3d8] sm:$0xff]
        %1153 = vst [vmem:[%s905 + $0x3d8] sm:$0xff] %v1152
        %v1154 = vld [vmem:[%s904 + $0x3e0] sm:$0xff]
        %1155 = vst [vmem:[%s905 + $0x3e0] sm:$0xff] %v1154
        %v1156 = vld [vmem:[%s904 + $0x3e8] sm:$0xff]
        %1157 = vst [vmem:[%s905 + $0x3e8] sm:$0xff] %v1156
        %v1158 = vld [vmem:[%s904 + $0x3f0] sm:$0xff]
        %1159 = vst [vmem:[%s905 + $0x3f0] sm:$0xff] %v1158
        %v1160 = vld [vmem:[%s904 + $0x3f8] sm:$0xff]
        %1161 = vst [vmem:[%s905 + $0x3f8] sm:$0xff] %v1160
        %v1162 = vld [vmem:[%s904 + $0x400] sm:$0xff]
        %1163 = vst [vmem:[%s905 + $0x400] sm:$0xff] %v1162
        %v1164 = vld [vmem:[%s904 + $0x408] sm:$0xff]
        %1165 = vst [vmem:[%s905 + $0x408] sm:$0xff] %v1164
        %v1166 = vld [vmem:[%s904 + $0x410] sm:$0xff]
        %1167 = vst [vmem:[%s905 + $0x410] sm:$0xff] %v1166
        %v1168 = vld [vmem:[%s904 + $0x418] sm:$0xff]
        %1169 = vst [vmem:[%s905 + $0x418] sm:$0xff] %v1168
        %v1170 = vld [vmem:[%s904 + $0x420] sm:$0xff]
        %1171 = vst [vmem:[%s905 + $0x420] sm:$0xff] %v1170
        %v1172 = vld [vmem:[%s904 + $0x428] sm:$0xff]
        %1173 = vst [vmem:[%s905 + $0x428] sm:$0xff] %v1172
        %v1174 = vld [vmem:[%s904 + $0x430] sm:$0xff]
        %1175 = vst [vmem:[%s905 + $0x430] sm:$0xff] %v1174
        %v1176 = vld [vmem:[%s904 + $0x438] sm:$0xff]
        %1177 = vst [vmem:[%s905 + $0x438] sm:$0xff] %v1176
        %v1178 = vld [vmem:[%s904 + $0x440] sm:$0xff]
        %1179 = vst [vmem:[%s905 + $0x440] sm:$0xff] %v1178
        %v1180 = vld [vmem:[%s904 + $0x448] sm:$0xff]
        %1181 = vst [vmem:[%s905 + $0x448] sm:$0xff] %v1180
        %v1182 = vld [vmem:[%s904 + $0x450] sm:$0xff]
        %1183 = vst [vmem:[%s905 + $0x450] sm:$0xff] %v1182
        %v1184 = vld [vmem:[%s904 + $0x458] sm:$0xff]
        %1185 = vst [vmem:[%s905 + $0x458] sm:$0xff] %v1184
        %v1186 = vld [vmem:[%s904 + $0x460] sm:$0xff]
        %1187 = vst [vmem:[%s905 + $0x460] sm:$0xff] %v1186
        %v1188 = vld [vmem:[%s904 + $0x468] sm:$0xff]
        %1189 = vst [vmem:[%s905 + $0x468] sm:$0xff] %v1188
        %v1190 = vld [vmem:[%s904 + $0x470] sm:$0xff]
        %1191 = vst [vmem:[%s905 + $0x470] sm:$0xff] %v1190
        %v1192 = vld [vmem:[%s904 + $0x478] sm:$0xff]
        %1193 = vst [vmem:[%s905 + $0x478] sm:$0xff] %v1192
        %v1194 = vld [vmem:[%s904 + $0x480] sm:$0xff]
        %1195 = vst [vmem:[%s905 + $0x480] sm:$0xff] %v1194
        %v1196 = vld [vmem:[%s904 + $0x488] sm:$0xff]
        %1197 = vst [vmem:[%s905 + $0x488] sm:$0xff] %v1196
        %v1198 = vld [vmem:[%s904 + $0x490] sm:$0xff]
        %1199 = vst [vmem:[%s905 + $0x490] sm:$0xff] %v1198
        %v1200 = vld [vmem:[%s904 + $0x498] sm:$0xff]
        %1201 = vst [vmem:[%s905 + $0x498] sm:$0xff] %v1200
        %v1202 = vld [vmem:[%s904 + $0x4a0] sm:$0xff]
        %1203 = vst [vmem:[%s905 + $0x4a0] sm:$0xff] %v1202
        %v1204 = vld [vmem:[%s904 + $0x4a8] sm:$0xff]
        %1205 = vst [vmem:[%s905 + $0x4a8] sm:$0xff] %v1204
        %v1206 = vld [vmem:[%s904 + $0x4b0] sm:$0xff]
        %1207 = vst [vmem:[%s905 + $0x4b0] sm:$0xff] %v1206
        %v1208 = vld [vmem:[%s904 + $0x4b8] sm:$0xff]
        %1209 = vst [vmem:[%s905 + $0x4b8] sm:$0xff] %v1208
        %v1210 = vld [vmem:[%s904 + $0x4c0] sm:$0xff]
        %1211 = vst [vmem:[%s905 + $0x4c0] sm:$0xff] %v1210
        %v1212 = vld [vmem:[%s904 + $0x4c8] sm:$0xff]
        %1213 = vst [vmem:[%s905 + $0x4c8] sm:$0xff] %v1212
        %v1214 = vld [vmem:[%s904 + $0x4d0] sm:$0xff]
        %1215 = vst [vmem:[%s905 + $0x4d0] sm:$0xff] %v1214
        %v1216 = vld [vmem:[%s904 + $0x4d8] sm:$0xff]
        %1217 = vst [vmem:[%s905 + $0x4d8] sm:$0xff] %v1216
        %v1218 = vld [vmem:[%s904 + $0x4e0] sm:$0xff]
        %1219 = vst [vmem:[%s905 + $0x4e0] sm:$0xff] %v1218
        %v1220 = vld [vmem:[%s904 + $0x4e8] sm:$0xff]
        %1221 = vst [vmem:[%s905 + $0x4e8] sm:$0xff] %v1220
        %v1222 = vld [vmem:[%s904 + $0x4f0] sm:$0xff]
        %1223 = vst [vmem:[%s905 + $0x4f0] sm:$0xff] %v1222
        %v1224 = vld [vmem:[%s904 + $0x4f8] sm:$0xff]
        %1225 = vst [vmem:[%s905 + $0x4f8] sm:$0xff] %v1224
        %v1226 = vld [vmem:[%s904 + $0x500] sm:$0xff]
        %1227 = vst [vmem:[%s905 + $0x500] sm:$0xff] %v1226
        %v1228 = vld [vmem:[%s904 + $0x508] sm:$0xff]
        %1229 = vst [vmem:[%s905 + $0x508] sm:$0xff] %v1228
        %v1230 = vld [vmem:[%s904 + $0x510] sm:$0xff]
        %1231 = vst [vmem:[%s905 + $0x510] sm:$0xff] %v1230
        %v1232 = vld [vmem:[%s904 + $0x518] sm:$0xff]
        %1233 = vst [vmem:[%s905 + $0x518] sm:$0xff] %v1232
        %v1234 = vld [vmem:[%s904 + $0x520] sm:$0xff]
        %1235 = vst [vmem:[%s905 + $0x520] sm:$0xff] %v1234
        %v1236 = vld [vmem:[%s904 + $0x528] sm:$0xff]
        %1237 = vst [vmem:[%s905 + $0x528] sm:$0xff] %v1236
        %v1238 = vld [vmem:[%s904 + $0x530] sm:$0xff]
        %1239 = vst [vmem:[%s905 + $0x530] sm:$0xff] %v1238
        %v1240 = vld [vmem:[%s904 + $0x538] sm:$0xff]
        %1241 = vst [vmem:[%s905 + $0x538] sm:$0xff] %v1240
        %v1242 = vld [vmem:[%s904 + $0x540] sm:$0xff]
        %1243 = vst [vmem:[%s905 + $0x540] sm:$0xff] %v1242
        %v1244 = vld [vmem:[%s904 + $0x548] sm:$0xff]
        %1245 = vst [vmem:[%s905 + $0x548] sm:$0xff] %v1244
        %v1246 = vld [vmem:[%s904 + $0x550] sm:$0xff]
        %1247 = vst [vmem:[%s905 + $0x550] sm:$0xff] %v1246
        %v1248 = vld [vmem:[%s904 + $0x558] sm:$0xff]
        %1249 = vst [vmem:[%s905 + $0x558] sm:$0xff] %v1248
        %v1250 = vld [vmem:[%s904 + $0x560] sm:$0xff]
        %1251 = vst [vmem:[%s905 + $0x560] sm:$0xff] %v1250
        %v1252 = vld [vmem:[%s904 + $0x568] sm:$0xff]
        %1253 = vst [vmem:[%s905 + $0x568] sm:$0xff] %v1252
        %v1254 = vld [vmem:[%s904 + $0x570] sm:$0xff]
        %1255 = vst [vmem:[%s905 + $0x570] sm:$0xff] %v1254
        %v1256 = vld [vmem:[%s904 + $0x578] sm:$0xff]
        %1257 = vst [vmem:[%s905 + $0x578] sm:$0xff] %v1256
        %v1258 = vld [vmem:[%s904 + $0x580] sm:$0xff]
        %1259 = vst [vmem:[%s905 + $0x580] sm:$0xff] %v1258
        %v1260 = vld [vmem:[%s904 + $0x588] sm:$0xff]
        %1261 = vst [vmem:[%s905 + $0x588] sm:$0xff] %v1260
        %v1262 = vld [vmem:[%s904 + $0x590] sm:$0xff]
        %1263 = vst [vmem:[%s905 + $0x590] sm:$0xff] %v1262
        %v1264 = vld [vmem:[%s904 + $0x598] sm:$0xff]
        %1265 = vst [vmem:[%s905 + $0x598] sm:$0xff] %v1264
        %v1266 = vld [vmem:[%s904 + $0x5a0] sm:$0xff]
        %1267 = vst [vmem:[%s905 + $0x5a0] sm:$0xff] %v1266
        %v1268 = vld [vmem:[%s904 + $0x5a8] sm:$0xff]
        %1269 = vst [vmem:[%s905 + $0x5a8] sm:$0xff] %v1268
        %v1270 = vld [vmem:[%s904 + $0x5b0] sm:$0xff]
        %1271 = vst [vmem:[%s905 + $0x5b0] sm:$0xff] %v1270
        %v1272 = vld [vmem:[%s904 + $0x5b8] sm:$0xff]
        %1273 = vst [vmem:[%s905 + $0x5b8] sm:$0xff] %v1272
        %v1274 = vld [vmem:[%s904 + $0x5c0] sm:$0xff]
        %1275 = vst [vmem:[%s905 + $0x5c0] sm:$0xff] %v1274
        %v1276 = vld [vmem:[%s904 + $0x5c8] sm:$0xff]
        %1277 = vst [vmem:[%s905 + $0x5c8] sm:$0xff] %v1276
        %v1278 = vld [vmem:[%s904 + $0x5d0] sm:$0xff]
        %1279 = vst [vmem:[%s905 + $0x5d0] sm:$0xff] %v1278
        %v1280 = vld [vmem:[%s904 + $0x5d8] sm:$0xff]
        %1281 = vst [vmem:[%s905 + $0x5d8] sm:$0xff] %v1280
        %v1282 = vld [vmem:[%s904 + $0x5e0] sm:$0xff]
        %1283 = vst [vmem:[%s905 + $0x5e0] sm:$0xff] %v1282
        %v1284 = vld [vmem:[%s904 + $0x5e8] sm:$0xff]
        %1285 = vst [vmem:[%s905 + $0x5e8] sm:$0xff] %v1284
        %v1286 = vld [vmem:[%s904 + $0x5f0] sm:$0xff]
        %1287 = vst [vmem:[%s905 + $0x5f0] sm:$0xff] %v1286
        %v1288 = vld [vmem:[%s904 + $0x5f8] sm:$0xff]
        %1289 = vst [vmem:[%s905 + $0x5f8] sm:$0xff] %v1288
        %v1290 = vld [vmem:[%s904 + $0x600] sm:$0xff]
        %1291 = vst [vmem:[%s905 + $0x600] sm:$0xff] %v1290
        %v1292 = vld [vmem:[%s904 + $0x608] sm:$0xff]
        %1293 = vst [vmem:[%s905 + $0x608] sm:$0xff] %v1292
        %v1294 = vld [vmem:[%s904 + $0x610] sm:$0xff]
        %1295 = vst [vmem:[%s905 + $0x610] sm:$0xff] %v1294
        %v1296 = vld [vmem:[%s904 + $0x618] sm:$0xff]
        %1297 = vst [vmem:[%s905 + $0x618] sm:$0xff] %v1296
        %v1298 = vld [vmem:[%s904 + $0x620] sm:$0xff]
        %1299 = vst [vmem:[%s905 + $0x620] sm:$0xff] %v1298
        %v1300 = vld [vmem:[%s904 + $0x628] sm:$0xff]
        %1301 = vst [vmem:[%s905 + $0x628] sm:$0xff] %v1300
        %v1302 = vld [vmem:[%s904 + $0x630] sm:$0xff]
        %1303 = vst [vmem:[%s905 + $0x630] sm:$0xff] %v1302
        %v1304 = vld [vmem:[%s904 + $0x638] sm:$0xff]
        %1305 = vst [vmem:[%s905 + $0x638] sm:$0xff] %v1304
        %v1306 = vld [vmem:[%s904 + $0x640] sm:$0xff]
        %1307 = vst [vmem:[%s905 + $0x640] sm:$0xff] %v1306
        %v1308 = vld [vmem:[%s904 + $0x648] sm:$0xff]
        %1309 = vst [vmem:[%s905 + $0x648] sm:$0xff] %v1308
        %v1310 = vld [vmem:[%s904 + $0x650] sm:$0xff]
        %1311 = vst [vmem:[%s905 + $0x650] sm:$0xff] %v1310
        %v1312 = vld [vmem:[%s904 + $0x658] sm:$0xff]
        %1313 = vst [vmem:[%s905 + $0x658] sm:$0xff] %v1312
        %v1314 = vld [vmem:[%s904 + $0x660] sm:$0xff]
        %1315 = vst [vmem:[%s905 + $0x660] sm:$0xff] %v1314
        %v1316 = vld [vmem:[%s904 + $0x668] sm:$0xff]
        %1317 = vst [vmem:[%s905 + $0x668] sm:$0xff] %v1316
        %v1318 = vld [vmem:[%s904 + $0x670] sm:$0xff]
        %1319 = vst [vmem:[%s905 + $0x670] sm:$0xff] %v1318
        %v1320 = vld [vmem:[%s904 + $0x678] sm:$0xff]
        %1321 = vst [vmem:[%s905 + $0x678] sm:$0xff] %v1320
        %v1322 = vld [vmem:[%s904 + $0x680] sm:$0xff]
        %1323 = vst [vmem:[%s905 + $0x680] sm:$0xff] %v1322
        %v1324 = vld [vmem:[%s904 + $0x688] sm:$0xff]
        %1325 = vst [vmem:[%s905 + $0x688] sm:$0xff] %v1324
        %v1326 = vld [vmem:[%s904 + $0x690] sm:$0xff]
        %1327 = vst [vmem:[%s905 + $0x690] sm:$0xff] %v1326
        %v1328 = vld [vmem:[%s904 + $0x698] sm:$0xff]
        %1329 = vst [vmem:[%s905 + $0x698] sm:$0xff] %v1328
        %v1330 = vld [vmem:[%s904 + $0x6a0] sm:$0xff]
        %1331 = vst [vmem:[%s905 + $0x6a0] sm:$0xff] %v1330
        %v1332 = vld [vmem:[%s904 + $0x6a8] sm:$0xff]
        %1333 = vst [vmem:[%s905 + $0x6a8] sm:$0xff] %v1332
        %v1334 = vld [vmem:[%s904 + $0x6b0] sm:$0xff]
        %1335 = vst [vmem:[%s905 + $0x6b0] sm:$0xff] %v1334
        %v1336 = vld [vmem:[%s904 + $0x6b8] sm:$0xff]
        %1337 = vst [vmem:[%s905 + $0x6b8] sm:$0xff] %v1336
        %v1338 = vld [vmem:[%s904 + $0x6c0] sm:$0xff]
        %1339 = vst [vmem:[%s905 + $0x6c0] sm:$0xff] %v1338
        %v1340 = vld [vmem:[%s904 + $0x6c8] sm:$0xff]
        %1341 = vst [vmem:[%s905 + $0x6c8] sm:$0xff] %v1340
        %v1342 = vld [vmem:[%s904 + $0x6d0] sm:$0xff]
        %1343 = vst [vmem:[%s905 + $0x6d0] sm:$0xff] %v1342
        %v1344 = vld [vmem:[%s904 + $0x6d8] sm:$0xff]
        %1345 = vst [vmem:[%s905 + $0x6d8] sm:$0xff] %v1344
        %v1346 = vld [vmem:[%s904 + $0x6e0] sm:$0xff]
        %1347 = vst [vmem:[%s905 + $0x6e0] sm:$0xff] %v1346
        %v1348 = vld [vmem:[%s904 + $0x6e8] sm:$0xff]
        %1349 = vst [vmem:[%s905 + $0x6e8] sm:$0xff] %v1348
        %v1350 = vld [vmem:[%s904 + $0x6f0] sm:$0xff]
        %1351 = vst [vmem:[%s905 + $0x6f0] sm:$0xff] %v1350
        %v1352 = vld [vmem:[%s904 + $0x6f8] sm:$0xff]
        %1353 = vst [vmem:[%s905 + $0x6f8] sm:$0xff] %v1352
        %v1354 = vld [vmem:[%s904 + $0x700] sm:$0xff]
        %1355 = vst [vmem:[%s905 + $0x700] sm:$0xff] %v1354
        %v1356 = vld [vmem:[%s904 + $0x708] sm:$0xff]
        %1357 = vst [vmem:[%s905 + $0x708] sm:$0xff] %v1356
        %v1358 = vld [vmem:[%s904 + $0x710] sm:$0xff]
        %1359 = vst [vmem:[%s905 + $0x710] sm:$0xff] %v1358
        %v1360 = vld [vmem:[%s904 + $0x718] sm:$0xff]
        %1361 = vst [vmem:[%s905 + $0x718] sm:$0xff] %v1360
        %v1362 = vld [vmem:[%s904 + $0x720] sm:$0xff]
        %1363 = vst [vmem:[%s905 + $0x720] sm:$0xff] %v1362
        %v1364 = vld [vmem:[%s904 + $0x728] sm:$0xff]
        %1365 = vst [vmem:[%s905 + $0x728] sm:$0xff] %v1364
        %v1366 = vld [vmem:[%s904 + $0x730] sm:$0xff]
        %1367 = vst [vmem:[%s905 + $0x730] sm:$0xff] %v1366
        %v1368 = vld [vmem:[%s904 + $0x738] sm:$0xff]
        %1369 = vst [vmem:[%s905 + $0x738] sm:$0xff] %v1368
        %v1370 = vld [vmem:[%s904 + $0x740] sm:$0xff]
        %1371 = vst [vmem:[%s905 + $0x740] sm:$0xff] %v1370
        %v1372 = vld [vmem:[%s904 + $0x748] sm:$0xff]
        %1373 = vst [vmem:[%s905 + $0x748] sm:$0xff] %v1372
        %v1374 = vld [vmem:[%s904 + $0x750] sm:$0xff]
        %1375 = vst [vmem:[%s905 + $0x750] sm:$0xff] %v1374
        %v1376 = vld [vmem:[%s904 + $0x758] sm:$0xff]
        %1377 = vst [vmem:[%s905 + $0x758] sm:$0xff] %v1376
        %v1378 = vld [vmem:[%s904 + $0x760] sm:$0xff]
        %1379 = vst [vmem:[%s905 + $0x760] sm:$0xff] %v1378
        %v1380 = vld [vmem:[%s904 + $0x768] sm:$0xff]
        %1381 = vst [vmem:[%s905 + $0x768] sm:$0xff] %v1380
        %v1382 = vld [vmem:[%s904 + $0x770] sm:$0xff]
        %1383 = vst [vmem:[%s905 + $0x770] sm:$0xff] %v1382
        %v1384 = vld [vmem:[%s904 + $0x778] sm:$0xff]
        %1385 = vst [vmem:[%s905 + $0x778] sm:$0xff] %v1384
        %v1386 = vld [vmem:[%s904 + $0x780] sm:$0xff]
        %1387 = vst [vmem:[%s905 + $0x780] sm:$0xff] %v1386
        %v1388 = vld [vmem:[%s904 + $0x788] sm:$0xff]
        %1389 = vst [vmem:[%s905 + $0x788] sm:$0xff] %v1388
        %v1390 = vld [vmem:[%s904 + $0x790] sm:$0xff]
        %1391 = vst [vmem:[%s905 + $0x790] sm:$0xff] %v1390
        %v1392 = vld [vmem:[%s904 + $0x798] sm:$0xff]
        %1393 = vst [vmem:[%s905 + $0x798] sm:$0xff] %v1392
        %v1394 = vld [vmem:[%s904 + $0x7a0] sm:$0xff]
        %1395 = vst [vmem:[%s905 + $0x7a0] sm:$0xff] %v1394
        %v1396 = vld [vmem:[%s904 + $0x7a8] sm:$0xff]
        %1397 = vst [vmem:[%s905 + $0x7a8] sm:$0xff] %v1396
        %v1398 = vld [vmem:[%s904 + $0x7b0] sm:$0xff]
        %1399 = vst [vmem:[%s905 + $0x7b0] sm:$0xff] %v1398
        %v1400 = vld [vmem:[%s904 + $0x7b8] sm:$0xff]
        %1401 = vst [vmem:[%s905 + $0x7b8] sm:$0xff] %v1400
        %v1402 = vld [vmem:[%s904 + $0x7c0] sm:$0xff]
        %1403 = vst [vmem:[%s905 + $0x7c0] sm:$0xff] %v1402
        %v1404 = vld [vmem:[%s904 + $0x7c8] sm:$0xff]
        %1405 = vst [vmem:[%s905 + $0x7c8] sm:$0xff] %v1404
        %v1406 = vld [vmem:[%s904 + $0x7d0] sm:$0xff]
        %1407 = vst [vmem:[%s905 + $0x7d0] sm:$0xff] %v1406
        %v1408 = vld [vmem:[%s904 + $0x7d8] sm:$0xff]
        %1409 = vst [vmem:[%s905 + $0x7d8] sm:$0xff] %v1408
        %v1410 = vld [vmem:[%s904 + $0x7e0] sm:$0xff]
        %1411 = vst [vmem:[%s905 + $0x7e0] sm:$0xff] %v1410
        %v1412 = vld [vmem:[%s904 + $0x7e8] sm:$0xff]
        %1413 = vst [vmem:[%s905 + $0x7e8] sm:$0xff] %v1412
        %v1414 = vld [vmem:[%s904 + $0x7f0] sm:$0xff]
        %1415 = vst [vmem:[%s905 + $0x7f0] sm:$0xff] %v1414
        %v1416 = vld [vmem:[%s904 + $0x7f8] sm:$0xff]
        %1417 = vst [vmem:[%s905 + $0x7f8] sm:$0xff] %v1416
        %v1418 = vld [vmem:[%s904 + $0x800] sm:$0xff]
        %1419 = vst [vmem:[%s905 + $0x800] sm:$0xff] %v1418
        %v1420 = vld [vmem:[%s904 + $0x808] sm:$0xff]
        %1421 = vst [vmem:[%s905 + $0x808] sm:$0xff] %v1420
        %v1422 = vld [vmem:[%s904 + $0x810] sm:$0xff]
        %1423 = vst [vmem:[%s905 + $0x810] sm:$0xff] %v1422
        %v1424 = vld [vmem:[%s904 + $0x818] sm:$0xff]
        %1425 = vst [vmem:[%s905 + $0x818] sm:$0xff] %v1424
        %v1426 = vld [vmem:[%s904 + $0x820] sm:$0xff]
        %1427 = vst [vmem:[%s905 + $0x820] sm:$0xff] %v1426
        %v1428 = vld [vmem:[%s904 + $0x828] sm:$0xff]
        %1429 = vst [vmem:[%s905 + $0x828] sm:$0xff] %v1428
        %v1430 = vld [vmem:[%s904 + $0x830] sm:$0xff]
        %1431 = vst [vmem:[%s905 + $0x830] sm:$0xff] %v1430
        %v1432 = vld [vmem:[%s904 + $0x838] sm:$0xff]
        %1433 = vst [vmem:[%s905 + $0x838] sm:$0xff] %v1432
        %v1434 = vld [vmem:[%s904 + $0x840] sm:$0xff]
        %1435 = vst [vmem:[%s905 + $0x840] sm:$0xff] %v1434
        %v1436 = vld [vmem:[%s904 + $0x848] sm:$0xff]
        %1437 = vst [vmem:[%s905 + $0x848] sm:$0xff] %v1436
        %v1438 = vld [vmem:[%s904 + $0x850] sm:$0xff]
        %1439 = vst [vmem:[%s905 + $0x850] sm:$0xff] %v1438
        %v1440 = vld [vmem:[%s904 + $0x858] sm:$0xff]
        %1441 = vst [vmem:[%s905 + $0x858] sm:$0xff] %v1440
        %v1442 = vld [vmem:[%s904 + $0x860] sm:$0xff]
        %1443 = vst [vmem:[%s905 + $0x860] sm:$0xff] %v1442
        %v1444 = vld [vmem:[%s904 + $0x868] sm:$0xff]
        %1445 = vst [vmem:[%s905 + $0x868] sm:$0xff] %v1444
        %v1446 = vld [vmem:[%s904 + $0x870] sm:$0xff]
        %1447 = vst [vmem:[%s905 + $0x870] sm:$0xff] %v1446
        %v1448 = vld [vmem:[%s904 + $0x878] sm:$0xff]
        %1449 = vst [vmem:[%s905 + $0x878] sm:$0xff] %v1448
        %v1450 = vld [vmem:[%s904 + $0x880] sm:$0xff]
        %1451 = vst [vmem:[%s905 + $0x880] sm:$0xff] %v1450
        %v1452 = vld [vmem:[%s904 + $0x888] sm:$0xff]
        %1453 = vst [vmem:[%s905 + $0x888] sm:$0xff] %v1452
        %v1454 = vld [vmem:[%s904 + $0x890] sm:$0xff]
        %1455 = vst [vmem:[%s905 + $0x890] sm:$0xff] %v1454
        %v1456 = vld [vmem:[%s904 + $0x898] sm:$0xff]
        %1457 = vst [vmem:[%s905 + $0x898] sm:$0xff] %v1456
        %v1458 = vld [vmem:[%s904 + $0x8a0] sm:$0xff]
        %1459 = vst [vmem:[%s905 + $0x8a0] sm:$0xff] %v1458
        %v1460 = vld [vmem:[%s904 + $0x8a8] sm:$0xff]
        %1461 = vst [vmem:[%s905 + $0x8a8] sm:$0xff] %v1460
        %v1462 = vld [vmem:[%s904 + $0x8b0] sm:$0xff]
        %1463 = vst [vmem:[%s905 + $0x8b0] sm:$0xff] %v1462
        %v1464 = vld [vmem:[%s904 + $0x8b8] sm:$0xff]
        %1465 = vst [vmem:[%s905 + $0x8b8] sm:$0xff] %v1464
        %v1466 = vld [vmem:[%s904 + $0x8c0] sm:$0xff]
        %1467 = vst [vmem:[%s905 + $0x8c0] sm:$0xff] %v1466
        %v1468 = vld [vmem:[%s904 + $0x8c8] sm:$0xff]
        %1469 = vst [vmem:[%s905 + $0x8c8] sm:$0xff] %v1468
        %v1470 = vld [vmem:[%s904 + $0x8d0] sm:$0xff]
        %1471 = vst [vmem:[%s905 + $0x8d0] sm:$0xff] %v1470
        %v1472 = vld [vmem:[%s904 + $0x8d8] sm:$0xff]
        %1473 = vst [vmem:[%s905 + $0x8d8] sm:$0xff] %v1472
        %v1474 = vld [vmem:[%s904 + $0x8e0] sm:$0xff]
        %1475 = vst [vmem:[%s905 + $0x8e0] sm:$0xff] %v1474
        %v1476 = vld [vmem:[%s904 + $0x8e8] sm:$0xff]
        %1477 = vst [vmem:[%s905 + $0x8e8] sm:$0xff] %v1476
        %v1478 = vld [vmem:[%s904 + $0x8f0] sm:$0xff]
        %1479 = vst [vmem:[%s905 + $0x8f0] sm:$0xff] %v1478
        %v1480 = vld [vmem:[%s904 + $0x8f8] sm:$0xff]
        %1481 = vst [vmem:[%s905 + $0x8f8] sm:$0xff] %v1480
        %v1482 = vld [vmem:[%s904 + $0x900] sm:$0xff]
        %1483 = vst [vmem:[%s905 + $0x900] sm:$0xff] %v1482
        %v1484 = vld [vmem:[%s904 + $0x908] sm:$0xff]
        %1485 = vst [vmem:[%s905 + $0x908] sm:$0xff] %v1484
        %v1486 = vld [vmem:[%s904 + $0x910] sm:$0xff]
        %1487 = vst [vmem:[%s905 + $0x910] sm:$0xff] %v1486
        %v1488 = vld [vmem:[%s904 + $0x918] sm:$0xff]
        %1489 = vst [vmem:[%s905 + $0x918] sm:$0xff] %v1488
        %v1490 = vld [vmem:[%s904 + $0x920] sm:$0xff]
        %1491 = vst [vmem:[%s905 + $0x920] sm:$0xff] %v1490
        %v1492 = vld [vmem:[%s904 + $0x928] sm:$0xff]
        %1493 = vst [vmem:[%s905 + $0x928] sm:$0xff] %v1492
        %v1494 = vld [vmem:[%s904 + $0x930] sm:$0xff]
        %1495 = vst [vmem:[%s905 + $0x930] sm:$0xff] %v1494
        %v1496 = vld [vmem:[%s904 + $0x938] sm:$0xff]
        %1497 = vst [vmem:[%s905 + $0x938] sm:$0xff] %v1496
        %v1498 = vld [vmem:[%s904 + $0x940] sm:$0xff]
        %1499 = vst [vmem:[%s905 + $0x940] sm:$0xff] %v1498
        %v1500 = vld [vmem:[%s904 + $0x948] sm:$0xff]
        %1501 = vst [vmem:[%s905 + $0x948] sm:$0xff] %v1500
        %v1502 = vld [vmem:[%s904 + $0x950] sm:$0xff]
        %1503 = vst [vmem:[%s905 + $0x950] sm:$0xff] %v1502
        %v1504 = vld [vmem:[%s904 + $0x958] sm:$0xff]
        %1505 = vst [vmem:[%s905 + $0x958] sm:$0xff] %v1504
        %v1506 = vld [vmem:[%s904 + $0x960] sm:$0xff]
        %1507 = vst [vmem:[%s905 + $0x960] sm:$0xff] %v1506
        %v1508 = vld [vmem:[%s904 + $0x968] sm:$0xff]
        %1509 = vst [vmem:[%s905 + $0x968] sm:$0xff] %v1508
        %v1510 = vld [vmem:[%s904 + $0x970] sm:$0xff]
        %1511 = vst [vmem:[%s905 + $0x970] sm:$0xff] %v1510
        %v1512 = vld [vmem:[%s904 + $0x978] sm:$0xff]
        %1513 = vst [vmem:[%s905 + $0x978] sm:$0xff] %v1512
        %v1514 = vld [vmem:[%s904 + $0x980] sm:$0xff]
        %1515 = vst [vmem:[%s905 + $0x980] sm:$0xff] %v1514
        %v1516 = vld [vmem:[%s904 + $0x988] sm:$0xff]
        %1517 = vst [vmem:[%s905 + $0x988] sm:$0xff] %v1516
        %v1518 = vld [vmem:[%s904 + $0x990] sm:$0xff]
        %1519 = vst [vmem:[%s905 + $0x990] sm:$0xff] %v1518
        %v1520 = vld [vmem:[%s904 + $0x998] sm:$0xff]
        %1521 = vst [vmem:[%s905 + $0x998] sm:$0xff] %v1520
        %v1522 = vld [vmem:[%s904 + $0x9a0] sm:$0xff]
        %1523 = vst [vmem:[%s905 + $0x9a0] sm:$0xff] %v1522
        %v1524 = vld [vmem:[%s904 + $0x9a8] sm:$0xff]
        %1525 = vst [vmem:[%s905 + $0x9a8] sm:$0xff] %v1524
        %v1526 = vld [vmem:[%s904 + $0x9b0] sm:$0xff]
        %1527 = vst [vmem:[%s905 + $0x9b0] sm:$0xff] %v1526
        %v1528 = vld [vmem:[%s904 + $0x9b8] sm:$0xff]
        %1529 = vst [vmem:[%s905 + $0x9b8] sm:$0xff] %v1528
        %v1530 = vld [vmem:[%s904 + $0x9c0] sm:$0xff]
        %1531 = vst [vmem:[%s905 + $0x9c0] sm:$0xff] %v1530
        %v1532 = vld [vmem:[%s904 + $0x9c8] sm:$0xff]
        %1533 = vst [vmem:[%s905 + $0x9c8] sm:$0xff] %v1532
        %v1534 = vld [vmem:[%s904 + $0x9d0] sm:$0xff]
        %1535 = vst [vmem:[%s905 + $0x9d0] sm:$0xff] %v1534
        %v1536 = vld [vmem:[%s904 + $0x9d8] sm:$0xff]
        %1537 = vst [vmem:[%s905 + $0x9d8] sm:$0xff] %v1536
        %v1538 = vld [vmem:[%s904 + $0x9e0] sm:$0xff]
        %1539 = vst [vmem:[%s905 + $0x9e0] sm:$0xff] %v1538
        %v1540 = vld [vmem:[%s904 + $0x9e8] sm:$0xff]
        %1541 = vst [vmem:[%s905 + $0x9e8] sm:$0xff] %v1540
        %v1542 = vld [vmem:[%s904 + $0x9f0] sm:$0xff]
        %1543 = vst [vmem:[%s905 + $0x9f0] sm:$0xff] %v1542
        %v1544 = vld [vmem:[%s904 + $0x9f8] sm:$0xff]
        %1545 = vst [vmem:[%s905 + $0x9f8] sm:$0xff] %v1544
        %v1546 = vld [vmem:[%s904 + $0xa00] sm:$0xff]
        %1547 = vst [vmem:[%s905 + $0xa00] sm:$0xff] %v1546
        %v1548 = vld [vmem:[%s904 + $0xa08] sm:$0xff]
        %1549 = vst [vmem:[%s905 + $0xa08] sm:$0xff] %v1548
        %v1550 = vld [vmem:[%s904 + $0xa10] sm:$0xff]
        %1551 = vst [vmem:[%s905 + $0xa10] sm:$0xff] %v1550
        %v1552 = vld [vmem:[%s904 + $0xa18] sm:$0xff]
        %1553 = vst [vmem:[%s905 + $0xa18] sm:$0xff] %v1552
        %v1554 = vld [vmem:[%s904 + $0xa20] sm:$0xff]
        %1555 = vst [vmem:[%s905 + $0xa20] sm:$0xff] %v1554
        %v1556 = vld [vmem:[%s904 + $0xa28] sm:$0xff]
        %1557 = vst [vmem:[%s905 + $0xa28] sm:$0xff] %v1556
        %v1558 = vld [vmem:[%s904 + $0xa30] sm:$0xff]
        %1559 = vst [vmem:[%s905 + $0xa30] sm:$0xff] %v1558
        %v1560 = vld [vmem:[%s904 + $0xa38] sm:$0xff]
        %1561 = vst [vmem:[%s905 + $0xa38] sm:$0xff] %v1560
        %v1562 = vld [vmem:[%s904 + $0xa40] sm:$0xff]
        %1563 = vst [vmem:[%s905 + $0xa40] sm:$0xff] %v1562
        %v1564 = vld [vmem:[%s904 + $0xa48] sm:$0xff]
        %1565 = vst [vmem:[%s905 + $0xa48] sm:$0xff] %v1564
        %v1566 = vld [vmem:[%s904 + $0xa50] sm:$0xff]
        %1567 = vst [vmem:[%s905 + $0xa50] sm:$0xff] %v1566
        %v1568 = vld [vmem:[%s904 + $0xa58] sm:$0xff]
        %1569 = vst [vmem:[%s905 + $0xa58] sm:$0xff] %v1568
        %v1570 = vld [vmem:[%s904 + $0xa60] sm:$0xff]
        %1571 = vst [vmem:[%s905 + $0xa60] sm:$0xff] %v1570
        %v1572 = vld [vmem:[%s904 + $0xa68] sm:$0xff]
        %1573 = vst [vmem:[%s905 + $0xa68] sm:$0xff] %v1572
        %v1574 = vld [vmem:[%s904 + $0xa70] sm:$0xff]
        %1575 = vst [vmem:[%s905 + $0xa70] sm:$0xff] %v1574
        %v1576 = vld [vmem:[%s904 + $0xa78] sm:$0xff]
        %1577 = vst [vmem:[%s905 + $0xa78] sm:$0xff] %v1576
        %v1578 = vld [vmem:[%s904 + $0xa80] sm:$0xff]
        %1579 = vst [vmem:[%s905 + $0xa80] sm:$0xff] %v1578
        %v1580 = vld [vmem:[%s904 + $0xa88] sm:$0xff]
        %1581 = vst [vmem:[%s905 + $0xa88] sm:$0xff] %v1580
        %v1582 = vld [vmem:[%s904 + $0xa90] sm:$0xff]
        %1583 = vst [vmem:[%s905 + $0xa90] sm:$0xff] %v1582
        %v1584 = vld [vmem:[%s904 + $0xa98] sm:$0xff]
        %1585 = vst [vmem:[%s905 + $0xa98] sm:$0xff] %v1584
        %v1586 = vld [vmem:[%s904 + $0xaa0] sm:$0xff]
        %1587 = vst [vmem:[%s905 + $0xaa0] sm:$0xff] %v1586
        %v1588 = vld [vmem:[%s904 + $0xaa8] sm:$0xff]
        %1589 = vst [vmem:[%s905 + $0xaa8] sm:$0xff] %v1588
        %v1590 = vld [vmem:[%s904 + $0xab0] sm:$0xff]
        %1591 = vst [vmem:[%s905 + $0xab0] sm:$0xff] %v1590
        %v1592 = vld [vmem:[%s904 + $0xab8] sm:$0xff]
        %1593 = vst [vmem:[%s905 + $0xab8] sm:$0xff] %v1592
        %v1594 = vld [vmem:[%s904 + $0xac0] sm:$0xff]
        %1595 = vst [vmem:[%s905 + $0xac0] sm:$0xff] %v1594
        %v1596 = vld [vmem:[%s904 + $0xac8] sm:$0xff]
        %1597 = vst [vmem:[%s905 + $0xac8] sm:$0xff] %v1596
        %v1598 = vld [vmem:[%s904 + $0xad0] sm:$0xff]
        %1599 = vst [vmem:[%s905 + $0xad0] sm:$0xff] %v1598
        %v1600 = vld [vmem:[%s904 + $0xad8] sm:$0xff]
        %1601 = vst [vmem:[%s905 + $0xad8] sm:$0xff] %v1600
        %v1602 = vld [vmem:[%s904 + $0xae0] sm:$0xff]
        %1603 = vst [vmem:[%s905 + $0xae0] sm:$0xff] %v1602
        %v1604 = vld [vmem:[%s904 + $0xae8] sm:$0xff]
        %1605 = vst [vmem:[%s905 + $0xae8] sm:$0xff] %v1604
        %v1606 = vld [vmem:[%s904 + $0xaf0] sm:$0xff]
        %1607 = vst [vmem:[%s905 + $0xaf0] sm:$0xff] %v1606
        %v1608 = vld [vmem:[%s904 + $0xaf8] sm:$0xff]
        %1609 = vst [vmem:[%s905 + $0xaf8] sm:$0xff] %v1608
        %v1610 = vld [vmem:[%s904 + $0xb00] sm:$0xff]
        %1611 = vst [vmem:[%s905 + $0xb00] sm:$0xff] %v1610
        %v1612 = vld [vmem:[%s904 + $0xb08] sm:$0xff]
        %1613 = vst [vmem:[%s905 + $0xb08] sm:$0xff] %v1612
        %v1614 = vld [vmem:[%s904 + $0xb10] sm:$0xff]
        %1615 = vst [vmem:[%s905 + $0xb10] sm:$0xff] %v1614
        %v1616 = vld [vmem:[%s904 + $0xb18] sm:$0xff]
        %1617 = vst [vmem:[%s905 + $0xb18] sm:$0xff] %v1616
        %v1618 = vld [vmem:[%s904 + $0xb20] sm:$0xff]
        %1619 = vst [vmem:[%s905 + $0xb20] sm:$0xff] %v1618
        %v1620 = vld [vmem:[%s904 + $0xb28] sm:$0xff]
        %1621 = vst [vmem:[%s905 + $0xb28] sm:$0xff] %v1620
        %v1622 = vld [vmem:[%s904 + $0xb30] sm:$0xff]
        %1623 = vst [vmem:[%s905 + $0xb30] sm:$0xff] %v1622
        %v1624 = vld [vmem:[%s904 + $0xb38] sm:$0xff]
        %1625 = vst [vmem:[%s905 + $0xb38] sm:$0xff] %v1624
        %v1626 = vld [vmem:[%s904 + $0xb40] sm:$0xff]
        %1627 = vst [vmem:[%s905 + $0xb40] sm:$0xff] %v1626
        %v1628 = vld [vmem:[%s904 + $0xb48] sm:$0xff]
        %1629 = vst [vmem:[%s905 + $0xb48] sm:$0xff] %v1628
        %v1630 = vld [vmem:[%s904 + $0xb50] sm:$0xff]
        %1631 = vst [vmem:[%s905 + $0xb50] sm:$0xff] %v1630
        %v1632 = vld [vmem:[%s904 + $0xb58] sm:$0xff]
        %1633 = vst [vmem:[%s905 + $0xb58] sm:$0xff] %v1632
        %v1634 = vld [vmem:[%s904 + $0xb60] sm:$0xff]
        %1635 = vst [vmem:[%s905 + $0xb60] sm:$0xff] %v1634
        %v1636 = vld [vmem:[%s904 + $0xb68] sm:$0xff]
        %1637 = vst [vmem:[%s905 + $0xb68] sm:$0xff] %v1636
        %v1638 = vld [vmem:[%s904 + $0xb70] sm:$0xff]
        %1639 = vst [vmem:[%s905 + $0xb70] sm:$0xff] %v1638
        %v1640 = vld [vmem:[%s904 + $0xb78] sm:$0xff]
        %1641 = vst [vmem:[%s905 + $0xb78] sm:$0xff] %v1640
        %v1642 = vld [vmem:[%s904 + $0xb80] sm:$0xff]
        %1643 = vst [vmem:[%s905 + $0xb80] sm:$0xff] %v1642
        %v1644 = vld [vmem:[%s904 + $0xb88] sm:$0xff]
        %1645 = vst [vmem:[%s905 + $0xb88] sm:$0xff] %v1644
        %v1646 = vld [vmem:[%s904 + $0xb90] sm:$0xff]
        %1647 = vst [vmem:[%s905 + $0xb90] sm:$0xff] %v1646
        %v1648 = vld [vmem:[%s904 + $0xb98] sm:$0xff]
        %1649 = vst [vmem:[%s905 + $0xb98] sm:$0xff] %v1648
        %v1650 = vld [vmem:[%s904 + $0xba0] sm:$0xff]
        %1651 = vst [vmem:[%s905 + $0xba0] sm:$0xff] %v1650
        %v1652 = vld [vmem:[%s904 + $0xba8] sm:$0xff]
        %1653 = vst [vmem:[%s905 + $0xba8] sm:$0xff] %v1652
        %v1654 = vld [vmem:[%s904 + $0xbb0] sm:$0xff]
        %1655 = vst [vmem:[%s905 + $0xbb0] sm:$0xff] %v1654
        %v1656 = vld [vmem:[%s904 + $0xbb8] sm:$0xff]
        %1657 = vst [vmem:[%s905 + $0xbb8] sm:$0xff] %v1656
        %v1658 = vld [vmem:[%s904 + $0xbc0] sm:$0xff]
        %1659 = vst [vmem:[%s905 + $0xbc0] sm:$0xff] %v1658
        %v1660 = vld [vmem:[%s904 + $0xbc8] sm:$0xff]
        %1661 = vst [vmem:[%s905 + $0xbc8] sm:$0xff] %v1660
        %v1662 = vld [vmem:[%s904 + $0xbd0] sm:$0xff]
        %1663 = vst [vmem:[%s905 + $0xbd0] sm:$0xff] %v1662
        %v1664 = vld [vmem:[%s904 + $0xbd8] sm:$0xff]
        %1665 = vst [vmem:[%s905 + $0xbd8] sm:$0xff] %v1664
        %v1666 = vld [vmem:[%s904 + $0xbe0] sm:$0xff]
        %1667 = vst [vmem:[%s905 + $0xbe0] sm:$0xff] %v1666
        %v1668 = vld [vmem:[%s904 + $0xbe8] sm:$0xff]
        %1669 = vst [vmem:[%s905 + $0xbe8] sm:$0xff] %v1668
        %v1670 = vld [vmem:[%s904 + $0xbf0] sm:$0xff]
        %1671 = vst [vmem:[%s905 + $0xbf0] sm:$0xff] %v1670
        %v1672 = vld [vmem:[%s904 + $0xbf8] sm:$0xff]
        %1673 = vst [vmem:[%s905 + $0xbf8] sm:$0xff] %v1672
        %v1674 = vld [vmem:[%s904 + $0xc00] sm:$0xff]
        %1675 = vst [vmem:[%s905 + $0xc00] sm:$0xff] %v1674
        %v1676 = vld [vmem:[%s904 + $0xc08] sm:$0xff]
        %1677 = vst [vmem:[%s905 + $0xc08] sm:$0xff] %v1676
        %v1678 = vld [vmem:[%s904 + $0xc10] sm:$0xff]
        %1679 = vst [vmem:[%s905 + $0xc10] sm:$0xff] %v1678
        %v1680 = vld [vmem:[%s904 + $0xc18] sm:$0xff]
        %1681 = vst [vmem:[%s905 + $0xc18] sm:$0xff] %v1680
        %v1682 = vld [vmem:[%s904 + $0xc20] sm:$0xff]
        %1683 = vst [vmem:[%s905 + $0xc20] sm:$0xff] %v1682
        %v1684 = vld [vmem:[%s904 + $0xc28] sm:$0xff]
        %1685 = vst [vmem:[%s905 + $0xc28] sm:$0xff] %v1684
        %v1686 = vld [vmem:[%s904 + $0xc30] sm:$0xff]
        %1687 = vst [vmem:[%s905 + $0xc30] sm:$0xff] %v1686
        %v1688 = vld [vmem:[%s904 + $0xc38] sm:$0xff]
        %1689 = vst [vmem:[%s905 + $0xc38] sm:$0xff] %v1688
      $region101: #{_lambda_.1} parent=95 // loop_footer
        %s903 = sadd.s32 1, %s899
      $region102: #{_lambda_.1} parent=95 // loop_footer_branch
        %898 = sbr.rel target = $region98
      $region103: #{_lambda_.1} parent=95 // loop_exit
        _
    $region96: #{_lambda_.1} parent=91 // pred_fallthru
      _
    // Predicated region
    $region104: #{_lambda_.1} parent=91 // pred_check
      _
    $region105: #{_lambda_.1} parent=91 // pred_check_branch
      %1691 = sbr.rel target = $region107
    $region106: #{_lambda_.1} parent=91 // pred_region
      _
    $region107: #{_lambda_.1} parent=91 // pred_fallthru
      _
    // Predicated region
    $region108: #{_lambda_.1} parent=91 // pred_check
      _
    $region109: #{_lambda_.1} parent=91 // pred_check_branch
      %1694 = sbr.rel (0) target = $region111
    $region110: #{_lambda_.1} parent=91 // pred_region
      %1695 = vsyncadd %s895, 50176
    $region111: #{_lambda_.1} parent=91 // pred_fallthru
      _
  $region92: #{_lambda_.1} parent=0 // pred_fallthru
    _
  %s1696 = ssub.s32 %s874, 10
  %v1697 = vld [vmem:[%s1] sm:$0xff]
  %v1698 = vld [vmem:[%s1 + $0x8] sm:$0xff]
  %v1699 = vld [vmem:[%s1 + $0x10] sm:$0xff]
  %v1700 = vld [vmem:[%s1 + $0x18] sm:$0x1]
  %v1701 = vld [vmem:[%s2] sm:$0x1]
  %v1702 = vlaneseq
  %v1703 = vshrl.u32 %v1702, 7
  %v1704 = vadd.s32 %v1703, 8
  %v1705 = vadd.s32 %v1703, 16
  %v1706 = vadd.s32 %v1703, 24
  %v1707 = vadd.s32 %v1703, 32
  %v1708 = vadd.s32 %v1703, 40
  %v1709 = vadd.s32 %v1703, 48
  %vm1710 = vcmp.ge.s32.totalorder %v1703, 10
  %vm1711 = vcmp.ge.s32.totalorder %v1704, 10
  %vm1712 = vcmp.ge.s32.totalorder %v1705, 10
  %vm1713 = vcmp.ge.s32.totalorder %v1706, 10
  %vm1714 = vcmp.ge.s32.totalorder %v1707, 10
  %vm1715 = vcmp.ge.s32.totalorder %v1708, 10
  %vm1716 = vcmp.ge.s32.totalorder %v1709, 10
  %vm1717 = vcmp.lt.s32.totalorder %v1703, 42
  %vm1718 = vcmp.lt.s32.totalorder %v1704, 42
  %vm1719 = vcmp.lt.s32.totalorder %v1705, 42
  %vm1720 = vcmp.lt.s32.totalorder %v1706, 42
  %vm1721 = vcmp.lt.s32.totalorder %v1707, 42
  %vm1722 = vcmp.lt.s32.totalorder %v1708, 42
  %vm1723 = vcmp.lt.s32.totalorder %v1709, 42
  %vm1724 = vmand %vm1710, %vm1717
  %vm1725 = vmand %vm1711, %vm1718
  %vm1726 = vmand %vm1712, %vm1719
  %vm1727 = vmand %vm1713, %vm1720
  %vm1728 = vmand %vm1714, %vm1721
  %vm1729 = vmand %vm1715, %vm1722
  %vm1730 = vmand %vm1716, %vm1723
  loop: start=0, step=1, limit=52
  $region112: #{_lambda_.1} parent=0 // loop_pre_header
    _
  $region113: #{_lambda_.1} parent=0 // loop_header
    %s1732 = sphi 0, %s1736
    %p1733 = scmp.ge.s32.totalorder %s1732, 52
  $region114: #{_lambda_.1} parent=0 // loop_header_branch
    %1735 = sbr.rel (%p1733) target = $region118
  $region115: #{_lambda_.1} parent=0 // loop_body
    %s1737 = smul.u32 %s1732, 56
    %s1738 = scalar_lea.vmem %s876, %s1737 [#allocation2]
    %v1739 = vld [vmem:[%s1738] sm:$0xff]
    %v1740 = vld [vmem:[%s1738 + $0x8] sm:$0xff]
    %v1741 = vld [vmem:[%s1738 + $0x10] sm:$0xff]
    %v1742 = vld [vmem:[%s1738 + $0x18] sm:$0xff]
    %v1743 = vld [vmem:[%s1738 + $0x20] sm:$0xff]
    %v1744 = vld [vmem:[%s1738 + $0x28] sm:$0xff]
    %v1745 = vld [vmem:[%s1738 + $0x30] sm:$0xf]
    %v1746 = vperm.slane %v1697, 0
    %v1747 = vmul.f32 %v1739, %v1746
    %v1748 = vmul.f32 %v1740, %v1746
    %v1749 = vmul.f32 %v1741, %v1746
    %v1750 = vmul.f32 %v1742, %v1746
    %v1751 = vmul.f32 %v1743, %v1746
    %v1752 = vmul.f32 %v1744, %v1746
    %v1753 = vmul.f32 %v1745, %v1746
    %v1754 = vld [vmem:[%s1738 + $0x1] sm:$0xff]
    %v1755 = vld [vmem:[%s1738 + $0x9] sm:$0xff]
    %v1756 = vld [vmem:[%s1738 + $0x11] sm:$0xff]
    %v1757 = vld [vmem:[%s1738 + $0x19] sm:$0xff]
    %v1758 = vld [vmem:[%s1738 + $0x21] sm:$0xff]
    %v1759 = vld [vmem:[%s1738 + $0x29] sm:$0xff]
    %v1760 = vld [vmem:[%s1738 + $0x31] sm:$0xf]
    %v1761 = vperm.slane %v1697, 1
    %v1762 = vmul.f32 %v1754, %v1761
    %v1763 = vmul.f32 %v1755, %v1761
    %v1764 = vmul.f32 %v1756, %v1761
    %v1765 = vmul.f32 %v1757, %v1761
    %v1766 = vmul.f32 %v1758, %v1761
    %v1767 = vmul.f32 %v1759, %v1761
    %v1768 = vmul.f32 %v1760, %v1761
    %v1769 = vadd.f32 %v1747, %v1762
    %v1770 = vadd.f32 %v1748, %v1763
    %v1771 = vadd.f32 %v1749, %v1764
    %v1772 = vadd.f32 %v1750, %v1765
    %v1773 = vadd.f32 %v1751, %v1766
    %v1774 = vadd.f32 %v1752, %v1767
    %v1775 = vadd.f32 %v1753, %v1768
    %v1776 = vld [vmem:[%s1738 + $0x2] sm:$0xff]
    %v1777 = vld [vmem:[%s1738 + $0xa] sm:$0xff]
    %v1778 = vld [vmem:[%s1738 + $0x12] sm:$0xff]
    %v1779 = vld [vmem:[%s1738 + $0x1a] sm:$0xff]
    %v1780 = vld [vmem:[%s1738 + $0x22] sm:$0xff]
    %v1781 = vld [vmem:[%s1738 + $0x2a] sm:$0xff]
    %v1782 = vld [vmem:[%s1738 + $0x32] sm:$0xf]
    %v1783 = vperm.slane %v1697, 2
    %v1784 = vmul.f32 %v1776, %v1783
    %v1785 = vmul.f32 %v1777, %v1783
    %v1786 = vmul.f32 %v1778, %v1783
    %v1787 = vmul.f32 %v1779, %v1783
    %v1788 = vmul.f32 %v1780, %v1783
    %v1789 = vmul.f32 %v1781, %v1783
    %v1790 = vmul.f32 %v1782, %v1783
    %v1791 = vadd.f32 %v1769, %v1784
    %v1792 = vadd.f32 %v1770, %v1785
    %v1793 = vadd.f32 %v1771, %v1786
    %v1794 = vadd.f32 %v1772, %v1787
    %v1795 = vadd.f32 %v1773, %v1788
    %v1796 = vadd.f32 %v1774, %v1789
    %v1797 = vadd.f32 %v1775, %v1790
    %v1798 = vld [vmem:[%s1738 + $0x3] sm:$0xff]
    %v1799 = vld [vmem:[%s1738 + $0xb] sm:$0xff]
    %v1800 = vld [vmem:[%s1738 + $0x13] sm:$0xff]
    %v1801 = vld [vmem:[%s1738 + $0x1b] sm:$0xff]
    %v1802 = vld [vmem:[%s1738 + $0x23] sm:$0xff]
    %v1803 = vld [vmem:[%s1738 + $0x2b] sm:$0xff]
    %v1804 = vld [vmem:[%s1738 + $0x33] sm:$0xf]
    %v1805 = vperm.slane %v1697, 3
    %v1806 = vmul.f32 %v1798, %v1805
    %v1807 = vmul.f32 %v1799, %v1805
    %v1808 = vmul.f32 %v1800, %v1805
    %v1809 = vmul.f32 %v1801, %v1805
    %v1810 = vmul.f32 %v1802, %v1805
    %v1811 = vmul.f32 %v1803, %v1805
    %v1812 = vmul.f32 %v1804, %v1805
    %v1813 = vadd.f32 %v1791, %v1806
    %v1814 = vadd.f32 %v1792, %v1807
    %v1815 = vadd.f32 %v1793, %v1808
    %v1816 = vadd.f32 %v1794, %v1809
    %v1817 = vadd.f32 %v1795, %v1810
    %v1818 = vadd.f32 %v1796, %v1811
    %v1819 = vadd.f32 %v1797, %v1812
    %v1820 = vld [vmem:[%s1738 + $0x4] sm:$0xff]
    %v1821 = vld [vmem:[%s1738 + $0xc] sm:$0xff]
    %v1822 = vld [vmem:[%s1738 + $0x14] sm:$0xff]
    %v1823 = vld [vmem:[%s1738 + $0x1c] sm:$0xff]
    %v1824 = vld [vmem:[%s1738 + $0x24] sm:$0xff]
    %v1825 = vld [vmem:[%s1738 + $0x2c] sm:$0xff]
    %v1826 = vld [vmem:[%s1738 + $0x34] sm:$0xf]
    %v1827 = vperm.slane %v1697, 4
    %v1828 = vmul.f32 %v1820, %v1827
    %v1829 = vmul.f32 %v1821, %v1827
    %v1830 = vmul.f32 %v1822, %v1827
    %v1831 = vmul.f32 %v1823, %v1827
    %v1832 = vmul.f32 %v1824, %v1827
    %v1833 = vmul.f32 %v1825, %v1827
    %v1834 = vmul.f32 %v1826, %v1827
    %v1835 = vadd.f32 %v1813, %v1828
    %v1836 = vadd.f32 %v1814, %v1829
    %v1837 = vadd.f32 %v1815, %v1830
    %v1838 = vadd.f32 %v1816, %v1831
    %v1839 = vadd.f32 %v1817, %v1832
    %v1840 = vadd.f32 %v1818, %v1833
    %v1841 = vadd.f32 %v1819, %v1834
    %s1842 = sadd.s32 %s1732, 1
    %s1843 = smul.u32 %s1842, 56
    %s1844 = scalar_lea.vmem %s876, %s1843 [#allocation2]
    %v1845 = vld [vmem:[%s1844] sm:$0xff]
    %v1846 = vld [vmem:[%s1844 + $0x8] sm:$0xff]
    %v1847 = vld [vmem:[%s1844 + $0x10] sm:$0xff]
    %v1848 = vld [vmem:[%s1844 + $0x18] sm:$0xff]
    %v1849 = vld [vmem:[%s1844 + $0x20] sm:$0xff]
    %v1850 = vld [vmem:[%s1844 + $0x28] sm:$0xff]
    %v1851 = vld [vmem:[%s1844 + $0x30] sm:$0xf]
    %v1852 = vperm.slane %v1697, 5
    %v1853 = vmul.f32 %v1845, %v1852
    %v1854 = vmul.f32 %v1846, %v1852
    %v1855 = vmul.f32 %v1847, %v1852
    %v1856 = vmul.f32 %v1848, %v1852
    %v1857 = vmul.f32 %v1849, %v1852
    %v1858 = vmul.f32 %v1850, %v1852
    %v1859 = vmul.f32 %v1851, %v1852
    %v1860 = vadd.f32 %v1835, %v1853
    %v1861 = vadd.f32 %v1836, %v1854
    %v1862 = vadd.f32 %v1837, %v1855
    %v1863 = vadd.f32 %v1838, %v1856
    %v1864 = vadd.f32 %v1839, %v1857
    %v1865 = vadd.f32 %v1840, %v1858
    %v1866 = vadd.f32 %v1841, %v1859
    %v1867 = vld [vmem:[%s1844 + $0x1] sm:$0xff]
    %v1868 = vld [vmem:[%s1844 + $0x9] sm:$0xff]
    %v1869 = vld [vmem:[%s1844 + $0x11] sm:$0xff]
    %v1870 = vld [vmem:[%s1844 + $0x19] sm:$0xff]
    %v1871 = vld [vmem:[%s1844 + $0x21] sm:$0xff]
    %v1872 = vld [vmem:[%s1844 + $0x29] sm:$0xff]
    %v1873 = vld [vmem:[%s1844 + $0x31] sm:$0xf]
    %v1874 = vperm.slane %v1697, 6
    %v1875 = vmul.f32 %v1867, %v1874
    %v1876 = vmul.f32 %v1868, %v1874
    %v1877 = vmul.f32 %v1869, %v1874
    %v1878 = vmul.f32 %v1870, %v1874
    %v1879 = vmul.f32 %v1871, %v1874
    %v1880 = vmul.f32 %v1872, %v1874
    %v1881 = vmul.f32 %v1873, %v1874
    %v1882 = vadd.f32 %v1860, %v1875
    %v1883 = vadd.f32 %v1861, %v1876
    %v1884 = vadd.f32 %v1862, %v1877
    %v1885 = vadd.f32 %v1863, %v1878
    %v1886 = vadd.f32 %v1864, %v1879
    %v1887 = vadd.f32 %v1865, %v1880
    %v1888 = vadd.f32 %v1866, %v1881
    %v1889 = vld [vmem:[%s1844 + $0x2] sm:$0xff]
    %v1890 = vld [vmem:[%s1844 + $0xa] sm:$0xff]
    %v1891 = vld [vmem:[%s1844 + $0x12] sm:$0xff]
    %v1892 = vld [vmem:[%s1844 + $0x1a] sm:$0xff]
    %v1893 = vld [vmem:[%s1844 + $0x22] sm:$0xff]
    %v1894 = vld [vmem:[%s1844 + $0x2a] sm:$0xff]
    %v1895 = vld [vmem:[%s1844 + $0x32] sm:$0xf]
    %v1896 = vperm.slane %v1697, 7
    %v1897 = vmul.f32 %v1889, %v1896
    %v1898 = vmul.f32 %v1890, %v1896
    %v1899 = vmul.f32 %v1891, %v1896
    %v1900 = vmul.f32 %v1892, %v1896
    %v1901 = vmul.f32 %v1893, %v1896
    %v1902 = vmul.f32 %v1894, %v1896
    %v1903 = vmul.f32 %v1895, %v1896
    %v1904 = vadd.f32 %v1882, %v1897
    %v1905 = vadd.f32 %v1883, %v1898
    %v1906 = vadd.f32 %v1884, %v1899
    %v1907 = vadd.f32 %v1885, %v1900
    %v1908 = vadd.f32 %v1886, %v1901
    %v1909 = vadd.f32 %v1887, %v1902
    %v1910 = vadd.f32 %v1888, %v1903
    %v1911 = vld [vmem:[%s1844 + $0x3] sm:$0xff]
    %v1912 = vld [vmem:[%s1844 + $0xb] sm:$0xff]
    %v1913 = vld [vmem:[%s1844 + $0x13] sm:$0xff]
    %v1914 = vld [vmem:[%s1844 + $0x1b] sm:$0xff]
    %v1915 = vld [vmem:[%s1844 + $0x23] sm:$0xff]
    %v1916 = vld [vmem:[%s1844 + $0x2b] sm:$0xff]
    %v1917 = vld [vmem:[%s1844 + $0x33] sm:$0xf]
    %v1918 = vperm.slane %v1698, 0
    %v1919 = vmul.f32 %v1911, %v1918
    %v1920 = vmul.f32 %v1912, %v1918
    %v1921 = vmul.f32 %v1913, %v1918
    %v1922 = vmul.f32 %v1914, %v1918
    %v1923 = vmul.f32 %v1915, %v1918
    %v1924 = vmul.f32 %v1916, %v1918
    %v1925 = vmul.f32 %v1917, %v1918
    %v1926 = vadd.f32 %v1904, %v1919
    %v1927 = vadd.f32 %v1905, %v1920
    %v1928 = vadd.f32 %v1906, %v1921
    %v1929 = vadd.f32 %v1907, %v1922
    %v1930 = vadd.f32 %v1908, %v1923
    %v1931 = vadd.f32 %v1909, %v1924
    %v1932 = vadd.f32 %v1910, %v1925
    %v1933 = vld [vmem:[%s1844 + $0x4] sm:$0xff]
    %v1934 = vld [vmem:[%s1844 + $0xc] sm:$0xff]
    %v1935 = vld [vmem:[%s1844 + $0x14] sm:$0xff]
    %v1936 = vld [vmem:[%s1844 + $0x1c] sm:$0xff]
    %v1937 = vld [vmem:[%s1844 + $0x24] sm:$0xff]
    %v1938 = vld [vmem:[%s1844 + $0x2c] sm:$0xff]
    %v1939 = vld [vmem:[%s1844 + $0x34] sm:$0xf]
    %v1940 = vperm.slane %v1698, 1
    %v1941 = vmul.f32 %v1933, %v1940
    %v1942 = vmul.f32 %v1934, %v1940
    %v1943 = vmul.f32 %v1935, %v1940
    %v1944 = vmul.f32 %v1936, %v1940
    %v1945 = vmul.f32 %v1937, %v1940
    %v1946 = vmul.f32 %v1938, %v1940
    %v1947 = vmul.f32 %v1939, %v1940
    %v1948 = vadd.f32 %v1926, %v1941
    %v1949 = vadd.f32 %v1927, %v1942
    %v1950 = vadd.f32 %v1928, %v1943
    %v1951 = vadd.f32 %v1929, %v1944
    %v1952 = vadd.f32 %v1930, %v1945
    %v1953 = vadd.f32 %v1931, %v1946
    %v1954 = vadd.f32 %v1932, %v1947
    %s1955 = sadd.s32 %s1732, 2
    %s1956 = smul.u32 %s1955, 56
    %s1957 = scalar_lea.vmem %s876, %s1956 [#allocation2]
    %v1958 = vld [vmem:[%s1957] sm:$0xff]
    %v1959 = vld [vmem:[%s1957 + $0x8] sm:$0xff]
    %v1960 = vld [vmem:[%s1957 + $0x10] sm:$0xff]
    %v1961 = vld [vmem:[%s1957 + $0x18] sm:$0xff]
    %v1962 = vld [vmem:[%s1957 + $0x20] sm:$0xff]
    %v1963 = vld [vmem:[%s1957 + $0x28] sm:$0xff]
    %v1964 = vld [vmem:[%s1957 + $0x30] sm:$0xf]
    %v1965 = vperm.slane %v1698, 2
    %v1966 = vmul.f32 %v1958, %v1965
    %v1967 = vmul.f32 %v1959, %v1965
    %v1968 = vmul.f32 %v1960, %v1965
    %v1969 = vmul.f32 %v1961, %v1965
    %v1970 = vmul.f32 %v1962, %v1965
    %v1971 = vmul.f32 %v1963, %v1965
    %v1972 = vmul.f32 %v1964, %v1965
    %v1973 = vadd.f32 %v1948, %v1966
    %v1974 = vadd.f32 %v1949, %v1967
    %v1975 = vadd.f32 %v1950, %v1968
    %v1976 = vadd.f32 %v1951, %v1969
    %v1977 = vadd.f32 %v1952, %v1970
    %v1978 = vadd.f32 %v1953, %v1971
    %v1979 = vadd.f32 %v1954, %v1972
    %v1980 = vld [vmem:[%s1957 + $0x1] sm:$0xff]
    %v1981 = vld [vmem:[%s1957 + $0x9] sm:$0xff]
    %v1982 = vld [vmem:[%s1957 + $0x11] sm:$0xff]
    %v1983 = vld [vmem:[%s1957 + $0x19] sm:$0xff]
    %v1984 = vld [vmem:[%s1957 + $0x21] sm:$0xff]
    %v1985 = vld [vmem:[%s1957 + $0x29] sm:$0xff]
    %v1986 = vld [vmem:[%s1957 + $0x31] sm:$0xf]
    %v1987 = vperm.slane %v1698, 3
    %v1988 = vmul.f32 %v1980, %v1987
    %v1989 = vmul.f32 %v1981, %v1987
    %v1990 = vmul.f32 %v1982, %v1987
    %v1991 = vmul.f32 %v1983, %v1987
    %v1992 = vmul.f32 %v1984, %v1987
    %v1993 = vmul.f32 %v1985, %v1987
    %v1994 = vmul.f32 %v1986, %v1987
    %v1995 = vadd.f32 %v1973, %v1988
    %v1996 = vadd.f32 %v1974, %v1989
    %v1997 = vadd.f32 %v1975, %v1990
    %v1998 = vadd.f32 %v1976, %v1991
    %v1999 = vadd.f32 %v1977, %v1992
    %v2000 = vadd.f32 %v1978, %v1993
    %v2001 = vadd.f32 %v1979, %v1994
    %v2002 = vld [vmem:[%s1957 + $0x2] sm:$0xff]
    %v2003 = vld [vmem:[%s1957 + $0xa] sm:$0xff]
    %v2004 = vld [vmem:[%s1957 + $0x12] sm:$0xff]
    %v2005 = vld [vmem:[%s1957 + $0x1a] sm:$0xff]
    %v2006 = vld [vmem:[%s1957 + $0x22] sm:$0xff]
    %v2007 = vld [vmem:[%s1957 + $0x2a] sm:$0xff]
    %v2008 = vld [vmem:[%s1957 + $0x32] sm:$0xf]
    %v2009 = vperm.slane %v1698, 4
    %v2010 = vmul.f32 %v2002, %v2009
    %v2011 = vmul.f32 %v2003, %v2009
    %v2012 = vmul.f32 %v2004, %v2009
    %v2013 = vmul.f32 %v2005, %v2009
    %v2014 = vmul.f32 %v2006, %v2009
    %v2015 = vmul.f32 %v2007, %v2009
    %v2016 = vmul.f32 %v2008, %v2009
    %v2017 = vadd.f32 %v1995, %v2010
    %v2018 = vadd.f32 %v1996, %v2011
    %v2019 = vadd.f32 %v1997, %v2012
    %v2020 = vadd.f32 %v1998, %v2013
    %v2021 = vadd.f32 %v1999, %v2014
    %v2022 = vadd.f32 %v2000, %v2015
    %v2023 = vadd.f32 %v2001, %v2016
    %v2024 = vld [vmem:[%s1957 + $0x3] sm:$0xff]
    %v2025 = vld [vmem:[%s1957 + $0xb] sm:$0xff]
    %v2026 = vld [vmem:[%s1957 + $0x13] sm:$0xff]
    %v2027 = vld [vmem:[%s1957 + $0x1b] sm:$0xff]
    %v2028 = vld [vmem:[%s1957 + $0x23] sm:$0xff]
    %v2029 = vld [vmem:[%s1957 + $0x2b] sm:$0xff]
    %v2030 = vld [vmem:[%s1957 + $0x33] sm:$0xf]
    %v2031 = vperm.slane %v1698, 5
    %v2032 = vmul.f32 %v2024, %v2031
    %v2033 = vmul.f32 %v2025, %v2031
    %v2034 = vmul.f32 %v2026, %v2031
    %v2035 = vmul.f32 %v2027, %v2031
    %v2036 = vmul.f32 %v2028, %v2031
    %v2037 = vmul.f32 %v2029, %v2031
    %v2038 = vmul.f32 %v2030, %v2031
    %v2039 = vadd.f32 %v2017, %v2032
    %v2040 = vadd.f32 %v2018, %v2033
    %v2041 = vadd.f32 %v2019, %v2034
    %v2042 = vadd.f32 %v2020, %v2035
    %v2043 = vadd.f32 %v2021, %v2036
    %v2044 = vadd.f32 %v2022, %v2037
    %v2045 = vadd.f32 %v2023, %v2038
    %v2046 = vld [vmem:[%s1957 + $0x4] sm:$0xff]
    %v2047 = vld [vmem:[%s1957 + $0xc] sm:$0xff]
    %v2048 = vld [vmem:[%s1957 + $0x14] sm:$0xff]
    %v2049 = vld [vmem:[%s1957 + $0x1c] sm:$0xff]
    %v2050 = vld [vmem:[%s1957 + $0x24] sm:$0xff]
    %v2051 = vld [vmem:[%s1957 + $0x2c] sm:$0xff]
    %v2052 = vld [vmem:[%s1957 + $0x34] sm:$0xf]
    %v2053 = vperm.slane %v1698, 6
    %v2054 = vmul.f32 %v2046, %v2053
    %v2055 = vmul.f32 %v2047, %v2053
    %v2056 = vmul.f32 %v2048, %v2053
    %v2057 = vmul.f32 %v2049, %v2053
    %v2058 = vmul.f32 %v2050, %v2053
    %v2059 = vmul.f32 %v2051, %v2053
    %v2060 = vmul.f32 %v2052, %v2053
    %v2061 = vadd.f32 %v2039, %v2054
    %v2062 = vadd.f32 %v2040, %v2055
    %v2063 = vadd.f32 %v2041, %v2056
    %v2064 = vadd.f32 %v2042, %v2057
    %v2065 = vadd.f32 %v2043, %v2058
    %v2066 = vadd.f32 %v2044, %v2059
    %v2067 = vadd.f32 %v2045, %v2060
    %s2068 = sadd.s32 %s1732, 3
    %s2069 = smul.u32 %s2068, 56
    %s2070 = scalar_lea.vmem %s876, %s2069 [#allocation2]
    %v2071 = vld [vmem:[%s2070] sm:$0xff]
    %v2072 = vld [vmem:[%s2070 + $0x8] sm:$0xff]
    %v2073 = vld [vmem:[%s2070 + $0x10] sm:$0xff]
    %v2074 = vld [vmem:[%s2070 + $0x18] sm:$0xff]
    %v2075 = vld [vmem:[%s2070 + $0x20] sm:$0xff]
    %v2076 = vld [vmem:[%s2070 + $0x28] sm:$0xff]
    %v2077 = vld [vmem:[%s2070 + $0x30] sm:$0xf]
    %v2078 = vperm.slane %v1698, 7
    %v2079 = vmul.f32 %v2071, %v2078
    %v2080 = vmul.f32 %v2072, %v2078
    %v2081 = vmul.f32 %v2073, %v2078
    %v2082 = vmul.f32 %v2074, %v2078
    %v2083 = vmul.f32 %v2075, %v2078
    %v2084 = vmul.f32 %v2076, %v2078
    %v2085 = vmul.f32 %v2077, %v2078
    %v2086 = vadd.f32 %v2061, %v2079
    %v2087 = vadd.f32 %v2062, %v2080
    %v2088 = vadd.f32 %v2063, %v2081
    %v2089 = vadd.f32 %v2064, %v2082
    %v2090 = vadd.f32 %v2065, %v2083
    %v2091 = vadd.f32 %v2066, %v2084
    %v2092 = vadd.f32 %v2067, %v2085
    %v2093 = vld [vmem:[%s2070 + $0x1] sm:$0xff]
    %v2094 = vld [vmem:[%s2070 + $0x9] sm:$0xff]
    %v2095 = vld [vmem:[%s2070 + $0x11] sm:$0xff]
    %v2096 = vld [vmem:[%s2070 + $0x19] sm:$0xff]
    %v2097 = vld [vmem:[%s2070 + $0x21] sm:$0xff]
    %v2098 = vld [vmem:[%s2070 + $0x29] sm:$0xff]
    %v2099 = vld [vmem:[%s2070 + $0x31] sm:$0xf]
    %v2100 = vperm.slane %v1699, 0
    %v2101 = vmul.f32 %v2093, %v2100
    %v2102 = vmul.f32 %v2094, %v2100
    %v2103 = vmul.f32 %v2095, %v2100
    %v2104 = vmul.f32 %v2096, %v2100
    %v2105 = vmul.f32 %v2097, %v2100
    %v2106 = vmul.f32 %v2098, %v2100
    %v2107 = vmul.f32 %v2099, %v2100
    %v2108 = vadd.f32 %v2086, %v2101
    %v2109 = vadd.f32 %v2087, %v2102
    %v2110 = vadd.f32 %v2088, %v2103
    %v2111 = vadd.f32 %v2089, %v2104
    %v2112 = vadd.f32 %v2090, %v2105
    %v2113 = vadd.f32 %v2091, %v2106
    %v2114 = vadd.f32 %v2092, %v2107
    %v2115 = vld [vmem:[%s2070 + $0x2] sm:$0xff]
    %v2116 = vld [vmem:[%s2070 + $0xa] sm:$0xff]
    %v2117 = vld [vmem:[%s2070 + $0x12] sm:$0xff]
    %v2118 = vld [vmem:[%s2070 + $0x1a] sm:$0xff]
    %v2119 = vld [vmem:[%s2070 + $0x22] sm:$0xff]
    %v2120 = vld [vmem:[%s2070 + $0x2a] sm:$0xff]
    %v2121 = vld [vmem:[%s2070 + $0x32] sm:$0xf]
    %v2122 = vperm.slane %v1699, 1
    %v2123 = vmul.f32 %v2115, %v2122
    %v2124 = vmul.f32 %v2116, %v2122
    %v2125 = vmul.f32 %v2117, %v2122
    %v2126 = vmul.f32 %v2118, %v2122
    %v2127 = vmul.f32 %v2119, %v2122
    %v2128 = vmul.f32 %v2120, %v2122
    %v2129 = vmul.f32 %v2121, %v2122
    %v2130 = vadd.f32 %v2108, %v2123
    %v2131 = vadd.f32 %v2109, %v2124
    %v2132 = vadd.f32 %v2110, %v2125
    %v2133 = vadd.f32 %v2111, %v2126
    %v2134 = vadd.f32 %v2112, %v2127
    %v2135 = vadd.f32 %v2113, %v2128
    %v2136 = vadd.f32 %v2114, %v2129
    %v2137 = vld [vmem:[%s2070 + $0x3] sm:$0xff]
    %v2138 = vld [vmem:[%s2070 + $0xb] sm:$0xff]
    %v2139 = vld [vmem:[%s2070 + $0x13] sm:$0xff]
    %v2140 = vld [vmem:[%s2070 + $0x1b] sm:$0xff]
    %v2141 = vld [vmem:[%s2070 + $0x23] sm:$0xff]
    %v2142 = vld [vmem:[%s2070 + $0x2b] sm:$0xff]
    %v2143 = vld [vmem:[%s2070 + $0x33] sm:$0xf]
    %v2144 = vperm.slane %v1699, 2
    %v2145 = vmul.f32 %v2137, %v2144
    %v2146 = vmul.f32 %v2138, %v2144
    %v2147 = vmul.f32 %v2139, %v2144
    %v2148 = vmul.f32 %v2140, %v2144
    %v2149 = vmul.f32 %v2141, %v2144
    %v2150 = vmul.f32 %v2142, %v2144
    %v2151 = vmul.f32 %v2143, %v2144
    %v2152 = vadd.f32 %v2130, %v2145
    %v2153 = vadd.f32 %v2131, %v2146
    %v2154 = vadd.f32 %v2132, %v2147
    %v2155 = vadd.f32 %v2133, %v2148
    %v2156 = vadd.f32 %v2134, %v2149
    %v2157 = vadd.f32 %v2135, %v2150
    %v2158 = vadd.f32 %v2136, %v2151
    %v2159 = vld [vmem:[%s2070 + $0x4] sm:$0xff]
    %v2160 = vld [vmem:[%s2070 + $0xc] sm:$0xff]
    %v2161 = vld [vmem:[%s2070 + $0x14] sm:$0xff]
    %v2162 = vld [vmem:[%s2070 + $0x1c] sm:$0xff]
    %v2163 = vld [vmem:[%s2070 + $0x24] sm:$0xff]
    %v2164 = vld [vmem:[%s2070 + $0x2c] sm:$0xff]
    %v2165 = vld [vmem:[%s2070 + $0x34] sm:$0xf]
    %v2166 = vperm.slane %v1699, 3
    %v2167 = vmul.f32 %v2159, %v2166
    %v2168 = vmul.f32 %v2160, %v2166
    %v2169 = vmul.f32 %v2161, %v2166
    %v2170 = vmul.f32 %v2162, %v2166
    %v2171 = vmul.f32 %v2163, %v2166
    %v2172 = vmul.f32 %v2164, %v2166
    %v2173 = vmul.f32 %v2165, %v2166
    %v2174 = vadd.f32 %v2152, %v2167
    %v2175 = vadd.f32 %v2153, %v2168
    %v2176 = vadd.f32 %v2154, %v2169
    %v2177 = vadd.f32 %v2155, %v2170
    %v2178 = vadd.f32 %v2156, %v2171
    %v2179 = vadd.f32 %v2157, %v2172
    %v2180 = vadd.f32 %v2158, %v2173
    %s2181 = sadd.s32 %s1732, 4
    %s2182 = smul.u32 %s2181, 56
    %s2183 = scalar_lea.vmem %s876, %s2182 [#allocation2]
    %v2184 = vld [vmem:[%s2183] sm:$0xff]
    %v2185 = vld [vmem:[%s2183 + $0x8] sm:$0xff]
    %v2186 = vld [vmem:[%s2183 + $0x10] sm:$0xff]
    %v2187 = vld [vmem:[%s2183 + $0x18] sm:$0xff]
    %v2188 = vld [vmem:[%s2183 + $0x20] sm:$0xff]
    %v2189 = vld [vmem:[%s2183 + $0x28] sm:$0xff]
    %v2190 = vld [vmem:[%s2183 + $0x30] sm:$0xf]
    %v2191 = vperm.slane %v1699, 4
    %v2192 = vmul.f32 %v2184, %v2191
    %v2193 = vmul.f32 %v2185, %v2191
    %v2194 = vmul.f32 %v2186, %v2191
    %v2195 = vmul.f32 %v2187, %v2191
    %v2196 = vmul.f32 %v2188, %v2191
    %v2197 = vmul.f32 %v2189, %v2191
    %v2198 = vmul.f32 %v2190, %v2191
    %v2199 = vadd.f32 %v2174, %v2192
    %v2200 = vadd.f32 %v2175, %v2193
    %v2201 = vadd.f32 %v2176, %v2194
    %v2202 = vadd.f32 %v2177, %v2195
    %v2203 = vadd.f32 %v2178, %v2196
    %v2204 = vadd.f32 %v2179, %v2197
    %v2205 = vadd.f32 %v2180, %v2198
    %v2206 = vld [vmem:[%s2183 + $0x1] sm:$0xff]
    %v2207 = vld [vmem:[%s2183 + $0x9] sm:$0xff]
    %v2208 = vld [vmem:[%s2183 + $0x11] sm:$0xff]
    %v2209 = vld [vmem:[%s2183 + $0x19] sm:$0xff]
    %v2210 = vld [vmem:[%s2183 + $0x21] sm:$0xff]
    %v2211 = vld [vmem:[%s2183 + $0x29] sm:$0xff]
    %v2212 = vld [vmem:[%s2183 + $0x31] sm:$0xf]
    %v2213 = vperm.slane %v1699, 5
    %v2214 = vmul.f32 %v2206, %v2213
    %v2215 = vmul.f32 %v2207, %v2213
    %v2216 = vmul.f32 %v2208, %v2213
    %v2217 = vmul.f32 %v2209, %v2213
    %v2218 = vmul.f32 %v2210, %v2213
    %v2219 = vmul.f32 %v2211, %v2213
    %v2220 = vmul.f32 %v2212, %v2213
    %v2221 = vadd.f32 %v2199, %v2214
    %v2222 = vadd.f32 %v2200, %v2215
    %v2223 = vadd.f32 %v2201, %v2216
    %v2224 = vadd.f32 %v2202, %v2217
    %v2225 = vadd.f32 %v2203, %v2218
    %v2226 = vadd.f32 %v2204, %v2219
    %v2227 = vadd.f32 %v2205, %v2220
    %v2228 = vld [vmem:[%s2183 + $0x2] sm:$0xff]
    %v2229 = vld [vmem:[%s2183 + $0xa] sm:$0xff]
    %v2230 = vld [vmem:[%s2183 + $0x12] sm:$0xff]
    %v2231 = vld [vmem:[%s2183 + $0x1a] sm:$0xff]
    %v2232 = vld [vmem:[%s2183 + $0x22] sm:$0xff]
    %v2233 = vld [vmem:[%s2183 + $0x2a] sm:$0xff]
    %v2234 = vld [vmem:[%s2183 + $0x32] sm:$0xf]
    %v2235 = vperm.slane %v1699, 6
    %v2236 = vmul.f32 %v2228, %v2235
    %v2237 = vmul.f32 %v2229, %v2235
    %v2238 = vmul.f32 %v2230, %v2235
    %v2239 = vmul.f32 %v2231, %v2235
    %v2240 = vmul.f32 %v2232, %v2235
    %v2241 = vmul.f32 %v2233, %v2235
    %v2242 = vmul.f32 %v2234, %v2235
    %v2243 = vadd.f32 %v2221, %v2236
    %v2244 = vadd.f32 %v2222, %v2237
    %v2245 = vadd.f32 %v2223, %v2238
    %v2246 = vadd.f32 %v2224, %v2239
    %v2247 = vadd.f32 %v2225, %v2240
    %v2248 = vadd.f32 %v2226, %v2241
    %v2249 = vadd.f32 %v2227, %v2242
    %v2250 = vld [vmem:[%s2183 + $0x3] sm:$0xff]
    %v2251 = vld [vmem:[%s2183 + $0xb] sm:$0xff]
    %v2252 = vld [vmem:[%s2183 + $0x13] sm:$0xff]
    %v2253 = vld [vmem:[%s2183 + $0x1b] sm:$0xff]
    %v2254 = vld [vmem:[%s2183 + $0x23] sm:$0xff]
    %v2255 = vld [vmem:[%s2183 + $0x2b] sm:$0xff]
    %v2256 = vld [vmem:[%s2183 + $0x33] sm:$0xf]
    %v2257 = vperm.slane %v1699, 7
    %v2258 = vmul.f32 %v2250, %v2257
    %v2259 = vmul.f32 %v2251, %v2257
    %v2260 = vmul.f32 %v2252, %v2257
    %v2261 = vmul.f32 %v2253, %v2257
    %v2262 = vmul.f32 %v2254, %v2257
    %v2263 = vmul.f32 %v2255, %v2257
    %v2264 = vmul.f32 %v2256, %v2257
    %v2265 = vadd.f32 %v2243, %v2258
    %v2266 = vadd.f32 %v2244, %v2259
    %v2267 = vadd.f32 %v2245, %v2260
    %v2268 = vadd.f32 %v2246, %v2261
    %v2269 = vadd.f32 %v2247, %v2262
    %v2270 = vadd.f32 %v2248, %v2263
    %v2271 = vadd.f32 %v2249, %v2264
    %v2272 = vld [vmem:[%s2183 + $0x4] sm:$0xff]
    %v2273 = vld [vmem:[%s2183 + $0xc] sm:$0xff]
    %v2274 = vld [vmem:[%s2183 + $0x14] sm:$0xff]
    %v2275 = vld [vmem:[%s2183 + $0x1c] sm:$0xff]
    %v2276 = vld [vmem:[%s2183 + $0x24] sm:$0xff]
    %v2277 = vld [vmem:[%s2183 + $0x2c] sm:$0xff]
    %v2278 = vld [vmem:[%s2183 + $0x34] sm:$0xf]
    %v2279 = vperm.slane %v1700, 0
    %v2280 = vmul.f32 %v2272, %v2279
    %v2281 = vmul.f32 %v2273, %v2279
    %v2282 = vmul.f32 %v2274, %v2279
    %v2283 = vmul.f32 %v2275, %v2279
    %v2284 = vmul.f32 %v2276, %v2279
    %v2285 = vmul.f32 %v2277, %v2279
    %v2286 = vmul.f32 %v2278, %v2279
    %v2287 = vadd.f32 %v2265, %v2280
    %v2288 = vadd.f32 %v2266, %v2281
    %v2289 = vadd.f32 %v2267, %v2282
    %v2290 = vadd.f32 %v2268, %v2283
    %v2291 = vadd.f32 %v2269, %v2284
    %v2292 = vadd.f32 %v2270, %v2285
    %v2293 = vadd.f32 %v2271, %v2286
    %s2294 = sadd.s32 %s1696, %s1732
    %p2295 = scmp.ge.s32.totalorder %s2294, 0
    %p2296 = scmp.lt.s32.totalorder %s2294, 32
    %p2297 = pnand %p2295, %p2296
    %p2298 = pneg %p2297
    %s2299 = scalar_select %p2298, 1, 0
    %v2300 = vstv %s2299
    %vm2301 = vcmp.eq.s32.totalorder %v2300, 1
    %vm2302 = vmand %vm1724, %vm2301
    %vm2303 = vmand %vm1725, %vm2301
    %vm2304 = vmand %vm1726, %vm2301
    %vm2305 = vmand %vm1727, %vm2301
    %vm2306 = vmand %vm1728, %vm2301
    %vm2307 = vmand %vm1729, %vm2301
    %vm2308 = vmand %vm1730, %vm2301
    %v2310 = vperm.slane %v1701, 0
    %v2312 = vadd.f32 %v2287, %v2310
    %v2313 = vadd.f32 %v2288, %v2310
    %v2314 = vadd.f32 %v2289, %v2310
    %v2315 = vadd.f32 %v2290, %v2310
    %v2316 = vadd.f32 %v2291, %v2310
    %v2317 = vadd.f32 %v2292, %v2310
    %v2318 = vadd.f32 %v2293, %v2310
    %v2319 = vsel %vm2302, %v2312, 0.0
    %v2320 = vsel %vm2303, %v2313, 0.0
    %v2321 = vsel %vm2304, %v2314, 0.0
    %v2322 = vsel %vm2305, %v2315, 0.0
    %v2323 = vsel %vm2306, %v2316, 0.0
    %v2324 = vsel %vm2307, %v2317, 0.0
    %v2325 = vsel %vm2308, %v2318, 0.0
    %s2326 = scalar_lea.vmem [#allocation4], %s1737
    %2327 = vst [vmem:[%s2326] sm:$0xff] %v2319
    %2328 = vst [vmem:[%s2326 + $0x8] sm:$0xff] %v2320
    %2329 = vst [vmem:[%s2326 + $0x10] sm:$0xff] %v2321
    %2330 = vst [vmem:[%s2326 + $0x18] sm:$0xff] %v2322
    %2331 = vst [vmem:[%s2326 + $0x20] sm:$0xff] %v2323
    %2332 = vst [vmem:[%s2326 + $0x28] sm:$0xff] %v2324
    %2333 = vst [vmem:[%s2326 + $0x30] sm:$0xf] %v2325
  $region116: #{_lambda_.1} parent=0 // loop_footer
    %s1736 = sadd.s32 1, %s1732
  $region117: #{_lambda_.1} parent=0 // loop_footer_branch
    %1731 = sbr.rel target = $region113
  $region118: #{_lambda_.1} parent=0 // loop_exit
    _
  %s2334 = scalar_lea.vmem [#allocation4], 560
  %v2335 = vld [vmem:[%s2334 + $0xa] sm:$0xff]
  %v2336 = vld [vmem:[%s2334 + $0x12] sm:$0xff]
  %v2337 = vld [vmem:[%s2334 + $0x1a] sm:$0xff]
  %v2338 = vld [vmem:[%s2334 + $0x22] sm:$0xff]
  %v2339 = vld [vmem:[%s2334 + $0x42] sm:$0xff]
  %v2340 = vld [vmem:[%s2334 + $0x4a] sm:$0xff]
  %v2341 = vld [vmem:[%s2334 + $0x52] sm:$0xff]
  %v2342 = vld [vmem:[%s2334 + $0x5a] sm:$0xff]
  %v2343 = vld [vmem:[%s2334 + $0x7a] sm:$0xff]
  %v2344 = vld [vmem:[%s2334 + $0x82] sm:$0xff]
  %v2345 = vld [vmem:[%s2334 + $0x8a] sm:$0xff]
  %v2346 = vld [vmem:[%s2334 + $0x92] sm:$0xff]
  %v2347 = vld [vmem:[%s2334 + $0xb2] sm:$0xff]
  %v2348 = vld [vmem:[%s2334 + $0xba] sm:$0xff]
  %v2349 = vld [vmem:[%s2334 + $0xc2] sm:$0xff]
  %v2350 = vld [vmem:[%s2334 + $0xca] sm:$0xff]
  %v2351 = vld [vmem:[%s2334 + $0xea] sm:$0xff]
  %v2352 = vld [vmem:[%s2334 + $0xf2] sm:$0xff]
  %v2353 = vld [vmem:[%s2334 + $0xfa] sm:$0xff]
  %v2354 = vld [vmem:[%s2334 + $0x102] sm:$0xff]
  %v2355 = vld [vmem:[%s2334 + $0x122] sm:$0xff]
  %v2356 = vld [vmem:[%s2334 + $0x12a] sm:$0xff]
  %v2357 = vld [vmem:[%s2334 + $0x132] sm:$0xff]
  %v2358 = vld [vmem:[%s2334 + $0x13a] sm:$0xff]
  %v2359 = vld [vmem:[%s2334 + $0x15a] sm:$0xff]
  %v2360 = vld [vmem:[%s2334 + $0x162] sm:$0xff]
  %v2361 = vld [vmem:[%s2334 + $0x16a] sm:$0xff]
  %v2362 = vld [vmem:[%s2334 + $0x172] sm:$0xff]
  %v2363 = vld [vmem:[%s2334 + $0x192] sm:$0xff]
  %v2364 = vld [vmem:[%s2334 + $0x19a] sm:$0xff]
  %v2365 = vld [vmem:[%s2334 + $0x1a2] sm:$0xff]
  %v2366 = vld [vmem:[%s2334 + $0x1aa] sm:$0xff]
  %v2367 = vld [vmem:[%s2334 + $0x1ca] sm:$0xff]
  %v2368 = vld [vmem:[%s2334 + $0x1d2] sm:$0xff]
  %v2369 = vld [vmem:[%s2334 + $0x1da] sm:$0xff]
  %v2370 = vld [vmem:[%s2334 + $0x1e2] sm:$0xff]
  %v2371 = vld [vmem:[%s2334 + $0x202] sm:$0xff]
  %v2372 = vld [vmem:[%s2334 + $0x20a] sm:$0xff]
  %v2373 = vld [vmem:[%s2334 + $0x212] sm:$0xff]
  %v2374 = vld [vmem:[%s2334 + $0x21a] sm:$0xff]
  %v2375 = vld [vmem:[%s2334 + $0x23a] sm:$0xff]
  %v2376 = vld [vmem:[%s2334 + $0x242] sm:$0xff]
  %v2377 = vld [vmem:[%s2334 + $0x24a] sm:$0xff]
  %v2378 = vld [vmem:[%s2334 + $0x252] sm:$0xff]
  %v2379 = vld [vmem:[%s2334 + $0x272] sm:$0xff]
  %v2380 = vld [vmem:[%s2334 + $0x27a] sm:$0xff]
  %v2381 = vld [vmem:[%s2334 + $0x282] sm:$0xff]
  %v2382 = vld [vmem:[%s2334 + $0x28a] sm:$0xff]
  %v2383 = vld [vmem:[%s2334 + $0x2aa] sm:$0xff]
  %v2384 = vld [vmem:[%s2334 + $0x2b2] sm:$0xff]
  %v2385 = vld [vmem:[%s2334 + $0x2ba] sm:$0xff]
  %v2386 = vld [vmem:[%s2334 + $0x2c2] sm:$0xff]
  %v2387 = vld [vmem:[%s2334 + $0x2e2] sm:$0xff]
  %v2388 = vld [vmem:[%s2334 + $0x2ea] sm:$0xff]
  %v2389 = vld [vmem:[%s2334 + $0x2f2] sm:$0xff]
  %v2390 = vld [vmem:[%s2334 + $0x2fa] sm:$0xff]
  %v2391 = vld [vmem:[%s2334 + $0x31a] sm:$0xff]
  %v2392 = vld [vmem:[%s2334 + $0x322] sm:$0xff]
  %v2393 = vld [vmem:[%s2334 + $0x32a] sm:$0xff]
  %v2394 = vld [vmem:[%s2334 + $0x332] sm:$0xff]
  %v2395 = vld [vmem:[%s2334 + $0x352] sm:$0xff]
  %v2396 = vld [vmem:[%s2334 + $0x35a] sm:$0xff]
  %v2397 = vld [vmem:[%s2334 + $0x362] sm:$0xff]
  %v2398 = vld [vmem:[%s2334 + $0x36a] sm:$0xff]
  %v2399 = vld [vmem:[%s2334 + $0x38a] sm:$0xff]
  %v2400 = vld [vmem:[%s2334 + $0x392] sm:$0xff]
  %v2401 = vld [vmem:[%s2334 + $0x39a] sm:$0xff]
  %v2402 = vld [vmem:[%s2334 + $0x3a2] sm:$0xff]
  %v2403 = vld [vmem:[%s2334 + $0x3c2] sm:$0xff]
  %v2404 = vld [vmem:[%s2334 + $0x3ca] sm:$0xff]
  %v2405 = vld [vmem:[%s2334 + $0x3d2] sm:$0xff]
  %v2406 = vld [vmem:[%s2334 + $0x3da] sm:$0xff]
  %v2407 = vld [vmem:[%s2334 + $0x3fa] sm:$0xff]
  %v2408 = vld [vmem:[%s2334 + $0x402] sm:$0xff]
  %v2409 = vld [vmem:[%s2334 + $0x40a] sm:$0xff]
  %v2410 = vld [vmem:[%s2334 + $0x412] sm:$0xff]
  %v2411 = vld [vmem:[%s2334 + $0x432] sm:$0xff]
  %v2412 = vld [vmem:[%s2334 + $0x43a] sm:$0xff]
  %v2413 = vld [vmem:[%s2334 + $0x442] sm:$0xff]
  %v2414 = vld [vmem:[%s2334 + $0x44a] sm:$0xff]
  %v2415 = vld [vmem:[%s2334 + $0x46a] sm:$0xff]
  %v2416 = vld [vmem:[%s2334 + $0x472] sm:$0xff]
  %v2417 = vld [vmem:[%s2334 + $0x47a] sm:$0xff]
  %v2418 = vld [vmem:[%s2334 + $0x482] sm:$0xff]
  %v2419 = vld [vmem:[%s2334 + $0x4a2] sm:$0xff]
  %v2420 = vld [vmem:[%s2334 + $0x4aa] sm:$0xff]
  %v2421 = vld [vmem:[%s2334 + $0x4b2] sm:$0xff]
  %v2422 = vld [vmem:[%s2334 + $0x4ba] sm:$0xff]
  %v2423 = vld [vmem:[%s2334 + $0x4da] sm:$0xff]
  %v2424 = vld [vmem:[%s2334 + $0x4e2] sm:$0xff]
  %v2425 = vld [vmem:[%s2334 + $0x4ea] sm:$0xff]
  %v2426 = vld [vmem:[%s2334 + $0x4f2] sm:$0xff]
  %v2427 = vld [vmem:[%s2334 + $0x512] sm:$0xff]
  %v2428 = vld [vmem:[%s2334 + $0x51a] sm:$0xff]
  %v2429 = vld [vmem:[%s2334 + $0x522] sm:$0xff]
  %v2430 = vld [vmem:[%s2334 + $0x52a] sm:$0xff]
  %v2431 = vld [vmem:[%s2334 + $0x54a] sm:$0xff]
  %v2432 = vld [vmem:[%s2334 + $0x552] sm:$0xff]
  %v2433 = vld [vmem:[%s2334 + $0x55a] sm:$0xff]
  %v2434 = vld [vmem:[%s2334 + $0x562] sm:$0xff]
  %v2435 = vld [vmem:[%s2334 + $0x582] sm:$0xff]
  %v2436 = vld [vmem:[%s2334 + $0x58a] sm:$0xff]
  %v2437 = vld [vmem:[%s2334 + $0x592] sm:$0xff]
  %v2438 = vld [vmem:[%s2334 + $0x59a] sm:$0xff]
  %v2439 = vld [vmem:[%s2334 + $0x5ba] sm:$0xff]
  %v2440 = vld [vmem:[%s2334 + $0x5c2] sm:$0xff]
  %v2441 = vld [vmem:[%s2334 + $0x5ca] sm:$0xff]
  %v2442 = vld [vmem:[%s2334 + $0x5d2] sm:$0xff]
  %v2443 = vld [vmem:[%s2334 + $0x5f2] sm:$0xff]
  %v2444 = vld [vmem:[%s2334 + $0x5fa] sm:$0xff]
  %v2445 = vld [vmem:[%s2334 + $0x602] sm:$0xff]
  %v2446 = vld [vmem:[%s2334 + $0x60a] sm:$0xff]
  %v2447 = vld [vmem:[%s2334 + $0x62a] sm:$0xff]
  %v2448 = vld [vmem:[%s2334 + $0x632] sm:$0xff]
  %v2449 = vld [vmem:[%s2334 + $0x63a] sm:$0xff]
  %v2450 = vld [vmem:[%s2334 + $0x642] sm:$0xff]
  %v2451 = vld [vmem:[%s2334 + $0x662] sm:$0xff]
  %v2452 = vld [vmem:[%s2334 + $0x66a] sm:$0xff]
  %v2453 = vld [vmem:[%s2334 + $0x672] sm:$0xff]
  %v2454 = vld [vmem:[%s2334 + $0x67a] sm:$0xff]
  %v2455 = vld [vmem:[%s2334 + $0x69a] sm:$0xff]
  %v2456 = vld [vmem:[%s2334 + $0x6a2] sm:$0xff]
  %v2457 = vld [vmem:[%s2334 + $0x6aa] sm:$0xff]
  %v2458 = vld [vmem:[%s2334 + $0x6b2] sm:$0xff]
  %v2459 = vld [vmem:[%s2334 + $0x6d2] sm:$0xff]
  %v2460 = vld [vmem:[%s2334 + $0x6da] sm:$0xff]
  %v2461 = vld [vmem:[%s2334 + $0x6e2] sm:$0xff]
  %v2462 = vld [vmem:[%s2334 + $0x6ea] sm:$0xff]
  %2463 = vst [vmem:[#allocation6] sm:$0xff] %v2335
  %2464 = vst [vmem:[#allocation6 + $0x8] sm:$0xff] %v2336
  %2465 = vst [vmem:[#allocation6 + $0x10] sm:$0xff] %v2337
  %2466 = vst [vmem:[#allocation6 + $0x18] sm:$0xff] %v2338
  %2467 = vst [vmem:[#allocation6 + $0x20] sm:$0xff] %v2339
  %2468 = vst [vmem:[#allocation6 + $0x28] sm:$0xff] %v2340
  %2469 = vst [vmem:[#allocation6 + $0x30] sm:$0xff] %v2341
  %2470 = vst [vmem:[#allocation6 + $0x38] sm:$0xff] %v2342
  %2471 = vst [vmem:[#allocation6 + $0x40] sm:$0xff] %v2343
  %2472 = vst [vmem:[#allocation6 + $0x48] sm:$0xff] %v2344
  %2473 = vst [vmem:[#allocation6 + $0x50] sm:$0xff] %v2345
  %2474 = vst [vmem:[#allocation6 + $0x58] sm:$0xff] %v2346
  %2475 = vst [vmem:[#allocation6 + $0x60] sm:$0xff] %v2347
  %2476 = vst [vmem:[#allocation6 + $0x68] sm:$0xff] %v2348
  %2477 = vst [vmem:[#allocation6 + $0x70] sm:$0xff] %v2349
  %2478 = vst [vmem:[#allocation6 + $0x78] sm:$0xff] %v2350
  %2479 = vst [vmem:[#allocation6 + $0x80] sm:$0xff] %v2351
  %2480 = vst [vmem:[#allocation6 + $0x88] sm:$0xff] %v2352
  %2481 = vst [vmem:[#allocation6 + $0x90] sm:$0xff] %v2353
  %2482 = vst [vmem:[#allocation6 + $0x98] sm:$0xff] %v2354
  %2483 = vst [vmem:[#allocation6 + $0xa0] sm:$0xff] %v2355
  %2484 = vst [vmem:[#allocation6 + $0xa8] sm:$0xff] %v2356
  %2485 = vst [vmem:[#allocation6 + $0xb0] sm:$0xff] %v2357
  %2486 = vst [vmem:[#allocation6 + $0xb8] sm:$0xff] %v2358
  %2487 = vst [vmem:[#allocation6 + $0xc0] sm:$0xff] %v2359
  %2488 = vst [vmem:[#allocation6 + $0xc8] sm:$0xff] %v2360
  %2489 = vst [vmem:[#allocation6 + $0xd0] sm:$0xff] %v2361
  %2490 = vst [vmem:[#allocation6 + $0xd8] sm:$0xff] %v2362
  %2491 = vst [vmem:[#allocation6 + $0xe0] sm:$0xff] %v2363
  %2492 = vst [vmem:[#allocation6 + $0xe8] sm:$0xff] %v2364
  %2493 = vst [vmem:[#allocation6 + $0xf0] sm:$0xff] %v2365
  %2494 = vst [vmem:[#allocation6 + $0xf8] sm:$0xff] %v2366
  %2495 = vst [vmem:[#allocation6 + $0x100] sm:$0xff] %v2367
  %2496 = vst [vmem:[#allocation6 + $0x108] sm:$0xff] %v2368
  %2497 = vst [vmem:[#allocation6 + $0x110] sm:$0xff] %v2369
  %2498 = vst [vmem:[#allocation6 + $0x118] sm:$0xff] %v2370
  %2499 = vst [vmem:[#allocation6 + $0x120] sm:$0xff] %v2371
  %2500 = vst [vmem:[#allocation6 + $0x128] sm:$0xff] %v2372
  %2501 = vst [vmem:[#allocation6 + $0x130] sm:$0xff] %v2373
  %2502 = vst [vmem:[#allocation6 + $0x138] sm:$0xff] %v2374
  %2503 = vst [vmem:[#allocation6 + $0x140] sm:$0xff] %v2375
  %2504 = vst [vmem:[#allocation6 + $0x148] sm:$0xff] %v2376
  %2505 = vst [vmem:[#allocation6 + $0x150] sm:$0xff] %v2377
  %2506 = vst [vmem:[#allocation6 + $0x158] sm:$0xff] %v2378
  %2507 = vst [vmem:[#allocation6 + $0x160] sm:$0xff] %v2379
  %2508 = vst [vmem:[#allocation6 + $0x168] sm:$0xff] %v2380
  %2509 = vst [vmem:[#allocation6 + $0x170] sm:$0xff] %v2381
  %2510 = vst [vmem:[#allocation6 + $0x178] sm:$0xff] %v2382
  %2511 = vst [vmem:[#allocation6 + $0x180] sm:$0xff] %v2383
  %2512 = vst [vmem:[#allocation6 + $0x188] sm:$0xff] %v2384
  %2513 = vst [vmem:[#allocation6 + $0x190] sm:$0xff] %v2385
  %2514 = vst [vmem:[#allocation6 + $0x198] sm:$0xff] %v2386
  %2515 = vst [vmem:[#allocation6 + $0x1a0] sm:$0xff] %v2387
  %2516 = vst [vmem:[#allocation6 + $0x1a8] sm:$0xff] %v2388
  %2517 = vst [vmem:[#allocation6 + $0x1b0] sm:$0xff] %v2389
  %2518 = vst [vmem:[#allocation6 + $0x1b8] sm:$0xff] %v2390
  %2519 = vst [vmem:[#allocation6 + $0x1c0] sm:$0xff] %v2391
  %2520 = vst [vmem:[#allocation6 + $0x1c8] sm:$0xff] %v2392
  %2521 = vst [vmem:[#allocation6 + $0x1d0] sm:$0xff] %v2393
  %2522 = vst [vmem:[#allocation6 + $0x1d8] sm:$0xff] %v2394
  %2523 = vst [vmem:[#allocation6 + $0x1e0] sm:$0xff] %v2395
  %2524 = vst [vmem:[#allocation6 + $0x1e8] sm:$0xff] %v2396
  %2525 = vst [vmem:[#allocation6 + $0x1f0] sm:$0xff] %v2397
  %2526 = vst [vmem:[#allocation6 + $0x1f8] sm:$0xff] %v2398
  %2527 = vst [vmem:[#allocation6 + $0x200] sm:$0xff] %v2399
  %2528 = vst [vmem:[#allocation6 + $0x208] sm:$0xff] %v2400
  %2529 = vst [vmem:[#allocation6 + $0x210] sm:$0xff] %v2401
  %2530 = vst [vmem:[#allocation6 + $0x218] sm:$0xff] %v2402
  %2531 = vst [vmem:[#allocation6 + $0x220] sm:$0xff] %v2403
  %2532 = vst [vmem:[#allocation6 + $0x228] sm:$0xff] %v2404
  %2533 = vst [vmem:[#allocation6 + $0x230] sm:$0xff] %v2405
  %2534 = vst [vmem:[#allocation6 + $0x238] sm:$0xff] %v2406
  %2535 = vst [vmem:[#allocation6 + $0x240] sm:$0xff] %v2407
  %2536 = vst [vmem:[#allocation6 + $0x248] sm:$0xff] %v2408
  %2537 = vst [vmem:[#allocation6 + $0x250] sm:$0xff] %v2409
  %2538 = vst [vmem:[#allocation6 + $0x258] sm:$0xff] %v2410
  %2539 = vst [vmem:[#allocation6 + $0x260] sm:$0xff] %v2411
  %2540 = vst [vmem:[#allocation6 + $0x268] sm:$0xff] %v2412
  %2541 = vst [vmem:[#allocation6 + $0x270] sm:$0xff] %v2413
  %2542 = vst [vmem:[#allocation6 + $0x278] sm:$0xff] %v2414
  %2543 = vst [vmem:[#allocation6 + $0x280] sm:$0xff] %v2415
  %2544 = vst [vmem:[#allocation6 + $0x288] sm:$0xff] %v2416
  %2545 = vst [vmem:[#allocation6 + $0x290] sm:$0xff] %v2417
  %2546 = vst [vmem:[#allocation6 + $0x298] sm:$0xff] %v2418
  %2547 = vst [vmem:[#allocation6 + $0x2a0] sm:$0xff] %v2419
  %2548 = vst [vmem:[#allocation6 + $0x2a8] sm:$0xff] %v2420
  %2549 = vst [vmem:[#allocation6 + $0x2b0] sm:$0xff] %v2421
  %2550 = vst [vmem:[#allocation6 + $0x2b8] sm:$0xff] %v2422
  %2551 = vst [vmem:[#allocation6 + $0x2c0] sm:$0xff] %v2423
  %2552 = vst [vmem:[#allocation6 + $0x2c8] sm:$0xff] %v2424
  %2553 = vst [vmem:[#allocation6 + $0x2d0] sm:$0xff] %v2425
  %2554 = vst [vmem:[#allocation6 + $0x2d8] sm:$0xff] %v2426
  %2555 = vst [vmem:[#allocation6 + $0x2e0] sm:$0xff] %v2427
  %2556 = vst [vmem:[#allocation6 + $0x2e8] sm:$0xff] %v2428
  %2557 = vst [vmem:[#allocation6 + $0x2f0] sm:$0xff] %v2429
  %2558 = vst [vmem:[#allocation6 + $0x2f8] sm:$0xff] %v2430
  %2559 = vst [vmem:[#allocation6 + $0x300] sm:$0xff] %v2431
  %2560 = vst [vmem:[#allocation6 + $0x308] sm:$0xff] %v2432
  %2561 = vst [vmem:[#allocation6 + $0x310] sm:$0xff] %v2433
  %2562 = vst [vmem:[#allocation6 + $0x318] sm:$0xff] %v2434
  %2563 = vst [vmem:[#allocation6 + $0x320] sm:$0xff] %v2435
  %2564 = vst [vmem:[#allocation6 + $0x328] sm:$0xff] %v2436
  %2565 = vst [vmem:[#allocation6 + $0x330] sm:$0xff] %v2437
  %2566 = vst [vmem:[#allocation6 + $0x338] sm:$0xff] %v2438
  %2567 = vst [vmem:[#allocation6 + $0x340] sm:$0xff] %v2439
  %2568 = vst [vmem:[#allocation6 + $0x348] sm:$0xff] %v2440
  %2569 = vst [vmem:[#allocation6 + $0x350] sm:$0xff] %v2441
  %2570 = vst [vmem:[#allocation6 + $0x358] sm:$0xff] %v2442
  %2571 = vst [vmem:[#allocation6 + $0x360] sm:$0xff] %v2443
  %2572 = vst [vmem:[#allocation6 + $0x368] sm:$0xff] %v2444
  %2573 = vst [vmem:[#allocation6 + $0x370] sm:$0xff] %v2445
  %2574 = vst [vmem:[#allocation6 + $0x378] sm:$0xff] %v2446
  %2575 = vst [vmem:[#allocation6 + $0x380] sm:$0xff] %v2447
  %2576 = vst [vmem:[#allocation6 + $0x388] sm:$0xff] %v2448
  %2577 = vst [vmem:[#allocation6 + $0x390] sm:$0xff] %v2449
  %2578 = vst [vmem:[#allocation6 + $0x398] sm:$0xff] %v2450
  %2579 = vst [vmem:[#allocation6 + $0x3a0] sm:$0xff] %v2451
  %2580 = vst [vmem:[#allocation6 + $0x3a8] sm:$0xff] %v2452
  %2581 = vst [vmem:[#allocation6 + $0x3b0] sm:$0xff] %v2453
  %2582 = vst [vmem:[#allocation6 + $0x3b8] sm:$0xff] %v2454
  %2583 = vst [vmem:[#allocation6 + $0x3c0] sm:$0xff] %v2455
  %2584 = vst [vmem:[#allocation6 + $0x3c8] sm:$0xff] %v2456
  %2585 = vst [vmem:[#allocation6 + $0x3d0] sm:$0xff] %v2457
  %2586 = vst [vmem:[#allocation6 + $0x3d8] sm:$0xff] %v2458
  %2587 = vst [vmem:[#allocation6 + $0x3e0] sm:$0xff] %v2459
  %2588 = vst [vmem:[#allocation6 + $0x3e8] sm:$0xff] %v2460
  %2589 = vst [vmem:[#allocation6 + $0x3f0] sm:$0xff] %v2461
  %2590 = vst [vmem:[#allocation6 + $0x3f8] sm:$0xff] %v2462
  %v2591 = vld [vmem:[%s3] sm:$0x7f]
  %v2592 = vld [vmem:[%s4] sm:$0x1]
  %v2593 = vld [vmem:[%s5] sm:$0x7f]
  %v2594 = vld [vmem:[%s6] sm:$0x1]
  loop: start=7, step=1, limit=45
  $region119: #{_lambda_.1} parent=0 // loop_pre_header
    _
  $region120: #{_lambda_.1} parent=0 // loop_header
    %s2596 = sphi 7, %s2600
    %p2597 = scmp.ge.s32.totalorder %s2596, 45
  $region121: #{_lambda_.1} parent=0 // loop_header_branch
    %2599 = sbr.rel (%p2597) target = $region125
  $region122: #{_lambda_.1} parent=0 // loop_body
    %s2601 = smul.u32 %s2596, 56
    %s2602 = scalar_lea.vmem [#allocation4], %s2601
    %v2603 = vld [vmem:[%s2602 + $0x7] sm:$0xff]
    %v2604 = vld [vmem:[%s2602 + $0xf] sm:$0xff]
    %v2605 = vld [vmem:[%s2602 + $0x17] sm:$0xff]
    %v2606 = vld [vmem:[%s2602 + $0x1f] sm:$0xff]
    %v2607 = vperm.slane %v2591, 0
    %v2608 = vmul.f32 %v2603, %v2607
    %v2609 = vmul.f32 %v2604, %v2607
    %v2610 = vmul.f32 %v2605, %v2607
    %v2611 = vmul.f32 %v2606, %v2607
    %v2612 = vld [vmem:[%s2602 + $0x8] sm:$0xff]
    %v2613 = vld [vmem:[%s2602 + $0x10] sm:$0xff]
    %v2614 = vld [vmem:[%s2602 + $0x18] sm:$0xff]
    %v2615 = vld [vmem:[%s2602 + $0x20] sm:$0xff]
    %v2616 = vperm.slane %v2591, 1
    %v2617 = vmul.f32 %v2612, %v2616
    %v2618 = vmul.f32 %v2613, %v2616
    %v2619 = vmul.f32 %v2614, %v2616
    %v2620 = vmul.f32 %v2615, %v2616
    %v2621 = vadd.f32 %v2608, %v2617
    %v2622 = vadd.f32 %v2609, %v2618
    %v2623 = vadd.f32 %v2610, %v2619
    %v2624 = vadd.f32 %v2611, %v2620
    %v2625 = vld [vmem:[%s2602 + $0x9] sm:$0xff]
    %v2626 = vld [vmem:[%s2602 + $0x11] sm:$0xff]
    %v2627 = vld [vmem:[%s2602 + $0x19] sm:$0xff]
    %v2628 = vld [vmem:[%s2602 + $0x21] sm:$0xff]
    %v2629 = vperm.slane %v2591, 2
    %v2630 = vmul.f32 %v2625, %v2629
    %v2631 = vmul.f32 %v2626, %v2629
    %v2632 = vmul.f32 %v2627, %v2629
    %v2633 = vmul.f32 %v2628, %v2629
    %v2634 = vadd.f32 %v2621, %v2630
    %v2635 = vadd.f32 %v2622, %v2631
    %v2636 = vadd.f32 %v2623, %v2632
    %v2637 = vadd.f32 %v2624, %v2633
    %v2638 = vld [vmem:[%s2602 + $0xa] sm:$0xff]
    %v2639 = vld [vmem:[%s2602 + $0x12] sm:$0xff]
    %v2640 = vld [vmem:[%s2602 + $0x1a] sm:$0xff]
    %v2641 = vld [vmem:[%s2602 + $0x22] sm:$0xff]
    %v2642 = vperm.slane %v2591, 3
    %v2643 = vmul.f32 %v2638, %v2642
    %v2644 = vmul.f32 %v2639, %v2642
    %v2645 = vmul.f32 %v2640, %v2642
    %v2646 = vmul.f32 %v2641, %v2642
    %v2647 = vadd.f32 %v2634, %v2643
    %v2648 = vadd.f32 %v2635, %v2644
    %v2649 = vadd.f32 %v2636, %v2645
    %v2650 = vadd.f32 %v2637, %v2646
    %v2651 = vld [vmem:[%s2602 + $0xb] sm:$0xff]
    %v2652 = vld [vmem:[%s2602 + $0x13] sm:$0xff]
    %v2653 = vld [vmem:[%s2602 + $0x1b] sm:$0xff]
    %v2654 = vld [vmem:[%s2602 + $0x23] sm:$0xff]
    %v2655 = vperm.slane %v2591, 4
    %v2656 = vmul.f32 %v2651, %v2655
    %v2657 = vmul.f32 %v2652, %v2655
    %v2658 = vmul.f32 %v2653, %v2655
    %v2659 = vmul.f32 %v2654, %v2655
    %v2660 = vadd.f32 %v2647, %v2656
    %v2661 = vadd.f32 %v2648, %v2657
    %v2662 = vadd.f32 %v2649, %v2658
    %v2663 = vadd.f32 %v2650, %v2659
    %v2664 = vld [vmem:[%s2602 + $0xc] sm:$0xff]
    %v2665 = vld [vmem:[%s2602 + $0x14] sm:$0xff]
    %v2666 = vld [vmem:[%s2602 + $0x1c] sm:$0xff]
    %v2667 = vld [vmem:[%s2602 + $0x24] sm:$0xff]
    %v2668 = vperm.slane %v2591, 5
    %v2669 = vmul.f32 %v2664, %v2668
    %v2670 = vmul.f32 %v2665, %v2668
    %v2671 = vmul.f32 %v2666, %v2668
    %v2672 = vmul.f32 %v2667, %v2668
    %v2673 = vadd.f32 %v2660, %v2669
    %v2674 = vadd.f32 %v2661, %v2670
    %v2675 = vadd.f32 %v2662, %v2671
    %v2676 = vadd.f32 %v2663, %v2672
    %v2677 = vld [vmem:[%s2602 + $0xd] sm:$0xff]
    %v2678 = vld [vmem:[%s2602 + $0x15] sm:$0xff]
    %v2679 = vld [vmem:[%s2602 + $0x1d] sm:$0xff]
    %v2680 = vld [vmem:[%s2602 + $0x25] sm:$0xff]
    %v2681 = vperm.slane %v2591, 6
    %v2682 = vmul.f32 %v2677, %v2681
    %v2683 = vmul.f32 %v2678, %v2681
    %v2684 = vmul.f32 %v2679, %v2681
    %v2685 = vmul.f32 %v2680, %v2681
    %v2686 = vadd.f32 %v2673, %v2682
    %v2687 = vadd.f32 %v2674, %v2683
    %v2688 = vadd.f32 %v2675, %v2684
    %v2689 = vadd.f32 %v2676, %v2685
    %s2690 = sadd.s32 %s1696, %s2596
    %p2691 = scmp.ge.s32.totalorder %s2690, 0
    %p2692 = scmp.lt.s32.totalorder %s2690, 32
    %p2693 = pnand %p2691, %p2692
    %p2694 = pneg %p2693
    %v2696 = vperm.slane %v2592, 0
    %v2698 = vadd.f32 %v2686, %v2696
    %v2699 = vadd.f32 %v2687, %v2696
    %v2700 = vadd.f32 %v2688, %v2696
    %v2701 = vadd.f32 %v2689, %v2696
    %s2702 = scalar_select %p2694, 1, 0
    %v2703 = vstv %s2702
    %vm2704 = vcmp.eq.s32.totalorder %v2703, 1
    %v2705 = vsel %vm2704, %v2698, 0.0
    %v2706 = vsel %vm2704, %v2699, 0.0
    %v2707 = vsel %vm2704, %v2700, 0.0
    %v2708 = vsel %vm2704, %v2701, 0.0
    %s2709 = smul.u32 %s2596, 32
    %s2710 = scalar_lea.vmem [#allocation5], %s2709
    %2711 = vst [vmem:[%s2710] sm:$0xff] %v2705
    %2712 = vst [vmem:[%s2710 + $0x8] sm:$0xff] %v2706
    %2713 = vst [vmem:[%s2710 + $0x10] sm:$0xff] %v2707
    %2714 = vst [vmem:[%s2710 + $0x18] sm:$0xff] %v2708
  $region123: #{_lambda_.1} parent=0 // loop_footer
    %s2600 = sadd.s32 1, %s2596
  $region124: #{_lambda_.1} parent=0 // loop_footer_branch
    %2595 = sbr.rel target = $region120
  $region125: #{_lambda_.1} parent=0 // loop_exit
    _
  loop: start=0, step=1, limit=32
  $region126: #{_lambda_.1} parent=0 // loop_pre_header
    _
  $region127: #{_lambda_.1} parent=0 // loop_header
    %s2716 = sphi 0, %s2720
    %p2717 = scmp.ge.s32.totalorder %s2716, 32
  $region128: #{_lambda_.1} parent=0 // loop_header_branch
    %2719 = sbr.rel (%p2717) target = $region132
  $region129: #{_lambda_.1} parent=0 // loop_body
    %s2721 = sadd.s32 %s2716, 7
    %s2722 = smul.u32 %s2721, 32
    %s2723 = scalar_lea.vmem [#allocation5], %s2722
    %v2724 = vld [vmem:[%s2723] sm:$0xff]
    %v2725 = vld [vmem:[%s2723 + $0x8] sm:$0xff]
    %v2726 = vld [vmem:[%s2723 + $0x10] sm:$0xff]
    %v2727 = vld [vmem:[%s2723 + $0x18] sm:$0xff]
    %v2728 = vperm.slane %v2593, 0
    %v2729 = vmul.f32 %v2724, %v2728
    %v2730 = vmul.f32 %v2725, %v2728
    %v2731 = vmul.f32 %v2726, %v2728
    %v2732 = vmul.f32 %v2727, %v2728
    %s2733 = sadd.s32 %s2716, 8
    %s2734 = smul.u32 %s2733, 32
    %s2735 = scalar_lea.vmem [#allocation5], %s2734
    %v2736 = vld [vmem:[%s2735] sm:$0xff]
    %v2737 = vld [vmem:[%s2735 + $0x8] sm:$0xff]
    %v2738 = vld [vmem:[%s2735 + $0x10] sm:$0xff]
    %v2739 = vld [vmem:[%s2735 + $0x18] sm:$0xff]
    %v2740 = vperm.slane %v2593, 1
    %v2741 = vmul.f32 %v2736, %v2740
    %v2742 = vmul.f32 %v2737, %v2740
    %v2743 = vmul.f32 %v2738, %v2740
    %v2744 = vmul.f32 %v2739, %v2740
    %v2745 = vadd.f32 %v2729, %v2741
    %v2746 = vadd.f32 %v2730, %v2742
    %v2747 = vadd.f32 %v2731, %v2743
    %v2748 = vadd.f32 %v2732, %v2744
    %s2749 = sadd.s32 %s2716, 9
    %s2750 = smul.u32 %s2749, 32
    %s2751 = scalar_lea.vmem [#allocation5], %s2750
    %v2752 = vld [vmem:[%s2751] sm:$0xff]
    %v2753 = vld [vmem:[%s2751 + $0x8] sm:$0xff]
    %v2754 = vld [vmem:[%s2751 + $0x10] sm:$0xff]
    %v2755 = vld [vmem:[%s2751 + $0x18] sm:$0xff]
    %v2756 = vperm.slane %v2593, 2
    %v2757 = vmul.f32 %v2752, %v2756
    %v2758 = vmul.f32 %v2753, %v2756
    %v2759 = vmul.f32 %v2754, %v2756
    %v2760 = vmul.f32 %v2755, %v2756
    %v2761 = vadd.f32 %v2745, %v2757
    %v2762 = vadd.f32 %v2746, %v2758
    %v2763 = vadd.f32 %v2747, %v2759
    %v2764 = vadd.f32 %v2748, %v2760
    %s2765 = sadd.s32 %s2716, 10
    %s2766 = smul.u32 %s2765, 32
    %s2767 = scalar_lea.vmem [#allocation5], %s2766
    %v2768 = vld [vmem:[%s2767] sm:$0xff]
    %v2769 = vld [vmem:[%s2767 + $0x8] sm:$0xff]
    %v2770 = vld [vmem:[%s2767 + $0x10] sm:$0xff]
    %v2771 = vld [vmem:[%s2767 + $0x18] sm:$0xff]
    %v2772 = vperm.slane %v2593, 3
    %v2773 = vmul.f32 %v2768, %v2772
    %v2774 = vmul.f32 %v2769, %v2772
    %v2775 = vmul.f32 %v2770, %v2772
    %v2776 = vmul.f32 %v2771, %v2772
    %v2777 = vadd.f32 %v2761, %v2773
    %v2778 = vadd.f32 %v2762, %v2774
    %v2779 = vadd.f32 %v2763, %v2775
    %v2780 = vadd.f32 %v2764, %v2776
    %s2781 = sadd.s32 %s2716, 11
    %s2782 = smul.u32 %s2781, 32
    %s2783 = scalar_lea.vmem [#allocation5], %s2782
    %v2784 = vld [vmem:[%s2783] sm:$0xff]
    %v2785 = vld [vmem:[%s2783 + $0x8] sm:$0xff]
    %v2786 = vld [vmem:[%s2783 + $0x10] sm:$0xff]
    %v2787 = vld [vmem:[%s2783 + $0x18] sm:$0xff]
    %v2788 = vperm.slane %v2593, 4
    %v2789 = vmul.f32 %v2784, %v2788
    %v2790 = vmul.f32 %v2785, %v2788
    %v2791 = vmul.f32 %v2786, %v2788
    %v2792 = vmul.f32 %v2787, %v2788
    %v2793 = vadd.f32 %v2777, %v2789
    %v2794 = vadd.f32 %v2778, %v2790
    %v2795 = vadd.f32 %v2779, %v2791
    %v2796 = vadd.f32 %v2780, %v2792
    %s2797 = sadd.s32 %s2716, 12
    %s2798 = smul.u32 %s2797, 32
    %s2799 = scalar_lea.vmem [#allocation5], %s2798
    %v2800 = vld [vmem:[%s2799] sm:$0xff]
    %v2801 = vld [vmem:[%s2799 + $0x8] sm:$0xff]
    %v2802 = vld [vmem:[%s2799 + $0x10] sm:$0xff]
    %v2803 = vld [vmem:[%s2799 + $0x18] sm:$0xff]
    %v2804 = vperm.slane %v2593, 5
    %v2805 = vmul.f32 %v2800, %v2804
    %v2806 = vmul.f32 %v2801, %v2804
    %v2807 = vmul.f32 %v2802, %v2804
    %v2808 = vmul.f32 %v2803, %v2804
    %v2809 = vadd.f32 %v2793, %v2805
    %v2810 = vadd.f32 %v2794, %v2806
    %v2811 = vadd.f32 %v2795, %v2807
    %v2812 = vadd.f32 %v2796, %v2808
    %s2813 = sadd.s32 %s2716, 13
    %s2814 = smul.u32 %s2813, 32
    %s2815 = scalar_lea.vmem [#allocation5], %s2814
    %v2816 = vld [vmem:[%s2815] sm:$0xff]
    %v2817 = vld [vmem:[%s2815 + $0x8] sm:$0xff]
    %v2818 = vld [vmem:[%s2815 + $0x10] sm:$0xff]
    %v2819 = vld [vmem:[%s2815 + $0x18] sm:$0xff]
    %v2820 = vperm.slane %v2593, 6
    %v2821 = vmul.f32 %v2816, %v2820
    %v2822 = vmul.f32 %v2817, %v2820
    %v2823 = vmul.f32 %v2818, %v2820
    %v2824 = vmul.f32 %v2819, %v2820
    %v2825 = vadd.f32 %v2809, %v2821
    %v2826 = vadd.f32 %v2810, %v2822
    %v2827 = vadd.f32 %v2811, %v2823
    %v2828 = vadd.f32 %v2812, %v2824
    %s2829 = smul.u32 %s2716, 32
    %s2830 = scalar_lea.vmem [#allocation6], %s2829
    %v2831 = vld [vmem:[%s2830] sm:$0xff]
    %v2832 = vld [vmem:[%s2830 + $0x8] sm:$0xff]
    %v2833 = vld [vmem:[%s2830 + $0x10] sm:$0xff]
    %v2834 = vld [vmem:[%s2830 + $0x18] sm:$0xff]
    %v2835 = vadd.f32 %v2831, %v2825
    %v2836 = vadd.f32 %v2832, %v2826
    %v2837 = vadd.f32 %v2833, %v2827
    %v2838 = vadd.f32 %v2834, %v2828
    %v2840 = vperm.slane %v2594, 0
    %v2842 = vadd.f32 %v2835, %v2840
    %v2843 = vadd.f32 %v2836, %v2840
    %v2844 = vadd.f32 %v2837, %v2840
    %v2845 = vadd.f32 %v2838, %v2840
    %2846 = vst [vmem:[%s2830] sm:$0xff] %v2842
    %2847 = vst [vmem:[%s2830 + $0x8] sm:$0xff] %v2843
    %2848 = vst [vmem:[%s2830 + $0x10] sm:$0xff] %v2844
    %2849 = vst [vmem:[%s2830 + $0x18] sm:$0xff] %v2845
  $region130: #{_lambda_.1} parent=0 // loop_footer
    %s2720 = sadd.s32 1, %s2716
  $region131: #{_lambda_.1} parent=0 // loop_footer_branch
    %2715 = sbr.rel target = $region127
  $region132: #{_lambda_.1} parent=0 // loop_exit
    _
  %v2850 = vld [vmem:[%s7] sm:$0xff]
  %v2851 = vld [vmem:[%s7 + $0x8] sm:$0x7]
  %v2852 = vld [vmem:[%s8] sm:$0x1]
  %v2853 = vld [vmem:[%s9] sm:$0xff]
  %v2854 = vld [vmem:[%s9 + $0x8] sm:$0x7]
  %v2855 = vld [vmem:[%s10] sm:$0x1]
  loop: start=5, step=1, limit=47
  $region133: #{_lambda_.1} parent=0 // loop_pre_header
    _
  $region134: #{_lambda_.1} parent=0 // loop_header
    %s2857 = sphi 5, %s2861
    %p2858 = scmp.ge.s32.totalorder %s2857, 47
  $region135: #{_lambda_.1} parent=0 // loop_header_branch
    %2860 = sbr.rel (%p2858) target = $region139
  $region136: #{_lambda_.1} parent=0 // loop_body
    %s2862 = smul.u32 %s2857, 56
    %s2863 = scalar_lea.vmem [#allocation4], %s2862
    %v2864 = vld [vmem:[%s2863 + $0x5] sm:$0xff]
    %v2865 = vld [vmem:[%s2863 + $0xd] sm:$0xff]
    %v2866 = vld [vmem:[%s2863 + $0x15] sm:$0xff]
    %v2867 = vld [vmem:[%s2863 + $0x1d] sm:$0xff]
    %v2868 = vperm.slane %v2850, 0
    %v2869 = vmul.f32 %v2864, %v2868
    %v2870 = vmul.f32 %v2865, %v2868
    %v2871 = vmul.f32 %v2866, %v2868
    %v2872 = vmul.f32 %v2867, %v2868
    %v2873 = vld [vmem:[%s2863 + $0x6] sm:$0xff]
    %v2874 = vld [vmem:[%s2863 + $0xe] sm:$0xff]
    %v2875 = vld [vmem:[%s2863 + $0x16] sm:$0xff]
    %v2876 = vld [vmem:[%s2863 + $0x1e] sm:$0xff]
    %v2877 = vperm.slane %v2850, 1
    %v2878 = vmul.f32 %v2873, %v2877
    %v2879 = vmul.f32 %v2874, %v2877
    %v2880 = vmul.f32 %v2875, %v2877
    %v2881 = vmul.f32 %v2876, %v2877
    %v2882 = vadd.f32 %v2869, %v2878
    %v2883 = vadd.f32 %v2870, %v2879
    %v2884 = vadd.f32 %v2871, %v2880
    %v2885 = vadd.f32 %v2872, %v2881
    %v2886 = vld [vmem:[%s2863 + $0x7] sm:$0xff]
    %v2887 = vld [vmem:[%s2863 + $0xf] sm:$0xff]
    %v2888 = vld [vmem:[%s2863 + $0x17] sm:$0xff]
    %v2889 = vld [vmem:[%s2863 + $0x1f] sm:$0xff]
    %v2890 = vperm.slane %v2850, 2
    %v2891 = vmul.f32 %v2886, %v2890
    %v2892 = vmul.f32 %v2887, %v2890
    %v2893 = vmul.f32 %v2888, %v2890
    %v2894 = vmul.f32 %v2889, %v2890
    %v2895 = vadd.f32 %v2882, %v2891
    %v2896 = vadd.f32 %v2883, %v2892
    %v2897 = vadd.f32 %v2884, %v2893
    %v2898 = vadd.f32 %v2885, %v2894
    %v2899 = vld [vmem:[%s2863 + $0x8] sm:$0xff]
    %v2900 = vld [vmem:[%s2863 + $0x10] sm:$0xff]
    %v2901 = vld [vmem:[%s2863 + $0x18] sm:$0xff]
    %v2902 = vld [vmem:[%s2863 + $0x20] sm:$0xff]
    %v2903 = vperm.slane %v2850, 3
    %v2904 = vmul.f32 %v2899, %v2903
    %v2905 = vmul.f32 %v2900, %v2903
    %v2906 = vmul.f32 %v2901, %v2903
    %v2907 = vmul.f32 %v2902, %v2903
    %v2908 = vadd.f32 %v2895, %v2904
    %v2909 = vadd.f32 %v2896, %v2905
    %v2910 = vadd.f32 %v2897, %v2906
    %v2911 = vadd.f32 %v2898, %v2907
    %v2912 = vld [vmem:[%s2863 + $0x9] sm:$0xff]
    %v2913 = vld [vmem:[%s2863 + $0x11] sm:$0xff]
    %v2914 = vld [vmem:[%s2863 + $0x19] sm:$0xff]
    %v2915 = vld [vmem:[%s2863 + $0x21] sm:$0xff]
    %v2916 = vperm.slane %v2850, 4
    %v2917 = vmul.f32 %v2912, %v2916
    %v2918 = vmul.f32 %v2913, %v2916
    %v2919 = vmul.f32 %v2914, %v2916
    %v2920 = vmul.f32 %v2915, %v2916
    %v2921 = vadd.f32 %v2908, %v2917
    %v2922 = vadd.f32 %v2909, %v2918
    %v2923 = vadd.f32 %v2910, %v2919
    %v2924 = vadd.f32 %v2911, %v2920
    %v2925 = vld [vmem:[%s2863 + $0xa] sm:$0xff]
    %v2926 = vld [vmem:[%s2863 + $0x12] sm:$0xff]
    %v2927 = vld [vmem:[%s2863 + $0x1a] sm:$0xff]
    %v2928 = vld [vmem:[%s2863 + $0x22] sm:$0xff]
    %v2929 = vperm.slane %v2850, 5
    %v2930 = vmul.f32 %v2925, %v2929
    %v2931 = vmul.f32 %v2926, %v2929
    %v2932 = vmul.f32 %v2927, %v2929
    %v2933 = vmul.f32 %v2928, %v2929
    %v2934 = vadd.f32 %v2921, %v2930
    %v2935 = vadd.f32 %v2922, %v2931
    %v2936 = vadd.f32 %v2923, %v2932
    %v2937 = vadd.f32 %v2924, %v2933
    %v2938 = vld [vmem:[%s2863 + $0xb] sm:$0xff]
    %v2939 = vld [vmem:[%s2863 + $0x13] sm:$0xff]
    %v2940 = vld [vmem:[%s2863 + $0x1b] sm:$0xff]
    %v2941 = vld [vmem:[%s2863 + $0x23] sm:$0xff]
    %v2942 = vperm.slane %v2850, 6
    %v2943 = vmul.f32 %v2938, %v2942
    %v2944 = vmul.f32 %v2939, %v2942
    %v2945 = vmul.f32 %v2940, %v2942
    %v2946 = vmul.f32 %v2941, %v2942
    %v2947 = vadd.f32 %v2934, %v2943
    %v2948 = vadd.f32 %v2935, %v2944
    %v2949 = vadd.f32 %v2936, %v2945
    %v2950 = vadd.f32 %v2937, %v2946
    %v2951 = vld [vmem:[%s2863 + $0xc] sm:$0xff]
    %v2952 = vld [vmem:[%s2863 + $0x14] sm:$0xff]
    %v2953 = vld [vmem:[%s2863 + $0x1c] sm:$0xff]
    %v2954 = vld [vmem:[%s2863 + $0x24] sm:$0xff]
    %v2955 = vperm.slane %v2850, 7
    %v2956 = vmul.f32 %v2951, %v2955
    %v2957 = vmul.f32 %v2952, %v2955
    %v2958 = vmul.f32 %v2953, %v2955
    %v2959 = vmul.f32 %v2954, %v2955
    %v2960 = vadd.f32 %v2947, %v2956
    %v2961 = vadd.f32 %v2948, %v2957
    %v2962 = vadd.f32 %v2949, %v2958
    %v2963 = vadd.f32 %v2950, %v2959
    %v2964 = vld [vmem:[%s2863 + $0x25] sm:$0xff]
    %v2965 = vperm.slane %v2851, 0
    %v2966 = vmul.f32 %v2865, %v2965
    %v2967 = vmul.f32 %v2866, %v2965
    %v2968 = vmul.f32 %v2867, %v2965
    %v2969 = vmul.f32 %v2964, %v2965
    %v2970 = vadd.f32 %v2960, %v2966
    %v2971 = vadd.f32 %v2961, %v2967
    %v2972 = vadd.f32 %v2962, %v2968
    %v2973 = vadd.f32 %v2963, %v2969
    %v2974 = vld [vmem:[%s2863 + $0x26] sm:$0xff]
    %v2975 = vperm.slane %v2851, 1
    %v2976 = vmul.f32 %v2874, %v2975
    %v2977 = vmul.f32 %v2875, %v2975
    %v2978 = vmul.f32 %v2876, %v2975
    %v2979 = vmul.f32 %v2974, %v2975
    %v2980 = vadd.f32 %v2970, %v2976
    %v2981 = vadd.f32 %v2971, %v2977
    %v2982 = vadd.f32 %v2972, %v2978
    %v2983 = vadd.f32 %v2973, %v2979
    %v2984 = vld [vmem:[%s2863 + $0x27] sm:$0xff]
    %v2985 = vperm.slane %v2851, 2
    %v2986 = vmul.f32 %v2887, %v2985
    %v2987 = vmul.f32 %v2888, %v2985
    %v2988 = vmul.f32 %v2889, %v2985
    %v2989 = vmul.f32 %v2984, %v2985
    %v2990 = vadd.f32 %v2980, %v2986
    %v2991 = vadd.f32 %v2981, %v2987
    %v2992 = vadd.f32 %v2982, %v2988
    %v2993 = vadd.f32 %v2983, %v2989
    %s2994 = sadd.s32 %s1696, %s2857
    %p2995 = scmp.ge.s32.totalorder %s2994, 0
    %p2996 = scmp.lt.s32.totalorder %s2994, 32
    %p2997 = pnand %p2995, %p2996
    %p2998 = pneg %p2997
    %v3000 = vperm.slane %v2852, 0
    %v3002 = vadd.f32 %v2990, %v3000
    %v3003 = vadd.f32 %v2991, %v3000
    %v3004 = vadd.f32 %v2992, %v3000
    %v3005 = vadd.f32 %v2993, %v3000
    %s3006 = scalar_select %p2998, 1, 0
    %v3007 = vstv %s3006
    %vm3008 = vcmp.eq.s32.totalorder %v3007, 1
    %v3009 = vsel %vm3008, %v3002, 0.0
    %v3010 = vsel %vm3008, %v3003, 0.0
    %v3011 = vsel %vm3008, %v3004, 0.0
    %v3012 = vsel %vm3008, %v3005, 0.0
    %s3013 = smul.u32 %s2857, 32
    %s3014 = scalar_lea.vmem [#allocation5], %s3013
    %3015 = vst [vmem:[%s3014] sm:$0xff] %v3009
    %3016 = vst [vmem:[%s3014 + $0x8] sm:$0xff] %v3010
    %3017 = vst [vmem:[%s3014 + $0x10] sm:$0xff] %v3011
    %3018 = vst [vmem:[%s3014 + $0x18] sm:$0xff] %v3012
  $region137: #{_lambda_.1} parent=0 // loop_footer
    %s2861 = sadd.s32 1, %s2857
  $region138: #{_lambda_.1} parent=0 // loop_footer_branch
    %2856 = sbr.rel target = $region134
  $region139: #{_lambda_.1} parent=0 // loop_exit
    _
  loop: start=0, step=1, limit=32
  $region140: #{_lambda_.1} parent=0 // loop_pre_header
    _
  $region141: #{_lambda_.1} parent=0 // loop_header
    %s3020 = sphi 0, %s3024
    %p3021 = scmp.ge.s32.totalorder %s3020, 32
  $region142: #{_lambda_.1} parent=0 // loop_header_branch
    %3023 = sbr.rel (%p3021) target = $region146
  $region143: #{_lambda_.1} parent=0 // loop_body
    %s3025 = sadd.s32 %s3020, 5
    %s3026 = smul.u32 %s3025, 32
    %s3027 = scalar_lea.vmem [#allocation5], %s3026
    %v3028 = vld [vmem:[%s3027] sm:$0xff]
    %v3029 = vld [vmem:[%s3027 + $0x8] sm:$0xff]
    %v3030 = vld [vmem:[%s3027 + $0x10] sm:$0xff]
    %v3031 = vld [vmem:[%s3027 + $0x18] sm:$0xff]
    %v3032 = vperm.slane %v2853, 0
    %v3033 = vmul.f32 %v3028, %v3032
    %v3034 = vmul.f32 %v3029, %v3032
    %v3035 = vmul.f32 %v3030, %v3032
    %v3036 = vmul.f32 %v3031, %v3032
    %s3037 = sadd.s32 %s3020, 6
    %s3038 = smul.u32 %s3037, 32
    %s3039 = scalar_lea.vmem [#allocation5], %s3038
    %v3040 = vld [vmem:[%s3039] sm:$0xff]
    %v3041 = vld [vmem:[%s3039 + $0x8] sm:$0xff]
    %v3042 = vld [vmem:[%s3039 + $0x10] sm:$0xff]
    %v3043 = vld [vmem:[%s3039 + $0x18] sm:$0xff]
    %v3044 = vperm.slane %v2853, 1
    %v3045 = vmul.f32 %v3040, %v3044
    %v3046 = vmul.f32 %v3041, %v3044
    %v3047 = vmul.f32 %v3042, %v3044
    %v3048 = vmul.f32 %v3043, %v3044
    %v3049 = vadd.f32 %v3033, %v3045
    %v3050 = vadd.f32 %v3034, %v3046
    %v3051 = vadd.f32 %v3035, %v3047
    %v3052 = vadd.f32 %v3036, %v3048
    %s3053 = sadd.s32 %s3020, 7
    %s3054 = smul.u32 %s3053, 32
    %s3055 = scalar_lea.vmem [#allocation5], %s3054
    %v3056 = vld [vmem:[%s3055] sm:$0xff]
    %v3057 = vld [vmem:[%s3055 + $0x8] sm:$0xff]
    %v3058 = vld [vmem:[%s3055 + $0x10] sm:$0xff]
    %v3059 = vld [vmem:[%s3055 + $0x18] sm:$0xff]
    %v3060 = vperm.slane %v2853, 2
    %v3061 = vmul.f32 %v3056, %v3060
    %v3062 = vmul.f32 %v3057, %v3060
    %v3063 = vmul.f32 %v3058, %v3060
    %v3064 = vmul.f32 %v3059, %v3060
    %v3065 = vadd.f32 %v3049, %v3061
    %v3066 = vadd.f32 %v3050, %v3062
    %v3067 = vadd.f32 %v3051, %v3063
    %v3068 = vadd.f32 %v3052, %v3064
    %s3069 = sadd.s32 %s3020, 8
    %s3070 = smul.u32 %s3069, 32
    %s3071 = scalar_lea.vmem [#allocation5], %s3070
    %v3072 = vld [vmem:[%s3071] sm:$0xff]
    %v3073 = vld [vmem:[%s3071 + $0x8] sm:$0xff]
    %v3074 = vld [vmem:[%s3071 + $0x10] sm:$0xff]
    %v3075 = vld [vmem:[%s3071 + $0x18] sm:$0xff]
    %v3076 = vperm.slane %v2853, 3
    %v3077 = vmul.f32 %v3072, %v3076
    %v3078 = vmul.f32 %v3073, %v3076
    %v3079 = vmul.f32 %v3074, %v3076
    %v3080 = vmul.f32 %v3075, %v3076
    %v3081 = vadd.f32 %v3065, %v3077
    %v3082 = vadd.f32 %v3066, %v3078
    %v3083 = vadd.f32 %v3067, %v3079
    %v3084 = vadd.f32 %v3068, %v3080
    %s3085 = sadd.s32 %s3020, 9
    %s3086 = smul.u32 %s3085, 32
    %s3087 = scalar_lea.vmem [#allocation5], %s3086
    %v3088 = vld [vmem:[%s3087] sm:$0xff]
    %v3089 = vld [vmem:[%s3087 + $0x8] sm:$0xff]
    %v3090 = vld [vmem:[%s3087 + $0x10] sm:$0xff]
    %v3091 = vld [vmem:[%s3087 + $0x18] sm:$0xff]
    %v3092 = vperm.slane %v2853, 4
    %v3093 = vmul.f32 %v3088, %v3092
    %v3094 = vmul.f32 %v3089, %v3092
    %v3095 = vmul.f32 %v3090, %v3092
    %v3096 = vmul.f32 %v3091, %v3092
    %v3097 = vadd.f32 %v3081, %v3093
    %v3098 = vadd.f32 %v3082, %v3094
    %v3099 = vadd.f32 %v3083, %v3095
    %v3100 = vadd.f32 %v3084, %v3096
    %s3101 = sadd.s32 %s3020, 10
    %s3102 = smul.u32 %s3101, 32
    %s3103 = scalar_lea.vmem [#allocation5], %s3102
    %v3104 = vld [vmem:[%s3103] sm:$0xff]
    %v3105 = vld [vmem:[%s3103 + $0x8] sm:$0xff]
    %v3106 = vld [vmem:[%s3103 + $0x10] sm:$0xff]
    %v3107 = vld [vmem:[%s3103 + $0x18] sm:$0xff]
    %v3108 = vperm.slane %v2853, 5
    %v3109 = vmul.f32 %v3104, %v3108
    %v3110 = vmul.f32 %v3105, %v3108
    %v3111 = vmul.f32 %v3106, %v3108
    %v3112 = vmul.f32 %v3107, %v3108
    %v3113 = vadd.f32 %v3097, %v3109
    %v3114 = vadd.f32 %v3098, %v3110
    %v3115 = vadd.f32 %v3099, %v3111
    %v3116 = vadd.f32 %v3100, %v3112
    %s3117 = sadd.s32 %s3020, 11
    %s3118 = smul.u32 %s3117, 32
    %s3119 = scalar_lea.vmem [#allocation5], %s3118
    %v3120 = vld [vmem:[%s3119] sm:$0xff]
    %v3121 = vld [vmem:[%s3119 + $0x8] sm:$0xff]
    %v3122 = vld [vmem:[%s3119 + $0x10] sm:$0xff]
    %v3123 = vld [vmem:[%s3119 + $0x18] sm:$0xff]
    %v3124 = vperm.slane %v2853, 6
    %v3125 = vmul.f32 %v3120, %v3124
    %v3126 = vmul.f32 %v3121, %v3124
    %v3127 = vmul.f32 %v3122, %v3124
    %v3128 = vmul.f32 %v3123, %v3124
    %v3129 = vadd.f32 %v3113, %v3125
    %v3130 = vadd.f32 %v3114, %v3126
    %v3131 = vadd.f32 %v3115, %v3127
    %v3132 = vadd.f32 %v3116, %v3128
    %s3133 = sadd.s32 %s3020, 12
    %s3134 = smul.u32 %s3133, 32
    %s3135 = scalar_lea.vmem [#allocation5], %s3134
    %v3136 = vld [vmem:[%s3135] sm:$0xff]
    %v3137 = vld [vmem:[%s3135 + $0x8] sm:$0xff]
    %v3138 = vld [vmem:[%s3135 + $0x10] sm:$0xff]
    %v3139 = vld [vmem:[%s3135 + $0x18] sm:$0xff]
    %v3140 = vperm.slane %v2853, 7
    %v3141 = vmul.f32 %v3136, %v3140
    %v3142 = vmul.f32 %v3137, %v3140
    %v3143 = vmul.f32 %v3138, %v3140
    %v3144 = vmul.f32 %v3139, %v3140
    %v3145 = vadd.f32 %v3129, %v3141
    %v3146 = vadd.f32 %v3130, %v3142
    %v3147 = vadd.f32 %v3131, %v3143
    %v3148 = vadd.f32 %v3132, %v3144
    %s3149 = sadd.s32 %s3020, 13
    %s3150 = smul.u32 %s3149, 32
    %s3151 = scalar_lea.vmem [#allocation5], %s3150
    %v3152 = vld [vmem:[%s3151] sm:$0xff]
    %v3153 = vld [vmem:[%s3151 + $0x8] sm:$0xff]
    %v3154 = vld [vmem:[%s3151 + $0x10] sm:$0xff]
    %v3155 = vld [vmem:[%s3151 + $0x18] sm:$0xff]
    %v3156 = vperm.slane %v2854, 0
    %v3157 = vmul.f32 %v3152, %v3156
    %v3158 = vmul.f32 %v3153, %v3156
    %v3159 = vmul.f32 %v3154, %v3156
    %v3160 = vmul.f32 %v3155, %v3156
    %v3161 = vadd.f32 %v3145, %v3157
    %v3162 = vadd.f32 %v3146, %v3158
    %v3163 = vadd.f32 %v3147, %v3159
    %v3164 = vadd.f32 %v3148, %v3160
    %s3165 = sadd.s32 %s3020, 14
    %s3166 = smul.u32 %s3165, 32
    %s3167 = scalar_lea.vmem [#allocation5], %s3166
    %v3168 = vld [vmem:[%s3167] sm:$0xff]
    %v3169 = vld [vmem:[%s3167 + $0x8] sm:$0xff]
    %v3170 = vld [vmem:[%s3167 + $0x10] sm:$0xff]
    %v3171 = vld [vmem:[%s3167 + $0x18] sm:$0xff]
    %v3172 = vperm.slane %v2854, 1
    %v3173 = vmul.f32 %v3168, %v3172
    %v3174 = vmul.f32 %v3169, %v3172
    %v3175 = vmul.f32 %v3170, %v3172
    %v3176 = vmul.f32 %v3171, %v3172
    %v3177 = vadd.f32 %v3161, %v3173
    %v3178 = vadd.f32 %v3162, %v3174
    %v3179 = vadd.f32 %v3163, %v3175
    %v3180 = vadd.f32 %v3164, %v3176
    %s3181 = sadd.s32 %s3020, 15
    %s3182 = smul.u32 %s3181, 32
    %s3183 = scalar_lea.vmem [#allocation5], %s3182
    %v3184 = vld [vmem:[%s3183] sm:$0xff]
    %v3185 = vld [vmem:[%s3183 + $0x8] sm:$0xff]
    %v3186 = vld [vmem:[%s3183 + $0x10] sm:$0xff]
    %v3187 = vld [vmem:[%s3183 + $0x18] sm:$0xff]
    %v3188 = vperm.slane %v2854, 2
    %v3189 = vmul.f32 %v3184, %v3188
    %v3190 = vmul.f32 %v3185, %v3188
    %v3191 = vmul.f32 %v3186, %v3188
    %v3192 = vmul.f32 %v3187, %v3188
    %v3193 = vadd.f32 %v3177, %v3189
    %v3194 = vadd.f32 %v3178, %v3190
    %v3195 = vadd.f32 %v3179, %v3191
    %v3196 = vadd.f32 %v3180, %v3192
    %s3197 = smul.u32 %s3020, 32
    %s3198 = scalar_lea.vmem [#allocation6], %s3197
    %v3199 = vld [vmem:[%s3198] sm:$0xff]
    %v3200 = vld [vmem:[%s3198 + $0x8] sm:$0xff]
    %v3201 = vld [vmem:[%s3198 + $0x10] sm:$0xff]
    %v3202 = vld [vmem:[%s3198 + $0x18] sm:$0xff]
    %v3203 = vadd.f32 %v3199, %v3193
    %v3204 = vadd.f32 %v3200, %v3194
    %v3205 = vadd.f32 %v3201, %v3195
    %v3206 = vadd.f32 %v3202, %v3196
    %v3208 = vperm.slane %v2855, 0
    %v3210 = vadd.f32 %v3203, %v3208
    %v3211 = vadd.f32 %v3204, %v3208
    %v3212 = vadd.f32 %v3205, %v3208
    %v3213 = vadd.f32 %v3206, %v3208
    %3214 = vst [vmem:[%s3198] sm:$0xff] %v3210
    %3215 = vst [vmem:[%s3198 + $0x8] sm:$0xff] %v3211
    %3216 = vst [vmem:[%s3198 + $0x10] sm:$0xff] %v3212
    %3217 = vst [vmem:[%s3198 + $0x18] sm:$0xff] %v3213
  $region144: #{_lambda_.1} parent=0 // loop_footer
    %s3024 = sadd.s32 1, %s3020
  $region145: #{_lambda_.1} parent=0 // loop_footer_branch
    %3019 = sbr.rel target = $region141
  $region146: #{_lambda_.1} parent=0 // loop_exit
    _
  %v3218 = vld [vmem:[%s11] sm:$0xff]
  %v3219 = vld [vmem:[%s11 + $0x8] sm:$0xff]
  %v3220 = vld [vmem:[%s11 + $0x10] sm:$0x1f]
  %v3221 = vld [vmem:[%s12] sm:$0x1]
  %v3222 = vld [vmem:[%s13] sm:$0xff]
  %v3223 = vld [vmem:[%s13 + $0x8] sm:$0xff]
  %v3224 = vld [vmem:[%s13 + $0x10] sm:$0x1f]
  %v3225 = vld [vmem:[%s14] sm:$0x1]
  loop: start=0, step=1, limit=52
  $region147: #{_lambda_.1} parent=0 // loop_pre_header
    _
  $region148: #{_lambda_.1} parent=0 // loop_header
    %s3227 = sphi 0, %s3231
    %p3228 = scmp.ge.s32.totalorder %s3227, 52
  $region149: #{_lambda_.1} parent=0 // loop_header_branch
    %3230 = sbr.rel (%p3228) target = $region153
  $region150: #{_lambda_.1} parent=0 // loop_body
    %s3232 = smul.u32 %s3227, 56
    %s3233 = scalar_lea.vmem [#allocation4], %s3232
    %v3234 = vld [vmem:[%s3233] sm:$0xff]
    %v3235 = vld [vmem:[%s3233 + $0x8] sm:$0xff]
    %v3236 = vld [vmem:[%s3233 + $0x10] sm:$0xff]
    %v3237 = vld [vmem:[%s3233 + $0x18] sm:$0xff]
    %v3238 = vperm.slane %v3218, 0
    %v3239 = vmul.f32 %v3234, %v3238
    %v3240 = vmul.f32 %v3235, %v3238
    %v3241 = vmul.f32 %v3236, %v3238
    %v3242 = vmul.f32 %v3237, %v3238
    %v3243 = vld [vmem:[%s3233 + $0x1] sm:$0xff]
    %v3244 = vld [vmem:[%s3233 + $0x9] sm:$0xff]
    %v3245 = vld [vmem:[%s3233 + $0x11] sm:$0xff]
    %v3246 = vld [vmem:[%s3233 + $0x19] sm:$0xff]
    %v3247 = vperm.slane %v3218, 1
    %v3248 = vmul.f32 %v3243, %v3247
    %v3249 = vmul.f32 %v3244, %v3247
    %v3250 = vmul.f32 %v3245, %v3247
    %v3251 = vmul.f32 %v3246, %v3247
    %v3252 = vadd.f32 %v3239, %v3248
    %v3253 = vadd.f32 %v3240, %v3249
    %v3254 = vadd.f32 %v3241, %v3250
    %v3255 = vadd.f32 %v3242, %v3251
    %v3256 = vld [vmem:[%s3233 + $0x2] sm:$0xff]
    %v3257 = vld [vmem:[%s3233 + $0xa] sm:$0xff]
    %v3258 = vld [vmem:[%s3233 + $0x12] sm:$0xff]
    %v3259 = vld [vmem:[%s3233 + $0x1a] sm:$0xff]
    %v3260 = vperm.slane %v3218, 2
    %v3261 = vmul.f32 %v3256, %v3260
    %v3262 = vmul.f32 %v3257, %v3260
    %v3263 = vmul.f32 %v3258, %v3260
    %v3264 = vmul.f32 %v3259, %v3260
    %v3265 = vadd.f32 %v3252, %v3261
    %v3266 = vadd.f32 %v3253, %v3262
    %v3267 = vadd.f32 %v3254, %v3263
    %v3268 = vadd.f32 %v3255, %v3264
    %v3269 = vld [vmem:[%s3233 + $0x3] sm:$0xff]
    %v3270 = vld [vmem:[%s3233 + $0xb] sm:$0xff]
    %v3271 = vld [vmem:[%s3233 + $0x13] sm:$0xff]
    %v3272 = vld [vmem:[%s3233 + $0x1b] sm:$0xff]
    %v3273 = vperm.slane %v3218, 3
    %v3274 = vmul.f32 %v3269, %v3273
    %v3275 = vmul.f32 %v3270, %v3273
    %v3276 = vmul.f32 %v3271, %v3273
    %v3277 = vmul.f32 %v3272, %v3273
    %v3278 = vadd.f32 %v3265, %v3274
    %v3279 = vadd.f32 %v3266, %v3275
    %v3280 = vadd.f32 %v3267, %v3276
    %v3281 = vadd.f32 %v3268, %v3277
    %v3282 = vld [vmem:[%s3233 + $0x4] sm:$0xff]
    %v3283 = vld [vmem:[%s3233 + $0xc] sm:$0xff]
    %v3284 = vld [vmem:[%s3233 + $0x14] sm:$0xff]
    %v3285 = vld [vmem:[%s3233 + $0x1c] sm:$0xff]
    %v3286 = vperm.slane %v3218, 4
    %v3287 = vmul.f32 %v3282, %v3286
    %v3288 = vmul.f32 %v3283, %v3286
    %v3289 = vmul.f32 %v3284, %v3286
    %v3290 = vmul.f32 %v3285, %v3286
    %v3291 = vadd.f32 %v3278, %v3287
    %v3292 = vadd.f32 %v3279, %v3288
    %v3293 = vadd.f32 %v3280, %v3289
    %v3294 = vadd.f32 %v3281, %v3290
    %v3295 = vld [vmem:[%s3233 + $0x5] sm:$0xff]
    %v3296 = vld [vmem:[%s3233 + $0xd] sm:$0xff]
    %v3297 = vld [vmem:[%s3233 + $0x15] sm:$0xff]
    %v3298 = vld [vmem:[%s3233 + $0x1d] sm:$0xff]
    %v3299 = vperm.slane %v3218, 5
    %v3300 = vmul.f32 %v3295, %v3299
    %v3301 = vmul.f32 %v3296, %v3299
    %v3302 = vmul.f32 %v3297, %v3299
    %v3303 = vmul.f32 %v3298, %v3299
    %v3304 = vadd.f32 %v3291, %v3300
    %v3305 = vadd.f32 %v3292, %v3301
    %v3306 = vadd.f32 %v3293, %v3302
    %v3307 = vadd.f32 %v3294, %v3303
    %v3308 = vld [vmem:[%s3233 + $0x6] sm:$0xff]
    %v3309 = vld [vmem:[%s3233 + $0xe] sm:$0xff]
    %v3310 = vld [vmem:[%s3233 + $0x16] sm:$0xff]
    %v3311 = vld [vmem:[%s3233 + $0x1e] sm:$0xff]
    %v3312 = vperm.slane %v3218, 6
    %v3313 = vmul.f32 %v3308, %v3312
    %v3314 = vmul.f32 %v3309, %v3312
    %v3315 = vmul.f32 %v3310, %v3312
    %v3316 = vmul.f32 %v3311, %v3312
    %v3317 = vadd.f32 %v3304, %v3313
    %v3318 = vadd.f32 %v3305, %v3314
    %v3319 = vadd.f32 %v3306, %v3315
    %v3320 = vadd.f32 %v3307, %v3316
    %v3321 = vld [vmem:[%s3233 + $0x7] sm:$0xff]
    %v3322 = vld [vmem:[%s3233 + $0xf] sm:$0xff]
    %v3323 = vld [vmem:[%s3233 + $0x17] sm:$0xff]
    %v3324 = vld [vmem:[%s3233 + $0x1f] sm:$0xff]
    %v3325 = vperm.slane %v3218, 7
    %v3326 = vmul.f32 %v3321, %v3325
    %v3327 = vmul.f32 %v3322, %v3325
    %v3328 = vmul.f32 %v3323, %v3325
    %v3329 = vmul.f32 %v3324, %v3325
    %v3330 = vadd.f32 %v3317, %v3326
    %v3331 = vadd.f32 %v3318, %v3327
    %v3332 = vadd.f32 %v3319, %v3328
    %v3333 = vadd.f32 %v3320, %v3329
    %v3334 = vld [vmem:[%s3233 + $0x20] sm:$0xff]
    %v3335 = vperm.slane %v3219, 0
    %v3336 = vmul.f32 %v3235, %v3335
    %v3337 = vmul.f32 %v3236, %v3335
    %v3338 = vmul.f32 %v3237, %v3335
    %v3339 = vmul.f32 %v3334, %v3335
    %v3340 = vadd.f32 %v3330, %v3336
    %v3341 = vadd.f32 %v3331, %v3337
    %v3342 = vadd.f32 %v3332, %v3338
    %v3343 = vadd.f32 %v3333, %v3339
    %v3344 = vld [vmem:[%s3233 + $0x21] sm:$0xff]
    %v3345 = vperm.slane %v3219, 1
    %v3346 = vmul.f32 %v3244, %v3345
    %v3347 = vmul.f32 %v3245, %v3345
    %v3348 = vmul.f32 %v3246, %v3345
    %v3349 = vmul.f32 %v3344, %v3345
    %v3350 = vadd.f32 %v3340, %v3346
    %v3351 = vadd.f32 %v3341, %v3347
    %v3352 = vadd.f32 %v3342, %v3348
    %v3353 = vadd.f32 %v3343, %v3349
    %v3354 = vld [vmem:[%s3233 + $0x22] sm:$0xff]
    %v3355 = vperm.slane %v3219, 2
    %v3356 = vmul.f32 %v3257, %v3355
    %v3357 = vmul.f32 %v3258, %v3355
    %v3358 = vmul.f32 %v3259, %v3355
    %v3359 = vmul.f32 %v3354, %v3355
    %v3360 = vadd.f32 %v3350, %v3356
    %v3361 = vadd.f32 %v3351, %v3357
    %v3362 = vadd.f32 %v3352, %v3358
    %v3363 = vadd.f32 %v3353, %v3359
    %v3364 = vld [vmem:[%s3233 + $0x23] sm:$0xff]
    %v3365 = vperm.slane %v3219, 3
    %v3366 = vmul.f32 %v3270, %v3365
    %v3367 = vmul.f32 %v3271, %v3365
    %v3368 = vmul.f32 %v3272, %v3365
    %v3369 = vmul.f32 %v3364, %v3365
    %v3370 = vadd.f32 %v3360, %v3366
    %v3371 = vadd.f32 %v3361, %v3367
    %v3372 = vadd.f32 %v3362, %v3368
    %v3373 = vadd.f32 %v3363, %v3369
    %v3374 = vld [vmem:[%s3233 + $0x24] sm:$0xff]
    %v3375 = vperm.slane %v3219, 4
    %v3376 = vmul.f32 %v3283, %v3375
    %v3377 = vmul.f32 %v3284, %v3375
    %v3378 = vmul.f32 %v3285, %v3375
    %v3379 = vmul.f32 %v3374, %v3375
    %v3380 = vadd.f32 %v3370, %v3376
    %v3381 = vadd.f32 %v3371, %v3377
    %v3382 = vadd.f32 %v3372, %v3378
    %v3383 = vadd.f32 %v3373, %v3379
    %v3384 = vld [vmem:[%s3233 + $0x25] sm:$0xff]
    %v3385 = vperm.slane %v3219, 5
    %v3386 = vmul.f32 %v3296, %v3385
    %v3387 = vmul.f32 %v3297, %v3385
    %v3388 = vmul.f32 %v3298, %v3385
    %v3389 = vmul.f32 %v3384, %v3385
    %v3390 = vadd.f32 %v3380, %v3386
    %v3391 = vadd.f32 %v3381, %v3387
    %v3392 = vadd.f32 %v3382, %v3388
    %v3393 = vadd.f32 %v3383, %v3389
    %v3394 = vld [vmem:[%s3233 + $0x26] sm:$0xff]
    %v3395 = vperm.slane %v3219, 6
    %v3396 = vmul.f32 %v3309, %v3395
    %v3397 = vmul.f32 %v3310, %v3395
    %v3398 = vmul.f32 %v3311, %v3395
    %v3399 = vmul.f32 %v3394, %v3395
    %v3400 = vadd.f32 %v3390, %v3396
    %v3401 = vadd.f32 %v3391, %v3397
    %v3402 = vadd.f32 %v3392, %v3398
    %v3403 = vadd.f32 %v3393, %v3399
    %v3404 = vld [vmem:[%s3233 + $0x27] sm:$0xff]
    %v3405 = vperm.slane %v3219, 7
    %v3406 = vmul.f32 %v3322, %v3405
    %v3407 = vmul.f32 %v3323, %v3405
    %v3408 = vmul.f32 %v3324, %v3405
    %v3409 = vmul.f32 %v3404, %v3405
    %v3410 = vadd.f32 %v3400, %v3406
    %v3411 = vadd.f32 %v3401, %v3407
    %v3412 = vadd.f32 %v3402, %v3408
    %v3413 = vadd.f32 %v3403, %v3409
    %v3414 = vld [vmem:[%s3233 + $0x28] sm:$0xff]
    %v3415 = vperm.slane %v3220, 0
    %v3416 = vmul.f32 %v3236, %v3415
    %v3417 = vmul.f32 %v3237, %v3415
    %v3418 = vmul.f32 %v3334, %v3415
    %v3419 = vmul.f32 %v3414, %v3415
    %v3420 = vadd.f32 %v3410, %v3416
    %v3421 = vadd.f32 %v3411, %v3417
    %v3422 = vadd.f32 %v3412, %v3418
    %v3423 = vadd.f32 %v3413, %v3419
    %v3424 = vld [vmem:[%s3233 + $0x29] sm:$0xff]
    %v3425 = vperm.slane %v3220, 1
    %v3426 = vmul.f32 %v3245, %v3425
    %v3427 = vmul.f32 %v3246, %v3425
    %v3428 = vmul.f32 %v3344, %v3425
    %v3429 = vmul.f32 %v3424, %v3425
    %v3430 = vadd.f32 %v3420, %v3426
    %v3431 = vadd.f32 %v3421, %v3427
    %v3432 = vadd.f32 %v3422, %v3428
    %v3433 = vadd.f32 %v3423, %v3429
    %v3434 = vld [vmem:[%s3233 + $0x2a] sm:$0xff]
    %v3435 = vperm.slane %v3220, 2
    %v3436 = vmul.f32 %v3258, %v3435
    %v3437 = vmul.f32 %v3259, %v3435
    %v3438 = vmul.f32 %v3354, %v3435
    %v3439 = vmul.f32 %v3434, %v3435
    %v3440 = vadd.f32 %v3430, %v3436
    %v3441 = vadd.f32 %v3431, %v3437
    %v3442 = vadd.f32 %v3432, %v3438
    %v3443 = vadd.f32 %v3433, %v3439
    %v3444 = vld [vmem:[%s3233 + $0x2b] sm:$0xff]
    %v3445 = vperm.slane %v3220, 3
    %v3446 = vmul.f32 %v3271, %v3445
    %v3447 = vmul.f32 %v3272, %v3445
    %v3448 = vmul.f32 %v3364, %v3445
    %v3449 = vmul.f32 %v3444, %v3445
    %v3450 = vadd.f32 %v3440, %v3446
    %v3451 = vadd.f32 %v3441, %v3447
    %v3452 = vadd.f32 %v3442, %v3448
    %v3453 = vadd.f32 %v3443, %v3449
    %v3454 = vld [vmem:[%s3233 + $0x2c] sm:$0xff]
    %v3455 = vperm.slane %v3220, 4
    %v3456 = vmul.f32 %v3284, %v3455
    %v3457 = vmul.f32 %v3285, %v3455
    %v3458 = vmul.f32 %v3374, %v3455
    %v3459 = vmul.f32 %v3454, %v3455
    %v3460 = vadd.f32 %v3450, %v3456
    %v3461 = vadd.f32 %v3451, %v3457
    %v3462 = vadd.f32 %v3452, %v3458
    %v3463 = vadd.f32 %v3453, %v3459
    %s3464 = sadd.s32 %s1696, %s3227
    %p3465 = scmp.ge.s32.totalorder %s3464, 0
    %p3466 = scmp.lt.s32.totalorder %s3464, 32
    %p3467 = pnand %p3465, %p3466
    %p3468 = pneg %p3467
    %v3470 = vperm.slane %v3221, 0
    %v3472 = vadd.f32 %v3460, %v3470
    %v3473 = vadd.f32 %v3461, %v3470
    %v3474 = vadd.f32 %v3462, %v3470
    %v3475 = vadd.f32 %v3463, %v3470
    %s3476 = scalar_select %p3468, 1, 0
    %v3477 = vstv %s3476
    %vm3478 = vcmp.eq.s32.totalorder %v3477, 1
    %v3479 = vsel %vm3478, %v3472, 0.0
    %v3480 = vsel %vm3478, %v3473, 0.0
    %v3481 = vsel %vm3478, %v3474, 0.0
    %v3482 = vsel %vm3478, %v3475, 0.0
    %s3483 = smul.u32 %s3227, 32
    %s3484 = scalar_lea.vmem [#allocation5], %s3483
    %3485 = vst [vmem:[%s3484] sm:$0xff] %v3479
    %3486 = vst [vmem:[%s3484 + $0x8] sm:$0xff] %v3480
    %3487 = vst [vmem:[%s3484 + $0x10] sm:$0xff] %v3481
    %3488 = vst [vmem:[%s3484 + $0x18] sm:$0xff] %v3482
  $region151: #{_lambda_.1} parent=0 // loop_footer
    %s3231 = sadd.s32 1, %s3227
  $region152: #{_lambda_.1} parent=0 // loop_footer_branch
    %3226 = sbr.rel target = $region148
  $region153: #{_lambda_.1} parent=0 // loop_exit
    _
  loop: start=0, step=1, limit=32
  $region154: #{_lambda_.1} parent=0 // loop_pre_header
    _
  $region155: #{_lambda_.1} parent=0 // loop_header
    %s3490 = sphi 0, %s3494
    %p3491 = scmp.ge.s32.totalorder %s3490, 32
  $region156: #{_lambda_.1} parent=0 // loop_header_branch
    %3493 = sbr.rel (%p3491) target = $region160
  $region157: #{_lambda_.1} parent=0 // loop_body
    %s3495 = smul.u32 %s3490, 32
    %s3496 = scalar_lea.vmem [#allocation5], %s3495
    %v3497 = vld [vmem:[%s3496] sm:$0xff]
    %v3498 = vld [vmem:[%s3496 + $0x8] sm:$0xff]
    %v3499 = vld [vmem:[%s3496 + $0x10] sm:$0xff]
    %v3500 = vld [vmem:[%s3496 + $0x18] sm:$0xff]
    %v3501 = vperm.slane %v3222, 0
    %v3502 = vmul.f32 %v3497, %v3501
    %v3503 = vmul.f32 %v3498, %v3501
    %v3504 = vmul.f32 %v3499, %v3501
    %v3505 = vmul.f32 %v3500, %v3501
    %s3506 = sadd.s32 %s3490, 1
    %s3507 = smul.u32 %s3506, 32
    %s3508 = scalar_lea.vmem [#allocation5], %s3507
    %v3509 = vld [vmem:[%s3508] sm:$0xff]
    %v3510 = vld [vmem:[%s3508 + $0x8] sm:$0xff]
    %v3511 = vld [vmem:[%s3508 + $0x10] sm:$0xff]
    %v3512 = vld [vmem:[%s3508 + $0x18] sm:$0xff]
    %v3513 = vperm.slane %v3222, 1
    %v3514 = vmul.f32 %v3509, %v3513
    %v3515 = vmul.f32 %v3510, %v3513
    %v3516 = vmul.f32 %v3511, %v3513
    %v3517 = vmul.f32 %v3512, %v3513
    %v3518 = vadd.f32 %v3502, %v3514
    %v3519 = vadd.f32 %v3503, %v3515
    %v3520 = vadd.f32 %v3504, %v3516
    %v3521 = vadd.f32 %v3505, %v3517
    %s3522 = sadd.s32 %s3490, 2
    %s3523 = smul.u32 %s3522, 32
    %s3524 = scalar_lea.vmem [#allocation5], %s3523
    %v3525 = vld [vmem:[%s3524] sm:$0xff]
    %v3526 = vld [vmem:[%s3524 + $0x8] sm:$0xff]
    %v3527 = vld [vmem:[%s3524 + $0x10] sm:$0xff]
    %v3528 = vld [vmem:[%s3524 + $0x18] sm:$0xff]
    %v3529 = vperm.slane %v3222, 2
    %v3530 = vmul.f32 %v3525, %v3529
    %v3531 = vmul.f32 %v3526, %v3529
    %v3532 = vmul.f32 %v3527, %v3529
    %v3533 = vmul.f32 %v3528, %v3529
    %v3534 = vadd.f32 %v3518, %v3530
    %v3535 = vadd.f32 %v3519, %v3531
    %v3536 = vadd.f32 %v3520, %v3532
    %v3537 = vadd.f32 %v3521, %v3533
    %s3538 = sadd.s32 %s3490, 3
    %s3539 = smul.u32 %s3538, 32
    %s3540 = scalar_lea.vmem [#allocation5], %s3539
    %v3541 = vld [vmem:[%s3540] sm:$0xff]
    %v3542 = vld [vmem:[%s3540 + $0x8] sm:$0xff]
    %v3543 = vld [vmem:[%s3540 + $0x10] sm:$0xff]
    %v3544 = vld [vmem:[%s3540 + $0x18] sm:$0xff]
    %v3545 = vperm.slane %v3222, 3
    %v3546 = vmul.f32 %v3541, %v3545
    %v3547 = vmul.f32 %v3542, %v3545
    %v3548 = vmul.f32 %v3543, %v3545
    %v3549 = vmul.f32 %v3544, %v3545
    %v3550 = vadd.f32 %v3534, %v3546
    %v3551 = vadd.f32 %v3535, %v3547
    %v3552 = vadd.f32 %v3536, %v3548
    %v3553 = vadd.f32 %v3537, %v3549
    %s3554 = sadd.s32 %s3490, 4
    %s3555 = smul.u32 %s3554, 32
    %s3556 = scalar_lea.vmem [#allocation5], %s3555
    %v3557 = vld [vmem:[%s3556] sm:$0xff]
    %v3558 = vld [vmem:[%s3556 + $0x8] sm:$0xff]
    %v3559 = vld [vmem:[%s3556 + $0x10] sm:$0xff]
    %v3560 = vld [vmem:[%s3556 + $0x18] sm:$0xff]
    %v3561 = vperm.slane %v3222, 4
    %v3562 = vmul.f32 %v3557, %v3561
    %v3563 = vmul.f32 %v3558, %v3561
    %v3564 = vmul.f32 %v3559, %v3561
    %v3565 = vmul.f32 %v3560, %v3561
    %v3566 = vadd.f32 %v3550, %v3562
    %v3567 = vadd.f32 %v3551, %v3563
    %v3568 = vadd.f32 %v3552, %v3564
    %v3569 = vadd.f32 %v3553, %v3565
    %s3570 = sadd.s32 %s3490, 5
    %s3571 = smul.u32 %s3570, 32
    %s3572 = scalar_lea.vmem [#allocation5], %s3571
    %v3573 = vld [vmem:[%s3572] sm:$0xff]
    %v3574 = vld [vmem:[%s3572 + $0x8] sm:$0xff]
    %v3575 = vld [vmem:[%s3572 + $0x10] sm:$0xff]
    %v3576 = vld [vmem:[%s3572 + $0x18] sm:$0xff]
    %v3577 = vperm.slane %v3222, 5
    %v3578 = vmul.f32 %v3573, %v3577
    %v3579 = vmul.f32 %v3574, %v3577
    %v3580 = vmul.f32 %v3575, %v3577
    %v3581 = vmul.f32 %v3576, %v3577
    %v3582 = vadd.f32 %v3566, %v3578
    %v3583 = vadd.f32 %v3567, %v3579
    %v3584 = vadd.f32 %v3568, %v3580
    %v3585 = vadd.f32 %v3569, %v3581
    %s3586 = sadd.s32 %s3490, 6
    %s3587 = smul.u32 %s3586, 32
    %s3588 = scalar_lea.vmem [#allocation5], %s3587
    %v3589 = vld [vmem:[%s3588] sm:$0xff]
    %v3590 = vld [vmem:[%s3588 + $0x8] sm:$0xff]
    %v3591 = vld [vmem:[%s3588 + $0x10] sm:$0xff]
    %v3592 = vld [vmem:[%s3588 + $0x18] sm:$0xff]
    %v3593 = vperm.slane %v3222, 6
    %v3594 = vmul.f32 %v3589, %v3593
    %v3595 = vmul.f32 %v3590, %v3593
    %v3596 = vmul.f32 %v3591, %v3593
    %v3597 = vmul.f32 %v3592, %v3593
    %v3598 = vadd.f32 %v3582, %v3594
    %v3599 = vadd.f32 %v3583, %v3595
    %v3600 = vadd.f32 %v3584, %v3596
    %v3601 = vadd.f32 %v3585, %v3597
    %s3602 = sadd.s32 %s3490, 7
    %s3603 = smul.u32 %s3602, 32
    %s3604 = scalar_lea.vmem [#allocation5], %s3603
    %v3605 = vld [vmem:[%s3604] sm:$0xff]
    %v3606 = vld [vmem:[%s3604 + $0x8] sm:$0xff]
    %v3607 = vld [vmem:[%s3604 + $0x10] sm:$0xff]
    %v3608 = vld [vmem:[%s3604 + $0x18] sm:$0xff]
    %v3609 = vperm.slane %v3222, 7
    %v3610 = vmul.f32 %v3605, %v3609
    %v3611 = vmul.f32 %v3606, %v3609
    %v3612 = vmul.f32 %v3607, %v3609
    %v3613 = vmul.f32 %v3608, %v3609
    %v3614 = vadd.f32 %v3598, %v3610
    %v3615 = vadd.f32 %v3599, %v3611
    %v3616 = vadd.f32 %v3600, %v3612
    %v3617 = vadd.f32 %v3601, %v3613
    %s3618 = sadd.s32 %s3490, 8
    %s3619 = smul.u32 %s3618, 32
    %s3620 = scalar_lea.vmem [#allocation5], %s3619
    %v3621 = vld [vmem:[%s3620] sm:$0xff]
    %v3622 = vld [vmem:[%s3620 + $0x8] sm:$0xff]
    %v3623 = vld [vmem:[%s3620 + $0x10] sm:$0xff]
    %v3624 = vld [vmem:[%s3620 + $0x18] sm:$0xff]
    %v3625 = vperm.slane %v3223, 0
    %v3626 = vmul.f32 %v3621, %v3625
    %v3627 = vmul.f32 %v3622, %v3625
    %v3628 = vmul.f32 %v3623, %v3625
    %v3629 = vmul.f32 %v3624, %v3625
    %v3630 = vadd.f32 %v3614, %v3626
    %v3631 = vadd.f32 %v3615, %v3627
    %v3632 = vadd.f32 %v3616, %v3628
    %v3633 = vadd.f32 %v3617, %v3629
    %s3634 = sadd.s32 %s3490, 9
    %s3635 = smul.u32 %s3634, 32
    %s3636 = scalar_lea.vmem [#allocation5], %s3635
    %v3637 = vld [vmem:[%s3636] sm:$0xff]
    %v3638 = vld [vmem:[%s3636 + $0x8] sm:$0xff]
    %v3639 = vld [vmem:[%s3636 + $0x10] sm:$0xff]
    %v3640 = vld [vmem:[%s3636 + $0x18] sm:$0xff]
    %v3641 = vperm.slane %v3223, 1
    %v3642 = vmul.f32 %v3637, %v3641
    %v3643 = vmul.f32 %v3638, %v3641
    %v3644 = vmul.f32 %v3639, %v3641
    %v3645 = vmul.f32 %v3640, %v3641
    %v3646 = vadd.f32 %v3630, %v3642
    %v3647 = vadd.f32 %v3631, %v3643
    %v3648 = vadd.f32 %v3632, %v3644
    %v3649 = vadd.f32 %v3633, %v3645
    %s3650 = sadd.s32 %s3490, 10
    %s3651 = smul.u32 %s3650, 32
    %s3652 = scalar_lea.vmem [#allocation5], %s3651
    %v3653 = vld [vmem:[%s3652] sm:$0xff]
    %v3654 = vld [vmem:[%s3652 + $0x8] sm:$0xff]
    %v3655 = vld [vmem:[%s3652 + $0x10] sm:$0xff]
    %v3656 = vld [vmem:[%s3652 + $0x18] sm:$0xff]
    %v3657 = vperm.slane %v3223, 2
    %v3658 = vmul.f32 %v3653, %v3657
    %v3659 = vmul.f32 %v3654, %v3657
    %v3660 = vmul.f32 %v3655, %v3657
    %v3661 = vmul.f32 %v3656, %v3657
    %v3662 = vadd.f32 %v3646, %v3658
    %v3663 = vadd.f32 %v3647, %v3659
    %v3664 = vadd.f32 %v3648, %v3660
    %v3665 = vadd.f32 %v3649, %v3661
    %s3666 = sadd.s32 %s3490, 11
    %s3667 = smul.u32 %s3666, 32
    %s3668 = scalar_lea.vmem [#allocation5], %s3667
    %v3669 = vld [vmem:[%s3668] sm:$0xff]
    %v3670 = vld [vmem:[%s3668 + $0x8] sm:$0xff]
    %v3671 = vld [vmem:[%s3668 + $0x10] sm:$0xff]
    %v3672 = vld [vmem:[%s3668 + $0x18] sm:$0xff]
    %v3673 = vperm.slane %v3223, 3
    %v3674 = vmul.f32 %v3669, %v3673
    %v3675 = vmul.f32 %v3670, %v3673
    %v3676 = vmul.f32 %v3671, %v3673
    %v3677 = vmul.f32 %v3672, %v3673
    %v3678 = vadd.f32 %v3662, %v3674
    %v3679 = vadd.f32 %v3663, %v3675
    %v3680 = vadd.f32 %v3664, %v3676
    %v3681 = vadd.f32 %v3665, %v3677
    %s3682 = sadd.s32 %s3490, 12
    %s3683 = smul.u32 %s3682, 32
    %s3684 = scalar_lea.vmem [#allocation5], %s3683
    %v3685 = vld [vmem:[%s3684] sm:$0xff]
    %v3686 = vld [vmem:[%s3684 + $0x8] sm:$0xff]
    %v3687 = vld [vmem:[%s3684 + $0x10] sm:$0xff]
    %v3688 = vld [vmem:[%s3684 + $0x18] sm:$0xff]
    %v3689 = vperm.slane %v3223, 4
    %v3690 = vmul.f32 %v3685, %v3689
    %v3691 = vmul.f32 %v3686, %v3689
    %v3692 = vmul.f32 %v3687, %v3689
    %v3693 = vmul.f32 %v3688, %v3689
    %v3694 = vadd.f32 %v3678, %v3690
    %v3695 = vadd.f32 %v3679, %v3691
    %v3696 = vadd.f32 %v3680, %v3692
    %v3697 = vadd.f32 %v3681, %v3693
    %s3698 = sadd.s32 %s3490, 13
    %s3699 = smul.u32 %s3698, 32
    %s3700 = scalar_lea.vmem [#allocation5], %s3699
    %v3701 = vld [vmem:[%s3700] sm:$0xff]
    %v3702 = vld [vmem:[%s3700 + $0x8] sm:$0xff]
    %v3703 = vld [vmem:[%s3700 + $0x10] sm:$0xff]
    %v3704 = vld [vmem:[%s3700 + $0x18] sm:$0xff]
    %v3705 = vperm.slane %v3223, 5
    %v3706 = vmul.f32 %v3701, %v3705
    %v3707 = vmul.f32 %v3702, %v3705
    %v3708 = vmul.f32 %v3703, %v3705
    %v3709 = vmul.f32 %v3704, %v3705
    %v3710 = vadd.f32 %v3694, %v3706
    %v3711 = vadd.f32 %v3695, %v3707
    %v3712 = vadd.f32 %v3696, %v3708
    %v3713 = vadd.f32 %v3697, %v3709
    %s3714 = sadd.s32 %s3490, 14
    %s3715 = smul.u32 %s3714, 32
    %s3716 = scalar_lea.vmem [#allocation5], %s3715
    %v3717 = vld [vmem:[%s3716] sm:$0xff]
    %v3718 = vld [vmem:[%s3716 + $0x8] sm:$0xff]
    %v3719 = vld [vmem:[%s3716 + $0x10] sm:$0xff]
    %v3720 = vld [vmem:[%s3716 + $0x18] sm:$0xff]
    %v3721 = vperm.slane %v3223, 6
    %v3722 = vmul.f32 %v3717, %v3721
    %v3723 = vmul.f32 %v3718, %v3721
    %v3724 = vmul.f32 %v3719, %v3721
    %v3725 = vmul.f32 %v3720, %v3721
    %v3726 = vadd.f32 %v3710, %v3722
    %v3727 = vadd.f32 %v3711, %v3723
    %v3728 = vadd.f32 %v3712, %v3724
    %v3729 = vadd.f32 %v3713, %v3725
    %s3730 = sadd.s32 %s3490, 15
    %s3731 = smul.u32 %s3730, 32
    %s3732 = scalar_lea.vmem [#allocation5], %s3731
    %v3733 = vld [vmem:[%s3732] sm:$0xff]
    %v3734 = vld [vmem:[%s3732 + $0x8] sm:$0xff]
    %v3735 = vld [vmem:[%s3732 + $0x10] sm:$0xff]
    %v3736 = vld [vmem:[%s3732 + $0x18] sm:$0xff]
    %v3737 = vperm.slane %v3223, 7
    %v3738 = vmul.f32 %v3733, %v3737
    %v3739 = vmul.f32 %v3734, %v3737
    %v3740 = vmul.f32 %v3735, %v3737
    %v3741 = vmul.f32 %v3736, %v3737
    %v3742 = vadd.f32 %v3726, %v3738
    %v3743 = vadd.f32 %v3727, %v3739
    %v3744 = vadd.f32 %v3728, %v3740
    %v3745 = vadd.f32 %v3729, %v3741
    %s3746 = sadd.s32 %s3490, 16
    %s3747 = smul.u32 %s3746, 32
    %s3748 = scalar_lea.vmem [#allocation5], %s3747
    %v3749 = vld [vmem:[%s3748] sm:$0xff]
    %v3750 = vld [vmem:[%s3748 + $0x8] sm:$0xff]
    %v3751 = vld [vmem:[%s3748 + $0x10] sm:$0xff]
    %v3752 = vld [vmem:[%s3748 + $0x18] sm:$0xff]
    %v3753 = vperm.slane %v3224, 0
    %v3754 = vmul.f32 %v3749, %v3753
    %v3755 = vmul.f32 %v3750, %v3753
    %v3756 = vmul.f32 %v3751, %v3753
    %v3757 = vmul.f32 %v3752, %v3753
    %v3758 = vadd.f32 %v3742, %v3754
    %v3759 = vadd.f32 %v3743, %v3755
    %v3760 = vadd.f32 %v3744, %v3756
    %v3761 = vadd.f32 %v3745, %v3757
    %s3762 = sadd.s32 %s3490, 17
    %s3763 = smul.u32 %s3762, 32
    %s3764 = scalar_lea.vmem [#allocation5], %s3763
    %v3765 = vld [vmem:[%s3764] sm:$0xff]
    %v3766 = vld [vmem:[%s3764 + $0x8] sm:$0xff]
    %v3767 = vld [vmem:[%s3764 + $0x10] sm:$0xff]
    %v3768 = vld [vmem:[%s3764 + $0x18] sm:$0xff]
    %v3769 = vperm.slane %v3224, 1
    %v3770 = vmul.f32 %v3765, %v3769
    %v3771 = vmul.f32 %v3766, %v3769
    %v3772 = vmul.f32 %v3767, %v3769
    %v3773 = vmul.f32 %v3768, %v3769
    %v3774 = vadd.f32 %v3758, %v3770
    %v3775 = vadd.f32 %v3759, %v3771
    %v3776 = vadd.f32 %v3760, %v3772
    %v3777 = vadd.f32 %v3761, %v3773
    %s3778 = sadd.s32 %s3490, 18
    %s3779 = smul.u32 %s3778, 32
    %s3780 = scalar_lea.vmem [#allocation5], %s3779
    %v3781 = vld [vmem:[%s3780] sm:$0xff]
    %v3782 = vld [vmem:[%s3780 + $0x8] sm:$0xff]
    %v3783 = vld [vmem:[%s3780 + $0x10] sm:$0xff]
    %v3784 = vld [vmem:[%s3780 + $0x18] sm:$0xff]
    %v3785 = vperm.slane %v3224, 2
    %v3786 = vmul.f32 %v3781, %v3785
    %v3787 = vmul.f32 %v3782, %v3785
    %v3788 = vmul.f32 %v3783, %v3785
    %v3789 = vmul.f32 %v3784, %v3785
    %v3790 = vadd.f32 %v3774, %v3786
    %v3791 = vadd.f32 %v3775, %v3787
    %v3792 = vadd.f32 %v3776, %v3788
    %v3793 = vadd.f32 %v3777, %v3789
    %s3794 = sadd.s32 %s3490, 19
    %s3795 = smul.u32 %s3794, 32
    %s3796 = scalar_lea.vmem [#allocation5], %s3795
    %v3797 = vld [vmem:[%s3796] sm:$0xff]
    %v3798 = vld [vmem:[%s3796 + $0x8] sm:$0xff]
    %v3799 = vld [vmem:[%s3796 + $0x10] sm:$0xff]
    %v3800 = vld [vmem:[%s3796 + $0x18] sm:$0xff]
    %v3801 = vperm.slane %v3224, 3
    %v3802 = vmul.f32 %v3797, %v3801
    %v3803 = vmul.f32 %v3798, %v3801
    %v3804 = vmul.f32 %v3799, %v3801
    %v3805 = vmul.f32 %v3800, %v3801
    %v3806 = vadd.f32 %v3790, %v3802
    %v3807 = vadd.f32 %v3791, %v3803
    %v3808 = vadd.f32 %v3792, %v3804
    %v3809 = vadd.f32 %v3793, %v3805
    %s3810 = sadd.s32 %s3490, 20
    %s3811 = smul.u32 %s3810, 32
    %s3812 = scalar_lea.vmem [#allocation5], %s3811
    %v3813 = vld [vmem:[%s3812] sm:$0xff]
    %v3814 = vld [vmem:[%s3812 + $0x8] sm:$0xff]
    %v3815 = vld [vmem:[%s3812 + $0x10] sm:$0xff]
    %v3816 = vld [vmem:[%s3812 + $0x18] sm:$0xff]
    %v3817 = vperm.slane %v3224, 4
    %v3818 = vmul.f32 %v3813, %v3817
    %v3819 = vmul.f32 %v3814, %v3817
    %v3820 = vmul.f32 %v3815, %v3817
    %v3821 = vmul.f32 %v3816, %v3817
    %v3822 = vadd.f32 %v3806, %v3818
    %v3823 = vadd.f32 %v3807, %v3819
    %v3824 = vadd.f32 %v3808, %v3820
    %v3825 = vadd.f32 %v3809, %v3821
    %s3826 = scalar_lea.vmem [#allocation6], %s3495
    %v3827 = vld [vmem:[%s3826] sm:$0xff]
    %v3828 = vld [vmem:[%s3826 + $0x8] sm:$0xff]
    %v3829 = vld [vmem:[%s3826 + $0x10] sm:$0xff]
    %v3830 = vld [vmem:[%s3826 + $0x18] sm:$0xff]
    %v3831 = vadd.f32 %v3827, %v3822
    %v3832 = vadd.f32 %v3828, %v3823
    %v3833 = vadd.f32 %v3829, %v3824
    %v3834 = vadd.f32 %v3830, %v3825
    %v3836 = vperm.slane %v3225, 0
    %v3838 = vadd.f32 %v3831, %v3836
    %v3839 = vadd.f32 %v3832, %v3836
    %v3840 = vadd.f32 %v3833, %v3836
    %v3841 = vadd.f32 %v3834, %v3836
    %3842 = vst [vmem:[%s3826] sm:$0xff] %v3838
    %3843 = vst [vmem:[%s3826 + $0x8] sm:$0xff] %v3839
    %3844 = vst [vmem:[%s3826 + $0x10] sm:$0xff] %v3840
    %3845 = vst [vmem:[%s3826 + $0x18] sm:$0xff] %v3841
  $region158: #{_lambda_.1} parent=0 // loop_footer
    %s3494 = sadd.s32 1, %s3490
  $region159: #{_lambda_.1} parent=0 // loop_footer_branch
    %3489 = sbr.rel target = $region155
  $region160: #{_lambda_.1} parent=0 // loop_exit
    _
  %v3846 = vld [vmem:[#allocation6] sm:$0xff]
  %v3847 = vld [vmem:[#allocation6 + $0x8] sm:$0xff]
  %v3848 = vld [vmem:[#allocation6 + $0x10] sm:$0xff]
  %v3849 = vld [vmem:[#allocation6 + $0x18] sm:$0xff]
  %v3850 = vld [vmem:[#allocation6 + $0x20] sm:$0xff]
  %v3851 = vld [vmem:[#allocation6 + $0x28] sm:$0xff]
  %v3852 = vld [vmem:[#allocation6 + $0x30] sm:$0xff]
  %v3853 = vld [vmem:[#allocation6 + $0x38] sm:$0xff]
  %v3854 = vld [vmem:[#allocation6 + $0x40] sm:$0xff]
  %v3855 = vld [vmem:[#allocation6 + $0x48] sm:$0xff]
  %v3856 = vld [vmem:[#allocation6 + $0x50] sm:$0xff]
  %v3857 = vld [vmem:[#allocation6 + $0x58] sm:$0xff]
  %v3858 = vld [vmem:[#allocation6 + $0x60] sm:$0xff]
  %v3859 = vld [vmem:[#allocation6 + $0x68] sm:$0xff]
  %v3860 = vld [vmem:[#allocation6 + $0x70] sm:$0xff]
  %v3861 = vld [vmem:[#allocation6 + $0x78] sm:$0xff]
  %v3862 = vld [vmem:[#allocation6 + $0x80] sm:$0xff]
  %v3863 = vld [vmem:[#allocation6 + $0x88] sm:$0xff]
  %v3864 = vld [vmem:[#allocation6 + $0x90] sm:$0xff]
  %v3865 = vld [vmem:[#allocation6 + $0x98] sm:$0xff]
  %v3866 = vld [vmem:[#allocation6 + $0xa0] sm:$0xff]
  %v3867 = vld [vmem:[#allocation6 + $0xa8] sm:$0xff]
  %v3868 = vld [vmem:[#allocation6 + $0xb0] sm:$0xff]
  %v3869 = vld [vmem:[#allocation6 + $0xb8] sm:$0xff]
  %v3870 = vld [vmem:[#allocation6 + $0xc0] sm:$0xff]
  %v3871 = vld [vmem:[#allocation6 + $0xc8] sm:$0xff]
  %v3872 = vld [vmem:[#allocation6 + $0xd0] sm:$0xff]
  %v3873 = vld [vmem:[#allocation6 + $0xd8] sm:$0xff]
  %v3874 = vld [vmem:[#allocation6 + $0xe0] sm:$0xff]
  %v3875 = vld [vmem:[#allocation6 + $0xe8] sm:$0xff]
  %v3876 = vld [vmem:[#allocation6 + $0xf0] sm:$0xff]
  %v3877 = vld [vmem:[#allocation6 + $0xf8] sm:$0xff]
  %v3878 = vld [vmem:[#allocation6 + $0x100] sm:$0xff]
  %v3879 = vld [vmem:[#allocation6 + $0x108] sm:$0xff]
  %v3880 = vld [vmem:[#allocation6 + $0x110] sm:$0xff]
  %v3881 = vld [vmem:[#allocation6 + $0x118] sm:$0xff]
  %v3882 = vld [vmem:[#allocation6 + $0x120] sm:$0xff]
  %v3883 = vld [vmem:[#allocation6 + $0x128] sm:$0xff]
  %v3884 = vld [vmem:[#allocation6 + $0x130] sm:$0xff]
  %v3885 = vld [vmem:[#allocation6 + $0x138] sm:$0xff]
  %v3886 = vld [vmem:[#allocation6 + $0x140] sm:$0xff]
  %v3887 = vld [vmem:[#allocation6 + $0x148] sm:$0xff]
  %v3888 = vld [vmem:[#allocation6 + $0x150] sm:$0xff]
  %v3889 = vld [vmem:[#allocation6 + $0x158] sm:$0xff]
  %v3890 = vld [vmem:[#allocation6 + $0x160] sm:$0xff]
  %v3891 = vld [vmem:[#allocation6 + $0x168] sm:$0xff]
  %v3892 = vld [vmem:[#allocation6 + $0x170] sm:$0xff]
  %v3893 = vld [vmem:[#allocation6 + $0x178] sm:$0xff]
  %v3894 = vld [vmem:[#allocation6 + $0x180] sm:$0xff]
  %v3895 = vld [vmem:[#allocation6 + $0x188] sm:$0xff]
  %v3896 = vld [vmem:[#allocation6 + $0x190] sm:$0xff]
  %v3897 = vld [vmem:[#allocation6 + $0x198] sm:$0xff]
  %v3898 = vld [vmem:[#allocation6 + $0x1a0] sm:$0xff]
  %v3899 = vld [vmem:[#allocation6 + $0x1a8] sm:$0xff]
  %v3900 = vld [vmem:[#allocation6 + $0x1b0] sm:$0xff]
  %v3901 = vld [vmem:[#allocation6 + $0x1b8] sm:$0xff]
  %v3902 = vld [vmem:[#allocation6 + $0x1c0] sm:$0xff]
  %v3903 = vld [vmem:[#allocation6 + $0x1c8] sm:$0xff]
  %v3904 = vld [vmem:[#allocation6 + $0x1d0] sm:$0xff]
  %v3905 = vld [vmem:[#allocation6 + $0x1d8] sm:$0xff]
  %v3906 = vld [vmem:[#allocation6 + $0x1e0] sm:$0xff]
  %v3907 = vld [vmem:[#allocation6 + $0x1e8] sm:$0xff]
  %v3908 = vld [vmem:[#allocation6 + $0x1f0] sm:$0xff]
  %v3909 = vld [vmem:[#allocation6 + $0x1f8] sm:$0xff]
  %v3910 = vld [vmem:[#allocation6 + $0x200] sm:$0xff]
  %v3911 = vld [vmem:[#allocation6 + $0x208] sm:$0xff]
  %v3912 = vld [vmem:[#allocation6 + $0x210] sm:$0xff]
  %v3913 = vld [vmem:[#allocation6 + $0x218] sm:$0xff]
  %v3914 = vld [vmem:[#allocation6 + $0x220] sm:$0xff]
  %v3915 = vld [vmem:[#allocation6 + $0x228] sm:$0xff]
  %v3916 = vld [vmem:[#allocation6 + $0x230] sm:$0xff]
  %v3917 = vld [vmem:[#allocation6 + $0x238] sm:$0xff]
  %v3918 = vld [vmem:[#allocation6 + $0x240] sm:$0xff]
  %v3919 = vld [vmem:[#allocation6 + $0x248] sm:$0xff]
  %v3920 = vld [vmem:[#allocation6 + $0x250] sm:$0xff]
  %v3921 = vld [vmem:[#allocation6 + $0x258] sm:$0xff]
  %v3922 = vld [vmem:[#allocation6 + $0x260] sm:$0xff]
  %v3923 = vld [vmem:[#allocation6 + $0x268] sm:$0xff]
  %v3924 = vld [vmem:[#allocation6 + $0x270] sm:$0xff]
  %v3925 = vld [vmem:[#allocation6 + $0x278] sm:$0xff]
  %v3926 = vld [vmem:[#allocation6 + $0x280] sm:$0xff]
  %v3927 = vld [vmem:[#allocation6 + $0x288] sm:$0xff]
  %v3928 = vld [vmem:[#allocation6 + $0x290] sm:$0xff]
  %v3929 = vld [vmem:[#allocation6 + $0x298] sm:$0xff]
  %v3930 = vld [vmem:[#allocation6 + $0x2a0] sm:$0xff]
  %v3931 = vld [vmem:[#allocation6 + $0x2a8] sm:$0xff]
  %v3932 = vld [vmem:[#allocation6 + $0x2b0] sm:$0xff]
  %v3933 = vld [vmem:[#allocation6 + $0x2b8] sm:$0xff]
  %v3934 = vld [vmem:[#allocation6 + $0x2c0] sm:$0xff]
  %v3935 = vld [vmem:[#allocation6 + $0x2c8] sm:$0xff]
  %v3936 = vld [vmem:[#allocation6 + $0x2d0] sm:$0xff]
  %v3937 = vld [vmem:[#allocation6 + $0x2d8] sm:$0xff]
  %v3938 = vld [vmem:[#allocation6 + $0x2e0] sm:$0xff]
  %v3939 = vld [vmem:[#allocation6 + $0x2e8] sm:$0xff]
  %v3940 = vld [vmem:[#allocation6 + $0x2f0] sm:$0xff]
  %v3941 = vld [vmem:[#allocation6 + $0x2f8] sm:$0xff]
  %v3942 = vld [vmem:[#allocation6 + $0x300] sm:$0xff]
  %v3943 = vld [vmem:[#allocation6 + $0x308] sm:$0xff]
  %v3944 = vld [vmem:[#allocation6 + $0x310] sm:$0xff]
  %v3945 = vld [vmem:[#allocation6 + $0x318] sm:$0xff]
  %v3946 = vld [vmem:[#allocation6 + $0x320] sm:$0xff]
  %v3947 = vld [vmem:[#allocation6 + $0x328] sm:$0xff]
  %v3948 = vld [vmem:[#allocation6 + $0x330] sm:$0xff]
  %v3949 = vld [vmem:[#allocation6 + $0x338] sm:$0xff]
  %v3950 = vld [vmem:[#allocation6 + $0x340] sm:$0xff]
  %v3951 = vld [vmem:[#allocation6 + $0x348] sm:$0xff]
  %v3952 = vld [vmem:[#allocation6 + $0x350] sm:$0xff]
  %v3953 = vld [vmem:[#allocation6 + $0x358] sm:$0xff]
  %v3954 = vld [vmem:[#allocation6 + $0x360] sm:$0xff]
  %v3955 = vld [vmem:[#allocation6 + $0x368] sm:$0xff]
  %v3956 = vld [vmem:[#allocation6 + $0x370] sm:$0xff]
  %v3957 = vld [vmem:[#allocation6 + $0x378] sm:$0xff]
  %v3958 = vld [vmem:[#allocation6 + $0x380] sm:$0xff]
  %v3959 = vld [vmem:[#allocation6 + $0x388] sm:$0xff]
  %v3960 = vld [vmem:[#allocation6 + $0x390] sm:$0xff]
  %v3961 = vld [vmem:[#allocation6 + $0x398] sm:$0xff]
  %v3962 = vld [vmem:[#allocation6 + $0x3a0] sm:$0xff]
  %v3963 = vld [vmem:[#allocation6 + $0x3a8] sm:$0xff]
  %v3964 = vld [vmem:[#allocation6 + $0x3b0] sm:$0xff]
  %v3965 = vld [vmem:[#allocation6 + $0x3b8] sm:$0xff]
  %v3966 = vld [vmem:[#allocation6 + $0x3c0] sm:$0xff]
  %v3967 = vld [vmem:[#allocation6 + $0x3c8] sm:$0xff]
  %v3968 = vld [vmem:[#allocation6 + $0x3d0] sm:$0xff]
  %v3969 = vld [vmem:[#allocation6 + $0x3d8] sm:$0xff]
  %v3970 = vld [vmem:[#allocation6 + $0x3e0] sm:$0xff]
  %v3971 = vld [vmem:[#allocation6 + $0x3e8] sm:$0xff]
  %v3972 = vld [vmem:[#allocation6 + $0x3f0] sm:$0xff]
  %v3973 = vld [vmem:[#allocation6 + $0x3f8] sm:$0xff]
  %v3974 = vld [vmem:[%s15] sm:$0xff]
  %v3975 = vld [vmem:[%s15 + $0x8] sm:$0xff]
  %v3976 = vld [vmem:[%s15 + $0x10] sm:$0xff]
  %v3977 = vld [vmem:[%s15 + $0x18] sm:$0xff]
  %v3978 = vld [vmem:[%s15 + $0x20] sm:$0xff]
  %v3979 = vld [vmem:[%s15 + $0x28] sm:$0xff]
  %v3980 = vld [vmem:[%s15 + $0x30] sm:$0xff]
  %v3981 = vld [vmem:[%s15 + $0x38] sm:$0xff]
  %v3982 = vld [vmem:[%s15 + $0x40] sm:$0xff]
  %v3983 = vld [vmem:[%s15 + $0x48] sm:$0xff]
  %v3984 = vld [vmem:[%s15 + $0x50] sm:$0xff]
  %v3985 = vld [vmem:[%s15 + $0x58] sm:$0xff]
  %v3986 = vld [vmem:[%s15 + $0x60] sm:$0xff]
  %v3987 = vld [vmem:[%s15 + $0x68] sm:$0xff]
  %v3988 = vld [vmem:[%s15 + $0x70] sm:$0xff]
  %v3989 = vld [vmem:[%s15 + $0x78] sm:$0xff]
  %v3990 = vld [vmem:[%s16] sm:$0x1]
  %v3992 = vperm.slane %v3990, 0
  %3994 = vmatpush.msra.mxu0 %v3989
  %3995 = vmatpush.msra.mxu0 %v3988
  %3996 = vmatpush.msra.mxu0 %v3987
  %3997 = vmatpush.msra.mxu0 %v3986
  %3998 = vmatpush.msra.mxu0 %v3985
  %3999 = vmatpush.msra.mxu0 %v3984
  %4000 = vmatpush.msra.mxu0 %v3983
  %4001 = vmatpush.msra.mxu0 %v3982
  %4002 = vmatpush.msra.mxu0 %v3981
  %4003 = vmatpush.msra.mxu0 %v3980
  %4004 = vmatpush.msra.mxu0 %v3979
  %4005 = vmatpush.msra.mxu0 %v3978
  %4006 = vmatpush.msra.mxu0 %v3977
  %4007 = vmatpush.msra.mxu0 %v3976
  %4008 = vmatpush.msra.mxu0 %v3975
  %4009 = vmatpush.msra.mxu0 %v3974
  %4010 = vmatmul.f32.gmra.mxu0 %v3846
  %v4011 = vpop.f32.mrf.mxu0
  %v4012 = vadd.f32 %v3992, %v4011
  %4013 = vmatmul.f32.gmra.mxu0 %v3847
  %v4014 = vpop.f32.mrf.mxu0
  %v4015 = vadd.f32 %v3992, %v4014
  %4016 = vmatmul.f32.gmra.mxu0 %v3848
  %v4017 = vpop.f32.mrf.mxu0
  %v4018 = vadd.f32 %v3992, %v4017
  %4019 = vmatmul.f32.gmra.mxu0 %v3849
  %v4020 = vpop.f32.mrf.mxu0
  %v4021 = vadd.f32 %v3992, %v4020
  %4022 = vmatmul.f32.gmra.mxu0 %v3850
  %v4023 = vpop.f32.mrf.mxu0
  %v4024 = vadd.f32 %v3992, %v4023
  %4025 = vmatmul.f32.gmra.mxu0 %v3851
  %v4026 = vpop.f32.mrf.mxu0
  %v4027 = vadd.f32 %v3992, %v4026
  %4028 = vmatmul.f32.gmra.mxu0 %v3852
  %v4029 = vpop.f32.mrf.mxu0
  %v4030 = vadd.f32 %v3992, %v4029
  %4031 = vmatmul.f32.gmra.mxu0 %v3853
  %v4032 = vpop.f32.mrf.mxu0
  %v4033 = vadd.f32 %v3992, %v4032
  %4034 = vmatmul.f32.gmra.mxu0 %v3854
  %v4035 = vpop.f32.mrf.mxu0
  %v4036 = vadd.f32 %v3992, %v4035
  %4037 = vmatmul.f32.gmra.mxu0 %v3855
  %v4038 = vpop.f32.mrf.mxu0
  %v4039 = vadd.f32 %v3992, %v4038
  %4040 = vmatmul.f32.gmra.mxu0 %v3856
  %v4041 = vpop.f32.mrf.mxu0
  %v4042 = vadd.f32 %v3992, %v4041
  %4043 = vmatmul.f32.gmra.mxu0 %v3857
  %v4044 = vpop.f32.mrf.mxu0
  %v4045 = vadd.f32 %v3992, %v4044
  %4046 = vmatmul.f32.gmra.mxu0 %v3858
  %v4047 = vpop.f32.mrf.mxu0
  %v4048 = vadd.f32 %v3992, %v4047
  %4049 = vmatmul.f32.gmra.mxu0 %v3859
  %v4050 = vpop.f32.mrf.mxu0
  %v4051 = vadd.f32 %v3992, %v4050
  %4052 = vmatmul.f32.gmra.mxu0 %v3860
  %v4053 = vpop.f32.mrf.mxu0
  %v4054 = vadd.f32 %v3992, %v4053
  %4055 = vmatmul.f32.gmra.mxu0 %v3861
  %v4056 = vpop.f32.mrf.mxu0
  %v4057 = vadd.f32 %v3992, %v4056
  %4058 = vmatmul.f32.gmra.mxu0 %v3862
  %v4059 = vpop.f32.mrf.mxu0
  %v4060 = vadd.f32 %v3992, %v4059
  %4061 = vmatmul.f32.gmra.mxu0 %v3863
  %v4062 = vpop.f32.mrf.mxu0
  %v4063 = vadd.f32 %v3992, %v4062
  %4064 = vmatmul.f32.gmra.mxu0 %v3864
  %v4065 = vpop.f32.mrf.mxu0
  %v4066 = vadd.f32 %v3992, %v4065
  %4067 = vmatmul.f32.gmra.mxu0 %v3865
  %v4068 = vpop.f32.mrf.mxu0
  %v4069 = vadd.f32 %v3992, %v4068
  %4070 = vmatmul.f32.gmra.mxu0 %v3866
  %v4071 = vpop.f32.mrf.mxu0
  %v4072 = vadd.f32 %v3992, %v4071
  %4073 = vmatmul.f32.gmra.mxu0 %v3867
  %v4074 = vpop.f32.mrf.mxu0
  %v4075 = vadd.f32 %v3992, %v4074
  %4076 = vmatmul.f32.gmra.mxu0 %v3868
  %v4077 = vpop.f32.mrf.mxu0
  %v4078 = vadd.f32 %v3992, %v4077
  %4079 = vmatmul.f32.gmra.mxu0 %v3869
  %v4080 = vpop.f32.mrf.mxu0
  %v4081 = vadd.f32 %v3992, %v4080
  %4082 = vmatmul.f32.gmra.mxu0 %v3870
  %v4083 = vpop.f32.mrf.mxu0
  %v4084 = vadd.f32 %v3992, %v4083
  %4085 = vmatmul.f32.gmra.mxu0 %v3871
  %v4086 = vpop.f32.mrf.mxu0
  %v4087 = vadd.f32 %v3992, %v4086
  %4088 = vmatmul.f32.gmra.mxu0 %v3872
  %v4089 = vpop.f32.mrf.mxu0
  %v4090 = vadd.f32 %v3992, %v4089
  %4091 = vmatmul.f32.gmra.mxu0 %v3873
  %v4092 = vpop.f32.mrf.mxu0
  %v4093 = vadd.f32 %v3992, %v4092
  %4094 = vmatmul.f32.gmra.mxu0 %v3874
  %v4095 = vpop.f32.mrf.mxu0
  %v4096 = vadd.f32 %v3992, %v4095
  %4097 = vmatmul.f32.gmra.mxu0 %v3875
  %v4098 = vpop.f32.mrf.mxu0
  %v4099 = vadd.f32 %v3992, %v4098
  %4100 = vmatmul.f32.gmra.mxu0 %v3876
  %v4101 = vpop.f32.mrf.mxu0
  %v4102 = vadd.f32 %v3992, %v4101
  %4103 = vmatmul.f32.gmra.mxu0 %v3877
  %v4104 = vpop.f32.mrf.mxu0
  %v4105 = vadd.f32 %v3992, %v4104
  %4106 = vmatmul.f32.gmra.mxu0 %v3878
  %v4107 = vpop.f32.mrf.mxu0
  %v4108 = vadd.f32 %v3992, %v4107
  %4109 = vmatmul.f32.gmra.mxu0 %v3879
  %v4110 = vpop.f32.mrf.mxu0
  %v4111 = vadd.f32 %v3992, %v4110
  %4112 = vmatmul.f32.gmra.mxu0 %v3880
  %v4113 = vpop.f32.mrf.mxu0
  %v4114 = vadd.f32 %v3992, %v4113
  %4115 = vmatmul.f32.gmra.mxu0 %v3881
  %v4116 = vpop.f32.mrf.mxu0
  %v4117 = vadd.f32 %v3992, %v4116
  %4118 = vmatmul.f32.gmra.mxu0 %v3882
  %v4119 = vpop.f32.mrf.mxu0
  %v4120 = vadd.f32 %v3992, %v4119
  %4121 = vmatmul.f32.gmra.mxu0 %v3883
  %v4122 = vpop.f32.mrf.mxu0
  %v4123 = vadd.f32 %v3992, %v4122
  %4124 = vmatmul.f32.gmra.mxu0 %v3884
  %v4125 = vpop.f32.mrf.mxu0
  %v4126 = vadd.f32 %v3992, %v4125
  %4127 = vmatmul.f32.gmra.mxu0 %v3885
  %v4128 = vpop.f32.mrf.mxu0
  %v4129 = vadd.f32 %v3992, %v4128
  %4130 = vmatmul.f32.gmra.mxu0 %v3886
  %v4131 = vpop.f32.mrf.mxu0
  %v4132 = vadd.f32 %v3992, %v4131
  %4133 = vmatmul.f32.gmra.mxu0 %v3887
  %v4134 = vpop.f32.mrf.mxu0
  %v4135 = vadd.f32 %v3992, %v4134
  %4136 = vmatmul.f32.gmra.mxu0 %v3888
  %v4137 = vpop.f32.mrf.mxu0
  %v4138 = vadd.f32 %v3992, %v4137
  %4139 = vmatmul.f32.gmra.mxu0 %v3889
  %v4140 = vpop.f32.mrf.mxu0
  %v4141 = vadd.f32 %v3992, %v4140
  %4142 = vmatmul.f32.gmra.mxu0 %v3890
  %v4143 = vpop.f32.mrf.mxu0
  %v4144 = vadd.f32 %v3992, %v4143
  %4145 = vmatmul.f32.gmra.mxu0 %v3891
  %v4146 = vpop.f32.mrf.mxu0
  %v4147 = vadd.f32 %v3992, %v4146
  %4148 = vmatmul.f32.gmra.mxu0 %v3892
  %v4149 = vpop.f32.mrf.mxu0
  %v4150 = vadd.f32 %v3992, %v4149
  %4151 = vmatmul.f32.gmra.mxu0 %v3893
  %v4152 = vpop.f32.mrf.mxu0
  %v4153 = vadd.f32 %v3992, %v4152
  %4154 = vmatmul.f32.gmra.mxu0 %v3894
  %v4155 = vpop.f32.mrf.mxu0
  %v4156 = vadd.f32 %v3992, %v4155
  %4157 = vmatmul.f32.gmra.mxu0 %v3895
  %v4158 = vpop.f32.mrf.mxu0
  %v4159 = vadd.f32 %v3992, %v4158
  %4160 = vmatmul.f32.gmra.mxu0 %v3896
  %v4161 = vpop.f32.mrf.mxu0
  %v4162 = vadd.f32 %v3992, %v4161
  %4163 = vmatmul.f32.gmra.mxu0 %v3897
  %v4164 = vpop.f32.mrf.mxu0
  %v4165 = vadd.f32 %v3992, %v4164
  %4166 = vmatmul.f32.gmra.mxu0 %v3898
  %v4167 = vpop.f32.mrf.mxu0
  %v4168 = vadd.f32 %v3992, %v4167
  %4169 = vmatmul.f32.gmra.mxu0 %v3899
  %v4170 = vpop.f32.mrf.mxu0
  %v4171 = vadd.f32 %v3992, %v4170
  %4172 = vmatmul.f32.gmra.mxu0 %v3900
  %v4173 = vpop.f32.mrf.mxu0
  %v4174 = vadd.f32 %v3992, %v4173
  %4175 = vmatmul.f32.gmra.mxu0 %v3901
  %v4176 = vpop.f32.mrf.mxu0
  %v4177 = vadd.f32 %v3992, %v4176
  %4178 = vmatmul.f32.gmra.mxu0 %v3902
  %v4179 = vpop.f32.mrf.mxu0
  %v4180 = vadd.f32 %v3992, %v4179
  %4181 = vmatmul.f32.gmra.mxu0 %v3903
  %v4182 = vpop.f32.mrf.mxu0
  %v4183 = vadd.f32 %v3992, %v4182
  %4184 = vmatmul.f32.gmra.mxu0 %v3904
  %v4185 = vpop.f32.mrf.mxu0
  %v4186 = vadd.f32 %v3992, %v4185
  %4187 = vmatmul.f32.gmra.mxu0 %v3905
  %v4188 = vpop.f32.mrf.mxu0
  %v4189 = vadd.f32 %v3992, %v4188
  %4190 = vmatmul.f32.gmra.mxu0 %v3906
  %v4191 = vpop.f32.mrf.mxu0
  %v4192 = vadd.f32 %v3992, %v4191
  %4193 = vmatmul.f32.gmra.mxu0 %v3907
  %v4194 = vpop.f32.mrf.mxu0
  %v4195 = vadd.f32 %v3992, %v4194
  %4196 = vmatmul.f32.gmra.mxu0 %v3908
  %v4197 = vpop.f32.mrf.mxu0
  %v4198 = vadd.f32 %v3992, %v4197
  %4199 = vmatmul.f32.gmra.mxu0 %v3909
  %v4200 = vpop.f32.mrf.mxu0
  %v4201 = vadd.f32 %v3992, %v4200
  %4202 = vmatmul.f32.gmra.mxu0 %v3910
  %v4203 = vpop.f32.mrf.mxu0
  %v4204 = vadd.f32 %v3992, %v4203
  %4205 = vmatmul.f32.gmra.mxu0 %v3911
  %v4206 = vpop.f32.mrf.mxu0
  %v4207 = vadd.f32 %v3992, %v4206
  %4208 = vmatmul.f32.gmra.mxu0 %v3912
  %v4209 = vpop.f32.mrf.mxu0
  %v4210 = vadd.f32 %v3992, %v4209
  %4211 = vmatmul.f32.gmra.mxu0 %v3913
  %v4212 = vpop.f32.mrf.mxu0
  %v4213 = vadd.f32 %v3992, %v4212
  %4214 = vmatmul.f32.gmra.mxu0 %v3914
  %v4215 = vpop.f32.mrf.mxu0
  %v4216 = vadd.f32 %v3992, %v4215
  %4217 = vmatmul.f32.gmra.mxu0 %v3915
  %v4218 = vpop.f32.mrf.mxu0
  %v4219 = vadd.f32 %v3992, %v4218
  %4220 = vmatmul.f32.gmra.mxu0 %v3916
  %v4221 = vpop.f32.mrf.mxu0
  %v4222 = vadd.f32 %v3992, %v4221
  %4223 = vmatmul.f32.gmra.mxu0 %v3917
  %v4224 = vpop.f32.mrf.mxu0
  %v4225 = vadd.f32 %v3992, %v4224
  %4226 = vmatmul.f32.gmra.mxu0 %v3918
  %v4227 = vpop.f32.mrf.mxu0
  %v4228 = vadd.f32 %v3992, %v4227
  %4229 = vmatmul.f32.gmra.mxu0 %v3919
  %v4230 = vpop.f32.mrf.mxu0
  %v4231 = vadd.f32 %v3992, %v4230
  %4232 = vmatmul.f32.gmra.mxu0 %v3920
  %v4233 = vpop.f32.mrf.mxu0
  %v4234 = vadd.f32 %v3992, %v4233
  %4235 = vmatmul.f32.gmra.mxu0 %v3921
  %v4236 = vpop.f32.mrf.mxu0
  %v4237 = vadd.f32 %v3992, %v4236
  %4238 = vmatmul.f32.gmra.mxu0 %v3922
  %v4239 = vpop.f32.mrf.mxu0
  %v4240 = vadd.f32 %v3992, %v4239
  %4241 = vmatmul.f32.gmra.mxu0 %v3923
  %v4242 = vpop.f32.mrf.mxu0
  %v4243 = vadd.f32 %v3992, %v4242
  %4244 = vmatmul.f32.gmra.mxu0 %v3924
  %v4245 = vpop.f32.mrf.mxu0
  %v4246 = vadd.f32 %v3992, %v4245
  %4247 = vmatmul.f32.gmra.mxu0 %v3925
  %v4248 = vpop.f32.mrf.mxu0
  %v4249 = vadd.f32 %v3992, %v4248
  %4250 = vmatmul.f32.gmra.mxu0 %v3926
  %v4251 = vpop.f32.mrf.mxu0
  %v4252 = vadd.f32 %v3992, %v4251
  %4253 = vmatmul.f32.gmra.mxu0 %v3927
  %v4254 = vpop.f32.mrf.mxu0
  %v4255 = vadd.f32 %v3992, %v4254
  %4256 = vmatmul.f32.gmra.mxu0 %v3928
  %v4257 = vpop.f32.mrf.mxu0
  %v4258 = vadd.f32 %v3992, %v4257
  %4259 = vmatmul.f32.gmra.mxu0 %v3929
  %v4260 = vpop.f32.mrf.mxu0
  %v4261 = vadd.f32 %v3992, %v4260
  %4262 = vmatmul.f32.gmra.mxu0 %v3930
  %v4263 = vpop.f32.mrf.mxu0
  %v4264 = vadd.f32 %v3992, %v4263
  %4265 = vmatmul.f32.gmra.mxu0 %v3931
  %v4266 = vpop.f32.mrf.mxu0
  %v4267 = vadd.f32 %v3992, %v4266
  %4268 = vmatmul.f32.gmra.mxu0 %v3932
  %v4269 = vpop.f32.mrf.mxu0
  %v4270 = vadd.f32 %v3992, %v4269
  %4271 = vmatmul.f32.gmra.mxu0 %v3933
  %v4272 = vpop.f32.mrf.mxu0
  %v4273 = vadd.f32 %v3992, %v4272
  %4274 = vmatmul.f32.gmra.mxu0 %v3934
  %v4275 = vpop.f32.mrf.mxu0
  %v4276 = vadd.f32 %v3992, %v4275
  %4277 = vmatmul.f32.gmra.mxu0 %v3935
  %v4278 = vpop.f32.mrf.mxu0
  %v4279 = vadd.f32 %v3992, %v4278
  %4280 = vmatmul.f32.gmra.mxu0 %v3936
  %v4281 = vpop.f32.mrf.mxu0
  %v4282 = vadd.f32 %v3992, %v4281
  %4283 = vmatmul.f32.gmra.mxu0 %v3937
  %v4284 = vpop.f32.mrf.mxu0
  %v4285 = vadd.f32 %v3992, %v4284
  %4286 = vmatmul.f32.gmra.mxu0 %v3938
  %v4287 = vpop.f32.mrf.mxu0
  %v4288 = vadd.f32 %v3992, %v4287
  %4289 = vmatmul.f32.gmra.mxu0 %v3939
  %v4290 = vpop.f32.mrf.mxu0
  %v4291 = vadd.f32 %v3992, %v4290
  %4292 = vmatmul.f32.gmra.mxu0 %v3940
  %v4293 = vpop.f32.mrf.mxu0
  %v4294 = vadd.f32 %v3992, %v4293
  %4295 = vmatmul.f32.gmra.mxu0 %v3941
  %v4296 = vpop.f32.mrf.mxu0
  %v4297 = vadd.f32 %v3992, %v4296
  %4298 = vmatmul.f32.gmra.mxu0 %v3942
  %v4299 = vpop.f32.mrf.mxu0
  %v4300 = vadd.f32 %v3992, %v4299
  %4301 = vmatmul.f32.gmra.mxu0 %v3943
  %v4302 = vpop.f32.mrf.mxu0
  %v4303 = vadd.f32 %v3992, %v4302
  %4304 = vmatmul.f32.gmra.mxu0 %v3944
  %v4305 = vpop.f32.mrf.mxu0
  %v4306 = vadd.f32 %v3992, %v4305
  %4307 = vmatmul.f32.gmra.mxu0 %v3945
  %v4308 = vpop.f32.mrf.mxu0
  %v4309 = vadd.f32 %v3992, %v4308
  %4310 = vmatmul.f32.gmra.mxu0 %v3946
  %v4311 = vpop.f32.mrf.mxu0
  %v4312 = vadd.f32 %v3992, %v4311
  %4313 = vmatmul.f32.gmra.mxu0 %v3947
  %v4314 = vpop.f32.mrf.mxu0
  %v4315 = vadd.f32 %v3992, %v4314
  %4316 = vmatmul.f32.gmra.mxu0 %v3948
  %v4317 = vpop.f32.mrf.mxu0
  %v4318 = vadd.f32 %v3992, %v4317
  %4319 = vmatmul.f32.gmra.mxu0 %v3949
  %v4320 = vpop.f32.mrf.mxu0
  %v4321 = vadd.f32 %v3992, %v4320
  %4322 = vmatmul.f32.gmra.mxu0 %v3950
  %v4323 = vpop.f32.mrf.mxu0
  %v4324 = vadd.f32 %v3992, %v4323
  %4325 = vmatmul.f32.gmra.mxu0 %v3951
  %v4326 = vpop.f32.mrf.mxu0
  %v4327 = vadd.f32 %v3992, %v4326
  %4328 = vmatmul.f32.gmra.mxu0 %v3952
  %v4329 = vpop.f32.mrf.mxu0
  %v4330 = vadd.f32 %v3992, %v4329
  %4331 = vmatmul.f32.gmra.mxu0 %v3953
  %v4332 = vpop.f32.mrf.mxu0
  %v4333 = vadd.f32 %v3992, %v4332
  %4334 = vmatmul.f32.gmra.mxu0 %v3954
  %v4335 = vpop.f32.mrf.mxu0
  %v4336 = vadd.f32 %v3992, %v4335
  %4337 = vmatmul.f32.gmra.mxu0 %v3955
  %v4338 = vpop.f32.mrf.mxu0
  %v4339 = vadd.f32 %v3992, %v4338
  %4340 = vmatmul.f32.gmra.mxu0 %v3956
  %v4341 = vpop.f32.mrf.mxu0
  %v4342 = vadd.f32 %v3992, %v4341
  %4343 = vmatmul.f32.gmra.mxu0 %v3957
  %v4344 = vpop.f32.mrf.mxu0
  %v4345 = vadd.f32 %v3992, %v4344
  %4346 = vmatmul.f32.gmra.mxu0 %v3958
  %v4347 = vpop.f32.mrf.mxu0
  %v4348 = vadd.f32 %v3992, %v4347
  %4349 = vmatmul.f32.gmra.mxu0 %v3959
  %v4350 = vpop.f32.mrf.mxu0
  %v4351 = vadd.f32 %v3992, %v4350
  %4352 = vmatmul.f32.gmra.mxu0 %v3960
  %v4353 = vpop.f32.mrf.mxu0
  %v4354 = vadd.f32 %v3992, %v4353
  %4355 = vmatmul.f32.gmra.mxu0 %v3961
  %v4356 = vpop.f32.mrf.mxu0
  %v4357 = vadd.f32 %v3992, %v4356
  %4358 = vmatmul.f32.gmra.mxu0 %v3962
  %v4359 = vpop.f32.mrf.mxu0
  %v4360 = vadd.f32 %v3992, %v4359
  %4361 = vmatmul.f32.gmra.mxu0 %v3963
  %v4362 = vpop.f32.mrf.mxu0
  %v4363 = vadd.f32 %v3992, %v4362
  %4364 = vmatmul.f32.gmra.mxu0 %v3964
  %v4365 = vpop.f32.mrf.mxu0
  %v4366 = vadd.f32 %v3992, %v4365
  %4367 = vmatmul.f32.gmra.mxu0 %v3965
  %v4368 = vpop.f32.mrf.mxu0
  %v4369 = vadd.f32 %v3992, %v4368
  %4370 = vmatmul.f32.gmra.mxu0 %v3966
  %v4371 = vpop.f32.mrf.mxu0
  %v4372 = vadd.f32 %v3992, %v4371
  %4373 = vmatmul.f32.gmra.mxu0 %v3967
  %v4374 = vpop.f32.mrf.mxu0
  %v4375 = vadd.f32 %v3992, %v4374
  %4376 = vmatmul.f32.gmra.mxu0 %v3968
  %v4377 = vpop.f32.mrf.mxu0
  %v4378 = vadd.f32 %v3992, %v4377
  %4379 = vmatmul.f32.gmra.mxu0 %v3969
  %v4380 = vpop.f32.mrf.mxu0
  %v4381 = vadd.f32 %v3992, %v4380
  %4382 = vmatmul.f32.gmra.mxu0 %v3970
  %v4383 = vpop.f32.mrf.mxu0
  %v4384 = vadd.f32 %v3992, %v4383
  %4385 = vmatmul.f32.gmra.mxu0 %v3971
  %v4386 = vpop.f32.mrf.mxu0
  %v4387 = vadd.f32 %v3992, %v4386
  %4388 = vmatmul.f32.gmra.mxu0 %v3972
  %v4389 = vpop.f32.mrf.mxu0
  %v4390 = vadd.f32 %v3992, %v4389
  %4391 = vmatmul.f32.gmra.mxu0 %v3973
  %v4392 = vpop.f32.mrf.mxu0
  %v4393 = vadd.f32 %v3992, %v4392
  %4394 = vdwg.mxu0
  %s4395 = scalar_lea.vmem %s876, 672 [#allocation2]
  %v4396 = vld [vmem:[%s4395 + $0xc] sm:$0xff]
  %v4397 = vld [vmem:[%s4395 + $0x14] sm:$0xff]
  %v4398 = vld [vmem:[%s4395 + $0x1c] sm:$0xff]
  %v4399 = vld [vmem:[%s4395 + $0x24] sm:$0xff]
  %v4400 = vld [vmem:[%s4395 + $0x44] sm:$0xff]
  %v4401 = vld [vmem:[%s4395 + $0x4c] sm:$0xff]
  %v4402 = vld [vmem:[%s4395 + $0x54] sm:$0xff]
  %v4403 = vld [vmem:[%s4395 + $0x5c] sm:$0xff]
  %v4404 = vld [vmem:[%s4395 + $0x7c] sm:$0xff]
  %v4405 = vld [vmem:[%s4395 + $0x84] sm:$0xff]
  %v4406 = vld [vmem:[%s4395 + $0x8c] sm:$0xff]
  %v4407 = vld [vmem:[%s4395 + $0x94] sm:$0xff]
  %v4408 = vld [vmem:[%s4395 + $0xb4] sm:$0xff]
  %v4409 = vld [vmem:[%s4395 + $0xbc] sm:$0xff]
  %v4410 = vld [vmem:[%s4395 + $0xc4] sm:$0xff]
  %v4411 = vld [vmem:[%s4395 + $0xcc] sm:$0xff]
  %v4412 = vld [vmem:[%s4395 + $0xec] sm:$0xff]
  %v4413 = vld [vmem:[%s4395 + $0xf4] sm:$0xff]
  %v4414 = vld [vmem:[%s4395 + $0xfc] sm:$0xff]
  %v4415 = vld [vmem:[%s4395 + $0x104] sm:$0xff]
  %v4416 = vld [vmem:[%s4395 + $0x124] sm:$0xff]
  %v4417 = vld [vmem:[%s4395 + $0x12c] sm:$0xff]
  %v4418 = vld [vmem:[%s4395 + $0x134] sm:$0xff]
  %v4419 = vld [vmem:[%s4395 + $0x13c] sm:$0xff]
  %v4420 = vld [vmem:[%s4395 + $0x15c] sm:$0xff]
  %v4421 = vld [vmem:[%s4395 + $0x164] sm:$0xff]
  %v4422 = vld [vmem:[%s4395 + $0x16c] sm:$0xff]
  %v4423 = vld [vmem:[%s4395 + $0x174] sm:$0xff]
  %v4424 = vld [vmem:[%s4395 + $0x194] sm:$0xff]
  %v4425 = vld [vmem:[%s4395 + $0x19c] sm:$0xff]
  %v4426 = vld [vmem:[%s4395 + $0x1a4] sm:$0xff]
  %v4427 = vld [vmem:[%s4395 + $0x1ac] sm:$0xff]
  %v4428 = vld [vmem:[%s4395 + $0x1cc] sm:$0xff]
  %v4429 = vld [vmem:[%s4395 + $0x1d4] sm:$0xff]
  %v4430 = vld [vmem:[%s4395 + $0x1dc] sm:$0xff]
  %v4431 = vld [vmem:[%s4395 + $0x1e4] sm:$0xff]
  %v4432 = vld [vmem:[%s4395 + $0x204] sm:$0xff]
  %v4433 = vld [vmem:[%s4395 + $0x20c] sm:$0xff]
  %v4434 = vld [vmem:[%s4395 + $0x214] sm:$0xff]
  %v4435 = vld [vmem:[%s4395 + $0x21c] sm:$0xff]
  %v4436 = vld [vmem:[%s4395 + $0x23c] sm:$0xff]
  %v4437 = vld [vmem:[%s4395 + $0x244] sm:$0xff]
  %v4438 = vld [vmem:[%s4395 + $0x24c] sm:$0xff]
  %v4439 = vld [vmem:[%s4395 + $0x254] sm:$0xff]
  %v4440 = vld [vmem:[%s4395 + $0x274] sm:$0xff]
  %v4441 = vld [vmem:[%s4395 + $0x27c] sm:$0xff]
  %v4442 = vld [vmem:[%s4395 + $0x284] sm:$0xff]
  %v4443 = vld [vmem:[%s4395 + $0x28c] sm:$0xff]
  %v4444 = vld [vmem:[%s4395 + $0x2ac] sm:$0xff]
  %v4445 = vld [vmem:[%s4395 + $0x2b4] sm:$0xff]
  %v4446 = vld [vmem:[%s4395 + $0x2bc] sm:$0xff]
  %v4447 = vld [vmem:[%s4395 + $0x2c4] sm:$0xff]
  %v4448 = vld [vmem:[%s4395 + $0x2e4] sm:$0xff]
  %v4449 = vld [vmem:[%s4395 + $0x2ec] sm:$0xff]
  %v4450 = vld [vmem:[%s4395 + $0x2f4] sm:$0xff]
  %v4451 = vld [vmem:[%s4395 + $0x2fc] sm:$0xff]
  %v4452 = vld [vmem:[%s4395 + $0x31c] sm:$0xff]
  %v4453 = vld [vmem:[%s4395 + $0x324] sm:$0xff]
  %v4454 = vld [vmem:[%s4395 + $0x32c] sm:$0xff]
  %v4455 = vld [vmem:[%s4395 + $0x334] sm:$0xff]
  %v4456 = vld [vmem:[%s4395 + $0x354] sm:$0xff]
  %v4457 = vld [vmem:[%s4395 + $0x35c] sm:$0xff]
  %v4458 = vld [vmem:[%s4395 + $0x364] sm:$0xff]
  %v4459 = vld [vmem:[%s4395 + $0x36c] sm:$0xff]
  %v4460 = vld [vmem:[%s4395 + $0x38c] sm:$0xff]
  %v4461 = vld [vmem:[%s4395 + $0x394] sm:$0xff]
  %v4462 = vld [vmem:[%s4395 + $0x39c] sm:$0xff]
  %v4463 = vld [vmem:[%s4395 + $0x3a4] sm:$0xff]
  %v4464 = vld [vmem:[%s4395 + $0x3c4] sm:$0xff]
  %v4465 = vld [vmem:[%s4395 + $0x3cc] sm:$0xff]
  %v4466 = vld [vmem:[%s4395 + $0x3d4] sm:$0xff]
  %v4467 = vld [vmem:[%s4395 + $0x3dc] sm:$0xff]
  %v4468 = vld [vmem:[%s4395 + $0x3fc] sm:$0xff]
  %v4469 = vld [vmem:[%s4395 + $0x404] sm:$0xff]
  %v4470 = vld [vmem:[%s4395 + $0x40c] sm:$0xff]
  %v4471 = vld [vmem:[%s4395 + $0x414] sm:$0xff]
  %v4472 = vld [vmem:[%s4395 + $0x434] sm:$0xff]
  %v4473 = vld [vmem:[%s4395 + $0x43c] sm:$0xff]
  %v4474 = vld [vmem:[%s4395 + $0x444] sm:$0xff]
  %v4475 = vld [vmem:[%s4395 + $0x44c] sm:$0xff]
  %v4476 = vld [vmem:[%s4395 + $0x46c] sm:$0xff]
  %v4477 = vld [vmem:[%s4395 + $0x474] sm:$0xff]
  %v4478 = vld [vmem:[%s4395 + $0x47c] sm:$0xff]
  %v4479 = vld [vmem:[%s4395 + $0x484] sm:$0xff]
  %v4480 = vld [vmem:[%s4395 + $0x4a4] sm:$0xff]
  %v4481 = vld [vmem:[%s4395 + $0x4ac] sm:$0xff]
  %v4482 = vld [vmem:[%s4395 + $0x4b4] sm:$0xff]
  %v4483 = vld [vmem:[%s4395 + $0x4bc] sm:$0xff]
  %v4484 = vld [vmem:[%s4395 + $0x4dc] sm:$0xff]
  %v4485 = vld [vmem:[%s4395 + $0x4e4] sm:$0xff]
  %v4486 = vld [vmem:[%s4395 + $0x4ec] sm:$0xff]
  %v4487 = vld [vmem:[%s4395 + $0x4f4] sm:$0xff]
  %v4488 = vld [vmem:[%s4395 + $0x514] sm:$0xff]
  %v4489 = vld [vmem:[%s4395 + $0x51c] sm:$0xff]
  %v4490 = vld [vmem:[%s4395 + $0x524] sm:$0xff]
  %v4491 = vld [vmem:[%s4395 + $0x52c] sm:$0xff]
  %v4492 = vld [vmem:[%s4395 + $0x54c] sm:$0xff]
  %v4493 = vld [vmem:[%s4395 + $0x554] sm:$0xff]
  %v4494 = vld [vmem:[%s4395 + $0x55c] sm:$0xff]
  %v4495 = vld [vmem:[%s4395 + $0x564] sm:$0xff]
  %v4496 = vld [vmem:[%s4395 + $0x584] sm:$0xff]
  %v4497 = vld [vmem:[%s4395 + $0x58c] sm:$0xff]
  %v4498 = vld [vmem:[%s4395 + $0x594] sm:$0xff]
  %v4499 = vld [vmem:[%s4395 + $0x59c] sm:$0xff]
  %v4500 = vld [vmem:[%s4395 + $0x5bc] sm:$0xff]
  %v4501 = vld [vmem:[%s4395 + $0x5c4] sm:$0xff]
  %v4502 = vld [vmem:[%s4395 + $0x5cc] sm:$0xff]
  %v4503 = vld [vmem:[%s4395 + $0x5d4] sm:$0xff]
  %v4504 = vld [vmem:[%s4395 + $0x5f4] sm:$0xff]
  %v4505 = vld [vmem:[%s4395 + $0x5fc] sm:$0xff]
  %v4506 = vld [vmem:[%s4395 + $0x604] sm:$0xff]
  %v4507 = vld [vmem:[%s4395 + $0x60c] sm:$0xff]
  %v4508 = vld [vmem:[%s4395 + $0x62c] sm:$0xff]
  %v4509 = vld [vmem:[%s4395 + $0x634] sm:$0xff]
  %v4510 = vld [vmem:[%s4395 + $0x63c] sm:$0xff]
  %v4511 = vld [vmem:[%s4395 + $0x644] sm:$0xff]
  %v4512 = vld [vmem:[%s4395 + $0x664] sm:$0xff]
  %v4513 = vld [vmem:[%s4395 + $0x66c] sm:$0xff]
  %v4514 = vld [vmem:[%s4395 + $0x674] sm:$0xff]
  %v4515 = vld [vmem:[%s4395 + $0x67c] sm:$0xff]
  %v4516 = vld [vmem:[%s4395 + $0x69c] sm:$0xff]
  %v4517 = vld [vmem:[%s4395 + $0x6a4] sm:$0xff]
  %v4518 = vld [vmem:[%s4395 + $0x6ac] sm:$0xff]
  %v4519 = vld [vmem:[%s4395 + $0x6b4] sm:$0xff]
  %v4520 = vld [vmem:[%s4395 + $0x6d4] sm:$0xff]
  %v4521 = vld [vmem:[%s4395 + $0x6dc] sm:$0xff]
  %v4522 = vld [vmem:[%s4395 + $0x6e4] sm:$0xff]
  %v4523 = vld [vmem:[%s4395 + $0x6ec] sm:$0xff]
  %v4524 = vmul.f32 %v4012, %v4396
  %v4525 = vmul.f32 %v4015, %v4397
  %v4526 = vmul.f32 %v4018, %v4398
  %v4527 = vmul.f32 %v4021, %v4399
  %v4528 = vmul.f32 %v4024, %v4400
  %v4529 = vmul.f32 %v4027, %v4401
  %v4530 = vmul.f32 %v4030, %v4402
  %v4531 = vmul.f32 %v4033, %v4403
  %v4532 = vmul.f32 %v4036, %v4404
  %v4533 = vmul.f32 %v4039, %v4405
  %v4534 = vmul.f32 %v4042, %v4406
  %v4535 = vmul.f32 %v4045, %v4407
  %v4536 = vmul.f32 %v4048, %v4408
  %v4537 = vmul.f32 %v4051, %v4409
  %v4538 = vmul.f32 %v4054, %v4410
  %v4539 = vmul.f32 %v4057, %v4411
  %v4540 = vmul.f32 %v4060, %v4412
  %v4541 = vmul.f32 %v4063, %v4413
  %v4542 = vmul.f32 %v4066, %v4414
  %v4543 = vmul.f32 %v4069, %v4415
  %v4544 = vmul.f32 %v4072, %v4416
  %v4545 = vmul.f32 %v4075, %v4417
  %v4546 = vmul.f32 %v4078, %v4418
  %v4547 = vmul.f32 %v4081, %v4419
  %v4548 = vmul.f32 %v4084, %v4420
  %v4549 = vmul.f32 %v4087, %v4421
  %v4550 = vmul.f32 %v4090, %v4422
  %v4551 = vmul.f32 %v4093, %v4423
  %v4552 = vmul.f32 %v4096, %v4424
  %v4553 = vmul.f32 %v4099, %v4425
  %v4554 = vmul.f32 %v4102, %v4426
  %v4555 = vmul.f32 %v4105, %v4427
  %v4556 = vmul.f32 %v4108, %v4428
  %v4557 = vmul.f32 %v4111, %v4429
  %v4558 = vmul.f32 %v4114, %v4430
  %v4559 = vmul.f32 %v4117, %v4431
  %v4560 = vmul.f32 %v4120, %v4432
  %v4561 = vmul.f32 %v4123, %v4433
  %v4562 = vmul.f32 %v4126, %v4434
  %v4563 = vmul.f32 %v4129, %v4435
  %v4564 = vmul.f32 %v4132, %v4436
  %v4565 = vmul.f32 %v4135, %v4437
  %v4566 = vmul.f32 %v4138, %v4438
  %v4567 = vmul.f32 %v4141, %v4439
  %v4568 = vmul.f32 %v4144, %v4440
  %v4569 = vmul.f32 %v4147, %v4441
  %v4570 = vmul.f32 %v4150, %v4442
  %v4571 = vmul.f32 %v4153, %v4443
  %v4572 = vmul.f32 %v4156, %v4444
  %v4573 = vmul.f32 %v4159, %v4445
  %v4574 = vmul.f32 %v4162, %v4446
  %v4575 = vmul.f32 %v4165, %v4447
  %v4576 = vmul.f32 %v4168, %v4448
  %v4577 = vmul.f32 %v4171, %v4449
  %v4578 = vmul.f32 %v4174, %v4450
  %v4579 = vmul.f32 %v4177, %v4451
  %v4580 = vmul.f32 %v4180, %v4452
  %v4581 = vmul.f32 %v4183, %v4453
  %v4582 = vmul.f32 %v4186, %v4454
  %v4583 = vmul.f32 %v4189, %v4455
  %v4584 = vmul.f32 %v4192, %v4456
  %v4585 = vmul.f32 %v4195, %v4457
  %v4586 = vmul.f32 %v4198, %v4458
  %v4587 = vmul.f32 %v4201, %v4459
  %v4588 = vmul.f32 %v4204, %v4460
  %v4589 = vmul.f32 %v4207, %v4461
  %v4590 = vmul.f32 %v4210, %v4462
  %v4591 = vmul.f32 %v4213, %v4463
  %v4592 = vmul.f32 %v4216, %v4464
  %v4593 = vmul.f32 %v4219, %v4465
  %v4594 = vmul.f32 %v4222, %v4466
  %v4595 = vmul.f32 %v4225, %v4467
  %v4596 = vmul.f32 %v4228, %v4468
  %v4597 = vmul.f32 %v4231, %v4469
  %v4598 = vmul.f32 %v4234, %v4470
  %v4599 = vmul.f32 %v4237, %v4471
  %v4600 = vmul.f32 %v4240, %v4472
  %v4601 = vmul.f32 %v4243, %v4473
  %v4602 = vmul.f32 %v4246, %v4474
  %v4603 = vmul.f32 %v4249, %v4475
  %v4604 = vmul.f32 %v4252, %v4476
  %v4605 = vmul.f32 %v4255, %v4477
  %v4606 = vmul.f32 %v4258, %v4478
  %v4607 = vmul.f32 %v4261, %v4479
  %v4608 = vmul.f32 %v4264, %v4480
  %v4609 = vmul.f32 %v4267, %v4481
  %v4610 = vmul.f32 %v4270, %v4482
  %v4611 = vmul.f32 %v4273, %v4483
  %v4612 = vmul.f32 %v4276, %v4484
  %v4613 = vmul.f32 %v4279, %v4485
  %v4614 = vmul.f32 %v4282, %v4486
  %v4615 = vmul.f32 %v4285, %v4487
  %v4616 = vmul.f32 %v4288, %v4488
  %v4617 = vmul.f32 %v4291, %v4489
  %v4618 = vmul.f32 %v4294, %v4490
  %v4619 = vmul.f32 %v4297, %v4491
  %v4620 = vmul.f32 %v4300, %v4492
  %v4621 = vmul.f32 %v4303, %v4493
  %v4622 = vmul.f32 %v4306, %v4494
  %v4623 = vmul.f32 %v4309, %v4495
  %v4624 = vmul.f32 %v4312, %v4496
  %v4625 = vmul.f32 %v4315, %v4497
  %v4626 = vmul.f32 %v4318, %v4498
  %v4627 = vmul.f32 %v4321, %v4499
  %v4628 = vmul.f32 %v4324, %v4500
  %v4629 = vmul.f32 %v4327, %v4501
  %v4630 = vmul.f32 %v4330, %v4502
  %v4631 = vmul.f32 %v4333, %v4503
  %v4632 = vmul.f32 %v4336, %v4504
  %v4633 = vmul.f32 %v4339, %v4505
  %v4634 = vmul.f32 %v4342, %v4506
  %v4635 = vmul.f32 %v4345, %v4507
  %v4636 = vmul.f32 %v4348, %v4508
  %v4637 = vmul.f32 %v4351, %v4509
  %v4638 = vmul.f32 %v4354, %v4510
  %v4639 = vmul.f32 %v4357, %v4511
  %v4640 = vmul.f32 %v4360, %v4512
  %v4641 = vmul.f32 %v4363, %v4513
  %v4642 = vmul.f32 %v4366, %v4514
  %v4643 = vmul.f32 %v4369, %v4515
  %v4644 = vmul.f32 %v4372, %v4516
  %v4645 = vmul.f32 %v4375, %v4517
  %v4646 = vmul.f32 %v4378, %v4518
  %v4647 = vmul.f32 %v4381, %v4519
  %v4648 = vmul.f32 %v4384, %v4520
  %v4649 = vmul.f32 %v4387, %v4521
  %v4650 = vmul.f32 %v4390, %v4522
  %v4651 = vmul.f32 %v4393, %v4523
  %4652 = vst [vmem:[%s17] sm:$0xff] %v4524
  %4653 = vst [vmem:[%s17 + $0x8] sm:$0xff] %v4525
  %4654 = vst [vmem:[%s17 + $0x10] sm:$0xff] %v4526
  %4655 = vst [vmem:[%s17 + $0x18] sm:$0xff] %v4527
  %4656 = vst [vmem:[%s17 + $0x20] sm:$0xff] %v4528
  %4657 = vst [vmem:[%s17 + $0x28] sm:$0xff] %v4529
  %4658 = vst [vmem:[%s17 + $0x30] sm:$0xff] %v4530
  %4659 = vst [vmem:[%s17 + $0x38] sm:$0xff] %v4531
  %4660 = vst [vmem:[%s17 + $0x40] sm:$0xff] %v4532
  %4661 = vst [vmem:[%s17 + $0x48] sm:$0xff] %v4533
  %4662 = vst [vmem:[%s17 + $0x50] sm:$0xff] %v4534
  %4663 = vst [vmem:[%s17 + $0x58] sm:$0xff] %v4535
  %4664 = vst [vmem:[%s17 + $0x60] sm:$0xff] %v4536
  %4665 = vst [vmem:[%s17 + $0x68] sm:$0xff] %v4537
  %4666 = vst [vmem:[%s17 + $0x70] sm:$0xff] %v4538
  %4667 = vst [vmem:[%s17 + $0x78] sm:$0xff] %v4539
  %4668 = vst [vmem:[%s17 + $0x80] sm:$0xff] %v4540
  %4669 = vst [vmem:[%s17 + $0x88] sm:$0xff] %v4541
  %4670 = vst [vmem:[%s17 + $0x90] sm:$0xff] %v4542
  %4671 = vst [vmem:[%s17 + $0x98] sm:$0xff] %v4543
  %4672 = vst [vmem:[%s17 + $0xa0] sm:$0xff] %v4544
  %4673 = vst [vmem:[%s17 + $0xa8] sm:$0xff] %v4545
  %4674 = vst [vmem:[%s17 + $0xb0] sm:$0xff] %v4546
  %4675 = vst [vmem:[%s17 + $0xb8] sm:$0xff] %v4547
  %4676 = vst [vmem:[%s17 + $0xc0] sm:$0xff] %v4548
  %4677 = vst [vmem:[%s17 + $0xc8] sm:$0xff] %v4549
  %4678 = vst [vmem:[%s17 + $0xd0] sm:$0xff] %v4550
  %4679 = vst [vmem:[%s17 + $0xd8] sm:$0xff] %v4551
  %4680 = vst [vmem:[%s17 + $0xe0] sm:$0xff] %v4552
  %4681 = vst [vmem:[%s17 + $0xe8] sm:$0xff] %v4553
  %4682 = vst [vmem:[%s17 + $0xf0] sm:$0xff] %v4554
  %4683 = vst [vmem:[%s17 + $0xf8] sm:$0xff] %v4555
  %4684 = vst [vmem:[%s17 + $0x100] sm:$0xff] %v4556
  %4685 = vst [vmem:[%s17 + $0x108] sm:$0xff] %v4557
  %4686 = vst [vmem:[%s17 + $0x110] sm:$0xff] %v4558
  %4687 = vst [vmem:[%s17 + $0x118] sm:$0xff] %v4559
  %4688 = vst [vmem:[%s17 + $0x120] sm:$0xff] %v4560
  %4689 = vst [vmem:[%s17 + $0x128] sm:$0xff] %v4561
  %4690 = vst [vmem:[%s17 + $0x130] sm:$0xff] %v4562
  %4691 = vst [vmem:[%s17 + $0x138] sm:$0xff] %v4563
  %4692 = vst [vmem:[%s17 + $0x140] sm:$0xff] %v4564
  %4693 = vst [vmem:[%s17 + $0x148] sm:$0xff] %v4565
  %4694 = vst [vmem:[%s17 + $0x150] sm:$0xff] %v4566
  %4695 = vst [vmem:[%s17 + $0x158] sm:$0xff] %v4567
  %4696 = vst [vmem:[%s17 + $0x160] sm:$0xff] %v4568
  %4697 = vst [vmem:[%s17 + $0x168] sm:$0xff] %v4569
  %4698 = vst [vmem:[%s17 + $0x170] sm:$0xff] %v4570
  %4699 = vst [vmem:[%s17 + $0x178] sm:$0xff] %v4571
  %4700 = vst [vmem:[%s17 + $0x180] sm:$0xff] %v4572
  %4701 = vst [vmem:[%s17 + $0x188] sm:$0xff] %v4573
  %4702 = vst [vmem:[%s17 + $0x190] sm:$0xff] %v4574
  %4703 = vst [vmem:[%s17 + $0x198] sm:$0xff] %v4575
  %4704 = vst [vmem:[%s17 + $0x1a0] sm:$0xff] %v4576
  %4705 = vst [vmem:[%s17 + $0x1a8] sm:$0xff] %v4577
  %4706 = vst [vmem:[%s17 + $0x1b0] sm:$0xff] %v4578
  %4707 = vst [vmem:[%s17 + $0x1b8] sm:$0xff] %v4579
  %4708 = vst [vmem:[%s17 + $0x1c0] sm:$0xff] %v4580
  %4709 = vst [vmem:[%s17 + $0x1c8] sm:$0xff] %v4581
  %4710 = vst [vmem:[%s17 + $0x1d0] sm:$0xff] %v4582
  %4711 = vst [vmem:[%s17 + $0x1d8] sm:$0xff] %v4583
  %4712 = vst [vmem:[%s17 + $0x1e0] sm:$0xff] %v4584
  %4713 = vst [vmem:[%s17 + $0x1e8] sm:$0xff] %v4585
  %4714 = vst [vmem:[%s17 + $0x1f0] sm:$0xff] %v4586
  %4715 = vst [vmem:[%s17 + $0x1f8] sm:$0xff] %v4587
  %4716 = vst [vmem:[%s17 + $0x200] sm:$0xff] %v4588
  %4717 = vst [vmem:[%s17 + $0x208] sm:$0xff] %v4589
  %4718 = vst [vmem:[%s17 + $0x210] sm:$0xff] %v4590
  %4719 = vst [vmem:[%s17 + $0x218] sm:$0xff] %v4591
  %4720 = vst [vmem:[%s17 + $0x220] sm:$0xff] %v4592
  %4721 = vst [vmem:[%s17 + $0x228] sm:$0xff] %v4593
  %4722 = vst [vmem:[%s17 + $0x230] sm:$0xff] %v4594
  %4723 = vst [vmem:[%s17 + $0x238] sm:$0xff] %v4595
  %4724 = vst [vmem:[%s17 + $0x240] sm:$0xff] %v4596
  %4725 = vst [vmem:[%s17 + $0x248] sm:$0xff] %v4597
  %4726 = vst [vmem:[%s17 + $0x250] sm:$0xff] %v4598
  %4727 = vst [vmem:[%s17 + $0x258] sm:$0xff] %v4599
  %4728 = vst [vmem:[%s17 + $0x260] sm:$0xff] %v4600
  %4729 = vst [vmem:[%s17 + $0x268] sm:$0xff] %v4601
  %4730 = vst [vmem:[%s17 + $0x270] sm:$0xff] %v4602
  %4731 = vst [vmem:[%s17 + $0x278] sm:$0xff] %v4603
  %4732 = vst [vmem:[%s17 + $0x280] sm:$0xff] %v4604
  %4733 = vst [vmem:[%s17 + $0x288] sm:$0xff] %v4605
  %4734 = vst [vmem:[%s17 + $0x290] sm:$0xff] %v4606
  %4735 = vst [vmem:[%s17 + $0x298] sm:$0xff] %v4607
  %4736 = vst [vmem:[%s17 + $0x2a0] sm:$0xff] %v4608
  %4737 = vst [vmem:[%s17 + $0x2a8] sm:$0xff] %v4609
  %4738 = vst [vmem:[%s17 + $0x2b0] sm:$0xff] %v4610
  %4739 = vst [vmem:[%s17 + $0x2b8] sm:$0xff] %v4611
  %4740 = vst [vmem:[%s17 + $0x2c0] sm:$0xff] %v4612
  %4741 = vst [vmem:[%s17 + $0x2c8] sm:$0xff] %v4613
  %4742 = vst [vmem:[%s17 + $0x2d0] sm:$0xff] %v4614
  %4743 = vst [vmem:[%s17 + $0x2d8] sm:$0xff] %v4615
  %4744 = vst [vmem:[%s17 + $0x2e0] sm:$0xff] %v4616
  %4745 = vst [vmem:[%s17 + $0x2e8] sm:$0xff] %v4617
  %4746 = vst [vmem:[%s17 + $0x2f0] sm:$0xff] %v4618
  %4747 = vst [vmem:[%s17 + $0x2f8] sm:$0xff] %v4619
  %4748 = vst [vmem:[%s17 + $0x300] sm:$0xff] %v4620
  %4749 = vst [vmem:[%s17 + $0x308] sm:$0xff] %v4621
  %4750 = vst [vmem:[%s17 + $0x310] sm:$0xff] %v4622
  %4751 = vst [vmem:[%s17 + $0x318] sm:$0xff] %v4623
  %4752 = vst [vmem:[%s17 + $0x320] sm:$0xff] %v4624
  %4753 = vst [vmem:[%s17 + $0x328] sm:$0xff] %v4625
  %4754 = vst [vmem:[%s17 + $0x330] sm:$0xff] %v4626
  %4755 = vst [vmem:[%s17 + $0x338] sm:$0xff] %v4627
  %4756 = vst [vmem:[%s17 + $0x340] sm:$0xff] %v4628
  %4757 = vst [vmem:[%s17 + $0x348] sm:$0xff] %v4629
  %4758 = vst [vmem:[%s17 + $0x350] sm:$0xff] %v4630
  %4759 = vst [vmem:[%s17 + $0x358] sm:$0xff] %v4631
  %4760 = vst [vmem:[%s17 + $0x360] sm:$0xff] %v4632
  %4761 = vst [vmem:[%s17 + $0x368] sm:$0xff] %v4633
  %4762 = vst [vmem:[%s17 + $0x370] sm:$0xff] %v4634
  %4763 = vst [vmem:[%s17 + $0x378] sm:$0xff] %v4635
  %4764 = vst [vmem:[%s17 + $0x380] sm:$0xff] %v4636
  %4765 = vst [vmem:[%s17 + $0x388] sm:$0xff] %v4637
  %4766 = vst [vmem:[%s17 + $0x390] sm:$0xff] %v4638
  %4767 = vst [vmem:[%s17 + $0x398] sm:$0xff] %v4639
  %4768 = vst [vmem:[%s17 + $0x3a0] sm:$0xff] %v4640
  %4769 = vst [vmem:[%s17 + $0x3a8] sm:$0xff] %v4641
  %4770 = vst [vmem:[%s17 + $0x3b0] sm:$0xff] %v4642
  %4771 = vst [vmem:[%s17 + $0x3b8] sm:$0xff] %v4643
  %4772 = vst [vmem:[%s17 + $0x3c0] sm:$0xff] %v4644
  %4773 = vst [vmem:[%s17 + $0x3c8] sm:$0xff] %v4645
  %4774 = vst [vmem:[%s17 + $0x3d0] sm:$0xff] %v4646
  %4775 = vst [vmem:[%s17 + $0x3d8] sm:$0xff] %v4647
  %4776 = vst [vmem:[%s17 + $0x3e0] sm:$0xff] %v4648
  %4777 = vst [vmem:[%s17 + $0x3e8] sm:$0xff] %v4649
  %4778 = vst [vmem:[%s17 + $0x3f0] sm:$0xff] %v4650
  %4779 = vst [vmem:[%s17 + $0x3f8] sm:$0xff] %v4651
  // Predicated region
  $region161: #{_lambda_.1} parent=0 // pred_check
    _
  $region162: #{_lambda_.1} parent=0 // pred_check_branch
    %4781 = sbr.rel (0) target = $region164
  $region163: #{_lambda_.1} parent=0 // pred_region
    _
  $region164: #{_lambda_.1} parent=0 // pred_fallthru
    _
  // Predicated region
  $region165: #{_lambda_.1} parent=0 // pred_check
    _
  $region166: #{_lambda_.1} parent=0 // pred_check_branch
    %4783 = sbr.rel (0) target = $region168
  $region167: #{_lambda_.1} parent=0 // pred_region
    _
  $region168: #{_lambda_.1} parent=0 // pred_fallthru
    _
  %4784 = vsyncmov [#allocation3]
  %s4785 = vpop.sfrf %4784
  %p4786 = scmp.eq.s32.totalorder %s4785, 0
  %p4787 = pneg %p4786
  %4789 = shalt.err (%p4787)
  %s4790 = scalar_lea.sflag [#allocation3], 1
  %4791 = vsyncmov %s4790
  %s4792 = vpop.sfrf %4791
  %p4793 = scmp.eq.s32.totalorder %s4792, 0
  %p4794 = pneg %p4793
  %4796 = shalt.err (%p4794)

</llo_original>
